<compile_context>
chip_gen: v6e
topology: v6e:2x2x1
jax: 0.10.0
libtpu: 0.0.40
codegen_flags: <defaults>
</compile_context>

<pallas_src>
import functools

import jax
import jax.numpy as jnp
from jax.experimental import pallas as pl
from jax.experimental.pallas import tpu as pltpu


def _cross_attention_kernel(
    x1_ref,     # (TB, S,  d1)  f32
    x2_ref,     # (TB, S,  d2)  f32
    dir_ref,    # (TB, Sq, 3)   f32
    small_ref,  # (5, 2*D) f32: rows 0..2 = scaled wq rows (cols [:D]),
                #   row 3 = [scaled bq | bfc | 0...], row 4 = [bk | bv]
    wkv_ref,    # (D, 2*D)   matmul dtype: [wk | wv]
    wfc_ref,    # (D, D//2)  matmul dtype
    out_ref,    # (TB, Sq * D//2) f32  (lane-dense)
    *,
    num_heads: int,
    head_dim: int,
):
    tb, s, d1 = x1_ref.shape
    _, _, d2 = x2_ref.shape
    _, sq, _ = dir_ref.shape
    d_model = num_heads * head_dim
    d_out = wfc_ref.shape[1]
    hd = head_dim
    cdt = wkv_ref.dtype            # MXU operand dtype (bf16 on the perf path)

    # ---- projections on flattened (batch*seq, feat) rows.  S == 8 keeps the
    #      leading-dim merge sublane-aligned for f32; other S stay correct. ----
    x1 = x1_ref[...].reshape(tb * s, d1).astype(cdt)
    x2 = x2_ref[...].reshape(tb * s, d2).astype(cdt)
    dr = dir_ref[...].reshape(tb * sq, 3)

    wkv = wkv_ref[...]
    bkv = small_ref[4:5, :]                                    # (1, 2D) f32
    # K|V of cat(x1, x2) in one N=2*d_model matmul, without materializing the
    # concat (row-split weights), f32 accumulation.
    kv = (jnp.dot(x1, wkv[:d1], preferred_element_type=jnp.float32)
          + jnp.dot(x2, wkv[d1:], preferred_element_type=jnp.float32)
          + bkv)                                               # (tb*s, 2D) f32

    # Q projection: K=3 contraction -> three VPU FMAs (an MXU push would be
    # ~empty).  The 1/sqrt(head_dim) scale is already folded into wq/bq.
    w0 = small_ref[0:1, :d_model]
    w1 = small_ref[1:2, :d_model]
    w2 = small_ref[2:3, :d_model]
    bq = small_ref[3:4, :d_model]
    q = dr[:, 0:1] * w0 + dr[:, 1:2] * w1 + dr[:, 2:3] * w2 + bq   # (tb*sq, D)

    # ---- heads stacked into the batch axis: one score matmul, one softmax,
    #      one PV matmul (no per-head Python loop over matmuls/softmaxes). ----
    q3 = q.reshape(tb, sq, d_model).astype(cdt)
    kv3 = kv.reshape(tb, s, 2 * d_model).astype(cdt)
    qs = jnp.concatenate(
        [q3[:, :, h * hd:(h + 1) * hd] for h in range(num_heads)], axis=0)
    ks = jnp.concatenate(
        [kv3[:, :, h * hd:(h + 1) * hd] for h in range(num_heads)], axis=0)
    vs = jnp.concatenate(
        [kv3[:, :, d_model + h * hd: d_model + (h + 1) * hd]
         for h in range(num_heads)], axis=0)                    # (H*tb, s, hd)

    scores = jnp.einsum("bqd,bkd->bqk", qs, ks,
                        preferred_element_type=jnp.float32)     # (H*tb, sq, s)
    m = jnp.max(scores, axis=-1, keepdims=True)
    p = jnp.exp(scores - m)
    denom = jnp.sum(p, axis=-1, keepdims=True)
    p = p * pl.reciprocal(denom, approx=True)                   # EUP, f32

    o = jnp.einsum("bqk,bkd->bqd", p.astype(cdt), vs,
                   preferred_element_type=jnp.float32)          # (H*tb, sq, hd)

    # ---- fold heads back along lanes (head-major == torch's
    #      .transpose(1,2).view(B,-1,d_model) order); one K=d_model fc dot. ----
    attn = jnp.concatenate(
        [o[h * tb:(h + 1) * tb] for h in range(num_heads)], axis=-1)
    attn = attn.reshape(tb * sq, d_model).astype(cdt)
    bfc = small_ref[3:4, d_model:d_model + d_out]
    out = (jnp.dot(attn, wfc_ref[...], preferred_element_type=jnp.float32)
           + bfc)                                               # (tb*sq, d_out)
    out = out.reshape(tb, sq, d_out)

    # Lane-dense store: (tb, Sq*d_out) == (tb, 128) here; avoids masked 16-lane
    # vst on every output row.
    out_wide = jnp.concatenate([out[:, qq, :] for qq in range(sq)], axis=-1)
    out_ref[...] = out_wide.astype(out_ref.dtype)


def _choose_batch_tiling(B: int, batch_tile: int):
    """Pick (tb, n_steps): tb sublane-aligned (8) when grid > 1, B padded up,
    and >= 2 grid steps for B >= 16 so v7x's two TensorCores both get work."""
    if B < 16:
        return B, 1
    n_steps = max(2, pl.cdiv(B, batch_tile))
    tb = pl.cdiv(B, n_steps)
    tb = pl.cdiv(tb, 8) * 8
    n_steps = max(2, pl.cdiv(B, tb))
    return tb, n_steps


def prepare_params(params, *, d_model: int, num_heads: int,
                   matmul_dtype=jnp.bfloat16):
    """One-time parameter prep.

    Folds 1/sqrt(head_dim) into the Q projection, packs wq + all biases into a
    single small f32 array, packs wk|wv into one matmul-dtype array, and casts
    the fc weight to the matmul dtype.
    """
    head_dim = d_model // num_heads
    d_out = d_model // 2
    scale = 1.0 / (float(head_dim) ** 0.5)

    wq = (params["wq"] * scale).astype(jnp.float32)            # (3, D)
    bq = (params["bq"] * scale).astype(jnp.float32)            # (1, D)

    small = jnp.zeros((5, 2 * d_model), jnp.float32)
    small = small.at[0:3, :d_model].set(wq)
    small = small.at[3, :d_model].set(bq[0])
    small = small.at[3, d_model:d_model + d_out].set(
        params["bfc"][0].astype(jnp.float32))
    small = small.at[4, :d_model].set(params["bk"][0].astype(jnp.float32))
    small = small.at[4, d_model:].set(params["bv"][0].astype(jnp.float32))

    wkv = jnp.concatenate([params["wk"], params["wv"]], axis=1).astype(matmul_dtype)
    wfc = params["wfc"].astype(matmul_dtype)
    return {"small": small, "wkv": wkv, "wfc": wfc}


def cross_attention(x1, x2, direction, prepared, *, d_model: int,
                    num_heads: int, batch_tile: int = 128):
    """JAX wrapper matching CrossAttention.forward semantics.

    `prepared` must come from `prepare_params` (scale folded, weights packed).
    """
    B, S, d1 = x1.shape
    B2, S2, d2 = x2.shape
    Bd, Sq, dd = direction.shape
    assert (B2, S2) == (B, S) and Bd == B and dd == 3
    assert d1 + d2 == d_model and d_model % num_heads == 0
    head_dim = d_model // num_heads
    d_out = d_model // 2

    small, wkv, wfc = prepared["small"], prepared["wkv"], prepared["wfc"]

    tb, n_steps = _choose_batch_tiling(B, batch_tile)
    B_pad = tb * n_steps
    if B_pad != B:
        pad = ((0, B_pad - B), (0, 0), (0, 0))
        x1 = jnp.pad(x1, pad)
        x2 = jnp.pad(x2, pad)
        direction = jnp.pad(direction, pad)

    kernel = functools.partial(
        _cross_attention_kernel, num_heads=num_heads, head_dim=head_dim)

    out_wide = pl.pallas_call(
        kernel,
        out_shape=jax.ShapeDtypeStruct((B_pad, Sq * d_out), jnp.float32),
        grid_spec=pltpu.PrefetchScalarGridSpec(
            num_scalar_prefetch=0,
            grid=(n_steps,),
            in_specs=[
                pl.BlockSpec((tb, S, d1), lambda b: (b, 0, 0)),   # x1
                pl.BlockSpec((tb, S, d2), lambda b: (b, 0, 0)),   # x2
                pl.BlockSpec((tb, Sq, 3), lambda b: (b, 0, 0)),   # direction
                pl.BlockSpec(small.shape, lambda b: (0, 0)),      # wq + biases
                pl.BlockSpec(wkv.shape, lambda b: (0, 0)),        # wk | wv
                pl.BlockSpec(wfc.shape, lambda b: (0, 0)),        # wfc
            ],
            out_specs=pl.BlockSpec((tb, Sq * d_out), lambda b: (b, 0)),
        ),
        compiler_params=pltpu.CompilerParams(
            dimension_semantics=("parallel",),
            vmem_limit_bytes=32 * 1024 * 1024,
        ),
    )(x1, x2, direction, small, wkv, wfc)

    return out_wide[:B].reshape(B, Sq, d_out)


def _reference(x1, x2, direction, params, *, d_model, num_heads):
    """Pure-JAX reference mirroring the PyTorch forward (unscaled params)."""
    head_dim = d_model // num_heads
    x = jnp.concatenate((x1, x2), axis=-1)
    B = x.shape[0]
    q = direction @ params["wq"] + params["bq"][0]
    k = x @ params["wk"] + params["bk"][0]
    v = x @ params["wv"] + params["bv"][0]

    def split(t):
        Bt, St, _ = t.shape
        return t.reshape(Bt, St, num_heads, head_dim).transpose(0, 2, 1, 3)

    qh, kh, vh = split(q), split(k), split(v)
    scores = jnp.einsum("bhqd,bhkd->bhqk", qh, kh) / jnp.sqrt(jnp.float32(head_dim))
    attn = jax.nn.softmax(scores, axis=-1)
    out = jnp.einsum("bhqk,bhkd->bhqd", attn, vh)
    out = out.transpose(0, 2, 1, 3).reshape(B, -1, d_model)
    return out @ params["wfc"] + params["bfc"][0]


if __name__ == "__main__":
    d_model = 32
    num_heads = 4
    B, S, Sq = 16, 8, 8              # B=16 -> tb=8, grid=(2,): exercises both
    d1 = d2 = d_model // 2           # batching and the v7x-friendly 2-step grid

    key = jax.random.PRNGKey(0)
    keys = jax.random.split(key, 11)

    x1 = jax.random.normal(keys[0], (B, S, d1), dtype=jnp.float32)
    x2 = jax.random.normal(keys[1], (B, S, d2), dtype=jnp.float32)
    direction = jax.random.normal(keys[2], (B, Sq, 3), dtype=jnp.float32)

    # nn.Linear-style init; weights stored (in_features, out_features).
    def init_linear(kw, kb, fan_in, fan_out):
        bound = 1.0 / (fan_in ** 0.5)
        w = jax.random.uniform(kw, (fan_in, fan_out), jnp.float32, -bound, bound)
        b = jax.random.uniform(kb, (1, fan_out), jnp.float32, -bound, bound)
        return w, b

    wq, bq = init_linear(keys[3], keys[4], 3, d_model)
    wk, bk = init_linear(keys[5], keys[6], d_model, d_model)
    wv, bv = init_linear(keys[7], keys[8], d_model, d_model)
    wfc, bfc = init_linear(keys[9], keys[10], d_model, d_model // 2)
    params = dict(wq=wq, bq=bq, wk=wk, bk=bk, wv=wv, bv=bv, wfc=wfc, bfc=bfc)

    ref = _reference(x1, x2, direction, params,
                     d_model=d_model, num_heads=num_heads)

    # 1) Exact path: f32 MXU operands — tight check of the kernel structure.
    #    (Tolerance 2e-3 covers the approx EUP reciprocal in the softmax.)
    prep_f32 = prepare_params(params, d_model=d_model, num_heads=num_heads,
                              matmul_dtype=jnp.float32)
    out_f32 = jax.block_until_ready(
        cross_attention(x1, x2, direction, prep_f32,
                        d_model=d_model, num_heads=num_heads))
    assert out_f32.shape == (B, Sq, d_model // 2)
    assert jnp.allclose(out_f32, ref, atol=2e-3, rtol=2e-3), "f32 path mismatch"

    # 2) Perf path: bf16 MXU operands, f32 accumulation + f32 softmax.
    prep_bf16 = prepare_params(params, d_model=d_model, num_heads=num_heads,
                               matmul_dtype=jnp.bfloat16)
    out_bf16 = jax.block_until_ready(
        cross_attention(x1, x2, direction, prep_bf16,
                        d_model=d_model, num_heads=num_heads))
    assert out_bf16.shape == (B, Sq, d_model // 2)
    assert jnp.allclose(out_bf16, ref, atol=5e-2, rtol=5e-2), "bf16 path mismatch"

    print("KERNEL_OK")
</pallas_src>

<mosaic_0001>
module attributes {stable_mosaic.version = 11 : i64} {
  func.func @_cross_attention_kernel(%arg0: i32, %arg1: memref<8x8x16xf32, #tpu.memory_space<vmem>>, %arg2: memref<8x8x16xf32, #tpu.memory_space<vmem>>, %arg3: memref<8x8x3xf32, #tpu.memory_space<vmem>>, %arg4: memref<5x64xf32, #tpu.memory_space<vmem>>, %arg5: memref<32x64xf32, #tpu.memory_space<vmem>>, %arg6: memref<32x16xf32, #tpu.memory_space<vmem>>, %arg7: memref<8x128xf32, #tpu.memory_space<vmem>>) attributes {dimension_semantics = [#tpu.dimension_semantics<parallel>], iteration_bounds = array<i64: 2>, scalar_prefetch = 0 : i64, scratch_operands = 0 : i64, tpu.core_type = #tpu.core_type<tc>, window_params = [{transform_indices = @transform_0, window_bounds = array<i64: 8, 8, 16>}, {transform_indices = @transform_1, window_bounds = array<i64: 8, 8, 16>}, {transform_indices = @transform_2, window_bounds = array<i64: 8, 8, 3>}, {pipeline_mode = #tpu.pipeline_mode<synchronous>, transform_indices = @transform_3, window_bounds = array<i64: 5, 64>}, {pipeline_mode = #tpu.pipeline_mode<synchronous>, transform_indices = @transform_4, window_bounds = array<i64: 32, 64>}, {pipeline_mode = #tpu.pipeline_mode<synchronous>, transform_indices = @transform_5, window_bounds = array<i64: 32, 16>}, {transform_indices = @transform_6, window_bounds = array<i64: 8, 128>}]} {
    %c0 = arith.constant 0 : index
    %c0_0 = arith.constant 0 : index
    %c0_1 = arith.constant 0 : index
    %0 = vector.load %arg1[%c0, %c0_0, %c0_1] : memref<8x8x16xf32, #tpu.memory_space<vmem>>, vector<8x8x16xf32>
    %1 = vector.shape_cast %0 : vector<8x8x16xf32> to vector<64x16xf32>
    %c0_2 = arith.constant 0 : index
    %c0_3 = arith.constant 0 : index
    %c0_4 = arith.constant 0 : index
    %2 = vector.load %arg2[%c0_2, %c0_3, %c0_4] : memref<8x8x16xf32, #tpu.memory_space<vmem>>, vector<8x8x16xf32>
    %3 = vector.shape_cast %2 : vector<8x8x16xf32> to vector<64x16xf32>
    %c0_5 = arith.constant 0 : index
    %c0_6 = arith.constant 0 : index
    %c0_7 = arith.constant 0 : index
    %4 = vector.load %arg3[%c0_5, %c0_6, %c0_7] : memref<8x8x3xf32, #tpu.memory_space<vmem>>, vector<8x8x3xf32>
    %5 = vector.shape_cast %4 : vector<8x8x3xf32> to vector<64x3xf32>
    %c0_8 = arith.constant 0 : index
    %c0_9 = arith.constant 0 : index
    %6 = vector.load %arg5[%c0_8, %c0_9] : memref<32x64xf32, #tpu.memory_space<vmem>>, vector<32x64xf32>
    %c4 = arith.constant 4 : index
    %c0_10 = arith.constant 0 : index
    %7 = vector.load %arg4[%c4, %c0_10] : memref<5x64xf32, #tpu.memory_space<vmem>>, vector<1x64xf32>
    %8 = vector.extract_strided_slice %6 {offsets = [0, 0], sizes = [16, 64], strides = [1, 1]} : vector<32x64xf32> to vector<16x64xf32>
    %cst = arith.constant dense<0.000000e+00> : vector<64x64xf32>
    %9 = tpu.matmul %1, %8, %cst {dimension_numbers = #tpu.dot_dimension_numbers<[1], [0], [0], [1], [0, 0, 1, 1], [], []>} : vector<64x16xf32>, vector<16x64xf32>, vector<64x64xf32> -> vector<64x64xf32>
    %10 = vector.extract_strided_slice %6 {offsets = [16, 0], sizes = [16, 64], strides = [1, 1]} : vector<32x64xf32> to vector<16x64xf32>
    %cst_11 = arith.constant dense<0.000000e+00> : vector<64x64xf32>
    %11 = tpu.matmul %3, %10, %cst_11 {dimension_numbers = #tpu.dot_dimension_numbers<[1], [0], [0], [1], [0, 0, 1, 1], [], []>} : vector<64x16xf32>, vector<16x64xf32>, vector<64x64xf32> -> vector<64x64xf32>
    %12 = arith.addf %9, %11 : vector<64x64xf32>
    %13 = vector.broadcast %7 : vector<1x64xf32> to vector<64x64xf32>
    %14 = arith.addf %12, %13 : vector<64x64xf32>
    %c0_12 = arith.constant 0 : index
    %c0_13 = arith.constant 0 : index
    %15 = vector.load %arg4[%c0_12, %c0_13] : memref<5x64xf32, #tpu.memory_space<vmem>>, vector<1x32xf32>
    %c1 = arith.constant 1 : index
    %c0_14 = arith.constant 0 : index
    %16 = vector.load %arg4[%c1, %c0_14] : memref<5x64xf32, #tpu.memory_space<vmem>>, vector<1x32xf32>
    %c2 = arith.constant 2 : index
    %c0_15 = arith.constant 0 : index
    %17 = vector.load %arg4[%c2, %c0_15] : memref<5x64xf32, #tpu.memory_space<vmem>>, vector<1x32xf32>
    %c3 = arith.constant 3 : index
    %c0_16 = arith.constant 0 : index
    %18 = vector.load %arg4[%c3, %c0_16] : memref<5x64xf32, #tpu.memory_space<vmem>>, vector<1x32xf32>
    %19 = vector.extract_strided_slice %5 {offsets = [0, 0], sizes = [64, 1], strides = [1, 1]} : vector<64x3xf32> to vector<64x1xf32>
    %20 = vector.broadcast %19 : vector<64x1xf32> to vector<64x32xf32>
    %21 = vector.broadcast %15 : vector<1x32xf32> to vector<64x32xf32>
    %22 = arith.mulf %20, %21 : vector<64x32xf32>
    %23 = vector.extract_strided_slice %5 {offsets = [0, 1], sizes = [64, 1], strides = [1, 1]} : vector<64x3xf32> to vector<64x1xf32>
    %24 = vector.broadcast %23 : vector<64x1xf32> to vector<64x32xf32>
    %25 = vector.broadcast %16 : vector<1x32xf32> to vector<64x32xf32>
    %26 = arith.mulf %24, %25 : vector<64x32xf32>
    %27 = arith.addf %22, %26 : vector<64x32xf32>
    %28 = vector.extract_strided_slice %5 {offsets = [0, 2], sizes = [64, 1], strides = [1, 1]} : vector<64x3xf32> to vector<64x1xf32>
    %29 = vector.broadcast %28 : vector<64x1xf32> to vector<64x32xf32>
    %30 = vector.broadcast %17 : vector<1x32xf32> to vector<64x32xf32>
    %31 = arith.mulf %29, %30 : vector<64x32xf32>
    %32 = arith.addf %27, %31 : vector<64x32xf32>
    %33 = vector.broadcast %18 : vector<1x32xf32> to vector<64x32xf32>
    %34 = arith.addf %32, %33 : vector<64x32xf32>
    %35 = vector.shape_cast %34 : vector<64x32xf32> to vector<8x8x32xf32>
    %36 = vector.shape_cast %14 : vector<64x64xf32> to vector<8x8x64xf32>
    %37 = vector.extract_strided_slice %35 {offsets = [0, 0, 0], sizes = [8, 8, 8], strides = [1, 1, 1]} : vector<8x8x32xf32> to vector<8x8x8xf32>
    %38 = vector.extract_strided_slice %35 {offsets = [0, 0, 8], sizes = [8, 8, 8], strides = [1, 1, 1]} : vector<8x8x32xf32> to vector<8x8x8xf32>
    %39 = vector.extract_strided_slice %35 {offsets = [0, 0, 16], sizes = [8, 8, 8], strides = [1, 1, 1]} : vector<8x8x32xf32> to vector<8x8x8xf32>
    %40 = vector.extract_strided_slice %35 {offsets = [0, 0, 24], sizes = [8, 8, 8], strides = [1, 1, 1]} : vector<8x8x32xf32> to vector<8x8x8xf32>
    %41 = tpu.concatenate %37, %38, %39, %40 in 0 : vector<8x8x8xf32>, vector<8x8x8xf32>, vector<8x8x8xf32>, vector<8x8x8xf32> -> vector<32x8x8xf32>
    %42 = vector.extract_strided_slice %36 {offsets = [0, 0, 0], sizes = [8, 8, 8], strides = [1, 1, 1]} : vector<8x8x64xf32> to vector<8x8x8xf32>
    %43 = vector.extract_strided_slice %36 {offsets = [0, 0, 8], sizes = [8, 8, 8], strides = [1, 1, 1]} : vector<8x8x64xf32> to vector<8x8x8xf32>
    %44 = vector.extract_strided_slice %36 {offsets = [0, 0, 16], sizes = [8, 8, 8], strides = [1, 1, 1]} : vector<8x8x64xf32> to vector<8x8x8xf32>
    %45 = vector.extract_strided_slice %36 {offsets = [0, 0, 24], sizes = [8, 8, 8], strides = [1, 1, 1]} : vector<8x8x64xf32> to vector<8x8x8xf32>
    %46 = tpu.concatenate %42, %43, %44, %45 in 0 : vector<8x8x8xf32>, vector<8x8x8xf32>, vector<8x8x8xf32>, vector<8x8x8xf32> -> vector<32x8x8xf32>
    %47 = vector.extract_strided_slice %36 {offsets = [0, 0, 32], sizes = [8, 8, 8], strides = [1, 1, 1]} : vector<8x8x64xf32> to vector<8x8x8xf32>
    %48 = vector.extract_strided_slice %36 {offsets = [0, 0, 40], sizes = [8, 8, 8], strides = [1, 1, 1]} : vector<8x8x64xf32> to vector<8x8x8xf32>
    %49 = vector.extract_strided_slice %36 {offsets = [0, 0, 48], sizes = [8, 8, 8], strides = [1, 1, 1]} : vector<8x8x64xf32> to vector<8x8x8xf32>
    %50 = vector.extract_strided_slice %36 {offsets = [0, 0, 56], sizes = [8, 8, 8], strides = [1, 1, 1]} : vector<8x8x64xf32> to vector<8x8x8xf32>
    %51 = tpu.concatenate %47, %48, %49, %50 in 0 : vector<8x8x8xf32>, vector<8x8x8xf32>, vector<8x8x8xf32>, vector<8x8x8xf32> -> vector<32x8x8xf32>
    "tpu.trace_start"() <{level = 10 : i32, message = "bqd,bkd->bqk"}> : () -> ()
    %cst_17 = arith.constant dense<0.000000e+00> : vector<32x8x8xf32>
    %52 = tpu.matmul %41, %46, %cst_17 {dimension_numbers = #tpu.dot_dimension_numbers<[2], [2], [1], [1], [0, 0, 0, 1, 1, 1], [0], [0]>} : vector<32x8x8xf32>, vector<32x8x8xf32>, vector<32x8x8xf32> -> vector<32x8x8xf32>
    "tpu.trace_stop"() : () -> ()
    %cst_18 = arith.constant dense<0xFF800000> : vector<32x8xf32>
    %53 = vector.multi_reduction <maximumf>, %52, %cst_18 [2] : vector<32x8x8xf32> to vector<32x8xf32>
    %54 = vector.shape_cast %53 : vector<32x8xf32> to vector<32x8x1xf32>
    %55 = vector.broadcast %54 : vector<32x8x1xf32> to vector<32x8x8xf32>
    %56 = arith.subf %52, %55 : vector<32x8x8xf32>
    %57 = math.exp %56 : vector<32x8x8xf32>
    %cst_19 = arith.constant dense<0.000000e+00> : vector<32x8xf32>
    %58 = vector.multi_reduction <add>, %57, %cst_19 [2] : vector<32x8x8xf32> to vector<32x8xf32>
    %59 = vector.shape_cast %58 : vector<32x8xf32> to vector<32x8x1xf32>
    %60 = tpu.reciprocal %59 {approx = true} : vector<32x8x1xf32> -> vector<32x8x1xf32>
    %61 = vector.broadcast %60 : vector<32x8x1xf32> to vector<32x8x8xf32>
    %62 = arith.mulf %57, %61 : vector<32x8x8xf32>
    "tpu.trace_start"() <{level = 10 : i32, message = "bqk,bkd->bqd"}> : () -> ()
    %cst_20 = arith.constant dense<0.000000e+00> : vector<32x8x8xf32>
    %63 = tpu.matmul %62, %51, %cst_20 {dimension_numbers = #tpu.dot_dimension_numbers<[2], [1], [1], [2], [0, 0, 0, 1, 1, 2], [0], [0]>} : vector<32x8x8xf32>, vector<32x8x8xf32>, vector<32x8x8xf32> -> vector<32x8x8xf32>
    "tpu.trace_stop"() : () -> ()
    %64 = vector.extract_strided_slice %63 {offsets = [0, 0, 0], sizes = [8, 8, 8], strides = [1, 1, 1]} : vector<32x8x8xf32> to vector<8x8x8xf32>
    %65 = vector.extract_strided_slice %63 {offsets = [8, 0, 0], sizes = [8, 8, 8], strides = [1, 1, 1]} : vector<32x8x8xf32> to vector<8x8x8xf32>
    %66 = vector.extract_strided_slice %63 {offsets = [16, 0, 0], sizes = [8, 8, 8], strides = [1, 1, 1]} : vector<32x8x8xf32> to vector<8x8x8xf32>
    %67 = vector.extract_strided_slice %63 {offsets = [24, 0, 0], sizes = [8, 8, 8], strides = [1, 1, 1]} : vector<32x8x8xf32> to vector<8x8x8xf32>
    %68 = tpu.concatenate %64, %65, %66, %67 in 2 : vector<8x8x8xf32>, vector<8x8x8xf32>, vector<8x8x8xf32>, vector<8x8x8xf32> -> vector<8x8x32xf32>
    %69 = vector.shape_cast %68 : vector<8x8x32xf32> to vector<64x32xf32>
    %c3_21 = arith.constant 3 : index
    %c32 = arith.constant 32 : index
    %70 = vector.load %arg4[%c3_21, %c32] : memref<5x64xf32, #tpu.memory_space<vmem>>, vector<1x16xf32>
    %c0_22 = arith.constant 0 : index
    %c0_23 = arith.constant 0 : index
    %71 = vector.load %arg6[%c0_22, %c0_23] : memref<32x16xf32, #tpu.memory_space<vmem>>, vector<32x16xf32>
    %cst_24 = arith.constant dense<0.000000e+00> : vector<64x16xf32>
    %72 = tpu.matmul %69, %71, %cst_24 {dimension_numbers = #tpu.dot_dimension_numbers<[1], [0], [0], [1], [0, 0, 1, 1], [], []>} : vector<64x32xf32>, vector<32x16xf32>, vector<64x16xf32> -> vector<64x16xf32>
    %73 = vector.broadcast %70 : vector<1x16xf32> to vector<64x16xf32>
    %74 = arith.addf %72, %73 : vector<64x16xf32>
    %75 = vector.shape_cast %74 : vector<64x16xf32> to vector<8x8x16xf32>
    %76 = vector.extract_strided_slice %75 {offsets = [0, 0, 0], sizes = [8, 1, 16], strides = [1, 1, 1]} : vector<8x8x16xf32> to vector<8x1x16xf32>
    %77 = vector.shape_cast %76 : vector<8x1x16xf32> to vector<8x16xf32>
    %78 = vector.extract_strided_slice %75 {offsets = [0, 1, 0], sizes = [8, 1, 16], strides = [1, 1, 1]} : vector<8x8x16xf32> to vector<8x1x16xf32>
    %79 = vector.shape_cast %78 : vector<8x1x16xf32> to vector<8x16xf32>
    %80 = vector.extract_strided_slice %75 {offsets = [0, 2, 0], sizes = [8, 1, 16], strides = [1, 1, 1]} : vector<8x8x16xf32> to vector<8x1x16xf32>
    %81 = vector.shape_cast %80 : vector<8x1x16xf32> to vector<8x16xf32>
    %82 = vector.extract_strided_slice %75 {offsets = [0, 3, 0], sizes = [8, 1, 16], strides = [1, 1, 1]} : vector<8x8x16xf32> to vector<8x1x16xf32>
    %83 = vector.shape_cast %82 : vector<8x1x16xf32> to vector<8x16xf32>
    %84 = vector.extract_strided_slice %75 {offsets = [0, 4, 0], sizes = [8, 1, 16], strides = [1, 1, 1]} : vector<8x8x16xf32> to vector<8x1x16xf32>
    %85 = vector.shape_cast %84 : vector<8x1x16xf32> to vector<8x16xf32>
    %86 = vector.extract_strided_slice %75 {offsets = [0, 5, 0], sizes = [8, 1, 16], strides = [1, 1, 1]} : vector<8x8x16xf32> to vector<8x1x16xf32>
    %87 = vector.shape_cast %86 : vector<8x1x16xf32> to vector<8x16xf32>
    %88 = vector.extract_strided_slice %75 {offsets = [0, 6, 0], sizes = [8, 1, 16], strides = [1, 1, 1]} : vector<8x8x16xf32> to vector<8x1x16xf32>
    %89 = vector.shape_cast %88 : vector<8x1x16xf32> to vector<8x16xf32>
    %90 = vector.extract_strided_slice %75 {offsets = [0, 7, 0], sizes = [8, 1, 16], strides = [1, 1, 1]} : vector<8x8x16xf32> to vector<8x1x16xf32>
    %91 = vector.shape_cast %90 : vector<8x1x16xf32> to vector<8x16xf32>
    %92 = tpu.concatenate %77, %79, %81, %83, %85, %87, %89, %91 in 1 : vector<8x16xf32>, vector<8x16xf32>, vector<8x16xf32>, vector<8x16xf32>, vector<8x16xf32>, vector<8x16xf32>, vector<8x16xf32>, vector<8x16xf32> -> vector<8x128xf32>
    %c0_25 = arith.constant 0 : index
    %c0_26 = arith.constant 0 : index
    %93 = vector.load %arg7[%c0_25, %c0_26] : memref<8x128xf32, #tpu.memory_space<vmem>>, vector<8x128xf32>
    tpu.vector_store %arg7[%c0_25, %c0_26], %92 {strides = array<i32>} : memref<8x128xf32, #tpu.memory_space<vmem>>, vector<8x128xf32>,
    return
  }
  func.func @transform_0(%arg0: i32) -> (i32, i32, i32) {
    %c0_i32 = arith.constant 0 : i32
    %c0_i32_0 = arith.constant 0 : i32
    %c0_i32_1 = arith.constant 0 : i32
    return %arg0, %c0_i32, %c0_i32_0 : i32, i32, i32
  }
  func.func @transform_1(%arg0: i32) -> (i32, i32, i32) {
    %c0_i32 = arith.constant 0 : i32
    %c0_i32_0 = arith.constant 0 : i32
    %c0_i32_1 = arith.constant 0 : i32
    return %arg0, %c0_i32, %c0_i32_0 : i32, i32, i32
  }
  func.func @transform_2(%arg0: i32) -> (i32, i32, i32) {
    %c0_i32 = arith.constant 0 : i32
    %c0_i32_0 = arith.constant 0 : i32
    %c0_i32_1 = arith.constant 0 : i32
    return %arg0, %c0_i32, %c0_i32_0 : i32, i32, i32
  }
  func.func @transform_3(%arg0: i32) -> (i32, i32) {
    %c0_i32 = arith.constant 0 : i32
    %c0_i32_0 = arith.constant 0 : i32
    %c0_i32_1 = arith.constant 0 : i32
    return %c0_i32, %c0_i32_0 : i32, i32
  }
  func.func @transform_4(%arg0: i32) -> (i32, i32) {
    %c0_i32 = arith.constant 0 : i32
    %c0_i32_0 = arith.constant 0 : i32
    %c0_i32_1 = arith.constant 0 : i32
    return %c0_i32, %c0_i32_0 : i32, i32
  }
  func.func @transform_5(%arg0: i32) -> (i32, i32) {
    %c0_i32 = arith.constant 0 : i32
    %c0_i32_0 = arith.constant 0 : i32
    %c0_i32_1 = arith.constant 0 : i32
    return %c0_i32, %c0_i32_0 : i32, i32
  }
  func.func @transform_6(%arg0: i32) -> (i32, i32) {
    %c0_i32 = arith.constant 0 : i32
    %c0_i32_0 = arith.constant 0 : i32
    return %arg0, %c0_i32 : i32, i32
  }
}

</mosaic_0001>

<llo_original>
// kernel: tpu_custom_call.1
$region0: #{tpu_custom_call.1}
  #allocation0 [shape = 'u32[]', space=smem, size = 0x4, offset = 0x4, fixed_abs, tag = 'smem constant byte address 0x4 - core index']
  #allocation1 [shape = 'u32[144,128]{1,0:T(1,128)}', space=vmem, size = 0x12000, scoped, tag = 'internal scratch']
  %s0 = inlined_call_operand.vmem [shape: f32[16,8,16], index: 0, kind: input, shape index: {}]
  %s1 = inlined_call_operand.hbm [shape: f32[16,8,16], index: 1, kind: input, shape index: {}]
  %s2 = inlined_call_operand.vmem [shape: f32[16,8,3], index: 2, kind: input, shape index: {}]
  %s3 = inlined_call_operand.vmem [shape: f32[5,64], index: 3, kind: input, shape index: {}]
  %s4 = inlined_call_operand.vmem [shape: f32[32,64], index: 4, kind: input, shape index: {}]
  %s5 = inlined_call_operand.vmem [shape: f32[32,16], index: 5, kind: input, shape index: {}]
  %s6 = inlined_call_operand.hbm [shape: f32[16,128], index: 6, kind: output, shape index: {}]
  %s7 = sld [smem:[#allocation0]]
  $region61: #{tpu_custom_call.1} parent=0
    _
  %s9 = ssub.s32 1, %s7
  %s10 = scalar_select 0, %s9, %s7
  $region1: #{tpu_custom_call.1} parent=0
    #allocation2 [shape = 'u8[65536]{0}', space=vmem, size = 0x10000, scoped, tag = 'input window, operand 1']
    #allocation3 [shape = 's32[2]{0}', space=sflag, size = 0x8, scoped, tag = 'scoped memory for tpu_custom_call.1']
    #allocation4 [shape = 's32[2]{0}', space=sflag, size = 0x8, scoped, tag = 'scoped memory for tpu_custom_call.1']
    #allocation5 [shape = 'u8[8192]{0}', space=vmem, size = 0x2000, scoped, tag = 'output window, operand 0']
    %11 = vsyncpa [#allocation3], 0
    %s12 = scalar_lea.sflag [#allocation3], 1
    %13 = vsyncpa %s12, 0
    %14 = vsyncpa [#allocation4], 0
    %s15 = scalar_lea.sflag [#allocation4], 1
    %16 = vsyncpa %s15, 0
    loop: start=0, step=1, limit=4
    $region2: #{tpu_custom_call.1} parent=1 // loop_pre_header
      _
    $region3: #{tpu_custom_call.1} parent=1 // loop_header
      %s18 = sphi 0, %s22
      %p19 = scmp.ge.s32.totalorder %s18, 4
      %s28 = sphi 0, %s30
      %s31 = sphi 0, %s28
      %s32 = sphi 0, %s31
      %s48 = sphi 0, %s32
      %s54 = sphi 0, %s56
      %s57 = sphi 0, %s54
      %s58 = sphi 0, %s57
      %s74 = sphi 0, %s58
      %s80 = sphi 0, %s82
      %s83 = sphi 0, %s80
      %s84 = sphi 0, %s83
      %s100 = sphi 0, %s84
      %s104 = sphi 0, %s104
      %s106 = sphi 0, %s104
      %s107 = sphi 0, %s106
      %s121 = sphi 0, %s107
      %s125 = sphi 0, %s125
      %s127 = sphi 0, %s125
      %s128 = sphi 0, %s127
      %s142 = sphi 0, %s128
      %s146 = sphi 0, %s146
      %s148 = sphi 0, %s146
      %s149 = sphi 0, %s148
      %s163 = sphi 0, %s149
      %s169 = sphi 0, %s171
      %s172 = sphi 0, %s169
      %s173 = sphi 0, %s172
      %s189 = sphi 0, %s173
    $region4: #{tpu_custom_call.1} parent=1 // loop_header_branch
      %21 = sbr.rel (%p19) target = $region8
    $region5: #{tpu_custom_call.1} parent=1 // loop_body
      %s23 = ssub.s32 %s18, 1
      %s24 = ssub.s32 %s18, 2
      %s25 = sadd.s32 %s18, 1
      %s26 = ssub.s32 %s18, %s25
      %p27 = scmp.eq.s32.totalorder %s26, 0
      %s29 = sadd.s32 %s28, 1
      %s30 = scalar_select %p27, %s28, %s29
      %p33 = pneg %p27
      %p34 = scmp.eq.s32.totalorder %s18, 1
      %p35 = por %p33, %p34
      %p36 = scmp.ne.s32.totalorder %s28, %s31
      %p37 = scmp.eq.s32.totalorder %s18, 0
      %p38 = por %p36, %p37
      %p39 = scmp.ne.s32.totalorder %s28, %s31
      %p40 = scmp.eq.s32.totalorder %s23, 1
      %p41 = por %p39, %p40
      %p42 = scmp.ne.s32.totalorder %s31, %s32
      %p43 = scmp.eq.s32.totalorder %s23, 0
      %p44 = por %p42, %p43
      %p45 = scmp.ne.s32.totalorder %s31, %s32
      %p46 = scmp.eq.s32.totalorder %s24, 1
      %p47 = por %p45, %p46
      %p49 = scmp.ne.s32.totalorder %s32, %s48
      %p50 = scmp.eq.s32.totalorder %s24, 0
      %p51 = por %p49, %p50
      %s52 = ssub.s32 %s18, %s25
      %p53 = scmp.eq.s32.totalorder %s52, 0
      %s55 = sadd.s32 %s54, 1
      %s56 = scalar_select %p53, %s54, %s55
      %p59 = pneg %p53
      %p60 = scmp.eq.s32.totalorder %s18, 1
      %p61 = por %p59, %p60
      %p62 = scmp.ne.s32.totalorder %s54, %s57
      %p63 = scmp.eq.s32.totalorder %s18, 0
      %p64 = por %p62, %p63
      %p65 = scmp.ne.s32.totalorder %s54, %s57
      %p66 = scmp.eq.s32.totalorder %s23, 1
      %p67 = por %p65, %p66
      %p68 = scmp.ne.s32.totalorder %s57, %s58
      %p69 = scmp.eq.s32.totalorder %s23, 0
      %p70 = por %p68, %p69
      %p71 = scmp.ne.s32.totalorder %s57, %s58
      %p72 = scmp.eq.s32.totalorder %s24, 1
      %p73 = por %p71, %p72
      %p75 = scmp.ne.s32.totalorder %s58, %s74
      %p76 = scmp.eq.s32.totalorder %s24, 0
      %p77 = por %p75, %p76
      %s78 = ssub.s32 %s18, %s25
      %p79 = scmp.eq.s32.totalorder %s78, 0
      %s81 = sadd.s32 %s80, 1
      %s82 = scalar_select %p79, %s80, %s81
      %p85 = pneg %p79
      %p86 = scmp.eq.s32.totalorder %s18, 1
      %p87 = por %p85, %p86
      %p88 = scmp.ne.s32.totalorder %s80, %s83
      %p89 = scmp.eq.s32.totalorder %s18, 0
      %p90 = por %p88, %p89
      %p91 = scmp.ne.s32.totalorder %s80, %s83
      %p92 = scmp.eq.s32.totalorder %s23, 1
      %p93 = por %p91, %p92
      %p94 = scmp.ne.s32.totalorder %s83, %s84
      %p95 = scmp.eq.s32.totalorder %s23, 0
      %p96 = por %p94, %p95
      %p97 = scmp.ne.s32.totalorder %s83, %s84
      %p98 = scmp.eq.s32.totalorder %s24, 1
      %p99 = por %p97, %p98
      %p101 = scmp.ne.s32.totalorder %s84, %s100
      %p102 = scmp.eq.s32.totalorder %s24, 0
      %p103 = por %p101, %p102
      %s105 = sadd.s32 %s104, 1
      %p108 = scmp.eq.s32.totalorder %s18, 1
      %p109 = scmp.ne.s32.totalorder %s104, %s106
      %p110 = scmp.eq.s32.totalorder %s18, 0
      %p111 = por %p109, %p110
      %p112 = scmp.ne.s32.totalorder %s104, %s106
      %p113 = scmp.eq.s32.totalorder %s23, 1
      %p114 = por %p112, %p113
      %p115 = scmp.ne.s32.totalorder %s106, %s107
      %p116 = scmp.eq.s32.totalorder %s23, 0
      %p117 = por %p115, %p116
      %p118 = scmp.ne.s32.totalorder %s106, %s107
      %p119 = scmp.eq.s32.totalorder %s24, 1
      %p120 = por %p118, %p119
      %p122 = scmp.ne.s32.totalorder %s107, %s121
      %p123 = scmp.eq.s32.totalorder %s24, 0
      %p124 = por %p122, %p123
      %s126 = sadd.s32 %s125, 1
      %p129 = scmp.eq.s32.totalorder %s18, 1
      %p130 = scmp.ne.s32.totalorder %s125, %s127
      %p131 = scmp.eq.s32.totalorder %s18, 0
      %p132 = por %p130, %p131
      %p133 = scmp.ne.s32.totalorder %s125, %s127
      %p134 = scmp.eq.s32.totalorder %s23, 1
      %p135 = por %p133, %p134
      %p136 = scmp.ne.s32.totalorder %s127, %s128
      %p137 = scmp.eq.s32.totalorder %s23, 0
      %p138 = por %p136, %p137
      %p139 = scmp.ne.s32.totalorder %s127, %s128
      %p140 = scmp.eq.s32.totalorder %s24, 1
      %p141 = por %p139, %p140
      %p143 = scmp.ne.s32.totalorder %s128, %s142
      %p144 = scmp.eq.s32.totalorder %s24, 0
      %p145 = por %p143, %p144
      %s147 = sadd.s32 %s146, 1
      %p150 = scmp.eq.s32.totalorder %s18, 1
      %p151 = scmp.ne.s32.totalorder %s146, %s148
      %p152 = scmp.eq.s32.totalorder %s18, 0
      %p153 = por %p151, %p152
      %p154 = scmp.ne.s32.totalorder %s146, %s148
      %p155 = scmp.eq.s32.totalorder %s23, 1
      %p156 = por %p154, %p155
      %p157 = scmp.ne.s32.totalorder %s148, %s149
      %p158 = scmp.eq.s32.totalorder %s23, 0
      %p159 = por %p157, %p158
      %p160 = scmp.ne.s32.totalorder %s148, %s149
      %p161 = scmp.eq.s32.totalorder %s24, 1
      %p162 = por %p160, %p161
      %p164 = scmp.ne.s32.totalorder %s149, %s163
      %p165 = scmp.eq.s32.totalorder %s24, 0
      %p166 = por %p164, %p165
      %s167 = ssub.s32 %s18, %s25
      %p168 = scmp.eq.s32.totalorder %s167, 0
      %s170 = sadd.s32 %s169, 1
      %s171 = scalar_select %p168, %s169, %s170
      %p174 = pneg %p168
      %p175 = scmp.eq.s32.totalorder %s18, 1
      %p176 = por %p174, %p175
      %p177 = scmp.ne.s32.totalorder %s169, %s172
      %p178 = scmp.eq.s32.totalorder %s18, 0
      %p179 = por %p177, %p178
      %p180 = scmp.ne.s32.totalorder %s169, %s172
      %p181 = scmp.eq.s32.totalorder %s23, 1
      %p182 = por %p180, %p181
      %p183 = scmp.ne.s32.totalorder %s172, %s173
      %p184 = scmp.eq.s32.totalorder %s23, 0
      %p185 = por %p183, %p184
      %p186 = scmp.ne.s32.totalorder %s172, %s173
      %p187 = scmp.eq.s32.totalorder %s24, 1
      %p188 = por %p186, %p187
      %p190 = scmp.ne.s32.totalorder %s173, %s189
      %p191 = scmp.eq.s32.totalorder %s24, 0
      %p192 = por %p190, %p191
      %p193 = scmp.le.s32.totalorder 1, %s18
      %p194 = scmp.lt.s32.totalorder %s18, 3
      %p195 = pnand %p193, %p194
      %p196 = pneg %p195
      // Predicated region
      $region9: #{tpu_custom_call.1} parent=5 // pred_check
        _
      $region10: #{tpu_custom_call.1} parent=5 // pred_check_branch
        %198 = sbr.rel (%p195) target = $region12
      $region11: #{tpu_custom_call.1} parent=5 // pred_region
        %s199 = ssub.s32 %s18, 1
        // Predicated region
        $region13: #{tpu_custom_call.1} parent=11 // pred_check
          %p200 = pneg %p117
        $region14: #{tpu_custom_call.1} parent=11 // pred_check_branch
          %202 = sbr.rel (%p200) target = $region16
        $region15: #{tpu_custom_call.1} parent=11 // pred_region
          _
        $region16: #{tpu_custom_call.1} parent=11 // pred_fallthru
          _
        // Predicated region
        $region17: #{tpu_custom_call.1} parent=11 // pred_check
          %p203 = pneg %p138
        $region18: #{tpu_custom_call.1} parent=11 // pred_check_branch
          %205 = sbr.rel (%p203) target = $region20
        $region19: #{tpu_custom_call.1} parent=11 // pred_region
          _
        $region20: #{tpu_custom_call.1} parent=11 // pred_fallthru
          _
        // Predicated region
        $region21: #{tpu_custom_call.1} parent=11 // pred_check
          %p206 = pneg %p159
        $region22: #{tpu_custom_call.1} parent=11 // pred_check_branch
          %208 = sbr.rel (%p206) target = $region24
        $region23: #{tpu_custom_call.1} parent=11 // pred_region
          _
        $region24: #{tpu_custom_call.1} parent=11 // pred_fallthru
          _
      $region12: #{tpu_custom_call.1} parent=5 // pred_fallthru
        _
      %p209 = scmp.lt.s32.totalorder %s18, 2
      // Predicated region
      $region25: #{tpu_custom_call.1} parent=5 // pred_check
        %p210 = pneg %p209
      $region26: #{tpu_custom_call.1} parent=5 // pred_check_branch
        %212 = sbr.rel (%p210) target = $region28
      $region27: #{tpu_custom_call.1} parent=5 // pred_region
        // Predicated region
        $region29: #{tpu_custom_call.1} parent=27 // pred_check
          %p213 = pneg %p38
        $region30: #{tpu_custom_call.1} parent=27 // pred_check_branch
          %215 = sbr.rel (%p213) target = $region32
        $region31: #{tpu_custom_call.1} parent=27 // pred_region
          %s216 = smul.u32 8, %s18
          %p217 = scmp.lt.s32.totalorder %s216, 15
          %s218 = scalar_select %p217, %s216, 15
          %s219 = smul.addr %s218, 8
          %s220 = scalar_lea.vmem %s0, %s219
          %s221 = smul.u32 8, %s18
        $region32: #{tpu_custom_call.1} parent=27 // pred_fallthru
          _
        // Predicated region
        $region33: #{tpu_custom_call.1} parent=27 // pred_check
          %p222 = pneg %p64
        $region34: #{tpu_custom_call.1} parent=27 // pred_check_branch
          %224 = sbr.rel (%p222) target = $region36
        $region35: #{tpu_custom_call.1} parent=27 // pred_region
          %s225 = sand.u32 %s54, 1
          %s226 = scalar_lea.sflag [#allocation3], %s225
          %s227 = sand.u32 %s54, 1
          %s228 = smul.addr %s227, 64
          %s229 = scalar_lea.vmem [#allocation2], %s228
          %s230 = smul.u32 8, %s18
          %s232 = ssub.s32 1024, 1024
          %233 = vsyncadd %s226, %s232
          %s234 = smul.addr %s230, 128
          %s235 = scalar_lea.hbm %s1, %s234
          %s236 = sshll.u32 %s229, 4
          %s237 = int_to_ptr.vmem [resolvable:$true] %s236
          %242 = dma.hbm_to_vmem [thread:$0]  %s235, 1024, %s237, %s226, 128, 128, 8
        $region36: #{tpu_custom_call.1} parent=27 // pred_fallthru
          _
        // Predicated region
        $region37: #{tpu_custom_call.1} parent=27 // pred_check
          %p243 = pneg %p90
        $region38: #{tpu_custom_call.1} parent=27 // pred_check_branch
          %245 = sbr.rel (%p243) target = $region40
        $region39: #{tpu_custom_call.1} parent=27 // pred_region
          %s246 = smul.u32 8, %s18
          %p247 = scmp.lt.s32.totalorder %s246, 15
          %s248 = scalar_select %p247, %s246, 15
          %s249 = smul.addr %s248, 8
          %s250 = scalar_lea.vmem %s2, %s249
          %s251 = smul.u32 8, %s18
        $region40: #{tpu_custom_call.1} parent=27 // pred_fallthru
          _
      $region28: #{tpu_custom_call.1} parent=5 // pred_fallthru
        _
      %p252 = scmp.le.s32.totalorder 1, %s18
      %p253 = scmp.lt.s32.totalorder %s18, 3
      %p254 = pnand %p252, %p253
      %p255 = pneg %p254
      // Predicated region
      $region41: #{tpu_custom_call.1} parent=5 // pred_check
        _
      $region42: #{tpu_custom_call.1} parent=5 // pred_check_branch
        %257 = sbr.rel (%p254) target = $region44
      $region43: #{tpu_custom_call.1} parent=5 // pred_region
        %s258 = ssub.s32 %s18, 1
        %s259 = sand.u32 %s57, 1
        %s260 = scalar_lea.sflag [#allocation3], %s259
        %s261 = sand.u32 %s57, 1
        %s262 = smul.addr %s261, 64
        %s263 = scalar_lea.vmem [#allocation2], %s262
        // Predicated region
        $region45: #{tpu_custom_call.1} parent=43 // pred_check
          %p264 = pneg %p70
        $region46: #{tpu_custom_call.1} parent=43 // pred_check_branch
          %266 = sbr.rel (%p264) target = $region48
        $region47: #{tpu_custom_call.1} parent=43 // pred_region
          %267 = dma.done %s260, 1024
        $region48: #{tpu_custom_call.1} parent=43 // pred_fallthru
          _
        %s268 = smul.u32 8, %s23
        %p269 = scmp.lt.s32.totalorder %s268, 15
        %s270 = scalar_select %p269, %s268, 15
        %s271 = smul.addr %s270, 8
        %s272 = scalar_lea.vmem %s0, %s271
        %p273 = pneg %p44
        %p274 = pneg %p41
        %s275 = sand.u32 %s57, 1
        %s276 = scalar_lea.sflag [#allocation3], %s275
        %s277 = sand.u32 %s57, 1
        %s278 = smul.addr %s277, 64
        %s279 = scalar_lea.vmem [#allocation2], %s278
        %p280 = pneg %p70
        %p281 = pneg %p67
        %s282 = smul.u32 8, %s23
        %p283 = scmp.lt.s32.totalorder %s282, 15
        %s284 = scalar_select %p283, %s282, 15
        %s285 = smul.addr %s284, 8
        %s286 = scalar_lea.vmem %s2, %s285
        %p287 = pneg %p96
        %p288 = pneg %p93
        %p289 = pneg %p117
        %p290 = pneg %p114
        %p291 = pneg %p138
        %p292 = pneg %p135
        %p293 = pneg %p159
        %p294 = pneg %p156
        %p295 = pneg %p185
        %p296 = pneg %p182
        %s297 = sand.u32 %s172, 1
        %s298 = scalar_lea.sflag [#allocation4], %s297
        %s299 = sand.u32 %s172, 1
        %s300 = smul.addr %s299, 8
        %s301 = scalar_lea.vmem [#allocation5], %s300
        %s302 = smul.u32 8, %s23
        %p303 = scmp.lt.s32.totalorder %s302, 15
        %s304 = scalar_select %p303, %s302, 15
        %s305 = smul.addr %s304, 8
        %s306 = scalar_lea.vmem %s0, %s305
        %s307 = smul.u32 8, %s23
        %s308 = smul.u32 8, %s23
        %s309 = smul.u32 8, %s23
        %p310 = scmp.lt.s32.totalorder %s309, 15
        %s311 = scalar_select %p310, %s309, 15
        %s312 = smul.addr %s311, 8
        %s313 = scalar_lea.vmem %s2, %s312
        %s314 = smul.u32 8, %s23
        %v315 = vld [vmem:[%s306] sm:$0xff]
        %v316 = vld [vmem:[%s306 + $0x8] sm:$0xff]
        %v317 = vld [vmem:[%s306 + $0x10] sm:$0xff]
        %v318 = vld [vmem:[%s306 + $0x18] sm:$0xff]
        %v319 = vld [vmem:[%s306 + $0x20] sm:$0xff]
        %v320 = vld [vmem:[%s306 + $0x28] sm:$0xff]
        %v321 = vld [vmem:[%s306 + $0x30] sm:$0xff]
        %v322 = vld [vmem:[%s306 + $0x38] sm:$0xff]
        %v323 = vld [vmem:[%s263] sm:$0xff]
        %v324 = vld [vmem:[%s263 + $0x8] sm:$0xff]
        %v325 = vld [vmem:[%s263 + $0x10] sm:$0xff]
        %v326 = vld [vmem:[%s263 + $0x18] sm:$0xff]
        %v327 = vld [vmem:[%s263 + $0x20] sm:$0xff]
        %v328 = vld [vmem:[%s263 + $0x28] sm:$0xff]
        %v329 = vld [vmem:[%s263 + $0x30] sm:$0xff]
        %v330 = vld [vmem:[%s263 + $0x38] sm:$0xff]
        %v331 = vld [vmem:[%s313] sm:$0xff]
        %v332 = vld [vmem:[%s313 + $0x8] sm:$0xff]
        %v333 = vld [vmem:[%s313 + $0x10] sm:$0xff]
        %v334 = vld [vmem:[%s313 + $0x18] sm:$0xff]
        %v335 = vld [vmem:[%s313 + $0x20] sm:$0xff]
        %v336 = vld [vmem:[%s313 + $0x28] sm:$0xff]
        %v337 = vld [vmem:[%s313 + $0x30] sm:$0xff]
        %v338 = vld [vmem:[%s313 + $0x38] sm:$0xff]
        %v339 = vld [vmem:[%s4] sm:$0xff]
        %v340 = vld [vmem:[%s4 + $0x8] sm:$0xff]
        %v341 = vld [vmem:[%s4 + $0x10] sm:$0xff]
        %v342 = vld [vmem:[%s4 + $0x18] sm:$0xff]
        %v343 = vld [vmem:[%s3 + $0x4] sm:$0x1]
        %vm344 = vcmask 130048
        %v346 = vsel %vm344, %v323, 0
        %v349 = vsel %vm344, %v324, 0
        %v352 = vsel %vm344, %v325, 0
        %v355 = vsel %vm344, %v326, 0
        %v358 = vsel %vm344, %v327, 0
        %v361 = vsel %vm344, %v328, 0
        %v364 = vsel %vm344, %v329, 0
        %v367 = vsel %vm344, %v330, 0
        %369 = vmatprep.subr.mxu0 0.0
        %370 = vmatpush1.msra.mxu0 0.0
        %371 = vmatprep.subr.mxu0 0.0
        %372 = vmatpush1.msra.mxu0 0.0
        %373 = vmatprep.subr.mxu0 0.0
        %374 = vmatpush1.msra.mxu0 0.0
        %375 = vmatprep.subr.mxu0 0.0
        %376 = vmatpush1.msra.mxu0 0.0
        %377 = vmatprep.subr.mxu0 0.0
        %378 = vmatpush1.msra.mxu0 0.0
        %379 = vmatprep.subr.mxu0 0.0
        %380 = vmatpush1.msra.mxu0 0.0
        %381 = vmatprep.subr.mxu0 0.0
        %382 = vmatpush1.msra.mxu0 0.0
        %383 = vmatprep.subr.mxu0 0.0
        %384 = vmatpush1.msra.mxu0 0.0
        %385 = vmatprep.subr.mxu0 0.0
        %386 = vmatpush1.msra.mxu0 0.0
        %387 = vmatprep.subr.mxu0 0.0
        %388 = vmatpush1.msra.mxu0 0.0
        %389 = vmatprep.subr.mxu0 0.0
        %390 = vmatpush1.msra.mxu0 0.0
        %391 = vmatprep.subr.mxu0 0.0
        %392 = vmatpush1.msra.mxu0 0.0
        %393 = vmatprep.subr.mxu0 0.0
        %394 = vmatpush1.msra.mxu0 0.0
        %395 = vmatprep.subr.mxu0 0.0
        %396 = vmatpush1.msra.mxu0 0.0
        %397 = vmatprep.subr.mxu0 0.0
        %398 = vmatpush1.msra.mxu0 %v342
        %399 = vmatprep.subr.mxu0 0.0
        %400 = vmatpush1.msra.mxu0 %v341
        %401 = vmatprep.subr.mxu0 0.0
        %402 = vmatpush2.msra.mxu0 0.0
        %403 = vmatprep.subr.mxu0 0.0
        %404 = vmatpush2.msra.mxu0 0.0
        %405 = vmatprep.subr.mxu0 0.0
        %406 = vmatpush2.msra.mxu0 0.0
        %407 = vmatprep.subr.mxu0 0.0
        %408 = vmatpush2.msra.mxu0 0.0
        %409 = vmatprep.subr.mxu0 0.0
        %410 = vmatpush2.msra.mxu0 0.0
        %411 = vmatprep.subr.mxu0 0.0
        %412 = vmatpush2.msra.mxu0 0.0
        %413 = vmatprep.subr.mxu0 0.0
        %414 = vmatpush2.msra.mxu0 0.0
        %415 = vmatprep.subr.mxu0 0.0
        %416 = vmatpush2.msra.mxu0 0.0
        %417 = vmatprep.subr.mxu0 0.0
        %418 = vmatpush2.msra.mxu0 0.0
        %419 = vmatprep.subr.mxu0 0.0
        %420 = vmatpush2.msra.mxu0 0.0
        %421 = vmatprep.subr.mxu0 0.0
        %422 = vmatpush2.msra.mxu0 0.0
        %423 = vmatprep.subr.mxu0 0.0
        %424 = vmatpush2.msra.mxu0 0.0
        %425 = vmatprep.subr.mxu0 0.0
        %426 = vmatpush2.msra.mxu0 0.0
        %427 = vmatprep.subr.mxu0 0.0
        %428 = vmatpush2.msra.mxu0 0.0
        %429 = vmatprep.subr.mxu0 0.0
        %430 = vmatpush2.msra.mxu0 0.0
        %431 = vmatprep.subr.mxu0 0.0
        %432 = vmatpush2.msra.mxu0 0.0
        %433 = vmatprep.mubr.f32.mxu0 0.0
        %434 = vmatmul.mubr.f32.gmra.mxu0 %v346
        %v435 = vpop.f32.mrf.mxu0
        %v436 = vadd.f32 0.0, %v435
        %v437 = vpop.f32.mrf.mxu0
        %438 = vmatprep.mubr.f32.mxu0 0.0
        %439 = vmatmul.mubr.f32.gmra.mxu0 %v349
        %v440 = vpop.f32.mrf.mxu0
        %v441 = vadd.f32 0.0, %v440
        %v442 = vpop.f32.mrf.mxu0
        %443 = vmatprep.mubr.f32.mxu0 0.0
        %444 = vmatmul.mubr.f32.gmra.mxu0 %v352
        %v445 = vpop.f32.mrf.mxu0
        %v446 = vadd.f32 0.0, %v445
        %v447 = vpop.f32.mrf.mxu0
        %448 = vmatprep.mubr.f32.mxu0 0.0
        %449 = vmatmul.mubr.f32.gmra.mxu0 %v355
        %v450 = vpop.f32.mrf.mxu0
        %v451 = vadd.f32 0.0, %v450
        %v452 = vpop.f32.mrf.mxu0
        %453 = vmatprep.mubr.f32.mxu0 0.0
        %454 = vmatmul.mubr.f32.gmra.mxu0 %v358
        %v455 = vpop.f32.mrf.mxu0
        %v456 = vadd.f32 0.0, %v455
        %v457 = vpop.f32.mrf.mxu0
        %458 = vmatprep.mubr.f32.mxu0 0.0
        %459 = vmatmul.mubr.f32.gmra.mxu0 %v361
        %v460 = vpop.f32.mrf.mxu0
        %v461 = vadd.f32 0.0, %v460
        %v462 = vpop.f32.mrf.mxu0
        %463 = vmatprep.mubr.f32.mxu0 0.0
        %464 = vmatmul.mubr.f32.gmra.mxu0 %v364
        %v465 = vpop.f32.mrf.mxu0
        %v466 = vadd.f32 0.0, %v465
        %v467 = vpop.f32.mrf.mxu0
        %468 = vmatprep.mubr.f32.mxu0 0.0
        %469 = vmatmul.mubr.f32.gmra.mxu0 %v367
        %v470 = vpop.f32.mrf.mxu0
        %v471 = vadd.f32 0.0, %v470
        %v472 = vpop.f32.mrf.mxu0
        %473 = vdwg.mxu0
        %v475 = vsel %vm344, %v315, 0
        %v478 = vsel %vm344, %v316, 0
        %v481 = vsel %vm344, %v317, 0
        %v484 = vsel %vm344, %v318, 0
        %v487 = vsel %vm344, %v319, 0
        %v490 = vsel %vm344, %v320, 0
        %v493 = vsel %vm344, %v321, 0
        %v496 = vsel %vm344, %v322, 0
        %498 = vmatprep.subr.mxu0 0.0
        %499 = vmatpush1.msra.mxu0 0.0
        %500 = vmatprep.subr.mxu0 0.0
        %501 = vmatpush1.msra.mxu0 0.0
        %502 = vmatprep.subr.mxu0 0.0
        %503 = vmatpush1.msra.mxu0 0.0
        %504 = vmatprep.subr.mxu0 0.0
        %505 = vmatpush1.msra.mxu0 0.0
        %506 = vmatprep.subr.mxu0 0.0
        %507 = vmatpush1.msra.mxu0 0.0
        %508 = vmatprep.subr.mxu0 0.0
        %509 = vmatpush1.msra.mxu0 0.0
        %510 = vmatprep.subr.mxu0 0.0
        %511 = vmatpush1.msra.mxu0 0.0
        %512 = vmatprep.subr.mxu0 0.0
        %513 = vmatpush1.msra.mxu0 0.0
        %514 = vmatprep.subr.mxu0 0.0
        %515 = vmatpush1.msra.mxu0 0.0
        %516 = vmatprep.subr.mxu0 0.0
        %517 = vmatpush1.msra.mxu0 0.0
        %518 = vmatprep.subr.mxu0 0.0
        %519 = vmatpush1.msra.mxu0 0.0
        %520 = vmatprep.subr.mxu0 0.0
        %521 = vmatpush1.msra.mxu0 0.0
        %522 = vmatprep.subr.mxu0 0.0
        %523 = vmatpush1.msra.mxu0 0.0
        %524 = vmatprep.subr.mxu0 0.0
        %525 = vmatpush1.msra.mxu0 0.0
        %526 = vmatprep.subr.mxu0 0.0
        %527 = vmatpush1.msra.mxu0 %v340
        %528 = vmatprep.subr.mxu0 0.0
        %529 = vmatpush1.msra.mxu0 %v339
        %530 = vmatprep.subr.mxu0 0.0
        %531 = vmatpush2.msra.mxu0 0.0
        %532 = vmatprep.subr.mxu0 0.0
        %533 = vmatpush2.msra.mxu0 0.0
        %534 = vmatprep.subr.mxu0 0.0
        %535 = vmatpush2.msra.mxu0 0.0
        %536 = vmatprep.subr.mxu0 0.0
        %537 = vmatpush2.msra.mxu0 0.0
        %538 = vmatprep.subr.mxu0 0.0
        %539 = vmatpush2.msra.mxu0 0.0
        %540 = vmatprep.subr.mxu0 0.0
        %541 = vmatpush2.msra.mxu0 0.0
        %542 = vmatprep.subr.mxu0 0.0
        %543 = vmatpush2.msra.mxu0 0.0
        %544 = vmatprep.subr.mxu0 0.0
        %545 = vmatpush2.msra.mxu0 0.0
        %546 = vmatprep.subr.mxu0 0.0
        %547 = vmatpush2.msra.mxu0 0.0
        %548 = vmatprep.subr.mxu0 0.0
        %549 = vmatpush2.msra.mxu0 0.0
        %550 = vmatprep.subr.mxu0 0.0
        %551 = vmatpush2.msra.mxu0 0.0
        %552 = vmatprep.subr.mxu0 0.0
        %553 = vmatpush2.msra.mxu0 0.0
        %554 = vmatprep.subr.mxu0 0.0
        %555 = vmatpush2.msra.mxu0 0.0
        %556 = vmatprep.subr.mxu0 0.0
        %557 = vmatpush2.msra.mxu0 0.0
        %558 = vmatprep.subr.mxu0 0.0
        %559 = vmatpush2.msra.mxu0 0.0
        %560 = vmatprep.subr.mxu0 0.0
        %561 = vmatpush2.msra.mxu0 0.0
        %562 = vmatprep.mubr.f32.mxu0 0.0
        %563 = vmatmul.mubr.f32.gmra.mxu0 %v475
        %v564 = vpop.f32.mrf.mxu0
        %v565 = vadd.f32 %v436, %v564
        %v566 = vpop.f32.mrf.mxu0
        %567 = vmatprep.mubr.f32.mxu0 0.0
        %568 = vmatmul.mubr.f32.gmra.mxu0 %v478
        %v569 = vpop.f32.mrf.mxu0
        %v570 = vadd.f32 %v441, %v569
        %v571 = vpop.f32.mrf.mxu0
        %572 = vmatprep.mubr.f32.mxu0 0.0
        %573 = vmatmul.mubr.f32.gmra.mxu0 %v481
        %v574 = vpop.f32.mrf.mxu0
        %v575 = vadd.f32 %v446, %v574
        %v576 = vpop.f32.mrf.mxu0
        %577 = vmatprep.mubr.f32.mxu0 0.0
        %578 = vmatmul.mubr.f32.gmra.mxu0 %v484
        %v579 = vpop.f32.mrf.mxu0
        %v580 = vadd.f32 %v451, %v579
        %v581 = vpop.f32.mrf.mxu0
        %582 = vmatprep.mubr.f32.mxu0 0.0
        %583 = vmatmul.mubr.f32.gmra.mxu0 %v487
        %v584 = vpop.f32.mrf.mxu0
        %v585 = vadd.f32 %v456, %v584
        %v586 = vpop.f32.mrf.mxu0
        %587 = vmatprep.mubr.f32.mxu0 0.0
        %588 = vmatmul.mubr.f32.gmra.mxu0 %v490
        %v589 = vpop.f32.mrf.mxu0
        %v590 = vadd.f32 %v461, %v589
        %v591 = vpop.f32.mrf.mxu0
        %592 = vmatprep.mubr.f32.mxu0 0.0
        %593 = vmatmul.mubr.f32.gmra.mxu0 %v493
        %v594 = vpop.f32.mrf.mxu0
        %v595 = vadd.f32 %v466, %v594
        %v596 = vpop.f32.mrf.mxu0
        %597 = vmatprep.mubr.f32.mxu0 0.0
        %598 = vmatmul.mubr.f32.gmra.mxu0 %v496
        %v599 = vpop.f32.mrf.mxu0
        %v600 = vadd.f32 %v471, %v599
        %v601 = vpop.f32.mrf.mxu0
        %602 = vdwg.mxu0
        %v603 = vlaneseq
        %v604 = vshrl.u32 %v603, 7
        %v605 = vsub.s32 0, %v604
        %v606 = vrot.slane %v343, %v605
        %v607 = vadd.f32 %v565, %v606
        %v608 = vadd.f32 %v570, %v606
        %v609 = vadd.f32 %v575, %v606
        %v610 = vadd.f32 %v580, %v606
        %v611 = vadd.f32 %v585, %v606
        %v612 = vadd.f32 %v590, %v606
        %v613 = vadd.f32 %v595, %v606
        %v614 = vadd.f32 %v600, %v606
        %v615 = vld [vmem:[%s3] sm:$0x1]
        %v616 = vld [vmem:[%s3 + $0x1] sm:$0x1]
        %v617 = vld [vmem:[%s3 + $0x2] sm:$0x1]
        %v618 = vld [vmem:[%s3 + $0x3] sm:$0x1]
        %620 = vset.pattern.permute.xlu0 0
        %621 = vperm.xlu0 %620, %v331
        %v622 = vpop.permute.xlu0 %621
        %625 = vset.pattern.permute.xlu0 0
        %626 = vperm.xlu0 %625, %v332
        %v627 = vpop.permute.xlu0 %626
        %630 = vset.pattern.permute.xlu0 0
        %631 = vperm.xlu0 %630, %v333
        %v632 = vpop.permute.xlu0 %631
        %635 = vset.pattern.permute.xlu0 0
        %636 = vperm.xlu0 %635, %v334
        %v637 = vpop.permute.xlu0 %636
        %640 = vset.pattern.permute.xlu0 0
        %641 = vperm.xlu0 %640, %v335
        %v642 = vpop.permute.xlu0 %641
        %645 = vset.pattern.permute.xlu0 0
        %646 = vperm.xlu0 %645, %v336
        %v647 = vpop.permute.xlu0 %646
        %650 = vset.pattern.permute.xlu0 0
        %651 = vperm.xlu0 %650, %v337
        %v652 = vpop.permute.xlu0 %651
        %655 = vset.pattern.permute.xlu0 0
        %656 = vperm.xlu0 %655, %v338
        %v657 = vpop.permute.xlu0 %656
        %v659 = vlaneseq
        %v660 = vshrl.u32 %v659, 7
        %v661 = vsub.s32 0, %v660
        %v662 = vrot.slane %v615, %v661
        %v663 = vmul.f32 %v622, %v662
        %v664 = vmul.f32 %v627, %v662
        %v665 = vmul.f32 %v632, %v662
        %v666 = vmul.f32 %v637, %v662
        %v667 = vmul.f32 %v642, %v662
        %v668 = vmul.f32 %v647, %v662
        %v669 = vmul.f32 %v652, %v662
        %v670 = vmul.f32 %v657, %v662
        %671 = vset.pattern.permute.xlu0 1
        %672 = vperm.xlu0 %671, %v331
        %v673 = vpop.permute.xlu0 %672
        %675 = vset.pattern.permute.xlu0 1
        %676 = vperm.xlu0 %675, %v332
        %v677 = vpop.permute.xlu0 %676
        %679 = vset.pattern.permute.xlu0 1
        %680 = vperm.xlu0 %679, %v333
        %v681 = vpop.permute.xlu0 %680
        %683 = vset.pattern.permute.xlu0 1
        %684 = vperm.xlu0 %683, %v334
        %v685 = vpop.permute.xlu0 %684
        %687 = vset.pattern.permute.xlu0 1
        %688 = vperm.xlu0 %687, %v335
        %v689 = vpop.permute.xlu0 %688
        %691 = vset.pattern.permute.xlu0 1
        %692 = vperm.xlu0 %691, %v336
        %v693 = vpop.permute.xlu0 %692
        %695 = vset.pattern.permute.xlu0 1
        %696 = vperm.xlu0 %695, %v337
        %v697 = vpop.permute.xlu0 %696
        %699 = vset.pattern.permute.xlu0 1
        %700 = vperm.xlu0 %699, %v338
        %v701 = vpop.permute.xlu0 %700
        %v703 = vlaneseq
        %v704 = vshrl.u32 %v703, 7
        %v705 = vsub.s32 0, %v704
        %v706 = vrot.slane %v616, %v705
        %v707 = vmul.f32 %v673, %v706
        %v708 = vmul.f32 %v677, %v706
        %v709 = vmul.f32 %v681, %v706
        %v710 = vmul.f32 %v685, %v706
        %v711 = vmul.f32 %v689, %v706
        %v712 = vmul.f32 %v693, %v706
        %v713 = vmul.f32 %v697, %v706
        %v714 = vmul.f32 %v701, %v706
        %v715 = vadd.f32 %v663, %v707
        %v716 = vadd.f32 %v664, %v708
        %v717 = vadd.f32 %v665, %v709
        %v718 = vadd.f32 %v666, %v710
        %v719 = vadd.f32 %v667, %v711
        %v720 = vadd.f32 %v668, %v712
        %v721 = vadd.f32 %v669, %v713
        %v722 = vadd.f32 %v670, %v714
        %723 = vset.pattern.permute.xlu0 2
        %724 = vperm.xlu0 %723, %v331
        %v725 = vpop.permute.xlu0 %724
        %727 = vset.pattern.permute.xlu0 2
        %728 = vperm.xlu0 %727, %v332
        %v729 = vpop.permute.xlu0 %728
        %731 = vset.pattern.permute.xlu0 2
        %732 = vperm.xlu0 %731, %v333
        %v733 = vpop.permute.xlu0 %732
        %735 = vset.pattern.permute.xlu0 2
        %736 = vperm.xlu0 %735, %v334
        %v737 = vpop.permute.xlu0 %736
        %739 = vset.pattern.permute.xlu0 2
        %740 = vperm.xlu0 %739, %v335
        %v741 = vpop.permute.xlu0 %740
        %743 = vset.pattern.permute.xlu0 2
        %744 = vperm.xlu0 %743, %v336
        %v745 = vpop.permute.xlu0 %744
        %747 = vset.pattern.permute.xlu0 2
        %748 = vperm.xlu0 %747, %v337
        %v749 = vpop.permute.xlu0 %748
        %751 = vset.pattern.permute.xlu0 2
        %752 = vperm.xlu0 %751, %v338
        %v753 = vpop.permute.xlu0 %752
        %v755 = vlaneseq
        %v756 = vshrl.u32 %v755, 7
        %v757 = vsub.s32 0, %v756
        %v758 = vrot.slane %v617, %v757
        %v759 = vmul.f32 %v725, %v758
        %v760 = vmul.f32 %v729, %v758
        %v761 = vmul.f32 %v733, %v758
        %v762 = vmul.f32 %v737, %v758
        %v763 = vmul.f32 %v741, %v758
        %v764 = vmul.f32 %v745, %v758
        %v765 = vmul.f32 %v749, %v758
        %v766 = vmul.f32 %v753, %v758
        %v767 = vadd.f32 %v715, %v759
        %v768 = vadd.f32 %v716, %v760
        %v769 = vadd.f32 %v717, %v761
        %v770 = vadd.f32 %v718, %v762
        %v771 = vadd.f32 %v719, %v763
        %v772 = vadd.f32 %v720, %v764
        %v773 = vadd.f32 %v721, %v765
        %v774 = vadd.f32 %v722, %v766
        %v775 = vlaneseq
        %v776 = vshrl.u32 %v775, 7
        %v777 = vsub.s32 0, %v776
        %v778 = vrot.slane %v618, %v777
        %v779 = vadd.f32 %v767, %v778
        %v780 = vadd.f32 %v768, %v778
        %v781 = vadd.f32 %v769, %v778
        %v782 = vadd.f32 %v770, %v778
        %v783 = vadd.f32 %v771, %v778
        %v784 = vadd.f32 %v772, %v778
        %v785 = vadd.f32 %v773, %v778
        %v786 = vadd.f32 %v774, %v778
        %795 = vrot.lane.b32.xlu0 %v779, 120
        %v796 = vpop.permute.xlu0 %795
        %797 = vrot.lane.b32.xlu0 %v780, 120
        %v798 = vpop.permute.xlu0 %797
        %799 = vrot.lane.b32.xlu0 %v781, 120
        %v800 = vpop.permute.xlu0 %799
        %801 = vrot.lane.b32.xlu0 %v782, 120
        %v802 = vpop.permute.xlu0 %801
        %803 = vrot.lane.b32.xlu0 %v783, 120
        %v804 = vpop.permute.xlu0 %803
        %805 = vrot.lane.b32.xlu0 %v784, 120
        %v806 = vpop.permute.xlu0 %805
        %807 = vrot.lane.b32.xlu0 %v785, 120
        %v808 = vpop.permute.xlu0 %807
        %809 = vrot.lane.b32.xlu0 %v786, 120
        %v810 = vpop.permute.xlu0 %809
        %811 = vrot.lane.b32.xlu0 %v779, 112
        %v812 = vpop.permute.xlu0 %811
        %813 = vrot.lane.b32.xlu0 %v780, 112
        %v814 = vpop.permute.xlu0 %813
        %815 = vrot.lane.b32.xlu0 %v781, 112
        %v816 = vpop.permute.xlu0 %815
        %817 = vrot.lane.b32.xlu0 %v782, 112
        %v818 = vpop.permute.xlu0 %817
        %819 = vrot.lane.b32.xlu0 %v783, 112
        %v820 = vpop.permute.xlu0 %819
        %821 = vrot.lane.b32.xlu0 %v784, 112
        %v822 = vpop.permute.xlu0 %821
        %823 = vrot.lane.b32.xlu0 %v785, 112
        %v824 = vpop.permute.xlu0 %823
        %825 = vrot.lane.b32.xlu0 %v786, 112
        %v826 = vpop.permute.xlu0 %825
        %827 = vrot.lane.b32.xlu0 %v779, 104
        %v828 = vpop.permute.xlu0 %827
        %829 = vrot.lane.b32.xlu0 %v780, 104
        %v830 = vpop.permute.xlu0 %829
        %831 = vrot.lane.b32.xlu0 %v781, 104
        %v832 = vpop.permute.xlu0 %831
        %833 = vrot.lane.b32.xlu0 %v782, 104
        %v834 = vpop.permute.xlu0 %833
        %835 = vrot.lane.b32.xlu0 %v783, 104
        %v836 = vpop.permute.xlu0 %835
        %837 = vrot.lane.b32.xlu0 %v784, 104
        %v838 = vpop.permute.xlu0 %837
        %839 = vrot.lane.b32.xlu0 %v785, 104
        %v840 = vpop.permute.xlu0 %839
        %841 = vrot.lane.b32.xlu0 %v786, 104
        %v842 = vpop.permute.xlu0 %841
        %851 = vrot.lane.b32.xlu0 %v607, 120
        %v852 = vpop.permute.xlu0 %851
        %853 = vrot.lane.b32.xlu0 %v608, 120
        %v854 = vpop.permute.xlu0 %853
        %855 = vrot.lane.b32.xlu0 %v609, 120
        %v856 = vpop.permute.xlu0 %855
        %857 = vrot.lane.b32.xlu0 %v610, 120
        %v858 = vpop.permute.xlu0 %857
        %859 = vrot.lane.b32.xlu0 %v611, 120
        %v860 = vpop.permute.xlu0 %859
        %861 = vrot.lane.b32.xlu0 %v612, 120
        %v862 = vpop.permute.xlu0 %861
        %863 = vrot.lane.b32.xlu0 %v613, 120
        %v864 = vpop.permute.xlu0 %863
        %865 = vrot.lane.b32.xlu0 %v614, 120
        %v866 = vpop.permute.xlu0 %865
        %867 = vrot.lane.b32.xlu0 %v607, 112
        %v868 = vpop.permute.xlu0 %867
        %869 = vrot.lane.b32.xlu0 %v608, 112
        %v870 = vpop.permute.xlu0 %869
        %871 = vrot.lane.b32.xlu0 %v609, 112
        %v872 = vpop.permute.xlu0 %871
        %873 = vrot.lane.b32.xlu0 %v610, 112
        %v874 = vpop.permute.xlu0 %873
        %875 = vrot.lane.b32.xlu0 %v611, 112
        %v876 = vpop.permute.xlu0 %875
        %877 = vrot.lane.b32.xlu0 %v612, 112
        %v878 = vpop.permute.xlu0 %877
        %879 = vrot.lane.b32.xlu0 %v613, 112
        %v880 = vpop.permute.xlu0 %879
        %881 = vrot.lane.b32.xlu0 %v614, 112
        %v882 = vpop.permute.xlu0 %881
        %883 = vrot.lane.b32.xlu0 %v607, 104
        %v884 = vpop.permute.xlu0 %883
        %885 = vrot.lane.b32.xlu0 %v608, 104
        %v886 = vpop.permute.xlu0 %885
        %887 = vrot.lane.b32.xlu0 %v609, 104
        %v888 = vpop.permute.xlu0 %887
        %889 = vrot.lane.b32.xlu0 %v610, 104
        %v890 = vpop.permute.xlu0 %889
        %891 = vrot.lane.b32.xlu0 %v611, 104
        %v892 = vpop.permute.xlu0 %891
        %893 = vrot.lane.b32.xlu0 %v612, 104
        %v894 = vpop.permute.xlu0 %893
        %895 = vrot.lane.b32.xlu0 %v613, 104
        %v896 = vpop.permute.xlu0 %895
        %897 = vrot.lane.b32.xlu0 %v614, 104
        %v898 = vpop.permute.xlu0 %897
        %vm899 = vcmask 64512
        %v900 = vsel %vm899, %v779, 0
        %v902 = vsel %vm899, %v607, 0
        %904 = vmatprep.subr.mxu0 0.0
        %905 = vmatpush1.xpose.msra.mxu0 0.0
        %906 = vmatprep.subr.mxu0 0.0
        %907 = vmatpush1.xpose.msra.mxu0 0.0
        %908 = vmatprep.subr.mxu0 0.0
        %909 = vmatpush1.xpose.msra.mxu0 0.0
        %910 = vmatprep.subr.mxu0 0.0
        %911 = vmatpush1.xpose.msra.mxu0 0.0
        %912 = vmatprep.subr.mxu0 0.0
        %913 = vmatpush1.xpose.msra.mxu0 0.0
        %914 = vmatprep.subr.mxu0 0.0
        %915 = vmatpush1.xpose.msra.mxu0 0.0
        %916 = vmatprep.subr.mxu0 0.0
        %917 = vmatpush1.xpose.msra.mxu0 0.0
        %918 = vmatprep.subr.mxu0 0.0
        %919 = vmatpush1.xpose.msra.mxu0 0.0
        %920 = vmatprep.subr.mxu0 0.0
        %921 = vmatpush1.xpose.msra.mxu0 0.0
        %922 = vmatprep.subr.mxu0 0.0
        %923 = vmatpush1.xpose.msra.mxu0 0.0
        %924 = vmatprep.subr.mxu0 0.0
        %925 = vmatpush1.xpose.msra.mxu0 0.0
        %926 = vmatprep.subr.mxu0 0.0
        %927 = vmatpush1.xpose.msra.mxu0 0.0
        %928 = vmatprep.subr.mxu0 0.0
        %929 = vmatpush1.xpose.msra.mxu0 0.0
        %930 = vmatprep.subr.mxu0 0.0
        %931 = vmatpush1.xpose.msra.mxu0 0.0
        %932 = vmatprep.subr.mxu0 0.0
        %933 = vmatpush1.xpose.msra.mxu0 0.0
        %934 = vmatprep.subr.mxu0 0.0
        %935 = vmatpush1.xpose.msra.mxu0 %v902
        %936 = vmatprep.subr.mxu0 0.0
        %937 = vmatpush2.xpose.msra.mxu0 0.0
        %938 = vmatprep.subr.mxu0 0.0
        %939 = vmatpush2.xpose.msra.mxu0 0.0
        %940 = vmatprep.subr.mxu0 0.0
        %941 = vmatpush2.xpose.msra.mxu0 0.0
        %942 = vmatprep.subr.mxu0 0.0
        %943 = vmatpush2.xpose.msra.mxu0 0.0
        %944 = vmatprep.subr.mxu0 0.0
        %945 = vmatpush2.xpose.msra.mxu0 0.0
        %946 = vmatprep.subr.mxu0 0.0
        %947 = vmatpush2.xpose.msra.mxu0 0.0
        %948 = vmatprep.subr.mxu0 0.0
        %949 = vmatpush2.xpose.msra.mxu0 0.0
        %950 = vmatprep.subr.mxu0 0.0
        %951 = vmatpush2.xpose.msra.mxu0 0.0
        %952 = vmatprep.subr.mxu0 0.0
        %953 = vmatpush2.xpose.msra.mxu0 0.0
        %954 = vmatprep.subr.mxu0 0.0
        %955 = vmatpush2.xpose.msra.mxu0 0.0
        %956 = vmatprep.subr.mxu0 0.0
        %957 = vmatpush2.xpose.msra.mxu0 0.0
        %958 = vmatprep.subr.mxu0 0.0
        %959 = vmatpush2.xpose.msra.mxu0 0.0
        %960 = vmatprep.subr.mxu0 0.0
        %961 = vmatpush2.xpose.msra.mxu0 0.0
        %962 = vmatprep.subr.mxu0 0.0
        %963 = vmatpush2.xpose.msra.mxu0 0.0
        %964 = vmatprep.subr.mxu0 0.0
        %965 = vmatpush2.xpose.msra.mxu0 0.0
        %966 = vmatprep.subr.mxu0 0.0
        %967 = vmatpush2.xpose.msra.mxu0 0.0
        %968 = vmatprep.mubr.f32.mxu0 0.0
        %969 = vmatmul.mubr.f32.gmra.mxu0 %v900
        %v970 = vpop.f32.mrf.mxu0
        %v971 = vadd.f32 0.0, %v970
        %v972 = vpop.f32.mrf.mxu0
        %973 = vdwg.mxu0
        %v974 = vsel %vm899, %v780, 0
        %v976 = vsel %vm899, %v608, 0
        %978 = vmatprep.subr.mxu0 0.0
        %979 = vmatpush1.xpose.msra.mxu0 0.0
        %980 = vmatprep.subr.mxu0 0.0
        %981 = vmatpush1.xpose.msra.mxu0 0.0
        %982 = vmatprep.subr.mxu0 0.0
        %983 = vmatpush1.xpose.msra.mxu0 0.0
        %984 = vmatprep.subr.mxu0 0.0
        %985 = vmatpush1.xpose.msra.mxu0 0.0
        %986 = vmatprep.subr.mxu0 0.0
        %987 = vmatpush1.xpose.msra.mxu0 0.0
        %988 = vmatprep.subr.mxu0 0.0
        %989 = vmatpush1.xpose.msra.mxu0 0.0
        %990 = vmatprep.subr.mxu0 0.0
        %991 = vmatpush1.xpose.msra.mxu0 0.0
        %992 = vmatprep.subr.mxu0 0.0
        %993 = vmatpush1.xpose.msra.mxu0 0.0
        %994 = vmatprep.subr.mxu0 0.0
        %995 = vmatpush1.xpose.msra.mxu0 0.0
        %996 = vmatprep.subr.mxu0 0.0
        %997 = vmatpush1.xpose.msra.mxu0 0.0
        %998 = vmatprep.subr.mxu0 0.0
        %999 = vmatpush1.xpose.msra.mxu0 0.0
        %1000 = vmatprep.subr.mxu0 0.0
        %1001 = vmatpush1.xpose.msra.mxu0 0.0
        %1002 = vmatprep.subr.mxu0 0.0
        %1003 = vmatpush1.xpose.msra.mxu0 0.0
        %1004 = vmatprep.subr.mxu0 0.0
        %1005 = vmatpush1.xpose.msra.mxu0 0.0
        %1006 = vmatprep.subr.mxu0 0.0
        %1007 = vmatpush1.xpose.msra.mxu0 0.0
        %1008 = vmatprep.subr.mxu0 0.0
        %1009 = vmatpush1.xpose.msra.mxu0 %v976
        %1010 = vmatprep.subr.mxu0 0.0
        %1011 = vmatpush2.xpose.msra.mxu0 0.0
        %1012 = vmatprep.subr.mxu0 0.0
        %1013 = vmatpush2.xpose.msra.mxu0 0.0
        %1014 = vmatprep.subr.mxu0 0.0
        %1015 = vmatpush2.xpose.msra.mxu0 0.0
        %1016 = vmatprep.subr.mxu0 0.0
        %1017 = vmatpush2.xpose.msra.mxu0 0.0
        %1018 = vmatprep.subr.mxu0 0.0
        %1019 = vmatpush2.xpose.msra.mxu0 0.0
        %1020 = vmatprep.subr.mxu0 0.0
        %1021 = vmatpush2.xpose.msra.mxu0 0.0
        %1022 = vmatprep.subr.mxu0 0.0
        %1023 = vmatpush2.xpose.msra.mxu0 0.0
        %1024 = vmatprep.subr.mxu0 0.0
        %1025 = vmatpush2.xpose.msra.mxu0 0.0
        %1026 = vmatprep.subr.mxu0 0.0
        %1027 = vmatpush2.xpose.msra.mxu0 0.0
        %1028 = vmatprep.subr.mxu0 0.0
        %1029 = vmatpush2.xpose.msra.mxu0 0.0
        %1030 = vmatprep.subr.mxu0 0.0
        %1031 = vmatpush2.xpose.msra.mxu0 0.0
        %1032 = vmatprep.subr.mxu0 0.0
        %1033 = vmatpush2.xpose.msra.mxu0 0.0
        %1034 = vmatprep.subr.mxu0 0.0
        %1035 = vmatpush2.xpose.msra.mxu0 0.0
        %1036 = vmatprep.subr.mxu0 0.0
        %1037 = vmatpush2.xpose.msra.mxu0 0.0
        %1038 = vmatprep.subr.mxu0 0.0
        %1039 = vmatpush2.xpose.msra.mxu0 0.0
        %1040 = vmatprep.subr.mxu0 0.0
        %1041 = vmatpush2.xpose.msra.mxu0 0.0
        %1042 = vmatprep.mubr.f32.mxu0 0.0
        %1043 = vmatmul.mubr.f32.gmra.mxu0 %v974
        %v1044 = vpop.f32.mrf.mxu0
        %v1045 = vadd.f32 0.0, %v1044
        %v1046 = vpop.f32.mrf.mxu0
        %1047 = vdwg.mxu0
        %v1048 = vsel %vm899, %v781, 0
        %v1050 = vsel %vm899, %v609, 0
        %1052 = vmatprep.subr.mxu0 0.0
        %1053 = vmatpush1.xpose.msra.mxu0 0.0
        %1054 = vmatprep.subr.mxu0 0.0
        %1055 = vmatpush1.xpose.msra.mxu0 0.0
        %1056 = vmatprep.subr.mxu0 0.0
        %1057 = vmatpush1.xpose.msra.mxu0 0.0
        %1058 = vmatprep.subr.mxu0 0.0
        %1059 = vmatpush1.xpose.msra.mxu0 0.0
        %1060 = vmatprep.subr.mxu0 0.0
        %1061 = vmatpush1.xpose.msra.mxu0 0.0
        %1062 = vmatprep.subr.mxu0 0.0
        %1063 = vmatpush1.xpose.msra.mxu0 0.0
        %1064 = vmatprep.subr.mxu0 0.0
        %1065 = vmatpush1.xpose.msra.mxu0 0.0
        %1066 = vmatprep.subr.mxu0 0.0
        %1067 = vmatpush1.xpose.msra.mxu0 0.0
        %1068 = vmatprep.subr.mxu0 0.0
        %1069 = vmatpush1.xpose.msra.mxu0 0.0
        %1070 = vmatprep.subr.mxu0 0.0
        %1071 = vmatpush1.xpose.msra.mxu0 0.0
        %1072 = vmatprep.subr.mxu0 0.0
        %1073 = vmatpush1.xpose.msra.mxu0 0.0
        %1074 = vmatprep.subr.mxu0 0.0
        %1075 = vmatpush1.xpose.msra.mxu0 0.0
        %1076 = vmatprep.subr.mxu0 0.0
        %1077 = vmatpush1.xpose.msra.mxu0 0.0
        %1078 = vmatprep.subr.mxu0 0.0
        %1079 = vmatpush1.xpose.msra.mxu0 0.0
        %1080 = vmatprep.subr.mxu0 0.0
        %1081 = vmatpush1.xpose.msra.mxu0 0.0
        %1082 = vmatprep.subr.mxu0 0.0
        %1083 = vmatpush1.xpose.msra.mxu0 %v1050
        %1084 = vmatprep.subr.mxu0 0.0
        %1085 = vmatpush2.xpose.msra.mxu0 0.0
        %1086 = vmatprep.subr.mxu0 0.0
        %1087 = vmatpush2.xpose.msra.mxu0 0.0
        %1088 = vmatprep.subr.mxu0 0.0
        %1089 = vmatpush2.xpose.msra.mxu0 0.0
        %1090 = vmatprep.subr.mxu0 0.0
        %1091 = vmatpush2.xpose.msra.mxu0 0.0
        %1092 = vmatprep.subr.mxu0 0.0
        %1093 = vmatpush2.xpose.msra.mxu0 0.0
        %1094 = vmatprep.subr.mxu0 0.0
        %1095 = vmatpush2.xpose.msra.mxu0 0.0
        %1096 = vmatprep.subr.mxu0 0.0
        %1097 = vmatpush2.xpose.msra.mxu0 0.0
        %1098 = vmatprep.subr.mxu0 0.0
        %1099 = vmatpush2.xpose.msra.mxu0 0.0
        %1100 = vmatprep.subr.mxu0 0.0
        %1101 = vmatpush2.xpose.msra.mxu0 0.0
        %1102 = vmatprep.subr.mxu0 0.0
        %1103 = vmatpush2.xpose.msra.mxu0 0.0
        %1104 = vmatprep.subr.mxu0 0.0
        %1105 = vmatpush2.xpose.msra.mxu0 0.0
        %1106 = vmatprep.subr.mxu0 0.0
        %1107 = vmatpush2.xpose.msra.mxu0 0.0
        %1108 = vmatprep.subr.mxu0 0.0
        %1109 = vmatpush2.xpose.msra.mxu0 0.0
        %1110 = vmatprep.subr.mxu0 0.0
        %1111 = vmatpush2.xpose.msra.mxu0 0.0
        %1112 = vmatprep.subr.mxu0 0.0
        %1113 = vmatpush2.xpose.msra.mxu0 0.0
        %1114 = vmatprep.subr.mxu0 0.0
        %1115 = vmatpush2.xpose.msra.mxu0 0.0
        %1116 = vmatprep.mubr.f32.mxu0 0.0
        %1117 = vmatmul.mubr.f32.gmra.mxu0 %v1048
        %v1118 = vpop.f32.mrf.mxu0
        %v1119 = vadd.f32 0.0, %v1118
        %v1120 = vpop.f32.mrf.mxu0
        %1121 = vdwg.mxu0
        %v1122 = vsel %vm899, %v782, 0
        %v1124 = vsel %vm899, %v610, 0
        %1126 = vmatprep.subr.mxu0 0.0
        %1127 = vmatpush1.xpose.msra.mxu0 0.0
        %1128 = vmatprep.subr.mxu0 0.0
        %1129 = vmatpush1.xpose.msra.mxu0 0.0
        %1130 = vmatprep.subr.mxu0 0.0
        %1131 = vmatpush1.xpose.msra.mxu0 0.0
        %1132 = vmatprep.subr.mxu0 0.0
        %1133 = vmatpush1.xpose.msra.mxu0 0.0
        %1134 = vmatprep.subr.mxu0 0.0
        %1135 = vmatpush1.xpose.msra.mxu0 0.0
        %1136 = vmatprep.subr.mxu0 0.0
        %1137 = vmatpush1.xpose.msra.mxu0 0.0
        %1138 = vmatprep.subr.mxu0 0.0
        %1139 = vmatpush1.xpose.msra.mxu0 0.0
        %1140 = vmatprep.subr.mxu0 0.0
        %1141 = vmatpush1.xpose.msra.mxu0 0.0
        %1142 = vmatprep.subr.mxu0 0.0
        %1143 = vmatpush1.xpose.msra.mxu0 0.0
        %1144 = vmatprep.subr.mxu0 0.0
        %1145 = vmatpush1.xpose.msra.mxu0 0.0
        %1146 = vmatprep.subr.mxu0 0.0
        %1147 = vmatpush1.xpose.msra.mxu0 0.0
        %1148 = vmatprep.subr.mxu0 0.0
        %1149 = vmatpush1.xpose.msra.mxu0 0.0
        %1150 = vmatprep.subr.mxu0 0.0
        %1151 = vmatpush1.xpose.msra.mxu0 0.0
        %1152 = vmatprep.subr.mxu0 0.0
        %1153 = vmatpush1.xpose.msra.mxu0 0.0
        %1154 = vmatprep.subr.mxu0 0.0
        %1155 = vmatpush1.xpose.msra.mxu0 0.0
        %1156 = vmatprep.subr.mxu0 0.0
        %1157 = vmatpush1.xpose.msra.mxu0 %v1124
        %1158 = vmatprep.subr.mxu0 0.0
        %1159 = vmatpush2.xpose.msra.mxu0 0.0
        %1160 = vmatprep.subr.mxu0 0.0
        %1161 = vmatpush2.xpose.msra.mxu0 0.0
        %1162 = vmatprep.subr.mxu0 0.0
        %1163 = vmatpush2.xpose.msra.mxu0 0.0
        %1164 = vmatprep.subr.mxu0 0.0
        %1165 = vmatpush2.xpose.msra.mxu0 0.0
        %1166 = vmatprep.subr.mxu0 0.0
        %1167 = vmatpush2.xpose.msra.mxu0 0.0
        %1168 = vmatprep.subr.mxu0 0.0
        %1169 = vmatpush2.xpose.msra.mxu0 0.0
        %1170 = vmatprep.subr.mxu0 0.0
        %1171 = vmatpush2.xpose.msra.mxu0 0.0
        %1172 = vmatprep.subr.mxu0 0.0
        %1173 = vmatpush2.xpose.msra.mxu0 0.0
        %1174 = vmatprep.subr.mxu0 0.0
        %1175 = vmatpush2.xpose.msra.mxu0 0.0
        %1176 = vmatprep.subr.mxu0 0.0
        %1177 = vmatpush2.xpose.msra.mxu0 0.0
        %1178 = vmatprep.subr.mxu0 0.0
        %1179 = vmatpush2.xpose.msra.mxu0 0.0
        %1180 = vmatprep.subr.mxu0 0.0
        %1181 = vmatpush2.xpose.msra.mxu0 0.0
        %1182 = vmatprep.subr.mxu0 0.0
        %1183 = vmatpush2.xpose.msra.mxu0 0.0
        %1184 = vmatprep.subr.mxu0 0.0
        %1185 = vmatpush2.xpose.msra.mxu0 0.0
        %1186 = vmatprep.subr.mxu0 0.0
        %1187 = vmatpush2.xpose.msra.mxu0 0.0
        %1188 = vmatprep.subr.mxu0 0.0
        %1189 = vmatpush2.xpose.msra.mxu0 0.0
        %1190 = vmatprep.mubr.f32.mxu0 0.0
        %1191 = vmatmul.mubr.f32.gmra.mxu0 %v1122
        %v1192 = vpop.f32.mrf.mxu0
        %v1193 = vadd.f32 0.0, %v1192
        %v1194 = vpop.f32.mrf.mxu0
        %1195 = vdwg.mxu0
        %v1196 = vsel %vm899, %v783, 0
        %v1198 = vsel %vm899, %v611, 0
        %1200 = vmatprep.subr.mxu0 0.0
        %1201 = vmatpush1.xpose.msra.mxu0 0.0
        %1202 = vmatprep.subr.mxu0 0.0
        %1203 = vmatpush1.xpose.msra.mxu0 0.0
        %1204 = vmatprep.subr.mxu0 0.0
        %1205 = vmatpush1.xpose.msra.mxu0 0.0
        %1206 = vmatprep.subr.mxu0 0.0
        %1207 = vmatpush1.xpose.msra.mxu0 0.0
        %1208 = vmatprep.subr.mxu0 0.0
        %1209 = vmatpush1.xpose.msra.mxu0 0.0
        %1210 = vmatprep.subr.mxu0 0.0
        %1211 = vmatpush1.xpose.msra.mxu0 0.0
        %1212 = vmatprep.subr.mxu0 0.0
        %1213 = vmatpush1.xpose.msra.mxu0 0.0
        %1214 = vmatprep.subr.mxu0 0.0
        %1215 = vmatpush1.xpose.msra.mxu0 0.0
        %1216 = vmatprep.subr.mxu0 0.0
        %1217 = vmatpush1.xpose.msra.mxu0 0.0
        %1218 = vmatprep.subr.mxu0 0.0
        %1219 = vmatpush1.xpose.msra.mxu0 0.0
        %1220 = vmatprep.subr.mxu0 0.0
        %1221 = vmatpush1.xpose.msra.mxu0 0.0
        %1222 = vmatprep.subr.mxu0 0.0
        %1223 = vmatpush1.xpose.msra.mxu0 0.0
        %1224 = vmatprep.subr.mxu0 0.0
        %1225 = vmatpush1.xpose.msra.mxu0 0.0
        %1226 = vmatprep.subr.mxu0 0.0
        %1227 = vmatpush1.xpose.msra.mxu0 0.0
        %1228 = vmatprep.subr.mxu0 0.0
        %1229 = vmatpush1.xpose.msra.mxu0 0.0
        %1230 = vmatprep.subr.mxu0 0.0
        %1231 = vmatpush1.xpose.msra.mxu0 %v1198
        %1232 = vmatprep.subr.mxu0 0.0
        %1233 = vmatpush2.xpose.msra.mxu0 0.0
        %1234 = vmatprep.subr.mxu0 0.0
        %1235 = vmatpush2.xpose.msra.mxu0 0.0
        %1236 = vmatprep.subr.mxu0 0.0
        %1237 = vmatpush2.xpose.msra.mxu0 0.0
        %1238 = vmatprep.subr.mxu0 0.0
        %1239 = vmatpush2.xpose.msra.mxu0 0.0
        %1240 = vmatprep.subr.mxu0 0.0
        %1241 = vmatpush2.xpose.msra.mxu0 0.0
        %1242 = vmatprep.subr.mxu0 0.0
        %1243 = vmatpush2.xpose.msra.mxu0 0.0
        %1244 = vmatprep.subr.mxu0 0.0
        %1245 = vmatpush2.xpose.msra.mxu0 0.0
        %1246 = vmatprep.subr.mxu0 0.0
        %1247 = vmatpush2.xpose.msra.mxu0 0.0
        %1248 = vmatprep.subr.mxu0 0.0
        %1249 = vmatpush2.xpose.msra.mxu0 0.0
        %1250 = vmatprep.subr.mxu0 0.0
        %1251 = vmatpush2.xpose.msra.mxu0 0.0
        %1252 = vmatprep.subr.mxu0 0.0
        %1253 = vmatpush2.xpose.msra.mxu0 0.0
        %1254 = vmatprep.subr.mxu0 0.0
        %1255 = vmatpush2.xpose.msra.mxu0 0.0
        %1256 = vmatprep.subr.mxu0 0.0
        %1257 = vmatpush2.xpose.msra.mxu0 0.0
        %1258 = vmatprep.subr.mxu0 0.0
        %1259 = vmatpush2.xpose.msra.mxu0 0.0
        %1260 = vmatprep.subr.mxu0 0.0
        %1261 = vmatpush2.xpose.msra.mxu0 0.0
        %1262 = vmatprep.subr.mxu0 0.0
        %1263 = vmatpush2.xpose.msra.mxu0 0.0
        %1264 = vmatprep.mubr.f32.mxu0 0.0
        %1265 = vmatmul.mubr.f32.gmra.mxu0 %v1196
        %v1266 = vpop.f32.mrf.mxu0
        %v1267 = vadd.f32 0.0, %v1266
        %v1268 = vpop.f32.mrf.mxu0
        %1269 = vdwg.mxu0
        %v1270 = vsel %vm899, %v784, 0
        %v1272 = vsel %vm899, %v612, 0
        %1274 = vmatprep.subr.mxu0 0.0
        %1275 = vmatpush1.xpose.msra.mxu0 0.0
        %1276 = vmatprep.subr.mxu0 0.0
        %1277 = vmatpush1.xpose.msra.mxu0 0.0
        %1278 = vmatprep.subr.mxu0 0.0
        %1279 = vmatpush1.xpose.msra.mxu0 0.0
        %1280 = vmatprep.subr.mxu0 0.0
        %1281 = vmatpush1.xpose.msra.mxu0 0.0
        %1282 = vmatprep.subr.mxu0 0.0
        %1283 = vmatpush1.xpose.msra.mxu0 0.0
        %1284 = vmatprep.subr.mxu0 0.0
        %1285 = vmatpush1.xpose.msra.mxu0 0.0
        %1286 = vmatprep.subr.mxu0 0.0
        %1287 = vmatpush1.xpose.msra.mxu0 0.0
        %1288 = vmatprep.subr.mxu0 0.0
        %1289 = vmatpush1.xpose.msra.mxu0 0.0
        %1290 = vmatprep.subr.mxu0 0.0
        %1291 = vmatpush1.xpose.msra.mxu0 0.0
        %1292 = vmatprep.subr.mxu0 0.0
        %1293 = vmatpush1.xpose.msra.mxu0 0.0
        %1294 = vmatprep.subr.mxu0 0.0
        %1295 = vmatpush1.xpose.msra.mxu0 0.0
        %1296 = vmatprep.subr.mxu0 0.0
        %1297 = vmatpush1.xpose.msra.mxu0 0.0
        %1298 = vmatprep.subr.mxu0 0.0
        %1299 = vmatpush1.xpose.msra.mxu0 0.0
        %1300 = vmatprep.subr.mxu0 0.0
        %1301 = vmatpush1.xpose.msra.mxu0 0.0
        %1302 = vmatprep.subr.mxu0 0.0
        %1303 = vmatpush1.xpose.msra.mxu0 0.0
        %1304 = vmatprep.subr.mxu0 0.0
        %1305 = vmatpush1.xpose.msra.mxu0 %v1272
        %1306 = vmatprep.subr.mxu0 0.0
        %1307 = vmatpush2.xpose.msra.mxu0 0.0
        %1308 = vmatprep.subr.mxu0 0.0
        %1309 = vmatpush2.xpose.msra.mxu0 0.0
        %1310 = vmatprep.subr.mxu0 0.0
        %1311 = vmatpush2.xpose.msra.mxu0 0.0
        %1312 = vmatprep.subr.mxu0 0.0
        %1313 = vmatpush2.xpose.msra.mxu0 0.0
        %1314 = vmatprep.subr.mxu0 0.0
        %1315 = vmatpush2.xpose.msra.mxu0 0.0
        %1316 = vmatprep.subr.mxu0 0.0
        %1317 = vmatpush2.xpose.msra.mxu0 0.0
        %1318 = vmatprep.subr.mxu0 0.0
        %1319 = vmatpush2.xpose.msra.mxu0 0.0
        %1320 = vmatprep.subr.mxu0 0.0
        %1321 = vmatpush2.xpose.msra.mxu0 0.0
        %1322 = vmatprep.subr.mxu0 0.0
        %1323 = vmatpush2.xpose.msra.mxu0 0.0
        %1324 = vmatprep.subr.mxu0 0.0
        %1325 = vmatpush2.xpose.msra.mxu0 0.0
        %1326 = vmatprep.subr.mxu0 0.0
        %1327 = vmatpush2.xpose.msra.mxu0 0.0
        %1328 = vmatprep.subr.mxu0 0.0
        %1329 = vmatpush2.xpose.msra.mxu0 0.0
        %1330 = vmatprep.subr.mxu0 0.0
        %1331 = vmatpush2.xpose.msra.mxu0 0.0
        %1332 = vmatprep.subr.mxu0 0.0
        %1333 = vmatpush2.xpose.msra.mxu0 0.0
        %1334 = vmatprep.subr.mxu0 0.0
        %1335 = vmatpush2.xpose.msra.mxu0 0.0
        %1336 = vmatprep.subr.mxu0 0.0
        %1337 = vmatpush2.xpose.msra.mxu0 0.0
        %1338 = vmatprep.mubr.f32.mxu0 0.0
        %1339 = vmatmul.mubr.f32.gmra.mxu0 %v1270
        %v1340 = vpop.f32.mrf.mxu0
        %v1341 = vadd.f32 0.0, %v1340
        %v1342 = vpop.f32.mrf.mxu0
        %1343 = vdwg.mxu0
        %v1344 = vsel %vm899, %v785, 0
        %v1346 = vsel %vm899, %v613, 0
        %1348 = vmatprep.subr.mxu0 0.0
        %1349 = vmatpush1.xpose.msra.mxu0 0.0
        %1350 = vmatprep.subr.mxu0 0.0
        %1351 = vmatpush1.xpose.msra.mxu0 0.0
        %1352 = vmatprep.subr.mxu0 0.0
        %1353 = vmatpush1.xpose.msra.mxu0 0.0
        %1354 = vmatprep.subr.mxu0 0.0
        %1355 = vmatpush1.xpose.msra.mxu0 0.0
        %1356 = vmatprep.subr.mxu0 0.0
        %1357 = vmatpush1.xpose.msra.mxu0 0.0
        %1358 = vmatprep.subr.mxu0 0.0
        %1359 = vmatpush1.xpose.msra.mxu0 0.0
        %1360 = vmatprep.subr.mxu0 0.0
        %1361 = vmatpush1.xpose.msra.mxu0 0.0
        %1362 = vmatprep.subr.mxu0 0.0
        %1363 = vmatpush1.xpose.msra.mxu0 0.0
        %1364 = vmatprep.subr.mxu0 0.0
        %1365 = vmatpush1.xpose.msra.mxu0 0.0
        %1366 = vmatprep.subr.mxu0 0.0
        %1367 = vmatpush1.xpose.msra.mxu0 0.0
        %1368 = vmatprep.subr.mxu0 0.0
        %1369 = vmatpush1.xpose.msra.mxu0 0.0
        %1370 = vmatprep.subr.mxu0 0.0
        %1371 = vmatpush1.xpose.msra.mxu0 0.0
        %1372 = vmatprep.subr.mxu0 0.0
        %1373 = vmatpush1.xpose.msra.mxu0 0.0
        %1374 = vmatprep.subr.mxu0 0.0
        %1375 = vmatpush1.xpose.msra.mxu0 0.0
        %1376 = vmatprep.subr.mxu0 0.0
        %1377 = vmatpush1.xpose.msra.mxu0 0.0
        %1378 = vmatprep.subr.mxu0 0.0
        %1379 = vmatpush1.xpose.msra.mxu0 %v1346
        %1380 = vmatprep.subr.mxu0 0.0
        %1381 = vmatpush2.xpose.msra.mxu0 0.0
        %1382 = vmatprep.subr.mxu0 0.0
        %1383 = vmatpush2.xpose.msra.mxu0 0.0
        %1384 = vmatprep.subr.mxu0 0.0
        %1385 = vmatpush2.xpose.msra.mxu0 0.0
        %1386 = vmatprep.subr.mxu0 0.0
        %1387 = vmatpush2.xpose.msra.mxu0 0.0
        %1388 = vmatprep.subr.mxu0 0.0
        %1389 = vmatpush2.xpose.msra.mxu0 0.0
        %1390 = vmatprep.subr.mxu0 0.0
        %1391 = vmatpush2.xpose.msra.mxu0 0.0
        %1392 = vmatprep.subr.mxu0 0.0
        %1393 = vmatpush2.xpose.msra.mxu0 0.0
        %1394 = vmatprep.subr.mxu0 0.0
        %1395 = vmatpush2.xpose.msra.mxu0 0.0
        %1396 = vmatprep.subr.mxu0 0.0
        %1397 = vmatpush2.xpose.msra.mxu0 0.0
        %1398 = vmatprep.subr.mxu0 0.0
        %1399 = vmatpush2.xpose.msra.mxu0 0.0
        %1400 = vmatprep.subr.mxu0 0.0
        %1401 = vmatpush2.xpose.msra.mxu0 0.0
        %1402 = vmatprep.subr.mxu0 0.0
        %1403 = vmatpush2.xpose.msra.mxu0 0.0
        %1404 = vmatprep.subr.mxu0 0.0
        %1405 = vmatpush2.xpose.msra.mxu0 0.0
        %1406 = vmatprep.subr.mxu0 0.0
        %1407 = vmatpush2.xpose.msra.mxu0 0.0
        %1408 = vmatprep.subr.mxu0 0.0
        %1409 = vmatpush2.xpose.msra.mxu0 0.0
        %1410 = vmatprep.subr.mxu0 0.0
        %1411 = vmatpush2.xpose.msra.mxu0 0.0
        %1412 = vmatprep.mubr.f32.mxu0 0.0
        %1413 = vmatmul.mubr.f32.gmra.mxu0 %v1344
        %v1414 = vpop.f32.mrf.mxu0
        %v1415 = vadd.f32 0.0, %v1414
        %v1416 = vpop.f32.mrf.mxu0
        %1417 = vdwg.mxu0
        %v1418 = vsel %vm899, %v786, 0
        %v1420 = vsel %vm899, %v614, 0
        %1422 = vmatprep.subr.mxu0 0.0
        %1423 = vmatpush1.xpose.msra.mxu0 0.0
        %1424 = vmatprep.subr.mxu0 0.0
        %1425 = vmatpush1.xpose.msra.mxu0 0.0
        %1426 = vmatprep.subr.mxu0 0.0
        %1427 = vmatpush1.xpose.msra.mxu0 0.0
        %1428 = vmatprep.subr.mxu0 0.0
        %1429 = vmatpush1.xpose.msra.mxu0 0.0
        %1430 = vmatprep.subr.mxu0 0.0
        %1431 = vmatpush1.xpose.msra.mxu0 0.0
        %1432 = vmatprep.subr.mxu0 0.0
        %1433 = vmatpush1.xpose.msra.mxu0 0.0
        %1434 = vmatprep.subr.mxu0 0.0
        %1435 = vmatpush1.xpose.msra.mxu0 0.0
        %1436 = vmatprep.subr.mxu0 0.0
        %1437 = vmatpush1.xpose.msra.mxu0 0.0
        %1438 = vmatprep.subr.mxu0 0.0
        %1439 = vmatpush1.xpose.msra.mxu0 0.0
        %1440 = vmatprep.subr.mxu0 0.0
        %1441 = vmatpush1.xpose.msra.mxu0 0.0
        %1442 = vmatprep.subr.mxu0 0.0
        %1443 = vmatpush1.xpose.msra.mxu0 0.0
        %1444 = vmatprep.subr.mxu0 0.0
        %1445 = vmatpush1.xpose.msra.mxu0 0.0
        %1446 = vmatprep.subr.mxu0 0.0
        %1447 = vmatpush1.xpose.msra.mxu0 0.0
        %1448 = vmatprep.subr.mxu0 0.0
        %1449 = vmatpush1.xpose.msra.mxu0 0.0
        %1450 = vmatprep.subr.mxu0 0.0
        %1451 = vmatpush1.xpose.msra.mxu0 0.0
        %1452 = vmatprep.subr.mxu0 0.0
        %1453 = vmatpush1.xpose.msra.mxu0 %v1420
        %1454 = vmatprep.subr.mxu0 0.0
        %1455 = vmatpush2.xpose.msra.mxu0 0.0
        %1456 = vmatprep.subr.mxu0 0.0
        %1457 = vmatpush2.xpose.msra.mxu0 0.0
        %1458 = vmatprep.subr.mxu0 0.0
        %1459 = vmatpush2.xpose.msra.mxu0 0.0
        %1460 = vmatprep.subr.mxu0 0.0
        %1461 = vmatpush2.xpose.msra.mxu0 0.0
        %1462 = vmatprep.subr.mxu0 0.0
        %1463 = vmatpush2.xpose.msra.mxu0 0.0
        %1464 = vmatprep.subr.mxu0 0.0
        %1465 = vmatpush2.xpose.msra.mxu0 0.0
        %1466 = vmatprep.subr.mxu0 0.0
        %1467 = vmatpush2.xpose.msra.mxu0 0.0
        %1468 = vmatprep.subr.mxu0 0.0
        %1469 = vmatpush2.xpose.msra.mxu0 0.0
        %1470 = vmatprep.subr.mxu0 0.0
        %1471 = vmatpush2.xpose.msra.mxu0 0.0
        %1472 = vmatprep.subr.mxu0 0.0
        %1473 = vmatpush2.xpose.msra.mxu0 0.0
        %1474 = vmatprep.subr.mxu0 0.0
        %1475 = vmatpush2.xpose.msra.mxu0 0.0
        %1476 = vmatprep.subr.mxu0 0.0
        %1477 = vmatpush2.xpose.msra.mxu0 0.0
        %1478 = vmatprep.subr.mxu0 0.0
        %1479 = vmatpush2.xpose.msra.mxu0 0.0
        %1480 = vmatprep.subr.mxu0 0.0
        %1481 = vmatpush2.xpose.msra.mxu0 0.0
        %1482 = vmatprep.subr.mxu0 0.0
        %1483 = vmatpush2.xpose.msra.mxu0 0.0
        %1484 = vmatprep.subr.mxu0 0.0
        %1485 = vmatpush2.xpose.msra.mxu0 0.0
        %1486 = vmatprep.mubr.f32.mxu0 0.0
        %1487 = vmatmul.mubr.f32.gmra.mxu0 %v1418
        %v1488 = vpop.f32.mrf.mxu0
        %v1489 = vadd.f32 0.0, %v1488
        %v1490 = vpop.f32.mrf.mxu0
        %1491 = vdwg.mxu0
        %v1492 = vsel %vm899, %v796, 0
        %v1494 = vsel %vm899, %v852, 0
        %1496 = vmatprep.subr.mxu0 0.0
        %1497 = vmatpush1.xpose.msra.mxu0 0.0
        %1498 = vmatprep.subr.mxu0 0.0
        %1499 = vmatpush1.xpose.msra.mxu0 0.0
        %1500 = vmatprep.subr.mxu0 0.0
        %1501 = vmatpush1.xpose.msra.mxu0 0.0
        %1502 = vmatprep.subr.mxu0 0.0
        %1503 = vmatpush1.xpose.msra.mxu0 0.0
        %1504 = vmatprep.subr.mxu0 0.0
        %1505 = vmatpush1.xpose.msra.mxu0 0.0
        %1506 = vmatprep.subr.mxu0 0.0
        %1507 = vmatpush1.xpose.msra.mxu0 0.0
        %1508 = vmatprep.subr.mxu0 0.0
        %1509 = vmatpush1.xpose.msra.mxu0 0.0
        %1510 = vmatprep.subr.mxu0 0.0
        %1511 = vmatpush1.xpose.msra.mxu0 0.0
        %1512 = vmatprep.subr.mxu0 0.0
        %1513 = vmatpush1.xpose.msra.mxu0 0.0
        %1514 = vmatprep.subr.mxu0 0.0
        %1515 = vmatpush1.xpose.msra.mxu0 0.0
        %1516 = vmatprep.subr.mxu0 0.0
        %1517 = vmatpush1.xpose.msra.mxu0 0.0
        %1518 = vmatprep.subr.mxu0 0.0
        %1519 = vmatpush1.xpose.msra.mxu0 0.0
        %1520 = vmatprep.subr.mxu0 0.0
        %1521 = vmatpush1.xpose.msra.mxu0 0.0
        %1522 = vmatprep.subr.mxu0 0.0
        %1523 = vmatpush1.xpose.msra.mxu0 0.0
        %1524 = vmatprep.subr.mxu0 0.0
        %1525 = vmatpush1.xpose.msra.mxu0 0.0
        %1526 = vmatprep.subr.mxu0 0.0
        %1527 = vmatpush1.xpose.msra.mxu0 %v1494
        %1528 = vmatprep.subr.mxu0 0.0
        %1529 = vmatpush2.xpose.msra.mxu0 0.0
        %1530 = vmatprep.subr.mxu0 0.0
        %1531 = vmatpush2.xpose.msra.mxu0 0.0
        %1532 = vmatprep.subr.mxu0 0.0
        %1533 = vmatpush2.xpose.msra.mxu0 0.0
        %1534 = vmatprep.subr.mxu0 0.0
        %1535 = vmatpush2.xpose.msra.mxu0 0.0
        %1536 = vmatprep.subr.mxu0 0.0
        %1537 = vmatpush2.xpose.msra.mxu0 0.0
        %1538 = vmatprep.subr.mxu0 0.0
        %1539 = vmatpush2.xpose.msra.mxu0 0.0
        %1540 = vmatprep.subr.mxu0 0.0
        %1541 = vmatpush2.xpose.msra.mxu0 0.0
        %1542 = vmatprep.subr.mxu0 0.0
        %1543 = vmatpush2.xpose.msra.mxu0 0.0
        %1544 = vmatprep.subr.mxu0 0.0
        %1545 = vmatpush2.xpose.msra.mxu0 0.0
        %1546 = vmatprep.subr.mxu0 0.0
        %1547 = vmatpush2.xpose.msra.mxu0 0.0
        %1548 = vmatprep.subr.mxu0 0.0
        %1549 = vmatpush2.xpose.msra.mxu0 0.0
        %1550 = vmatprep.subr.mxu0 0.0
        %1551 = vmatpush2.xpose.msra.mxu0 0.0
        %1552 = vmatprep.subr.mxu0 0.0
        %1553 = vmatpush2.xpose.msra.mxu0 0.0
        %1554 = vmatprep.subr.mxu0 0.0
        %1555 = vmatpush2.xpose.msra.mxu0 0.0
        %1556 = vmatprep.subr.mxu0 0.0
        %1557 = vmatpush2.xpose.msra.mxu0 0.0
        %1558 = vmatprep.subr.mxu0 0.0
        %1559 = vmatpush2.xpose.msra.mxu0 0.0
        %1560 = vmatprep.mubr.f32.mxu0 0.0
        %1561 = vmatmul.mubr.f32.gmra.mxu0 %v1492
        %v1562 = vpop.f32.mrf.mxu0
        %v1563 = vadd.f32 0.0, %v1562
        %v1564 = vpop.f32.mrf.mxu0
        %1565 = vdwg.mxu0
        %v1566 = vsel %vm899, %v798, 0
        %v1568 = vsel %vm899, %v854, 0
        %1570 = vmatprep.subr.mxu0 0.0
        %1571 = vmatpush1.xpose.msra.mxu0 0.0
        %1572 = vmatprep.subr.mxu0 0.0
        %1573 = vmatpush1.xpose.msra.mxu0 0.0
        %1574 = vmatprep.subr.mxu0 0.0
        %1575 = vmatpush1.xpose.msra.mxu0 0.0
        %1576 = vmatprep.subr.mxu0 0.0
        %1577 = vmatpush1.xpose.msra.mxu0 0.0
        %1578 = vmatprep.subr.mxu0 0.0
        %1579 = vmatpush1.xpose.msra.mxu0 0.0
        %1580 = vmatprep.subr.mxu0 0.0
        %1581 = vmatpush1.xpose.msra.mxu0 0.0
        %1582 = vmatprep.subr.mxu0 0.0
        %1583 = vmatpush1.xpose.msra.mxu0 0.0
        %1584 = vmatprep.subr.mxu0 0.0
        %1585 = vmatpush1.xpose.msra.mxu0 0.0
        %1586 = vmatprep.subr.mxu0 0.0
        %1587 = vmatpush1.xpose.msra.mxu0 0.0
        %1588 = vmatprep.subr.mxu0 0.0
        %1589 = vmatpush1.xpose.msra.mxu0 0.0
        %1590 = vmatprep.subr.mxu0 0.0
        %1591 = vmatpush1.xpose.msra.mxu0 0.0
        %1592 = vmatprep.subr.mxu0 0.0
        %1593 = vmatpush1.xpose.msra.mxu0 0.0
        %1594 = vmatprep.subr.mxu0 0.0
        %1595 = vmatpush1.xpose.msra.mxu0 0.0
        %1596 = vmatprep.subr.mxu0 0.0
        %1597 = vmatpush1.xpose.msra.mxu0 0.0
        %1598 = vmatprep.subr.mxu0 0.0
        %1599 = vmatpush1.xpose.msra.mxu0 0.0
        %1600 = vmatprep.subr.mxu0 0.0
        %1601 = vmatpush1.xpose.msra.mxu0 %v1568
        %1602 = vmatprep.subr.mxu0 0.0
        %1603 = vmatpush2.xpose.msra.mxu0 0.0
        %1604 = vmatprep.subr.mxu0 0.0
        %1605 = vmatpush2.xpose.msra.mxu0 0.0
        %1606 = vmatprep.subr.mxu0 0.0
        %1607 = vmatpush2.xpose.msra.mxu0 0.0
        %1608 = vmatprep.subr.mxu0 0.0
        %1609 = vmatpush2.xpose.msra.mxu0 0.0
        %1610 = vmatprep.subr.mxu0 0.0
        %1611 = vmatpush2.xpose.msra.mxu0 0.0
        %1612 = vmatprep.subr.mxu0 0.0
        %1613 = vmatpush2.xpose.msra.mxu0 0.0
        %1614 = vmatprep.subr.mxu0 0.0
        %1615 = vmatpush2.xpose.msra.mxu0 0.0
        %1616 = vmatprep.subr.mxu0 0.0
        %1617 = vmatpush2.xpose.msra.mxu0 0.0
        %1618 = vmatprep.subr.mxu0 0.0
        %1619 = vmatpush2.xpose.msra.mxu0 0.0
        %1620 = vmatprep.subr.mxu0 0.0
        %1621 = vmatpush2.xpose.msra.mxu0 0.0
        %1622 = vmatprep.subr.mxu0 0.0
        %1623 = vmatpush2.xpose.msra.mxu0 0.0
        %1624 = vmatprep.subr.mxu0 0.0
        %1625 = vmatpush2.xpose.msra.mxu0 0.0
        %1626 = vmatprep.subr.mxu0 0.0
        %1627 = vmatpush2.xpose.msra.mxu0 0.0
        %1628 = vmatprep.subr.mxu0 0.0
        %1629 = vmatpush2.xpose.msra.mxu0 0.0
        %1630 = vmatprep.subr.mxu0 0.0
        %1631 = vmatpush2.xpose.msra.mxu0 0.0
        %1632 = vmatprep.subr.mxu0 0.0
        %1633 = vmatpush2.xpose.msra.mxu0 0.0
        %1634 = vmatprep.mubr.f32.mxu0 0.0
        %1635 = vmatmul.mubr.f32.gmra.mxu0 %v1566
        %v1636 = vpop.f32.mrf.mxu0
        %v1637 = vadd.f32 0.0, %v1636
        %v1638 = vpop.f32.mrf.mxu0
        %1639 = vdwg.mxu0
        %v1640 = vsel %vm899, %v800, 0
        %v1642 = vsel %vm899, %v856, 0
        %1644 = vmatprep.subr.mxu0 0.0
        %1645 = vmatpush1.xpose.msra.mxu0 0.0
        %1646 = vmatprep.subr.mxu0 0.0
        %1647 = vmatpush1.xpose.msra.mxu0 0.0
        %1648 = vmatprep.subr.mxu0 0.0
        %1649 = vmatpush1.xpose.msra.mxu0 0.0
        %1650 = vmatprep.subr.mxu0 0.0
        %1651 = vmatpush1.xpose.msra.mxu0 0.0
        %1652 = vmatprep.subr.mxu0 0.0
        %1653 = vmatpush1.xpose.msra.mxu0 0.0
        %1654 = vmatprep.subr.mxu0 0.0
        %1655 = vmatpush1.xpose.msra.mxu0 0.0
        %1656 = vmatprep.subr.mxu0 0.0
        %1657 = vmatpush1.xpose.msra.mxu0 0.0
        %1658 = vmatprep.subr.mxu0 0.0
        %1659 = vmatpush1.xpose.msra.mxu0 0.0
        %1660 = vmatprep.subr.mxu0 0.0
        %1661 = vmatpush1.xpose.msra.mxu0 0.0
        %1662 = vmatprep.subr.mxu0 0.0
        %1663 = vmatpush1.xpose.msra.mxu0 0.0
        %1664 = vmatprep.subr.mxu0 0.0
        %1665 = vmatpush1.xpose.msra.mxu0 0.0
        %1666 = vmatprep.subr.mxu0 0.0
        %1667 = vmatpush1.xpose.msra.mxu0 0.0
        %1668 = vmatprep.subr.mxu0 0.0
        %1669 = vmatpush1.xpose.msra.mxu0 0.0
        %1670 = vmatprep.subr.mxu0 0.0
        %1671 = vmatpush1.xpose.msra.mxu0 0.0
        %1672 = vmatprep.subr.mxu0 0.0
        %1673 = vmatpush1.xpose.msra.mxu0 0.0
        %1674 = vmatprep.subr.mxu0 0.0
        %1675 = vmatpush1.xpose.msra.mxu0 %v1642
        %1676 = vmatprep.subr.mxu0 0.0
        %1677 = vmatpush2.xpose.msra.mxu0 0.0
        %1678 = vmatprep.subr.mxu0 0.0
        %1679 = vmatpush2.xpose.msra.mxu0 0.0
        %1680 = vmatprep.subr.mxu0 0.0
        %1681 = vmatpush2.xpose.msra.mxu0 0.0
        %1682 = vmatprep.subr.mxu0 0.0
        %1683 = vmatpush2.xpose.msra.mxu0 0.0
        %1684 = vmatprep.subr.mxu0 0.0
        %1685 = vmatpush2.xpose.msra.mxu0 0.0
        %1686 = vmatprep.subr.mxu0 0.0
        %1687 = vmatpush2.xpose.msra.mxu0 0.0
        %1688 = vmatprep.subr.mxu0 0.0
        %1689 = vmatpush2.xpose.msra.mxu0 0.0
        %1690 = vmatprep.subr.mxu0 0.0
        %1691 = vmatpush2.xpose.msra.mxu0 0.0
        %1692 = vmatprep.subr.mxu0 0.0
        %1693 = vmatpush2.xpose.msra.mxu0 0.0
        %1694 = vmatprep.subr.mxu0 0.0
        %1695 = vmatpush2.xpose.msra.mxu0 0.0
        %1696 = vmatprep.subr.mxu0 0.0
        %1697 = vmatpush2.xpose.msra.mxu0 0.0
        %1698 = vmatprep.subr.mxu0 0.0
        %1699 = vmatpush2.xpose.msra.mxu0 0.0
        %1700 = vmatprep.subr.mxu0 0.0
        %1701 = vmatpush2.xpose.msra.mxu0 0.0
        %1702 = vmatprep.subr.mxu0 0.0
        %1703 = vmatpush2.xpose.msra.mxu0 0.0
        %1704 = vmatprep.subr.mxu0 0.0
        %1705 = vmatpush2.xpose.msra.mxu0 0.0
        %1706 = vmatprep.subr.mxu0 0.0
        %1707 = vmatpush2.xpose.msra.mxu0 0.0
        %1708 = vmatprep.mubr.f32.mxu0 0.0
        %1709 = vmatmul.mubr.f32.gmra.mxu0 %v1640
        %v1710 = vpop.f32.mrf.mxu0
        %v1711 = vadd.f32 0.0, %v1710
        %v1712 = vpop.f32.mrf.mxu0
        %1713 = vdwg.mxu0
        %v1714 = vsel %vm899, %v802, 0
        %v1716 = vsel %vm899, %v858, 0
        %1718 = vmatprep.subr.mxu0 0.0
        %1719 = vmatpush1.xpose.msra.mxu0 0.0
        %1720 = vmatprep.subr.mxu0 0.0
        %1721 = vmatpush1.xpose.msra.mxu0 0.0
        %1722 = vmatprep.subr.mxu0 0.0
        %1723 = vmatpush1.xpose.msra.mxu0 0.0
        %1724 = vmatprep.subr.mxu0 0.0
        %1725 = vmatpush1.xpose.msra.mxu0 0.0
        %1726 = vmatprep.subr.mxu0 0.0
        %1727 = vmatpush1.xpose.msra.mxu0 0.0
        %1728 = vmatprep.subr.mxu0 0.0
        %1729 = vmatpush1.xpose.msra.mxu0 0.0
        %1730 = vmatprep.subr.mxu0 0.0
        %1731 = vmatpush1.xpose.msra.mxu0 0.0
        %1732 = vmatprep.subr.mxu0 0.0
        %1733 = vmatpush1.xpose.msra.mxu0 0.0
        %1734 = vmatprep.subr.mxu0 0.0
        %1735 = vmatpush1.xpose.msra.mxu0 0.0
        %1736 = vmatprep.subr.mxu0 0.0
        %1737 = vmatpush1.xpose.msra.mxu0 0.0
        %1738 = vmatprep.subr.mxu0 0.0
        %1739 = vmatpush1.xpose.msra.mxu0 0.0
        %1740 = vmatprep.subr.mxu0 0.0
        %1741 = vmatpush1.xpose.msra.mxu0 0.0
        %1742 = vmatprep.subr.mxu0 0.0
        %1743 = vmatpush1.xpose.msra.mxu0 0.0
        %1744 = vmatprep.subr.mxu0 0.0
        %1745 = vmatpush1.xpose.msra.mxu0 0.0
        %1746 = vmatprep.subr.mxu0 0.0
        %1747 = vmatpush1.xpose.msra.mxu0 0.0
        %1748 = vmatprep.subr.mxu0 0.0
        %1749 = vmatpush1.xpose.msra.mxu0 %v1716
        %1750 = vmatprep.subr.mxu0 0.0
        %1751 = vmatpush2.xpose.msra.mxu0 0.0
        %1752 = vmatprep.subr.mxu0 0.0
        %1753 = vmatpush2.xpose.msra.mxu0 0.0
        %1754 = vmatprep.subr.mxu0 0.0
        %1755 = vmatpush2.xpose.msra.mxu0 0.0
        %1756 = vmatprep.subr.mxu0 0.0
        %1757 = vmatpush2.xpose.msra.mxu0 0.0
        %1758 = vmatprep.subr.mxu0 0.0
        %1759 = vmatpush2.xpose.msra.mxu0 0.0
        %1760 = vmatprep.subr.mxu0 0.0
        %1761 = vmatpush2.xpose.msra.mxu0 0.0
        %1762 = vmatprep.subr.mxu0 0.0
        %1763 = vmatpush2.xpose.msra.mxu0 0.0
        %1764 = vmatprep.subr.mxu0 0.0
        %1765 = vmatpush2.xpose.msra.mxu0 0.0
        %1766 = vmatprep.subr.mxu0 0.0
        %1767 = vmatpush2.xpose.msra.mxu0 0.0
        %1768 = vmatprep.subr.mxu0 0.0
        %1769 = vmatpush2.xpose.msra.mxu0 0.0
        %1770 = vmatprep.subr.mxu0 0.0
        %1771 = vmatpush2.xpose.msra.mxu0 0.0
        %1772 = vmatprep.subr.mxu0 0.0
        %1773 = vmatpush2.xpose.msra.mxu0 0.0
        %1774 = vmatprep.subr.mxu0 0.0
        %1775 = vmatpush2.xpose.msra.mxu0 0.0
        %1776 = vmatprep.subr.mxu0 0.0
        %1777 = vmatpush2.xpose.msra.mxu0 0.0
        %1778 = vmatprep.subr.mxu0 0.0
        %1779 = vmatpush2.xpose.msra.mxu0 0.0
        %1780 = vmatprep.subr.mxu0 0.0
        %1781 = vmatpush2.xpose.msra.mxu0 0.0
        %1782 = vmatprep.mubr.f32.mxu0 0.0
        %1783 = vmatmul.mubr.f32.gmra.mxu0 %v1714
        %v1784 = vpop.f32.mrf.mxu0
        %v1785 = vadd.f32 0.0, %v1784
        %v1786 = vpop.f32.mrf.mxu0
        %1787 = vdwg.mxu0
        %v1788 = vsel %vm899, %v804, 0
        %v1790 = vsel %vm899, %v860, 0
        %1792 = vmatprep.subr.mxu0 0.0
        %1793 = vmatpush1.xpose.msra.mxu0 0.0
        %1794 = vmatprep.subr.mxu0 0.0
        %1795 = vmatpush1.xpose.msra.mxu0 0.0
        %1796 = vmatprep.subr.mxu0 0.0
        %1797 = vmatpush1.xpose.msra.mxu0 0.0
        %1798 = vmatprep.subr.mxu0 0.0
        %1799 = vmatpush1.xpose.msra.mxu0 0.0
        %1800 = vmatprep.subr.mxu0 0.0
        %1801 = vmatpush1.xpose.msra.mxu0 0.0
        %1802 = vmatprep.subr.mxu0 0.0
        %1803 = vmatpush1.xpose.msra.mxu0 0.0
        %1804 = vmatprep.subr.mxu0 0.0
        %1805 = vmatpush1.xpose.msra.mxu0 0.0
        %1806 = vmatprep.subr.mxu0 0.0
        %1807 = vmatpush1.xpose.msra.mxu0 0.0
        %1808 = vmatprep.subr.mxu0 0.0
        %1809 = vmatpush1.xpose.msra.mxu0 0.0
        %1810 = vmatprep.subr.mxu0 0.0
        %1811 = vmatpush1.xpose.msra.mxu0 0.0
        %1812 = vmatprep.subr.mxu0 0.0
        %1813 = vmatpush1.xpose.msra.mxu0 0.0
        %1814 = vmatprep.subr.mxu0 0.0
        %1815 = vmatpush1.xpose.msra.mxu0 0.0
        %1816 = vmatprep.subr.mxu0 0.0
        %1817 = vmatpush1.xpose.msra.mxu0 0.0
        %1818 = vmatprep.subr.mxu0 0.0
        %1819 = vmatpush1.xpose.msra.mxu0 0.0
        %1820 = vmatprep.subr.mxu0 0.0
        %1821 = vmatpush1.xpose.msra.mxu0 0.0
        %1822 = vmatprep.subr.mxu0 0.0
        %1823 = vmatpush1.xpose.msra.mxu0 %v1790
        %1824 = vmatprep.subr.mxu0 0.0
        %1825 = vmatpush2.xpose.msra.mxu0 0.0
        %1826 = vmatprep.subr.mxu0 0.0
        %1827 = vmatpush2.xpose.msra.mxu0 0.0
        %1828 = vmatprep.subr.mxu0 0.0
        %1829 = vmatpush2.xpose.msra.mxu0 0.0
        %1830 = vmatprep.subr.mxu0 0.0
        %1831 = vmatpush2.xpose.msra.mxu0 0.0
        %1832 = vmatprep.subr.mxu0 0.0
        %1833 = vmatpush2.xpose.msra.mxu0 0.0
        %1834 = vmatprep.subr.mxu0 0.0
        %1835 = vmatpush2.xpose.msra.mxu0 0.0
        %1836 = vmatprep.subr.mxu0 0.0
        %1837 = vmatpush2.xpose.msra.mxu0 0.0
        %1838 = vmatprep.subr.mxu0 0.0
        %1839 = vmatpush2.xpose.msra.mxu0 0.0
        %1840 = vmatprep.subr.mxu0 0.0
        %1841 = vmatpush2.xpose.msra.mxu0 0.0
        %1842 = vmatprep.subr.mxu0 0.0
        %1843 = vmatpush2.xpose.msra.mxu0 0.0
        %1844 = vmatprep.subr.mxu0 0.0
        %1845 = vmatpush2.xpose.msra.mxu0 0.0
        %1846 = vmatprep.subr.mxu0 0.0
        %1847 = vmatpush2.xpose.msra.mxu0 0.0
        %1848 = vmatprep.subr.mxu0 0.0
        %1849 = vmatpush2.xpose.msra.mxu0 0.0
        %1850 = vmatprep.subr.mxu0 0.0
        %1851 = vmatpush2.xpose.msra.mxu0 0.0
        %1852 = vmatprep.subr.mxu0 0.0
        %1853 = vmatpush2.xpose.msra.mxu0 0.0
        %1854 = vmatprep.subr.mxu0 0.0
        %1855 = vmatpush2.xpose.msra.mxu0 0.0
        %1856 = vmatprep.mubr.f32.mxu0 0.0
        %1857 = vmatmul.mubr.f32.gmra.mxu0 %v1788
        %v1858 = vpop.f32.mrf.mxu0
        %v1859 = vadd.f32 0.0, %v1858
        %v1860 = vpop.f32.mrf.mxu0
        %1861 = vdwg.mxu0
        %v1862 = vsel %vm899, %v806, 0
        %v1864 = vsel %vm899, %v862, 0
        %1866 = vmatprep.subr.mxu0 0.0
        %1867 = vmatpush1.xpose.msra.mxu0 0.0
        %1868 = vmatprep.subr.mxu0 0.0
        %1869 = vmatpush1.xpose.msra.mxu0 0.0
        %1870 = vmatprep.subr.mxu0 0.0
        %1871 = vmatpush1.xpose.msra.mxu0 0.0
        %1872 = vmatprep.subr.mxu0 0.0
        %1873 = vmatpush1.xpose.msra.mxu0 0.0
        %1874 = vmatprep.subr.mxu0 0.0
        %1875 = vmatpush1.xpose.msra.mxu0 0.0
        %1876 = vmatprep.subr.mxu0 0.0
        %1877 = vmatpush1.xpose.msra.mxu0 0.0
        %1878 = vmatprep.subr.mxu0 0.0
        %1879 = vmatpush1.xpose.msra.mxu0 0.0
        %1880 = vmatprep.subr.mxu0 0.0
        %1881 = vmatpush1.xpose.msra.mxu0 0.0
        %1882 = vmatprep.subr.mxu0 0.0
        %1883 = vmatpush1.xpose.msra.mxu0 0.0
        %1884 = vmatprep.subr.mxu0 0.0
        %1885 = vmatpush1.xpose.msra.mxu0 0.0
        %1886 = vmatprep.subr.mxu0 0.0
        %1887 = vmatpush1.xpose.msra.mxu0 0.0
        %1888 = vmatprep.subr.mxu0 0.0
        %1889 = vmatpush1.xpose.msra.mxu0 0.0
        %1890 = vmatprep.subr.mxu0 0.0
        %1891 = vmatpush1.xpose.msra.mxu0 0.0
        %1892 = vmatprep.subr.mxu0 0.0
        %1893 = vmatpush1.xpose.msra.mxu0 0.0
        %1894 = vmatprep.subr.mxu0 0.0
        %1895 = vmatpush1.xpose.msra.mxu0 0.0
        %1896 = vmatprep.subr.mxu0 0.0
        %1897 = vmatpush1.xpose.msra.mxu0 %v1864
        %1898 = vmatprep.subr.mxu0 0.0
        %1899 = vmatpush2.xpose.msra.mxu0 0.0
        %1900 = vmatprep.subr.mxu0 0.0
        %1901 = vmatpush2.xpose.msra.mxu0 0.0
        %1902 = vmatprep.subr.mxu0 0.0
        %1903 = vmatpush2.xpose.msra.mxu0 0.0
        %1904 = vmatprep.subr.mxu0 0.0
        %1905 = vmatpush2.xpose.msra.mxu0 0.0
        %1906 = vmatprep.subr.mxu0 0.0
        %1907 = vmatpush2.xpose.msra.mxu0 0.0
        %1908 = vmatprep.subr.mxu0 0.0
        %1909 = vmatpush2.xpose.msra.mxu0 0.0
        %1910 = vmatprep.subr.mxu0 0.0
        %1911 = vmatpush2.xpose.msra.mxu0 0.0
        %1912 = vmatprep.subr.mxu0 0.0
        %1913 = vmatpush2.xpose.msra.mxu0 0.0
        %1914 = vmatprep.subr.mxu0 0.0
        %1915 = vmatpush2.xpose.msra.mxu0 0.0
        %1916 = vmatprep.subr.mxu0 0.0
        %1917 = vmatpush2.xpose.msra.mxu0 0.0
        %1918 = vmatprep.subr.mxu0 0.0
        %1919 = vmatpush2.xpose.msra.mxu0 0.0
        %1920 = vmatprep.subr.mxu0 0.0
        %1921 = vmatpush2.xpose.msra.mxu0 0.0
        %1922 = vmatprep.subr.mxu0 0.0
        %1923 = vmatpush2.xpose.msra.mxu0 0.0
        %1924 = vmatprep.subr.mxu0 0.0
        %1925 = vmatpush2.xpose.msra.mxu0 0.0
        %1926 = vmatprep.subr.mxu0 0.0
        %1927 = vmatpush2.xpose.msra.mxu0 0.0
        %1928 = vmatprep.subr.mxu0 0.0
        %1929 = vmatpush2.xpose.msra.mxu0 0.0
        %1930 = vmatprep.mubr.f32.mxu0 0.0
        %1931 = vmatmul.mubr.f32.gmra.mxu0 %v1862
        %v1932 = vpop.f32.mrf.mxu0
        %v1933 = vadd.f32 0.0, %v1932
        %v1934 = vpop.f32.mrf.mxu0
        %1935 = vdwg.mxu0
        %v1936 = vsel %vm899, %v808, 0
        %v1938 = vsel %vm899, %v864, 0
        %1940 = vmatprep.subr.mxu0 0.0
        %1941 = vmatpush1.xpose.msra.mxu0 0.0
        %1942 = vmatprep.subr.mxu0 0.0
        %1943 = vmatpush1.xpose.msra.mxu0 0.0
        %1944 = vmatprep.subr.mxu0 0.0
        %1945 = vmatpush1.xpose.msra.mxu0 0.0
        %1946 = vmatprep.subr.mxu0 0.0
        %1947 = vmatpush1.xpose.msra.mxu0 0.0
        %1948 = vmatprep.subr.mxu0 0.0
        %1949 = vmatpush1.xpose.msra.mxu0 0.0
        %1950 = vmatprep.subr.mxu0 0.0
        %1951 = vmatpush1.xpose.msra.mxu0 0.0
        %1952 = vmatprep.subr.mxu0 0.0
        %1953 = vmatpush1.xpose.msra.mxu0 0.0
        %1954 = vmatprep.subr.mxu0 0.0
        %1955 = vmatpush1.xpose.msra.mxu0 0.0
        %1956 = vmatprep.subr.mxu0 0.0
        %1957 = vmatpush1.xpose.msra.mxu0 0.0
        %1958 = vmatprep.subr.mxu0 0.0
        %1959 = vmatpush1.xpose.msra.mxu0 0.0
        %1960 = vmatprep.subr.mxu0 0.0
        %1961 = vmatpush1.xpose.msra.mxu0 0.0
        %1962 = vmatprep.subr.mxu0 0.0
        %1963 = vmatpush1.xpose.msra.mxu0 0.0
        %1964 = vmatprep.subr.mxu0 0.0
        %1965 = vmatpush1.xpose.msra.mxu0 0.0
        %1966 = vmatprep.subr.mxu0 0.0
        %1967 = vmatpush1.xpose.msra.mxu0 0.0
        %1968 = vmatprep.subr.mxu0 0.0
        %1969 = vmatpush1.xpose.msra.mxu0 0.0
        %1970 = vmatprep.subr.mxu0 0.0
        %1971 = vmatpush1.xpose.msra.mxu0 %v1938
        %1972 = vmatprep.subr.mxu0 0.0
        %1973 = vmatpush2.xpose.msra.mxu0 0.0
        %1974 = vmatprep.subr.mxu0 0.0
        %1975 = vmatpush2.xpose.msra.mxu0 0.0
        %1976 = vmatprep.subr.mxu0 0.0
        %1977 = vmatpush2.xpose.msra.mxu0 0.0
        %1978 = vmatprep.subr.mxu0 0.0
        %1979 = vmatpush2.xpose.msra.mxu0 0.0
        %1980 = vmatprep.subr.mxu0 0.0
        %1981 = vmatpush2.xpose.msra.mxu0 0.0
        %1982 = vmatprep.subr.mxu0 0.0
        %1983 = vmatpush2.xpose.msra.mxu0 0.0
        %1984 = vmatprep.subr.mxu0 0.0
        %1985 = vmatpush2.xpose.msra.mxu0 0.0
        %1986 = vmatprep.subr.mxu0 0.0
        %1987 = vmatpush2.xpose.msra.mxu0 0.0
        %1988 = vmatprep.subr.mxu0 0.0
        %1989 = vmatpush2.xpose.msra.mxu0 0.0
        %1990 = vmatprep.subr.mxu0 0.0
        %1991 = vmatpush2.xpose.msra.mxu0 0.0
        %1992 = vmatprep.subr.mxu0 0.0
        %1993 = vmatpush2.xpose.msra.mxu0 0.0
        %1994 = vmatprep.subr.mxu0 0.0
        %1995 = vmatpush2.xpose.msra.mxu0 0.0
        %1996 = vmatprep.subr.mxu0 0.0
        %1997 = vmatpush2.xpose.msra.mxu0 0.0
        %1998 = vmatprep.subr.mxu0 0.0
        %1999 = vmatpush2.xpose.msra.mxu0 0.0
        %2000 = vmatprep.subr.mxu0 0.0
        %2001 = vmatpush2.xpose.msra.mxu0 0.0
        %2002 = vmatprep.subr.mxu0 0.0
        %2003 = vmatpush2.xpose.msra.mxu0 0.0
        %2004 = vmatprep.mubr.f32.mxu0 0.0
        %2005 = vmatmul.mubr.f32.gmra.mxu0 %v1936
        %v2006 = vpop.f32.mrf.mxu0
        %v2007 = vadd.f32 0.0, %v2006
        %v2008 = vpop.f32.mrf.mxu0
        %2009 = vdwg.mxu0
        %v2010 = vsel %vm899, %v810, 0
        %v2012 = vsel %vm899, %v866, 0
        %2014 = vmatprep.subr.mxu0 0.0
        %2015 = vmatpush1.xpose.msra.mxu0 0.0
        %2016 = vmatprep.subr.mxu0 0.0
        %2017 = vmatpush1.xpose.msra.mxu0 0.0
        %2018 = vmatprep.subr.mxu0 0.0
        %2019 = vmatpush1.xpose.msra.mxu0 0.0
        %2020 = vmatprep.subr.mxu0 0.0
        %2021 = vmatpush1.xpose.msra.mxu0 0.0
        %2022 = vmatprep.subr.mxu0 0.0
        %2023 = vmatpush1.xpose.msra.mxu0 0.0
        %2024 = vmatprep.subr.mxu0 0.0
        %2025 = vmatpush1.xpose.msra.mxu0 0.0
        %2026 = vmatprep.subr.mxu0 0.0
        %2027 = vmatpush1.xpose.msra.mxu0 0.0
        %2028 = vmatprep.subr.mxu0 0.0
        %2029 = vmatpush1.xpose.msra.mxu0 0.0
        %2030 = vmatprep.subr.mxu0 0.0
        %2031 = vmatpush1.xpose.msra.mxu0 0.0
        %2032 = vmatprep.subr.mxu0 0.0
        %2033 = vmatpush1.xpose.msra.mxu0 0.0
        %2034 = vmatprep.subr.mxu0 0.0
        %2035 = vmatpush1.xpose.msra.mxu0 0.0
        %2036 = vmatprep.subr.mxu0 0.0
        %2037 = vmatpush1.xpose.msra.mxu0 0.0
        %2038 = vmatprep.subr.mxu0 0.0
        %2039 = vmatpush1.xpose.msra.mxu0 0.0
        %2040 = vmatprep.subr.mxu0 0.0
        %2041 = vmatpush1.xpose.msra.mxu0 0.0
        %2042 = vmatprep.subr.mxu0 0.0
        %2043 = vmatpush1.xpose.msra.mxu0 0.0
        %2044 = vmatprep.subr.mxu0 0.0
        %2045 = vmatpush1.xpose.msra.mxu0 %v2012
        %2046 = vmatprep.subr.mxu0 0.0
        %2047 = vmatpush2.xpose.msra.mxu0 0.0
        %2048 = vmatprep.subr.mxu0 0.0
        %2049 = vmatpush2.xpose.msra.mxu0 0.0
        %2050 = vmatprep.subr.mxu0 0.0
        %2051 = vmatpush2.xpose.msra.mxu0 0.0
        %2052 = vmatprep.subr.mxu0 0.0
        %2053 = vmatpush2.xpose.msra.mxu0 0.0
        %2054 = vmatprep.subr.mxu0 0.0
        %2055 = vmatpush2.xpose.msra.mxu0 0.0
        %2056 = vmatprep.subr.mxu0 0.0
        %2057 = vmatpush2.xpose.msra.mxu0 0.0
        %2058 = vmatprep.subr.mxu0 0.0
        %2059 = vmatpush2.xpose.msra.mxu0 0.0
        %2060 = vmatprep.subr.mxu0 0.0
        %2061 = vmatpush2.xpose.msra.mxu0 0.0
        %2062 = vmatprep.subr.mxu0 0.0
        %2063 = vmatpush2.xpose.msra.mxu0 0.0
        %2064 = vmatprep.subr.mxu0 0.0
        %2065 = vmatpush2.xpose.msra.mxu0 0.0
        %2066 = vmatprep.subr.mxu0 0.0
        %2067 = vmatpush2.xpose.msra.mxu0 0.0
        %2068 = vmatprep.subr.mxu0 0.0
        %2069 = vmatpush2.xpose.msra.mxu0 0.0
        %2070 = vmatprep.subr.mxu0 0.0
        %2071 = vmatpush2.xpose.msra.mxu0 0.0
        %2072 = vmatprep.subr.mxu0 0.0
        %2073 = vmatpush2.xpose.msra.mxu0 0.0
        %2074 = vmatprep.subr.mxu0 0.0
        %2075 = vmatpush2.xpose.msra.mxu0 0.0
        %2076 = vmatprep.subr.mxu0 0.0
        %2077 = vmatpush2.xpose.msra.mxu0 0.0
        %2078 = vmatprep.mubr.f32.mxu0 0.0
        %2079 = vmatmul.mubr.f32.gmra.mxu0 %v2010
        %v2080 = vpop.f32.mrf.mxu0
        %v2081 = vadd.f32 0.0, %v2080
        %v2082 = vpop.f32.mrf.mxu0
        %2083 = vdwg.mxu0
        %v2084 = vsel %vm899, %v812, 0
        %v2086 = vsel %vm899, %v868, 0
        %2088 = vmatprep.subr.mxu0 0.0
        %2089 = vmatpush1.xpose.msra.mxu0 0.0
        %2090 = vmatprep.subr.mxu0 0.0
        %2091 = vmatpush1.xpose.msra.mxu0 0.0
        %2092 = vmatprep.subr.mxu0 0.0
        %2093 = vmatpush1.xpose.msra.mxu0 0.0
        %2094 = vmatprep.subr.mxu0 0.0
        %2095 = vmatpush1.xpose.msra.mxu0 0.0
        %2096 = vmatprep.subr.mxu0 0.0
        %2097 = vmatpush1.xpose.msra.mxu0 0.0
        %2098 = vmatprep.subr.mxu0 0.0
        %2099 = vmatpush1.xpose.msra.mxu0 0.0
        %2100 = vmatprep.subr.mxu0 0.0
        %2101 = vmatpush1.xpose.msra.mxu0 0.0
        %2102 = vmatprep.subr.mxu0 0.0
        %2103 = vmatpush1.xpose.msra.mxu0 0.0
        %2104 = vmatprep.subr.mxu0 0.0
        %2105 = vmatpush1.xpose.msra.mxu0 0.0
        %2106 = vmatprep.subr.mxu0 0.0
        %2107 = vmatpush1.xpose.msra.mxu0 0.0
        %2108 = vmatprep.subr.mxu0 0.0
        %2109 = vmatpush1.xpose.msra.mxu0 0.0
        %2110 = vmatprep.subr.mxu0 0.0
        %2111 = vmatpush1.xpose.msra.mxu0 0.0
        %2112 = vmatprep.subr.mxu0 0.0
        %2113 = vmatpush1.xpose.msra.mxu0 0.0
        %2114 = vmatprep.subr.mxu0 0.0
        %2115 = vmatpush1.xpose.msra.mxu0 0.0
        %2116 = vmatprep.subr.mxu0 0.0
        %2117 = vmatpush1.xpose.msra.mxu0 0.0
        %2118 = vmatprep.subr.mxu0 0.0
        %2119 = vmatpush1.xpose.msra.mxu0 %v2086
        %2120 = vmatprep.subr.mxu0 0.0
        %2121 = vmatpush2.xpose.msra.mxu0 0.0
        %2122 = vmatprep.subr.mxu0 0.0
        %2123 = vmatpush2.xpose.msra.mxu0 0.0
        %2124 = vmatprep.subr.mxu0 0.0
        %2125 = vmatpush2.xpose.msra.mxu0 0.0
        %2126 = vmatprep.subr.mxu0 0.0
        %2127 = vmatpush2.xpose.msra.mxu0 0.0
        %2128 = vmatprep.subr.mxu0 0.0
        %2129 = vmatpush2.xpose.msra.mxu0 0.0
        %2130 = vmatprep.subr.mxu0 0.0
        %2131 = vmatpush2.xpose.msra.mxu0 0.0
        %2132 = vmatprep.subr.mxu0 0.0
        %2133 = vmatpush2.xpose.msra.mxu0 0.0
        %2134 = vmatprep.subr.mxu0 0.0
        %2135 = vmatpush2.xpose.msra.mxu0 0.0
        %2136 = vmatprep.subr.mxu0 0.0
        %2137 = vmatpush2.xpose.msra.mxu0 0.0
        %2138 = vmatprep.subr.mxu0 0.0
        %2139 = vmatpush2.xpose.msra.mxu0 0.0
        %2140 = vmatprep.subr.mxu0 0.0
        %2141 = vmatpush2.xpose.msra.mxu0 0.0
        %2142 = vmatprep.subr.mxu0 0.0
        %2143 = vmatpush2.xpose.msra.mxu0 0.0
        %2144 = vmatprep.subr.mxu0 0.0
        %2145 = vmatpush2.xpose.msra.mxu0 0.0
        %2146 = vmatprep.subr.mxu0 0.0
        %2147 = vmatpush2.xpose.msra.mxu0 0.0
        %2148 = vmatprep.subr.mxu0 0.0
        %2149 = vmatpush2.xpose.msra.mxu0 0.0
        %2150 = vmatprep.subr.mxu0 0.0
        %2151 = vmatpush2.xpose.msra.mxu0 0.0
        %2152 = vmatprep.mubr.f32.mxu0 0.0
        %2153 = vmatmul.mubr.f32.gmra.mxu0 %v2084
        %v2154 = vpop.f32.mrf.mxu0
        %v2155 = vadd.f32 0.0, %v2154
        %v2156 = vpop.f32.mrf.mxu0
        %2157 = vdwg.mxu0
        %v2158 = vsel %vm899, %v814, 0
        %v2160 = vsel %vm899, %v870, 0
        %2162 = vmatprep.subr.mxu0 0.0
        %2163 = vmatpush1.xpose.msra.mxu0 0.0
        %2164 = vmatprep.subr.mxu0 0.0
        %2165 = vmatpush1.xpose.msra.mxu0 0.0
        %2166 = vmatprep.subr.mxu0 0.0
        %2167 = vmatpush1.xpose.msra.mxu0 0.0
        %2168 = vmatprep.subr.mxu0 0.0
        %2169 = vmatpush1.xpose.msra.mxu0 0.0
        %2170 = vmatprep.subr.mxu0 0.0
        %2171 = vmatpush1.xpose.msra.mxu0 0.0
        %2172 = vmatprep.subr.mxu0 0.0
        %2173 = vmatpush1.xpose.msra.mxu0 0.0
        %2174 = vmatprep.subr.mxu0 0.0
        %2175 = vmatpush1.xpose.msra.mxu0 0.0
        %2176 = vmatprep.subr.mxu0 0.0
        %2177 = vmatpush1.xpose.msra.mxu0 0.0
        %2178 = vmatprep.subr.mxu0 0.0
        %2179 = vmatpush1.xpose.msra.mxu0 0.0
        %2180 = vmatprep.subr.mxu0 0.0
        %2181 = vmatpush1.xpose.msra.mxu0 0.0
        %2182 = vmatprep.subr.mxu0 0.0
        %2183 = vmatpush1.xpose.msra.mxu0 0.0
        %2184 = vmatprep.subr.mxu0 0.0
        %2185 = vmatpush1.xpose.msra.mxu0 0.0
        %2186 = vmatprep.subr.mxu0 0.0
        %2187 = vmatpush1.xpose.msra.mxu0 0.0
        %2188 = vmatprep.subr.mxu0 0.0
        %2189 = vmatpush1.xpose.msra.mxu0 0.0
        %2190 = vmatprep.subr.mxu0 0.0
        %2191 = vmatpush1.xpose.msra.mxu0 0.0
        %2192 = vmatprep.subr.mxu0 0.0
        %2193 = vmatpush1.xpose.msra.mxu0 %v2160
        %2194 = vmatprep.subr.mxu0 0.0
        %2195 = vmatpush2.xpose.msra.mxu0 0.0
        %2196 = vmatprep.subr.mxu0 0.0
        %2197 = vmatpush2.xpose.msra.mxu0 0.0
        %2198 = vmatprep.subr.mxu0 0.0
        %2199 = vmatpush2.xpose.msra.mxu0 0.0
        %2200 = vmatprep.subr.mxu0 0.0
        %2201 = vmatpush2.xpose.msra.mxu0 0.0
        %2202 = vmatprep.subr.mxu0 0.0
        %2203 = vmatpush2.xpose.msra.mxu0 0.0
        %2204 = vmatprep.subr.mxu0 0.0
        %2205 = vmatpush2.xpose.msra.mxu0 0.0
        %2206 = vmatprep.subr.mxu0 0.0
        %2207 = vmatpush2.xpose.msra.mxu0 0.0
        %2208 = vmatprep.subr.mxu0 0.0
        %2209 = vmatpush2.xpose.msra.mxu0 0.0
        %2210 = vmatprep.subr.mxu0 0.0
        %2211 = vmatpush2.xpose.msra.mxu0 0.0
        %2212 = vmatprep.subr.mxu0 0.0
        %2213 = vmatpush2.xpose.msra.mxu0 0.0
        %2214 = vmatprep.subr.mxu0 0.0
        %2215 = vmatpush2.xpose.msra.mxu0 0.0
        %2216 = vmatprep.subr.mxu0 0.0
        %2217 = vmatpush2.xpose.msra.mxu0 0.0
        %2218 = vmatprep.subr.mxu0 0.0
        %2219 = vmatpush2.xpose.msra.mxu0 0.0
        %2220 = vmatprep.subr.mxu0 0.0
        %2221 = vmatpush2.xpose.msra.mxu0 0.0
        %2222 = vmatprep.subr.mxu0 0.0
        %2223 = vmatpush2.xpose.msra.mxu0 0.0
        %2224 = vmatprep.subr.mxu0 0.0
        %2225 = vmatpush2.xpose.msra.mxu0 0.0
        %2226 = vmatprep.mubr.f32.mxu0 0.0
        %2227 = vmatmul.mubr.f32.gmra.mxu0 %v2158
        %v2228 = vpop.f32.mrf.mxu0
        %v2229 = vadd.f32 0.0, %v2228
        %v2230 = vpop.f32.mrf.mxu0
        %2231 = vdwg.mxu0
        %v2232 = vsel %vm899, %v816, 0
        %v2234 = vsel %vm899, %v872, 0
        %2236 = vmatprep.subr.mxu0 0.0
        %2237 = vmatpush1.xpose.msra.mxu0 0.0
        %2238 = vmatprep.subr.mxu0 0.0
        %2239 = vmatpush1.xpose.msra.mxu0 0.0
        %2240 = vmatprep.subr.mxu0 0.0
        %2241 = vmatpush1.xpose.msra.mxu0 0.0
        %2242 = vmatprep.subr.mxu0 0.0
        %2243 = vmatpush1.xpose.msra.mxu0 0.0
        %2244 = vmatprep.subr.mxu0 0.0
        %2245 = vmatpush1.xpose.msra.mxu0 0.0
        %2246 = vmatprep.subr.mxu0 0.0
        %2247 = vmatpush1.xpose.msra.mxu0 0.0
        %2248 = vmatprep.subr.mxu0 0.0
        %2249 = vmatpush1.xpose.msra.mxu0 0.0
        %2250 = vmatprep.subr.mxu0 0.0
        %2251 = vmatpush1.xpose.msra.mxu0 0.0
        %2252 = vmatprep.subr.mxu0 0.0
        %2253 = vmatpush1.xpose.msra.mxu0 0.0
        %2254 = vmatprep.subr.mxu0 0.0
        %2255 = vmatpush1.xpose.msra.mxu0 0.0
        %2256 = vmatprep.subr.mxu0 0.0
        %2257 = vmatpush1.xpose.msra.mxu0 0.0
        %2258 = vmatprep.subr.mxu0 0.0
        %2259 = vmatpush1.xpose.msra.mxu0 0.0
        %2260 = vmatprep.subr.mxu0 0.0
        %2261 = vmatpush1.xpose.msra.mxu0 0.0
        %2262 = vmatprep.subr.mxu0 0.0
        %2263 = vmatpush1.xpose.msra.mxu0 0.0
        %2264 = vmatprep.subr.mxu0 0.0
        %2265 = vmatpush1.xpose.msra.mxu0 0.0
        %2266 = vmatprep.subr.mxu0 0.0
        %2267 = vmatpush1.xpose.msra.mxu0 %v2234
        %2268 = vmatprep.subr.mxu0 0.0
        %2269 = vmatpush2.xpose.msra.mxu0 0.0
        %2270 = vmatprep.subr.mxu0 0.0
        %2271 = vmatpush2.xpose.msra.mxu0 0.0
        %2272 = vmatprep.subr.mxu0 0.0
        %2273 = vmatpush2.xpose.msra.mxu0 0.0
        %2274 = vmatprep.subr.mxu0 0.0
        %2275 = vmatpush2.xpose.msra.mxu0 0.0
        %2276 = vmatprep.subr.mxu0 0.0
        %2277 = vmatpush2.xpose.msra.mxu0 0.0
        %2278 = vmatprep.subr.mxu0 0.0
        %2279 = vmatpush2.xpose.msra.mxu0 0.0
        %2280 = vmatprep.subr.mxu0 0.0
        %2281 = vmatpush2.xpose.msra.mxu0 0.0
        %2282 = vmatprep.subr.mxu0 0.0
        %2283 = vmatpush2.xpose.msra.mxu0 0.0
        %2284 = vmatprep.subr.mxu0 0.0
        %2285 = vmatpush2.xpose.msra.mxu0 0.0
        %2286 = vmatprep.subr.mxu0 0.0
        %2287 = vmatpush2.xpose.msra.mxu0 0.0
        %2288 = vmatprep.subr.mxu0 0.0
        %2289 = vmatpush2.xpose.msra.mxu0 0.0
        %2290 = vmatprep.subr.mxu0 0.0
        %2291 = vmatpush2.xpose.msra.mxu0 0.0
        %2292 = vmatprep.subr.mxu0 0.0
        %2293 = vmatpush2.xpose.msra.mxu0 0.0
        %2294 = vmatprep.subr.mxu0 0.0
        %2295 = vmatpush2.xpose.msra.mxu0 0.0
        %2296 = vmatprep.subr.mxu0 0.0
        %2297 = vmatpush2.xpose.msra.mxu0 0.0
        %2298 = vmatprep.subr.mxu0 0.0
        %2299 = vmatpush2.xpose.msra.mxu0 0.0
        %2300 = vmatprep.mubr.f32.mxu0 0.0
        %2301 = vmatmul.mubr.f32.gmra.mxu0 %v2232
        %v2302 = vpop.f32.mrf.mxu0
        %v2303 = vadd.f32 0.0, %v2302
        %v2304 = vpop.f32.mrf.mxu0
        %2305 = vdwg.mxu0
        %v2306 = vsel %vm899, %v818, 0
        %v2308 = vsel %vm899, %v874, 0
        %2310 = vmatprep.subr.mxu0 0.0
        %2311 = vmatpush1.xpose.msra.mxu0 0.0
        %2312 = vmatprep.subr.mxu0 0.0
        %2313 = vmatpush1.xpose.msra.mxu0 0.0
        %2314 = vmatprep.subr.mxu0 0.0
        %2315 = vmatpush1.xpose.msra.mxu0 0.0
        %2316 = vmatprep.subr.mxu0 0.0
        %2317 = vmatpush1.xpose.msra.mxu0 0.0
        %2318 = vmatprep.subr.mxu0 0.0
        %2319 = vmatpush1.xpose.msra.mxu0 0.0
        %2320 = vmatprep.subr.mxu0 0.0
        %2321 = vmatpush1.xpose.msra.mxu0 0.0
        %2322 = vmatprep.subr.mxu0 0.0
        %2323 = vmatpush1.xpose.msra.mxu0 0.0
        %2324 = vmatprep.subr.mxu0 0.0
        %2325 = vmatpush1.xpose.msra.mxu0 0.0
        %2326 = vmatprep.subr.mxu0 0.0
        %2327 = vmatpush1.xpose.msra.mxu0 0.0
        %2328 = vmatprep.subr.mxu0 0.0
        %2329 = vmatpush1.xpose.msra.mxu0 0.0
        %2330 = vmatprep.subr.mxu0 0.0
        %2331 = vmatpush1.xpose.msra.mxu0 0.0
        %2332 = vmatprep.subr.mxu0 0.0
        %2333 = vmatpush1.xpose.msra.mxu0 0.0
        %2334 = vmatprep.subr.mxu0 0.0
        %2335 = vmatpush1.xpose.msra.mxu0 0.0
        %2336 = vmatprep.subr.mxu0 0.0
        %2337 = vmatpush1.xpose.msra.mxu0 0.0
        %2338 = vmatprep.subr.mxu0 0.0
        %2339 = vmatpush1.xpose.msra.mxu0 0.0
        %2340 = vmatprep.subr.mxu0 0.0
        %2341 = vmatpush1.xpose.msra.mxu0 %v2308
        %2342 = vmatprep.subr.mxu0 0.0
        %2343 = vmatpush2.xpose.msra.mxu0 0.0
        %2344 = vmatprep.subr.mxu0 0.0
        %2345 = vmatpush2.xpose.msra.mxu0 0.0
        %2346 = vmatprep.subr.mxu0 0.0
        %2347 = vmatpush2.xpose.msra.mxu0 0.0
        %2348 = vmatprep.subr.mxu0 0.0
        %2349 = vmatpush2.xpose.msra.mxu0 0.0
        %2350 = vmatprep.subr.mxu0 0.0
        %2351 = vmatpush2.xpose.msra.mxu0 0.0
        %2352 = vmatprep.subr.mxu0 0.0
        %2353 = vmatpush2.xpose.msra.mxu0 0.0
        %2354 = vmatprep.subr.mxu0 0.0
        %2355 = vmatpush2.xpose.msra.mxu0 0.0
        %2356 = vmatprep.subr.mxu0 0.0
        %2357 = vmatpush2.xpose.msra.mxu0 0.0
        %2358 = vmatprep.subr.mxu0 0.0
        %2359 = vmatpush2.xpose.msra.mxu0 0.0
        %2360 = vmatprep.subr.mxu0 0.0
        %2361 = vmatpush2.xpose.msra.mxu0 0.0
        %2362 = vmatprep.subr.mxu0 0.0
        %2363 = vmatpush2.xpose.msra.mxu0 0.0
        %2364 = vmatprep.subr.mxu0 0.0
        %2365 = vmatpush2.xpose.msra.mxu0 0.0
        %2366 = vmatprep.subr.mxu0 0.0
        %2367 = vmatpush2.xpose.msra.mxu0 0.0
        %2368 = vmatprep.subr.mxu0 0.0
        %2369 = vmatpush2.xpose.msra.mxu0 0.0
        %2370 = vmatprep.subr.mxu0 0.0
        %2371 = vmatpush2.xpose.msra.mxu0 0.0
        %2372 = vmatprep.subr.mxu0 0.0
        %2373 = vmatpush2.xpose.msra.mxu0 0.0
        %2374 = vmatprep.mubr.f32.mxu0 0.0
        %2375 = vmatmul.mubr.f32.gmra.mxu0 %v2306
        %v2376 = vpop.f32.mrf.mxu0
        %v2377 = vadd.f32 0.0, %v2376
        %v2378 = vpop.f32.mrf.mxu0
        %2379 = vdwg.mxu0
        %v2380 = vsel %vm899, %v820, 0
        %v2382 = vsel %vm899, %v876, 0
        %2384 = vmatprep.subr.mxu0 0.0
        %2385 = vmatpush1.xpose.msra.mxu0 0.0
        %2386 = vmatprep.subr.mxu0 0.0
        %2387 = vmatpush1.xpose.msra.mxu0 0.0
        %2388 = vmatprep.subr.mxu0 0.0
        %2389 = vmatpush1.xpose.msra.mxu0 0.0
        %2390 = vmatprep.subr.mxu0 0.0
        %2391 = vmatpush1.xpose.msra.mxu0 0.0
        %2392 = vmatprep.subr.mxu0 0.0
        %2393 = vmatpush1.xpose.msra.mxu0 0.0
        %2394 = vmatprep.subr.mxu0 0.0
        %2395 = vmatpush1.xpose.msra.mxu0 0.0
        %2396 = vmatprep.subr.mxu0 0.0
        %2397 = vmatpush1.xpose.msra.mxu0 0.0
        %2398 = vmatprep.subr.mxu0 0.0
        %2399 = vmatpush1.xpose.msra.mxu0 0.0
        %2400 = vmatprep.subr.mxu0 0.0
        %2401 = vmatpush1.xpose.msra.mxu0 0.0
        %2402 = vmatprep.subr.mxu0 0.0
        %2403 = vmatpush1.xpose.msra.mxu0 0.0
        %2404 = vmatprep.subr.mxu0 0.0
        %2405 = vmatpush1.xpose.msra.mxu0 0.0
        %2406 = vmatprep.subr.mxu0 0.0
        %2407 = vmatpush1.xpose.msra.mxu0 0.0
        %2408 = vmatprep.subr.mxu0 0.0
        %2409 = vmatpush1.xpose.msra.mxu0 0.0
        %2410 = vmatprep.subr.mxu0 0.0
        %2411 = vmatpush1.xpose.msra.mxu0 0.0
        %2412 = vmatprep.subr.mxu0 0.0
        %2413 = vmatpush1.xpose.msra.mxu0 0.0
        %2414 = vmatprep.subr.mxu0 0.0
        %2415 = vmatpush1.xpose.msra.mxu0 %v2382
        %2416 = vmatprep.subr.mxu0 0.0
        %2417 = vmatpush2.xpose.msra.mxu0 0.0
        %2418 = vmatprep.subr.mxu0 0.0
        %2419 = vmatpush2.xpose.msra.mxu0 0.0
        %2420 = vmatprep.subr.mxu0 0.0
        %2421 = vmatpush2.xpose.msra.mxu0 0.0
        %2422 = vmatprep.subr.mxu0 0.0
        %2423 = vmatpush2.xpose.msra.mxu0 0.0
        %2424 = vmatprep.subr.mxu0 0.0
        %2425 = vmatpush2.xpose.msra.mxu0 0.0
        %2426 = vmatprep.subr.mxu0 0.0
        %2427 = vmatpush2.xpose.msra.mxu0 0.0
        %2428 = vmatprep.subr.mxu0 0.0
        %2429 = vmatpush2.xpose.msra.mxu0 0.0
        %2430 = vmatprep.subr.mxu0 0.0
        %2431 = vmatpush2.xpose.msra.mxu0 0.0
        %2432 = vmatprep.subr.mxu0 0.0
        %2433 = vmatpush2.xpose.msra.mxu0 0.0
        %2434 = vmatprep.subr.mxu0 0.0
        %2435 = vmatpush2.xpose.msra.mxu0 0.0
        %2436 = vmatprep.subr.mxu0 0.0
        %2437 = vmatpush2.xpose.msra.mxu0 0.0
        %2438 = vmatprep.subr.mxu0 0.0
        %2439 = vmatpush2.xpose.msra.mxu0 0.0
        %2440 = vmatprep.subr.mxu0 0.0
        %2441 = vmatpush2.xpose.msra.mxu0 0.0
        %2442 = vmatprep.subr.mxu0 0.0
        %2443 = vmatpush2.xpose.msra.mxu0 0.0
        %2444 = vmatprep.subr.mxu0 0.0
        %2445 = vmatpush2.xpose.msra.mxu0 0.0
        %2446 = vmatprep.subr.mxu0 0.0
        %2447 = vmatpush2.xpose.msra.mxu0 0.0
        %2448 = vmatprep.mubr.f32.mxu0 0.0
        %2449 = vmatmul.mubr.f32.gmra.mxu0 %v2380
        %v2450 = vpop.f32.mrf.mxu0
        %v2451 = vadd.f32 0.0, %v2450
        %v2452 = vpop.f32.mrf.mxu0
        %2453 = vdwg.mxu0
        %v2454 = vsel %vm899, %v822, 0
        %v2456 = vsel %vm899, %v878, 0
        %2458 = vmatprep.subr.mxu0 0.0
        %2459 = vmatpush1.xpose.msra.mxu0 0.0
        %2460 = vmatprep.subr.mxu0 0.0
        %2461 = vmatpush1.xpose.msra.mxu0 0.0
        %2462 = vmatprep.subr.mxu0 0.0
        %2463 = vmatpush1.xpose.msra.mxu0 0.0
        %2464 = vmatprep.subr.mxu0 0.0
        %2465 = vmatpush1.xpose.msra.mxu0 0.0
        %2466 = vmatprep.subr.mxu0 0.0
        %2467 = vmatpush1.xpose.msra.mxu0 0.0
        %2468 = vmatprep.subr.mxu0 0.0
        %2469 = vmatpush1.xpose.msra.mxu0 0.0
        %2470 = vmatprep.subr.mxu0 0.0
        %2471 = vmatpush1.xpose.msra.mxu0 0.0
        %2472 = vmatprep.subr.mxu0 0.0
        %2473 = vmatpush1.xpose.msra.mxu0 0.0
        %2474 = vmatprep.subr.mxu0 0.0
        %2475 = vmatpush1.xpose.msra.mxu0 0.0
        %2476 = vmatprep.subr.mxu0 0.0
        %2477 = vmatpush1.xpose.msra.mxu0 0.0
        %2478 = vmatprep.subr.mxu0 0.0
        %2479 = vmatpush1.xpose.msra.mxu0 0.0
        %2480 = vmatprep.subr.mxu0 0.0
        %2481 = vmatpush1.xpose.msra.mxu0 0.0
        %2482 = vmatprep.subr.mxu0 0.0
        %2483 = vmatpush1.xpose.msra.mxu0 0.0
        %2484 = vmatprep.subr.mxu0 0.0
        %2485 = vmatpush1.xpose.msra.mxu0 0.0
        %2486 = vmatprep.subr.mxu0 0.0
        %2487 = vmatpush1.xpose.msra.mxu0 0.0
        %2488 = vmatprep.subr.mxu0 0.0
        %2489 = vmatpush1.xpose.msra.mxu0 %v2456
        %2490 = vmatprep.subr.mxu0 0.0
        %2491 = vmatpush2.xpose.msra.mxu0 0.0
        %2492 = vmatprep.subr.mxu0 0.0
        %2493 = vmatpush2.xpose.msra.mxu0 0.0
        %2494 = vmatprep.subr.mxu0 0.0
        %2495 = vmatpush2.xpose.msra.mxu0 0.0
        %2496 = vmatprep.subr.mxu0 0.0
        %2497 = vmatpush2.xpose.msra.mxu0 0.0
        %2498 = vmatprep.subr.mxu0 0.0
        %2499 = vmatpush2.xpose.msra.mxu0 0.0
        %2500 = vmatprep.subr.mxu0 0.0
        %2501 = vmatpush2.xpose.msra.mxu0 0.0
        %2502 = vmatprep.subr.mxu0 0.0
        %2503 = vmatpush2.xpose.msra.mxu0 0.0
        %2504 = vmatprep.subr.mxu0 0.0
        %2505 = vmatpush2.xpose.msra.mxu0 0.0
        %2506 = vmatprep.subr.mxu0 0.0
        %2507 = vmatpush2.xpose.msra.mxu0 0.0
        %2508 = vmatprep.subr.mxu0 0.0
        %2509 = vmatpush2.xpose.msra.mxu0 0.0
        %2510 = vmatprep.subr.mxu0 0.0
        %2511 = vmatpush2.xpose.msra.mxu0 0.0
        %2512 = vmatprep.subr.mxu0 0.0
        %2513 = vmatpush2.xpose.msra.mxu0 0.0
        %2514 = vmatprep.subr.mxu0 0.0
        %2515 = vmatpush2.xpose.msra.mxu0 0.0
        %2516 = vmatprep.subr.mxu0 0.0
        %2517 = vmatpush2.xpose.msra.mxu0 0.0
        %2518 = vmatprep.subr.mxu0 0.0
        %2519 = vmatpush2.xpose.msra.mxu0 0.0
        %2520 = vmatprep.subr.mxu0 0.0
        %2521 = vmatpush2.xpose.msra.mxu0 0.0
        %2522 = vmatprep.mubr.f32.mxu0 0.0
        %2523 = vmatmul.mubr.f32.gmra.mxu0 %v2454
        %v2524 = vpop.f32.mrf.mxu0
        %v2525 = vadd.f32 0.0, %v2524
        %v2526 = vpop.f32.mrf.mxu0
        %2527 = vdwg.mxu0
        %v2528 = vsel %vm899, %v824, 0
        %v2530 = vsel %vm899, %v880, 0
        %2532 = vmatprep.subr.mxu0 0.0
        %2533 = vmatpush1.xpose.msra.mxu0 0.0
        %2534 = vmatprep.subr.mxu0 0.0
        %2535 = vmatpush1.xpose.msra.mxu0 0.0
        %2536 = vmatprep.subr.mxu0 0.0
        %2537 = vmatpush1.xpose.msra.mxu0 0.0
        %2538 = vmatprep.subr.mxu0 0.0
        %2539 = vmatpush1.xpose.msra.mxu0 0.0
        %2540 = vmatprep.subr.mxu0 0.0
        %2541 = vmatpush1.xpose.msra.mxu0 0.0
        %2542 = vmatprep.subr.mxu0 0.0
        %2543 = vmatpush1.xpose.msra.mxu0 0.0
        %2544 = vmatprep.subr.mxu0 0.0
        %2545 = vmatpush1.xpose.msra.mxu0 0.0
        %2546 = vmatprep.subr.mxu0 0.0
        %2547 = vmatpush1.xpose.msra.mxu0 0.0
        %2548 = vmatprep.subr.mxu0 0.0
        %2549 = vmatpush1.xpose.msra.mxu0 0.0
        %2550 = vmatprep.subr.mxu0 0.0
        %2551 = vmatpush1.xpose.msra.mxu0 0.0
        %2552 = vmatprep.subr.mxu0 0.0
        %2553 = vmatpush1.xpose.msra.mxu0 0.0
        %2554 = vmatprep.subr.mxu0 0.0
        %2555 = vmatpush1.xpose.msra.mxu0 0.0
        %2556 = vmatprep.subr.mxu0 0.0
        %2557 = vmatpush1.xpose.msra.mxu0 0.0
        %2558 = vmatprep.subr.mxu0 0.0
        %2559 = vmatpush1.xpose.msra.mxu0 0.0
        %2560 = vmatprep.subr.mxu0 0.0
        %2561 = vmatpush1.xpose.msra.mxu0 0.0
        %2562 = vmatprep.subr.mxu0 0.0
        %2563 = vmatpush1.xpose.msra.mxu0 %v2530
        %2564 = vmatprep.subr.mxu0 0.0
        %2565 = vmatpush2.xpose.msra.mxu0 0.0
        %2566 = vmatprep.subr.mxu0 0.0
        %2567 = vmatpush2.xpose.msra.mxu0 0.0
        %2568 = vmatprep.subr.mxu0 0.0
        %2569 = vmatpush2.xpose.msra.mxu0 0.0
        %2570 = vmatprep.subr.mxu0 0.0
        %2571 = vmatpush2.xpose.msra.mxu0 0.0
        %2572 = vmatprep.subr.mxu0 0.0
        %2573 = vmatpush2.xpose.msra.mxu0 0.0
        %2574 = vmatprep.subr.mxu0 0.0
        %2575 = vmatpush2.xpose.msra.mxu0 0.0
        %2576 = vmatprep.subr.mxu0 0.0
        %2577 = vmatpush2.xpose.msra.mxu0 0.0
        %2578 = vmatprep.subr.mxu0 0.0
        %2579 = vmatpush2.xpose.msra.mxu0 0.0
        %2580 = vmatprep.subr.mxu0 0.0
        %2581 = vmatpush2.xpose.msra.mxu0 0.0
        %2582 = vmatprep.subr.mxu0 0.0
        %2583 = vmatpush2.xpose.msra.mxu0 0.0
        %2584 = vmatprep.subr.mxu0 0.0
        %2585 = vmatpush2.xpose.msra.mxu0 0.0
        %2586 = vmatprep.subr.mxu0 0.0
        %2587 = vmatpush2.xpose.msra.mxu0 0.0
        %2588 = vmatprep.subr.mxu0 0.0
        %2589 = vmatpush2.xpose.msra.mxu0 0.0
        %2590 = vmatprep.subr.mxu0 0.0
        %2591 = vmatpush2.xpose.msra.mxu0 0.0
        %2592 = vmatprep.subr.mxu0 0.0
        %2593 = vmatpush2.xpose.msra.mxu0 0.0
        %2594 = vmatprep.subr.mxu0 0.0
        %2595 = vmatpush2.xpose.msra.mxu0 0.0
        %2596 = vmatprep.mubr.f32.mxu0 0.0
        %2597 = vmatmul.mubr.f32.gmra.mxu0 %v2528
        %v2598 = vpop.f32.mrf.mxu0
        %v2599 = vadd.f32 0.0, %v2598
        %v2600 = vpop.f32.mrf.mxu0
        %2601 = vdwg.mxu0
        %v2602 = vsel %vm899, %v826, 0
        %v2604 = vsel %vm899, %v882, 0
        %2606 = vmatprep.subr.mxu0 0.0
        %2607 = vmatpush1.xpose.msra.mxu0 0.0
        %2608 = vmatprep.subr.mxu0 0.0
        %2609 = vmatpush1.xpose.msra.mxu0 0.0
        %2610 = vmatprep.subr.mxu0 0.0
        %2611 = vmatpush1.xpose.msra.mxu0 0.0
        %2612 = vmatprep.subr.mxu0 0.0
        %2613 = vmatpush1.xpose.msra.mxu0 0.0
        %2614 = vmatprep.subr.mxu0 0.0
        %2615 = vmatpush1.xpose.msra.mxu0 0.0
        %2616 = vmatprep.subr.mxu0 0.0
        %2617 = vmatpush1.xpose.msra.mxu0 0.0
        %2618 = vmatprep.subr.mxu0 0.0
        %2619 = vmatpush1.xpose.msra.mxu0 0.0
        %2620 = vmatprep.subr.mxu0 0.0
        %2621 = vmatpush1.xpose.msra.mxu0 0.0
        %2622 = vmatprep.subr.mxu0 0.0
        %2623 = vmatpush1.xpose.msra.mxu0 0.0
        %2624 = vmatprep.subr.mxu0 0.0
        %2625 = vmatpush1.xpose.msra.mxu0 0.0
        %2626 = vmatprep.subr.mxu0 0.0
        %2627 = vmatpush1.xpose.msra.mxu0 0.0
        %2628 = vmatprep.subr.mxu0 0.0
        %2629 = vmatpush1.xpose.msra.mxu0 0.0
        %2630 = vmatprep.subr.mxu0 0.0
        %2631 = vmatpush1.xpose.msra.mxu0 0.0
        %2632 = vmatprep.subr.mxu0 0.0
        %2633 = vmatpush1.xpose.msra.mxu0 0.0
        %2634 = vmatprep.subr.mxu0 0.0
        %2635 = vmatpush1.xpose.msra.mxu0 0.0
        %2636 = vmatprep.subr.mxu0 0.0
        %2637 = vmatpush1.xpose.msra.mxu0 %v2604
        %2638 = vmatprep.subr.mxu0 0.0
        %2639 = vmatpush2.xpose.msra.mxu0 0.0
        %2640 = vmatprep.subr.mxu0 0.0
        %2641 = vmatpush2.xpose.msra.mxu0 0.0
        %2642 = vmatprep.subr.mxu0 0.0
        %2643 = vmatpush2.xpose.msra.mxu0 0.0
        %2644 = vmatprep.subr.mxu0 0.0
        %2645 = vmatpush2.xpose.msra.mxu0 0.0
        %2646 = vmatprep.subr.mxu0 0.0
        %2647 = vmatpush2.xpose.msra.mxu0 0.0
        %2648 = vmatprep.subr.mxu0 0.0
        %2649 = vmatpush2.xpose.msra.mxu0 0.0
        %2650 = vmatprep.subr.mxu0 0.0
        %2651 = vmatpush2.xpose.msra.mxu0 0.0
        %2652 = vmatprep.subr.mxu0 0.0
        %2653 = vmatpush2.xpose.msra.mxu0 0.0
        %2654 = vmatprep.subr.mxu0 0.0
        %2655 = vmatpush2.xpose.msra.mxu0 0.0
        %2656 = vmatprep.subr.mxu0 0.0
        %2657 = vmatpush2.xpose.msra.mxu0 0.0
        %2658 = vmatprep.subr.mxu0 0.0
        %2659 = vmatpush2.xpose.msra.mxu0 0.0
        %2660 = vmatprep.subr.mxu0 0.0
        %2661 = vmatpush2.xpose.msra.mxu0 0.0
        %2662 = vmatprep.subr.mxu0 0.0
        %2663 = vmatpush2.xpose.msra.mxu0 0.0
        %2664 = vmatprep.subr.mxu0 0.0
        %2665 = vmatpush2.xpose.msra.mxu0 0.0
        %2666 = vmatprep.subr.mxu0 0.0
        %2667 = vmatpush2.xpose.msra.mxu0 0.0
        %2668 = vmatprep.subr.mxu0 0.0
        %2669 = vmatpush2.xpose.msra.mxu0 0.0
        %2670 = vmatprep.mubr.f32.mxu0 0.0
        %2671 = vmatmul.mubr.f32.gmra.mxu0 %v2602
        %v2672 = vpop.f32.mrf.mxu0
        %v2673 = vadd.f32 0.0, %v2672
        %v2674 = vpop.f32.mrf.mxu0
        %2675 = vdwg.mxu0
        %v2676 = vsel %vm899, %v828, 0
        %v2678 = vsel %vm899, %v884, 0
        %2680 = vmatprep.subr.mxu0 0.0
        %2681 = vmatpush1.xpose.msra.mxu0 0.0
        %2682 = vmatprep.subr.mxu0 0.0
        %2683 = vmatpush1.xpose.msra.mxu0 0.0
        %2684 = vmatprep.subr.mxu0 0.0
        %2685 = vmatpush1.xpose.msra.mxu0 0.0
        %2686 = vmatprep.subr.mxu0 0.0
        %2687 = vmatpush1.xpose.msra.mxu0 0.0
        %2688 = vmatprep.subr.mxu0 0.0
        %2689 = vmatpush1.xpose.msra.mxu0 0.0
        %2690 = vmatprep.subr.mxu0 0.0
        %2691 = vmatpush1.xpose.msra.mxu0 0.0
        %2692 = vmatprep.subr.mxu0 0.0
        %2693 = vmatpush1.xpose.msra.mxu0 0.0
        %2694 = vmatprep.subr.mxu0 0.0
        %2695 = vmatpush1.xpose.msra.mxu0 0.0
        %2696 = vmatprep.subr.mxu0 0.0
        %2697 = vmatpush1.xpose.msra.mxu0 0.0
        %2698 = vmatprep.subr.mxu0 0.0
        %2699 = vmatpush1.xpose.msra.mxu0 0.0
        %2700 = vmatprep.subr.mxu0 0.0
        %2701 = vmatpush1.xpose.msra.mxu0 0.0
        %2702 = vmatprep.subr.mxu0 0.0
        %2703 = vmatpush1.xpose.msra.mxu0 0.0
        %2704 = vmatprep.subr.mxu0 0.0
        %2705 = vmatpush1.xpose.msra.mxu0 0.0
        %2706 = vmatprep.subr.mxu0 0.0
        %2707 = vmatpush1.xpose.msra.mxu0 0.0
        %2708 = vmatprep.subr.mxu0 0.0
        %2709 = vmatpush1.xpose.msra.mxu0 0.0
        %2710 = vmatprep.subr.mxu0 0.0
        %2711 = vmatpush1.xpose.msra.mxu0 %v2678
        %2712 = vmatprep.subr.mxu0 0.0
        %2713 = vmatpush2.xpose.msra.mxu0 0.0
        %2714 = vmatprep.subr.mxu0 0.0
        %2715 = vmatpush2.xpose.msra.mxu0 0.0
        %2716 = vmatprep.subr.mxu0 0.0
        %2717 = vmatpush2.xpose.msra.mxu0 0.0
        %2718 = vmatprep.subr.mxu0 0.0
        %2719 = vmatpush2.xpose.msra.mxu0 0.0
        %2720 = vmatprep.subr.mxu0 0.0
        %2721 = vmatpush2.xpose.msra.mxu0 0.0
        %2722 = vmatprep.subr.mxu0 0.0
        %2723 = vmatpush2.xpose.msra.mxu0 0.0
        %2724 = vmatprep.subr.mxu0 0.0
        %2725 = vmatpush2.xpose.msra.mxu0 0.0
        %2726 = vmatprep.subr.mxu0 0.0
        %2727 = vmatpush2.xpose.msra.mxu0 0.0
        %2728 = vmatprep.subr.mxu0 0.0
        %2729 = vmatpush2.xpose.msra.mxu0 0.0
        %2730 = vmatprep.subr.mxu0 0.0
        %2731 = vmatpush2.xpose.msra.mxu0 0.0
        %2732 = vmatprep.subr.mxu0 0.0
        %2733 = vmatpush2.xpose.msra.mxu0 0.0
        %2734 = vmatprep.subr.mxu0 0.0
        %2735 = vmatpush2.xpose.msra.mxu0 0.0
        %2736 = vmatprep.subr.mxu0 0.0
        %2737 = vmatpush2.xpose.msra.mxu0 0.0
        %2738 = vmatprep.subr.mxu0 0.0
        %2739 = vmatpush2.xpose.msra.mxu0 0.0
        %2740 = vmatprep.subr.mxu0 0.0
        %2741 = vmatpush2.xpose.msra.mxu0 0.0
        %2742 = vmatprep.subr.mxu0 0.0
        %2743 = vmatpush2.xpose.msra.mxu0 0.0
        %2744 = vmatprep.mubr.f32.mxu0 0.0
        %2745 = vmatmul.mubr.f32.gmra.mxu0 %v2676
        %v2746 = vpop.f32.mrf.mxu0
        %v2747 = vadd.f32 0.0, %v2746
        %v2748 = vpop.f32.mrf.mxu0
        %2749 = vdwg.mxu0
        %v2750 = vsel %vm899, %v830, 0
        %v2752 = vsel %vm899, %v886, 0
        %2754 = vmatprep.subr.mxu0 0.0
        %2755 = vmatpush1.xpose.msra.mxu0 0.0
        %2756 = vmatprep.subr.mxu0 0.0
        %2757 = vmatpush1.xpose.msra.mxu0 0.0
        %2758 = vmatprep.subr.mxu0 0.0
        %2759 = vmatpush1.xpose.msra.mxu0 0.0
        %2760 = vmatprep.subr.mxu0 0.0
        %2761 = vmatpush1.xpose.msra.mxu0 0.0
        %2762 = vmatprep.subr.mxu0 0.0
        %2763 = vmatpush1.xpose.msra.mxu0 0.0
        %2764 = vmatprep.subr.mxu0 0.0
        %2765 = vmatpush1.xpose.msra.mxu0 0.0
        %2766 = vmatprep.subr.mxu0 0.0
        %2767 = vmatpush1.xpose.msra.mxu0 0.0
        %2768 = vmatprep.subr.mxu0 0.0
        %2769 = vmatpush1.xpose.msra.mxu0 0.0
        %2770 = vmatprep.subr.mxu0 0.0
        %2771 = vmatpush1.xpose.msra.mxu0 0.0
        %2772 = vmatprep.subr.mxu0 0.0
        %2773 = vmatpush1.xpose.msra.mxu0 0.0
        %2774 = vmatprep.subr.mxu0 0.0
        %2775 = vmatpush1.xpose.msra.mxu0 0.0
        %2776 = vmatprep.subr.mxu0 0.0
        %2777 = vmatpush1.xpose.msra.mxu0 0.0
        %2778 = vmatprep.subr.mxu0 0.0
        %2779 = vmatpush1.xpose.msra.mxu0 0.0
        %2780 = vmatprep.subr.mxu0 0.0
        %2781 = vmatpush1.xpose.msra.mxu0 0.0
        %2782 = vmatprep.subr.mxu0 0.0
        %2783 = vmatpush1.xpose.msra.mxu0 0.0
        %2784 = vmatprep.subr.mxu0 0.0
        %2785 = vmatpush1.xpose.msra.mxu0 %v2752
        %2786 = vmatprep.subr.mxu0 0.0
        %2787 = vmatpush2.xpose.msra.mxu0 0.0
        %2788 = vmatprep.subr.mxu0 0.0
        %2789 = vmatpush2.xpose.msra.mxu0 0.0
        %2790 = vmatprep.subr.mxu0 0.0
        %2791 = vmatpush2.xpose.msra.mxu0 0.0
        %2792 = vmatprep.subr.mxu0 0.0
        %2793 = vmatpush2.xpose.msra.mxu0 0.0
        %2794 = vmatprep.subr.mxu0 0.0
        %2795 = vmatpush2.xpose.msra.mxu0 0.0
        %2796 = vmatprep.subr.mxu0 0.0
        %2797 = vmatpush2.xpose.msra.mxu0 0.0
        %2798 = vmatprep.subr.mxu0 0.0
        %2799 = vmatpush2.xpose.msra.mxu0 0.0
        %2800 = vmatprep.subr.mxu0 0.0
        %2801 = vmatpush2.xpose.msra.mxu0 0.0
        %2802 = vmatprep.subr.mxu0 0.0
        %2803 = vmatpush2.xpose.msra.mxu0 0.0
        %2804 = vmatprep.subr.mxu0 0.0
        %2805 = vmatpush2.xpose.msra.mxu0 0.0
        %2806 = vmatprep.subr.mxu0 0.0
        %2807 = vmatpush2.xpose.msra.mxu0 0.0
        %2808 = vmatprep.subr.mxu0 0.0
        %2809 = vmatpush2.xpose.msra.mxu0 0.0
        %2810 = vmatprep.subr.mxu0 0.0
        %2811 = vmatpush2.xpose.msra.mxu0 0.0
        %2812 = vmatprep.subr.mxu0 0.0
        %2813 = vmatpush2.xpose.msra.mxu0 0.0
        %2814 = vmatprep.subr.mxu0 0.0
        %2815 = vmatpush2.xpose.msra.mxu0 0.0
        %2816 = vmatprep.subr.mxu0 0.0
        %2817 = vmatpush2.xpose.msra.mxu0 0.0
        %2818 = vmatprep.mubr.f32.mxu0 0.0
        %2819 = vmatmul.mubr.f32.gmra.mxu0 %v2750
        %v2820 = vpop.f32.mrf.mxu0
        %v2821 = vadd.f32 0.0, %v2820
        %v2822 = vpop.f32.mrf.mxu0
        %2823 = vdwg.mxu0
        %v2824 = vsel %vm899, %v832, 0
        %v2826 = vsel %vm899, %v888, 0
        %2828 = vmatprep.subr.mxu0 0.0
        %2829 = vmatpush1.xpose.msra.mxu0 0.0
        %2830 = vmatprep.subr.mxu0 0.0
        %2831 = vmatpush1.xpose.msra.mxu0 0.0
        %2832 = vmatprep.subr.mxu0 0.0
        %2833 = vmatpush1.xpose.msra.mxu0 0.0
        %2834 = vmatprep.subr.mxu0 0.0
        %2835 = vmatpush1.xpose.msra.mxu0 0.0
        %2836 = vmatprep.subr.mxu0 0.0
        %2837 = vmatpush1.xpose.msra.mxu0 0.0
        %2838 = vmatprep.subr.mxu0 0.0
        %2839 = vmatpush1.xpose.msra.mxu0 0.0
        %2840 = vmatprep.subr.mxu0 0.0
        %2841 = vmatpush1.xpose.msra.mxu0 0.0
        %2842 = vmatprep.subr.mxu0 0.0
        %2843 = vmatpush1.xpose.msra.mxu0 0.0
        %2844 = vmatprep.subr.mxu0 0.0
        %2845 = vmatpush1.xpose.msra.mxu0 0.0
        %2846 = vmatprep.subr.mxu0 0.0
        %2847 = vmatpush1.xpose.msra.mxu0 0.0
        %2848 = vmatprep.subr.mxu0 0.0
        %2849 = vmatpush1.xpose.msra.mxu0 0.0
        %2850 = vmatprep.subr.mxu0 0.0
        %2851 = vmatpush1.xpose.msra.mxu0 0.0
        %2852 = vmatprep.subr.mxu0 0.0
        %2853 = vmatpush1.xpose.msra.mxu0 0.0
        %2854 = vmatprep.subr.mxu0 0.0
        %2855 = vmatpush1.xpose.msra.mxu0 0.0
        %2856 = vmatprep.subr.mxu0 0.0
        %2857 = vmatpush1.xpose.msra.mxu0 0.0
        %2858 = vmatprep.subr.mxu0 0.0
        %2859 = vmatpush1.xpose.msra.mxu0 %v2826
        %2860 = vmatprep.subr.mxu0 0.0
        %2861 = vmatpush2.xpose.msra.mxu0 0.0
        %2862 = vmatprep.subr.mxu0 0.0
        %2863 = vmatpush2.xpose.msra.mxu0 0.0
        %2864 = vmatprep.subr.mxu0 0.0
        %2865 = vmatpush2.xpose.msra.mxu0 0.0
        %2866 = vmatprep.subr.mxu0 0.0
        %2867 = vmatpush2.xpose.msra.mxu0 0.0
        %2868 = vmatprep.subr.mxu0 0.0
        %2869 = vmatpush2.xpose.msra.mxu0 0.0
        %2870 = vmatprep.subr.mxu0 0.0
        %2871 = vmatpush2.xpose.msra.mxu0 0.0
        %2872 = vmatprep.subr.mxu0 0.0
        %2873 = vmatpush2.xpose.msra.mxu0 0.0
        %2874 = vmatprep.subr.mxu0 0.0
        %2875 = vmatpush2.xpose.msra.mxu0 0.0
        %2876 = vmatprep.subr.mxu0 0.0
        %2877 = vmatpush2.xpose.msra.mxu0 0.0
        %2878 = vmatprep.subr.mxu0 0.0
        %2879 = vmatpush2.xpose.msra.mxu0 0.0
        %2880 = vmatprep.subr.mxu0 0.0
        %2881 = vmatpush2.xpose.msra.mxu0 0.0
        %2882 = vmatprep.subr.mxu0 0.0
        %2883 = vmatpush2.xpose.msra.mxu0 0.0
        %2884 = vmatprep.subr.mxu0 0.0
        %2885 = vmatpush2.xpose.msra.mxu0 0.0
        %2886 = vmatprep.subr.mxu0 0.0
        %2887 = vmatpush2.xpose.msra.mxu0 0.0
        %2888 = vmatprep.subr.mxu0 0.0
        %2889 = vmatpush2.xpose.msra.mxu0 0.0
        %2890 = vmatprep.subr.mxu0 0.0
        %2891 = vmatpush2.xpose.msra.mxu0 0.0
        %2892 = vmatprep.mubr.f32.mxu0 0.0
        %2893 = vmatmul.mubr.f32.gmra.mxu0 %v2824
        %v2894 = vpop.f32.mrf.mxu0
        %v2895 = vadd.f32 0.0, %v2894
        %v2896 = vpop.f32.mrf.mxu0
        %2897 = vdwg.mxu0
        %v2898 = vsel %vm899, %v834, 0
        %v2900 = vsel %vm899, %v890, 0
        %2902 = vmatprep.subr.mxu0 0.0
        %2903 = vmatpush1.xpose.msra.mxu0 0.0
        %2904 = vmatprep.subr.mxu0 0.0
        %2905 = vmatpush1.xpose.msra.mxu0 0.0
        %2906 = vmatprep.subr.mxu0 0.0
        %2907 = vmatpush1.xpose.msra.mxu0 0.0
        %2908 = vmatprep.subr.mxu0 0.0
        %2909 = vmatpush1.xpose.msra.mxu0 0.0
        %2910 = vmatprep.subr.mxu0 0.0
        %2911 = vmatpush1.xpose.msra.mxu0 0.0
        %2912 = vmatprep.subr.mxu0 0.0
        %2913 = vmatpush1.xpose.msra.mxu0 0.0
        %2914 = vmatprep.subr.mxu0 0.0
        %2915 = vmatpush1.xpose.msra.mxu0 0.0
        %2916 = vmatprep.subr.mxu0 0.0
        %2917 = vmatpush1.xpose.msra.mxu0 0.0
        %2918 = vmatprep.subr.mxu0 0.0
        %2919 = vmatpush1.xpose.msra.mxu0 0.0
        %2920 = vmatprep.subr.mxu0 0.0
        %2921 = vmatpush1.xpose.msra.mxu0 0.0
        %2922 = vmatprep.subr.mxu0 0.0
        %2923 = vmatpush1.xpose.msra.mxu0 0.0
        %2924 = vmatprep.subr.mxu0 0.0
        %2925 = vmatpush1.xpose.msra.mxu0 0.0
        %2926 = vmatprep.subr.mxu0 0.0
        %2927 = vmatpush1.xpose.msra.mxu0 0.0
        %2928 = vmatprep.subr.mxu0 0.0
        %2929 = vmatpush1.xpose.msra.mxu0 0.0
        %2930 = vmatprep.subr.mxu0 0.0
        %2931 = vmatpush1.xpose.msra.mxu0 0.0
        %2932 = vmatprep.subr.mxu0 0.0
        %2933 = vmatpush1.xpose.msra.mxu0 %v2900
        %2934 = vmatprep.subr.mxu0 0.0
        %2935 = vmatpush2.xpose.msra.mxu0 0.0
        %2936 = vmatprep.subr.mxu0 0.0
        %2937 = vmatpush2.xpose.msra.mxu0 0.0
        %2938 = vmatprep.subr.mxu0 0.0
        %2939 = vmatpush2.xpose.msra.mxu0 0.0
        %2940 = vmatprep.subr.mxu0 0.0
        %2941 = vmatpush2.xpose.msra.mxu0 0.0
        %2942 = vmatprep.subr.mxu0 0.0
        %2943 = vmatpush2.xpose.msra.mxu0 0.0
        %2944 = vmatprep.subr.mxu0 0.0
        %2945 = vmatpush2.xpose.msra.mxu0 0.0
        %2946 = vmatprep.subr.mxu0 0.0
        %2947 = vmatpush2.xpose.msra.mxu0 0.0
        %2948 = vmatprep.subr.mxu0 0.0
        %2949 = vmatpush2.xpose.msra.mxu0 0.0
        %2950 = vmatprep.subr.mxu0 0.0
        %2951 = vmatpush2.xpose.msra.mxu0 0.0
        %2952 = vmatprep.subr.mxu0 0.0
        %2953 = vmatpush2.xpose.msra.mxu0 0.0
        %2954 = vmatprep.subr.mxu0 0.0
        %2955 = vmatpush2.xpose.msra.mxu0 0.0
        %2956 = vmatprep.subr.mxu0 0.0
        %2957 = vmatpush2.xpose.msra.mxu0 0.0
        %2958 = vmatprep.subr.mxu0 0.0
        %2959 = vmatpush2.xpose.msra.mxu0 0.0
        %2960 = vmatprep.subr.mxu0 0.0
        %2961 = vmatpush2.xpose.msra.mxu0 0.0
        %2962 = vmatprep.subr.mxu0 0.0
        %2963 = vmatpush2.xpose.msra.mxu0 0.0
        %2964 = vmatprep.subr.mxu0 0.0
        %2965 = vmatpush2.xpose.msra.mxu0 0.0
        %2966 = vmatprep.mubr.f32.mxu0 0.0
        %2967 = vmatmul.mubr.f32.gmra.mxu0 %v2898
        %v2968 = vpop.f32.mrf.mxu0
        %v2969 = vadd.f32 0.0, %v2968
        %v2970 = vpop.f32.mrf.mxu0
        %2971 = vdwg.mxu0
        %v2972 = vsel %vm899, %v836, 0
        %v2974 = vsel %vm899, %v892, 0
        %2976 = vmatprep.subr.mxu0 0.0
        %2977 = vmatpush1.xpose.msra.mxu0 0.0
        %2978 = vmatprep.subr.mxu0 0.0
        %2979 = vmatpush1.xpose.msra.mxu0 0.0
        %2980 = vmatprep.subr.mxu0 0.0
        %2981 = vmatpush1.xpose.msra.mxu0 0.0
        %2982 = vmatprep.subr.mxu0 0.0
        %2983 = vmatpush1.xpose.msra.mxu0 0.0
        %2984 = vmatprep.subr.mxu0 0.0
        %2985 = vmatpush1.xpose.msra.mxu0 0.0
        %2986 = vmatprep.subr.mxu0 0.0
        %2987 = vmatpush1.xpose.msra.mxu0 0.0
        %2988 = vmatprep.subr.mxu0 0.0
        %2989 = vmatpush1.xpose.msra.mxu0 0.0
        %2990 = vmatprep.subr.mxu0 0.0
        %2991 = vmatpush1.xpose.msra.mxu0 0.0
        %2992 = vmatprep.subr.mxu0 0.0
        %2993 = vmatpush1.xpose.msra.mxu0 0.0
        %2994 = vmatprep.subr.mxu0 0.0
        %2995 = vmatpush1.xpose.msra.mxu0 0.0
        %2996 = vmatprep.subr.mxu0 0.0
        %2997 = vmatpush1.xpose.msra.mxu0 0.0
        %2998 = vmatprep.subr.mxu0 0.0
        %2999 = vmatpush1.xpose.msra.mxu0 0.0
        %3000 = vmatprep.subr.mxu0 0.0
        %3001 = vmatpush1.xpose.msra.mxu0 0.0
        %3002 = vmatprep.subr.mxu0 0.0
        %3003 = vmatpush1.xpose.msra.mxu0 0.0
        %3004 = vmatprep.subr.mxu0 0.0
        %3005 = vmatpush1.xpose.msra.mxu0 0.0
        %3006 = vmatprep.subr.mxu0 0.0
        %3007 = vmatpush1.xpose.msra.mxu0 %v2974
        %3008 = vmatprep.subr.mxu0 0.0
        %3009 = vmatpush2.xpose.msra.mxu0 0.0
        %3010 = vmatprep.subr.mxu0 0.0
        %3011 = vmatpush2.xpose.msra.mxu0 0.0
        %3012 = vmatprep.subr.mxu0 0.0
        %3013 = vmatpush2.xpose.msra.mxu0 0.0
        %3014 = vmatprep.subr.mxu0 0.0
        %3015 = vmatpush2.xpose.msra.mxu0 0.0
        %3016 = vmatprep.subr.mxu0 0.0
        %3017 = vmatpush2.xpose.msra.mxu0 0.0
        %3018 = vmatprep.subr.mxu0 0.0
        %3019 = vmatpush2.xpose.msra.mxu0 0.0
        %3020 = vmatprep.subr.mxu0 0.0
        %3021 = vmatpush2.xpose.msra.mxu0 0.0
        %3022 = vmatprep.subr.mxu0 0.0
        %3023 = vmatpush2.xpose.msra.mxu0 0.0
        %3024 = vmatprep.subr.mxu0 0.0
        %3025 = vmatpush2.xpose.msra.mxu0 0.0
        %3026 = vmatprep.subr.mxu0 0.0
        %3027 = vmatpush2.xpose.msra.mxu0 0.0
        %3028 = vmatprep.subr.mxu0 0.0
        %3029 = vmatpush2.xpose.msra.mxu0 0.0
        %3030 = vmatprep.subr.mxu0 0.0
        %3031 = vmatpush2.xpose.msra.mxu0 0.0
        %3032 = vmatprep.subr.mxu0 0.0
        %3033 = vmatpush2.xpose.msra.mxu0 0.0
        %3034 = vmatprep.subr.mxu0 0.0
        %3035 = vmatpush2.xpose.msra.mxu0 0.0
        %3036 = vmatprep.subr.mxu0 0.0
        %3037 = vmatpush2.xpose.msra.mxu0 0.0
        %3038 = vmatprep.subr.mxu0 0.0
        %3039 = vmatpush2.xpose.msra.mxu0 0.0
        %3040 = vmatprep.mubr.f32.mxu0 0.0
        %3041 = vmatmul.mubr.f32.gmra.mxu0 %v2972
        %v3042 = vpop.f32.mrf.mxu0
        %v3043 = vadd.f32 0.0, %v3042
        %v3044 = vpop.f32.mrf.mxu0
        %3045 = vdwg.mxu0
        %v3046 = vsel %vm899, %v838, 0
        %v3048 = vsel %vm899, %v894, 0
        %3050 = vmatprep.subr.mxu0 0.0
        %3051 = vmatpush1.xpose.msra.mxu0 0.0
        %3052 = vmatprep.subr.mxu0 0.0
        %3053 = vmatpush1.xpose.msra.mxu0 0.0
        %3054 = vmatprep.subr.mxu0 0.0
        %3055 = vmatpush1.xpose.msra.mxu0 0.0
        %3056 = vmatprep.subr.mxu0 0.0
        %3057 = vmatpush1.xpose.msra.mxu0 0.0
        %3058 = vmatprep.subr.mxu0 0.0
        %3059 = vmatpush1.xpose.msra.mxu0 0.0
        %3060 = vmatprep.subr.mxu0 0.0
        %3061 = vmatpush1.xpose.msra.mxu0 0.0
        %3062 = vmatprep.subr.mxu0 0.0
        %3063 = vmatpush1.xpose.msra.mxu0 0.0
        %3064 = vmatprep.subr.mxu0 0.0
        %3065 = vmatpush1.xpose.msra.mxu0 0.0
        %3066 = vmatprep.subr.mxu0 0.0
        %3067 = vmatpush1.xpose.msra.mxu0 0.0
        %3068 = vmatprep.subr.mxu0 0.0
        %3069 = vmatpush1.xpose.msra.mxu0 0.0
        %3070 = vmatprep.subr.mxu0 0.0
        %3071 = vmatpush1.xpose.msra.mxu0 0.0
        %3072 = vmatprep.subr.mxu0 0.0
        %3073 = vmatpush1.xpose.msra.mxu0 0.0
        %3074 = vmatprep.subr.mxu0 0.0
        %3075 = vmatpush1.xpose.msra.mxu0 0.0
        %3076 = vmatprep.subr.mxu0 0.0
        %3077 = vmatpush1.xpose.msra.mxu0 0.0
        %3078 = vmatprep.subr.mxu0 0.0
        %3079 = vmatpush1.xpose.msra.mxu0 0.0
        %3080 = vmatprep.subr.mxu0 0.0
        %3081 = vmatpush1.xpose.msra.mxu0 %v3048
        %3082 = vmatprep.subr.mxu0 0.0
        %3083 = vmatpush2.xpose.msra.mxu0 0.0
        %3084 = vmatprep.subr.mxu0 0.0
        %3085 = vmatpush2.xpose.msra.mxu0 0.0
        %3086 = vmatprep.subr.mxu0 0.0
        %3087 = vmatpush2.xpose.msra.mxu0 0.0
        %3088 = vmatprep.subr.mxu0 0.0
        %3089 = vmatpush2.xpose.msra.mxu0 0.0
        %3090 = vmatprep.subr.mxu0 0.0
        %3091 = vmatpush2.xpose.msra.mxu0 0.0
        %3092 = vmatprep.subr.mxu0 0.0
        %3093 = vmatpush2.xpose.msra.mxu0 0.0
        %3094 = vmatprep.subr.mxu0 0.0
        %3095 = vmatpush2.xpose.msra.mxu0 0.0
        %3096 = vmatprep.subr.mxu0 0.0
        %3097 = vmatpush2.xpose.msra.mxu0 0.0
        %3098 = vmatprep.subr.mxu0 0.0
        %3099 = vmatpush2.xpose.msra.mxu0 0.0
        %3100 = vmatprep.subr.mxu0 0.0
        %3101 = vmatpush2.xpose.msra.mxu0 0.0
        %3102 = vmatprep.subr.mxu0 0.0
        %3103 = vmatpush2.xpose.msra.mxu0 0.0
        %3104 = vmatprep.subr.mxu0 0.0
        %3105 = vmatpush2.xpose.msra.mxu0 0.0
        %3106 = vmatprep.subr.mxu0 0.0
        %3107 = vmatpush2.xpose.msra.mxu0 0.0
        %3108 = vmatprep.subr.mxu0 0.0
        %3109 = vmatpush2.xpose.msra.mxu0 0.0
        %3110 = vmatprep.subr.mxu0 0.0
        %3111 = vmatpush2.xpose.msra.mxu0 0.0
        %3112 = vmatprep.subr.mxu0 0.0
        %3113 = vmatpush2.xpose.msra.mxu0 0.0
        %3114 = vmatprep.mubr.f32.mxu0 0.0
        %3115 = vmatmul.mubr.f32.gmra.mxu0 %v3046
        %v3116 = vpop.f32.mrf.mxu0
        %v3117 = vadd.f32 0.0, %v3116
        %v3118 = vpop.f32.mrf.mxu0
        %3119 = vdwg.mxu0
        %v3120 = vsel %vm899, %v840, 0
        %v3122 = vsel %vm899, %v896, 0
        %3124 = vmatprep.subr.mxu0 0.0
        %3125 = vmatpush1.xpose.msra.mxu0 0.0
        %3126 = vmatprep.subr.mxu0 0.0
        %3127 = vmatpush1.xpose.msra.mxu0 0.0
        %3128 = vmatprep.subr.mxu0 0.0
        %3129 = vmatpush1.xpose.msra.mxu0 0.0
        %3130 = vmatprep.subr.mxu0 0.0
        %3131 = vmatpush1.xpose.msra.mxu0 0.0
        %3132 = vmatprep.subr.mxu0 0.0
        %3133 = vmatpush1.xpose.msra.mxu0 0.0
        %3134 = vmatprep.subr.mxu0 0.0
        %3135 = vmatpush1.xpose.msra.mxu0 0.0
        %3136 = vmatprep.subr.mxu0 0.0
        %3137 = vmatpush1.xpose.msra.mxu0 0.0
        %3138 = vmatprep.subr.mxu0 0.0
        %3139 = vmatpush1.xpose.msra.mxu0 0.0
        %3140 = vmatprep.subr.mxu0 0.0
        %3141 = vmatpush1.xpose.msra.mxu0 0.0
        %3142 = vmatprep.subr.mxu0 0.0
        %3143 = vmatpush1.xpose.msra.mxu0 0.0
        %3144 = vmatprep.subr.mxu0 0.0
        %3145 = vmatpush1.xpose.msra.mxu0 0.0
        %3146 = vmatprep.subr.mxu0 0.0
        %3147 = vmatpush1.xpose.msra.mxu0 0.0
        %3148 = vmatprep.subr.mxu0 0.0
        %3149 = vmatpush1.xpose.msra.mxu0 0.0
        %3150 = vmatprep.subr.mxu0 0.0
        %3151 = vmatpush1.xpose.msra.mxu0 0.0
        %3152 = vmatprep.subr.mxu0 0.0
        %3153 = vmatpush1.xpose.msra.mxu0 0.0
        %3154 = vmatprep.subr.mxu0 0.0
        %3155 = vmatpush1.xpose.msra.mxu0 %v3122
        %3156 = vmatprep.subr.mxu0 0.0
        %3157 = vmatpush2.xpose.msra.mxu0 0.0
        %3158 = vmatprep.subr.mxu0 0.0
        %3159 = vmatpush2.xpose.msra.mxu0 0.0
        %3160 = vmatprep.subr.mxu0 0.0
        %3161 = vmatpush2.xpose.msra.mxu0 0.0
        %3162 = vmatprep.subr.mxu0 0.0
        %3163 = vmatpush2.xpose.msra.mxu0 0.0
        %3164 = vmatprep.subr.mxu0 0.0
        %3165 = vmatpush2.xpose.msra.mxu0 0.0
        %3166 = vmatprep.subr.mxu0 0.0
        %3167 = vmatpush2.xpose.msra.mxu0 0.0
        %3168 = vmatprep.subr.mxu0 0.0
        %3169 = vmatpush2.xpose.msra.mxu0 0.0
        %3170 = vmatprep.subr.mxu0 0.0
        %3171 = vmatpush2.xpose.msra.mxu0 0.0
        %3172 = vmatprep.subr.mxu0 0.0
        %3173 = vmatpush2.xpose.msra.mxu0 0.0
        %3174 = vmatprep.subr.mxu0 0.0
        %3175 = vmatpush2.xpose.msra.mxu0 0.0
        %3176 = vmatprep.subr.mxu0 0.0
        %3177 = vmatpush2.xpose.msra.mxu0 0.0
        %3178 = vmatprep.subr.mxu0 0.0
        %3179 = vmatpush2.xpose.msra.mxu0 0.0
        %3180 = vmatprep.subr.mxu0 0.0
        %3181 = vmatpush2.xpose.msra.mxu0 0.0
        %3182 = vmatprep.subr.mxu0 0.0
        %3183 = vmatpush2.xpose.msra.mxu0 0.0
        %3184 = vmatprep.subr.mxu0 0.0
        %3185 = vmatpush2.xpose.msra.mxu0 0.0
        %3186 = vmatprep.subr.mxu0 0.0
        %3187 = vmatpush2.xpose.msra.mxu0 0.0
        %3188 = vmatprep.mubr.f32.mxu0 0.0
        %3189 = vmatmul.mubr.f32.gmra.mxu0 %v3120
        %v3190 = vpop.f32.mrf.mxu0
        %v3191 = vadd.f32 0.0, %v3190
        %v3192 = vpop.f32.mrf.mxu0
        %3193 = vdwg.mxu0
        %v3194 = vsel %vm899, %v842, 0
        %v3196 = vsel %vm899, %v898, 0
        %3198 = vmatprep.subr.mxu0 0.0
        %3199 = vmatpush1.xpose.msra.mxu0 0.0
        %3200 = vmatprep.subr.mxu0 0.0
        %3201 = vmatpush1.xpose.msra.mxu0 0.0
        %3202 = vmatprep.subr.mxu0 0.0
        %3203 = vmatpush1.xpose.msra.mxu0 0.0
        %3204 = vmatprep.subr.mxu0 0.0
        %3205 = vmatpush1.xpose.msra.mxu0 0.0
        %3206 = vmatprep.subr.mxu0 0.0
        %3207 = vmatpush1.xpose.msra.mxu0 0.0
        %3208 = vmatprep.subr.mxu0 0.0
        %3209 = vmatpush1.xpose.msra.mxu0 0.0
        %3210 = vmatprep.subr.mxu0 0.0
        %3211 = vmatpush1.xpose.msra.mxu0 0.0
        %3212 = vmatprep.subr.mxu0 0.0
        %3213 = vmatpush1.xpose.msra.mxu0 0.0
        %3214 = vmatprep.subr.mxu0 0.0
        %3215 = vmatpush1.xpose.msra.mxu0 0.0
        %3216 = vmatprep.subr.mxu0 0.0
        %3217 = vmatpush1.xpose.msra.mxu0 0.0
        %3218 = vmatprep.subr.mxu0 0.0
        %3219 = vmatpush1.xpose.msra.mxu0 0.0
        %3220 = vmatprep.subr.mxu0 0.0
        %3221 = vmatpush1.xpose.msra.mxu0 0.0
        %3222 = vmatprep.subr.mxu0 0.0
        %3223 = vmatpush1.xpose.msra.mxu0 0.0
        %3224 = vmatprep.subr.mxu0 0.0
        %3225 = vmatpush1.xpose.msra.mxu0 0.0
        %3226 = vmatprep.subr.mxu0 0.0
        %3227 = vmatpush1.xpose.msra.mxu0 0.0
        %3228 = vmatprep.subr.mxu0 0.0
        %3229 = vmatpush1.xpose.msra.mxu0 %v3196
        %3230 = vmatprep.subr.mxu0 0.0
        %3231 = vmatpush2.xpose.msra.mxu0 0.0
        %3232 = vmatprep.subr.mxu0 0.0
        %3233 = vmatpush2.xpose.msra.mxu0 0.0
        %3234 = vmatprep.subr.mxu0 0.0
        %3235 = vmatpush2.xpose.msra.mxu0 0.0
        %3236 = vmatprep.subr.mxu0 0.0
        %3237 = vmatpush2.xpose.msra.mxu0 0.0
        %3238 = vmatprep.subr.mxu0 0.0
        %3239 = vmatpush2.xpose.msra.mxu0 0.0
        %3240 = vmatprep.subr.mxu0 0.0
        %3241 = vmatpush2.xpose.msra.mxu0 0.0
        %3242 = vmatprep.subr.mxu0 0.0
        %3243 = vmatpush2.xpose.msra.mxu0 0.0
        %3244 = vmatprep.subr.mxu0 0.0
        %3245 = vmatpush2.xpose.msra.mxu0 0.0
        %3246 = vmatprep.subr.mxu0 0.0
        %3247 = vmatpush2.xpose.msra.mxu0 0.0
        %3248 = vmatprep.subr.mxu0 0.0
        %3249 = vmatpush2.xpose.msra.mxu0 0.0
        %3250 = vmatprep.subr.mxu0 0.0
        %3251 = vmatpush2.xpose.msra.mxu0 0.0
        %3252 = vmatprep.subr.mxu0 0.0
        %3253 = vmatpush2.xpose.msra.mxu0 0.0
        %3254 = vmatprep.subr.mxu0 0.0
        %3255 = vmatpush2.xpose.msra.mxu0 0.0
        %3256 = vmatprep.subr.mxu0 0.0
        %3257 = vmatpush2.xpose.msra.mxu0 0.0
        %3258 = vmatprep.subr.mxu0 0.0
        %3259 = vmatpush2.xpose.msra.mxu0 0.0
        %3260 = vmatprep.subr.mxu0 0.0
        %3261 = vmatpush2.xpose.msra.mxu0 0.0
        %3262 = vmatprep.mubr.f32.mxu0 0.0
        %3263 = vmatmul.mubr.f32.gmra.mxu0 %v3194
        %v3264 = vpop.f32.mrf.mxu0
        %v3265 = vadd.f32 0.0, %v3264
        %v3266 = vpop.f32.mrf.mxu0
        %3267 = vdwg.mxu0
        %v3268 = vsel %vm899, %v971, -inf
        %3269 = vmax.xlane.f32.xlu0 %v3268
        %v3270 = vpop.xlane.xlu0 %3269
        %v3271 = vsel %vm899, %v1045, -inf
        %3272 = vmax.xlane.f32.xlu0 %v3271
        %v3273 = vpop.xlane.xlu0 %3272
        %v3274 = vsel %vm899, %v1119, -inf
        %3275 = vmax.xlane.f32.xlu0 %v3274
        %v3276 = vpop.xlane.xlu0 %3275
        %v3277 = vsel %vm899, %v1193, -inf
        %3278 = vmax.xlane.f32.xlu0 %v3277
        %v3279 = vpop.xlane.xlu0 %3278
        %v3280 = vsel %vm899, %v1267, -inf
        %3281 = vmax.xlane.f32.xlu0 %v3280
        %v3282 = vpop.xlane.xlu0 %3281
        %v3283 = vsel %vm899, %v1341, -inf
        %3284 = vmax.xlane.f32.xlu0 %v3283
        %v3285 = vpop.xlane.xlu0 %3284
        %v3286 = vsel %vm899, %v1415, -inf
        %3287 = vmax.xlane.f32.xlu0 %v3286
        %v3288 = vpop.xlane.xlu0 %3287
        %v3289 = vsel %vm899, %v1489, -inf
        %3290 = vmax.xlane.f32.xlu0 %v3289
        %v3291 = vpop.xlane.xlu0 %3290
        %v3292 = vsel %vm899, %v1563, -inf
        %3293 = vmax.xlane.f32.xlu0 %v3292
        %v3294 = vpop.xlane.xlu0 %3293
        %v3295 = vsel %vm899, %v1637, -inf
        %3296 = vmax.xlane.f32.xlu0 %v3295
        %v3297 = vpop.xlane.xlu0 %3296
        %v3298 = vsel %vm899, %v1711, -inf
        %3299 = vmax.xlane.f32.xlu0 %v3298
        %v3300 = vpop.xlane.xlu0 %3299
        %v3301 = vsel %vm899, %v1785, -inf
        %3302 = vmax.xlane.f32.xlu0 %v3301
        %v3303 = vpop.xlane.xlu0 %3302
        %v3304 = vsel %vm899, %v1859, -inf
        %3305 = vmax.xlane.f32.xlu0 %v3304
        %v3306 = vpop.xlane.xlu0 %3305
        %v3307 = vsel %vm899, %v1933, -inf
        %3308 = vmax.xlane.f32.xlu0 %v3307
        %v3309 = vpop.xlane.xlu0 %3308
        %v3310 = vsel %vm899, %v2007, -inf
        %3311 = vmax.xlane.f32.xlu0 %v3310
        %v3312 = vpop.xlane.xlu0 %3311
        %v3313 = vsel %vm899, %v2081, -inf
        %3314 = vmax.xlane.f32.xlu0 %v3313
        %v3315 = vpop.xlane.xlu0 %3314
        %v3316 = vsel %vm899, %v2155, -inf
        %3317 = vmax.xlane.f32.xlu0 %v3316
        %v3318 = vpop.xlane.xlu0 %3317
        %v3319 = vsel %vm899, %v2229, -inf
        %3320 = vmax.xlane.f32.xlu0 %v3319
        %v3321 = vpop.xlane.xlu0 %3320
        %v3322 = vsel %vm899, %v2303, -inf
        %3323 = vmax.xlane.f32.xlu0 %v3322
        %v3324 = vpop.xlane.xlu0 %3323
        %v3325 = vsel %vm899, %v2377, -inf
        %3326 = vmax.xlane.f32.xlu0 %v3325
        %v3327 = vpop.xlane.xlu0 %3326
        %v3328 = vsel %vm899, %v2451, -inf
        %3329 = vmax.xlane.f32.xlu0 %v3328
        %v3330 = vpop.xlane.xlu0 %3329
        %v3331 = vsel %vm899, %v2525, -inf
        %3332 = vmax.xlane.f32.xlu0 %v3331
        %v3333 = vpop.xlane.xlu0 %3332
        %v3334 = vsel %vm899, %v2599, -inf
        %3335 = vmax.xlane.f32.xlu0 %v3334
        %v3336 = vpop.xlane.xlu0 %3335
        %v3337 = vsel %vm899, %v2673, -inf
        %3338 = vmax.xlane.f32.xlu0 %v3337
        %v3339 = vpop.xlane.xlu0 %3338
        %v3340 = vsel %vm899, %v2747, -inf
        %3341 = vmax.xlane.f32.xlu0 %v3340
        %v3342 = vpop.xlane.xlu0 %3341
        %v3343 = vsel %vm899, %v2821, -inf
        %3344 = vmax.xlane.f32.xlu0 %v3343
        %v3345 = vpop.xlane.xlu0 %3344
        %v3346 = vsel %vm899, %v2895, -inf
        %3347 = vmax.xlane.f32.xlu0 %v3346
        %v3348 = vpop.xlane.xlu0 %3347
        %v3349 = vsel %vm899, %v2969, -inf
        %3350 = vmax.xlane.f32.xlu0 %v3349
        %v3351 = vpop.xlane.xlu0 %3350
        %v3352 = vsel %vm899, %v3043, -inf
        %3353 = vmax.xlane.f32.xlu0 %v3352
        %v3354 = vpop.xlane.xlu0 %3353
        %v3355 = vsel %vm899, %v3117, -inf
        %3356 = vmax.xlane.f32.xlu0 %v3355
        %v3357 = vpop.xlane.xlu0 %3356
        %v3358 = vsel %vm899, %v3191, -inf
        %3359 = vmax.xlane.f32.xlu0 %v3358
        %v3360 = vpop.xlane.xlu0 %3359
        %v3361 = vsel %vm899, %v3265, -inf
        %3362 = vmax.xlane.f32.xlu0 %v3361
        %v3363 = vpop.xlane.xlu0 %3362
        %v3364 = vsub.f32 %v971, %v3270
        %v3365 = vsub.f32 %v1045, %v3273
        %v3366 = vsub.f32 %v1119, %v3276
        %v3367 = vsub.f32 %v1193, %v3279
        %v3368 = vsub.f32 %v1267, %v3282
        %v3369 = vsub.f32 %v1341, %v3285
        %v3370 = vsub.f32 %v1415, %v3288
        %v3371 = vsub.f32 %v1489, %v3291
        %v3372 = vsub.f32 %v1563, %v3294
        %v3373 = vsub.f32 %v1637, %v3297
        %v3374 = vsub.f32 %v1711, %v3300
        %v3375 = vsub.f32 %v1785, %v3303
        %v3376 = vsub.f32 %v1859, %v3306
        %v3377 = vsub.f32 %v1933, %v3309
        %v3378 = vsub.f32 %v2007, %v3312
        %v3379 = vsub.f32 %v2081, %v3315
        %v3380 = vsub.f32 %v2155, %v3318
        %v3381 = vsub.f32 %v2229, %v3321
        %v3382 = vsub.f32 %v2303, %v3324
        %v3383 = vsub.f32 %v2377, %v3327
        %v3384 = vsub.f32 %v2451, %v3330
        %v3385 = vsub.f32 %v2525, %v3333
        %v3386 = vsub.f32 %v2599, %v3336
        %v3387 = vsub.f32 %v2673, %v3339
        %v3388 = vsub.f32 %v2747, %v3342
        %v3389 = vsub.f32 %v2821, %v3345
        %v3390 = vsub.f32 %v2895, %v3348
        %v3391 = vsub.f32 %v2969, %v3351
        %v3392 = vsub.f32 %v3043, %v3354
        %v3393 = vsub.f32 %v3117, %v3357
        %v3394 = vsub.f32 %v3191, %v3360
        %v3395 = vsub.f32 %v3265, %v3363
        %v3396 = vmul.f32 %v3364, 1.442695
        %v3397 = vpow.pop %v3396
        %v3398 = vmul.f32 %v3365, 1.442695
        %v3399 = vpow.pop %v3398
        %v3400 = vmul.f32 %v3366, 1.442695
        %v3401 = vpow.pop %v3400
        %v3402 = vmul.f32 %v3367, 1.442695
        %v3403 = vpow.pop %v3402
        %v3404 = vmul.f32 %v3368, 1.442695
        %v3405 = vpow.pop %v3404
        %v3406 = vmul.f32 %v3369, 1.442695
        %v3407 = vpow.pop %v3406
        %v3408 = vmul.f32 %v3370, 1.442695
        %v3409 = vpow.pop %v3408
        %v3410 = vmul.f32 %v3371, 1.442695
        %v3411 = vpow.pop %v3410
        %v3412 = vmul.f32 %v3372, 1.442695
        %v3413 = vpow.pop %v3412
        %v3414 = vmul.f32 %v3373, 1.442695
        %v3415 = vpow.pop %v3414
        %v3416 = vmul.f32 %v3374, 1.442695
        %v3417 = vpow.pop %v3416
        %v3418 = vmul.f32 %v3375, 1.442695
        %v3419 = vpow.pop %v3418
        %v3420 = vmul.f32 %v3376, 1.442695
        %v3421 = vpow.pop %v3420
        %v3422 = vmul.f32 %v3377, 1.442695
        %v3423 = vpow.pop %v3422
        %v3424 = vmul.f32 %v3378, 1.442695
        %v3425 = vpow.pop %v3424
        %v3426 = vmul.f32 %v3379, 1.442695
        %v3427 = vpow.pop %v3426
        %v3428 = vmul.f32 %v3380, 1.442695
        %v3429 = vpow.pop %v3428
        %v3430 = vmul.f32 %v3381, 1.442695
        %v3431 = vpow.pop %v3430
        %v3432 = vmul.f32 %v3382, 1.442695
        %v3433 = vpow.pop %v3432
        %v3434 = vmul.f32 %v3383, 1.442695
        %v3435 = vpow.pop %v3434
        %v3436 = vmul.f32 %v3384, 1.442695
        %v3437 = vpow.pop %v3436
        %v3438 = vmul.f32 %v3385, 1.442695
        %v3439 = vpow.pop %v3438
        %v3440 = vmul.f32 %v3386, 1.442695
        %v3441 = vpow.pop %v3440
        %v3442 = vmul.f32 %v3387, 1.442695
        %v3443 = vpow.pop %v3442
        %v3444 = vmul.f32 %v3388, 1.442695
        %v3445 = vpow.pop %v3444
        %v3446 = vmul.f32 %v3389, 1.442695
        %v3447 = vpow.pop %v3446
        %v3448 = vmul.f32 %v3390, 1.442695
        %v3449 = vpow.pop %v3448
        %v3450 = vmul.f32 %v3391, 1.442695
        %v3451 = vpow.pop %v3450
        %v3452 = vmul.f32 %v3392, 1.442695
        %v3453 = vpow.pop %v3452
        %v3454 = vmul.f32 %v3393, 1.442695
        %v3455 = vpow.pop %v3454
        %v3456 = vmul.f32 %v3394, 1.442695
        %v3457 = vpow.pop %v3456
        %v3458 = vmul.f32 %v3395, 1.442695
        %v3459 = vpow.pop %v3458
        %v3460 = vsel %vm899, %v3397, 0.0
        %3461 = vadd.xlane.f32.xlu0 %v3460
        %v3462 = vpop.xlane.xlu0 %3461
        %v3463 = vsel %vm899, %v3399, 0.0
        %3464 = vadd.xlane.f32.xlu0 %v3463
        %v3465 = vpop.xlane.xlu0 %3464
        %v3466 = vsel %vm899, %v3401, 0.0
        %3467 = vadd.xlane.f32.xlu0 %v3466
        %v3468 = vpop.xlane.xlu0 %3467
        %v3469 = vsel %vm899, %v3403, 0.0
        %3470 = vadd.xlane.f32.xlu0 %v3469
        %v3471 = vpop.xlane.xlu0 %3470
        %v3472 = vsel %vm899, %v3405, 0.0
        %3473 = vadd.xlane.f32.xlu0 %v3472
        %v3474 = vpop.xlane.xlu0 %3473
        %v3475 = vsel %vm899, %v3407, 0.0
        %3476 = vadd.xlane.f32.xlu0 %v3475
        %v3477 = vpop.xlane.xlu0 %3476
        %v3478 = vsel %vm899, %v3409, 0.0
        %3479 = vadd.xlane.f32.xlu0 %v3478
        %v3480 = vpop.xlane.xlu0 %3479
        %v3481 = vsel %vm899, %v3411, 0.0
        %3482 = vadd.xlane.f32.xlu0 %v3481
        %v3483 = vpop.xlane.xlu0 %3482
        %v3484 = vsel %vm899, %v3413, 0.0
        %3485 = vadd.xlane.f32.xlu0 %v3484
        %v3486 = vpop.xlane.xlu0 %3485
        %v3487 = vsel %vm899, %v3415, 0.0
        %3488 = vadd.xlane.f32.xlu0 %v3487
        %v3489 = vpop.xlane.xlu0 %3488
        %v3490 = vsel %vm899, %v3417, 0.0
        %3491 = vadd.xlane.f32.xlu0 %v3490
        %v3492 = vpop.xlane.xlu0 %3491
        %v3493 = vsel %vm899, %v3419, 0.0
        %3494 = vadd.xlane.f32.xlu0 %v3493
        %v3495 = vpop.xlane.xlu0 %3494
        %v3496 = vsel %vm899, %v3421, 0.0
        %3497 = vadd.xlane.f32.xlu0 %v3496
        %v3498 = vpop.xlane.xlu0 %3497
        %v3499 = vsel %vm899, %v3423, 0.0
        %3500 = vadd.xlane.f32.xlu0 %v3499
        %v3501 = vpop.xlane.xlu0 %3500
        %v3502 = vsel %vm899, %v3425, 0.0
        %3503 = vadd.xlane.f32.xlu0 %v3502
        %v3504 = vpop.xlane.xlu0 %3503
        %v3505 = vsel %vm899, %v3427, 0.0
        %3506 = vadd.xlane.f32.xlu0 %v3505
        %v3507 = vpop.xlane.xlu0 %3506
        %v3508 = vsel %vm899, %v3429, 0.0
        %3509 = vadd.xlane.f32.xlu0 %v3508
        %v3510 = vpop.xlane.xlu0 %3509
        %v3511 = vsel %vm899, %v3431, 0.0
        %3512 = vadd.xlane.f32.xlu0 %v3511
        %v3513 = vpop.xlane.xlu0 %3512
        %v3514 = vsel %vm899, %v3433, 0.0
        %3515 = vadd.xlane.f32.xlu0 %v3514
        %v3516 = vpop.xlane.xlu0 %3515
        %v3517 = vsel %vm899, %v3435, 0.0
        %3518 = vadd.xlane.f32.xlu0 %v3517
        %v3519 = vpop.xlane.xlu0 %3518
        %v3520 = vsel %vm899, %v3437, 0.0
        %3521 = vadd.xlane.f32.xlu0 %v3520
        %v3522 = vpop.xlane.xlu0 %3521
        %v3523 = vsel %vm899, %v3439, 0.0
        %3524 = vadd.xlane.f32.xlu0 %v3523
        %v3525 = vpop.xlane.xlu0 %3524
        %v3526 = vsel %vm899, %v3441, 0.0
        %3527 = vadd.xlane.f32.xlu0 %v3526
        %v3528 = vpop.xlane.xlu0 %3527
        %v3529 = vsel %vm899, %v3443, 0.0
        %3530 = vadd.xlane.f32.xlu0 %v3529
        %v3531 = vpop.xlane.xlu0 %3530
        %v3532 = vsel %vm899, %v3445, 0.0
        %3533 = vadd.xlane.f32.xlu0 %v3532
        %v3534 = vpop.xlane.xlu0 %3533
        %v3535 = vsel %vm899, %v3447, 0.0
        %3536 = vadd.xlane.f32.xlu0 %v3535
        %v3537 = vpop.xlane.xlu0 %3536
        %v3538 = vsel %vm899, %v3449, 0.0
        %3539 = vadd.xlane.f32.xlu0 %v3538
        %v3540 = vpop.xlane.xlu0 %3539
        %v3541 = vsel %vm899, %v3451, 0.0
        %3542 = vadd.xlane.f32.xlu0 %v3541
        %v3543 = vpop.xlane.xlu0 %3542
        %v3544 = vsel %vm899, %v3453, 0.0
        %3545 = vadd.xlane.f32.xlu0 %v3544
        %v3546 = vpop.xlane.xlu0 %3545
        %v3547 = vsel %vm899, %v3455, 0.0
        %3548 = vadd.xlane.f32.xlu0 %v3547
        %v3549 = vpop.xlane.xlu0 %3548
        %v3550 = vsel %vm899, %v3457, 0.0
        %3551 = vadd.xlane.f32.xlu0 %v3550
        %v3552 = vpop.xlane.xlu0 %3551
        %v3553 = vsel %vm899, %v3459, 0.0
        %3554 = vadd.xlane.f32.xlu0 %v3553
        %v3555 = vpop.xlane.xlu0 %3554
        %v3556 = vrcp.pop %v3462
        %v3557 = vrcp.pop %v3465
        %v3558 = vrcp.pop %v3468
        %v3559 = vrcp.pop %v3471
        %v3560 = vrcp.pop %v3474
        %v3561 = vrcp.pop %v3477
        %v3562 = vrcp.pop %v3480
        %v3563 = vrcp.pop %v3483
        %v3564 = vrcp.pop %v3486
        %v3565 = vrcp.pop %v3489
        %v3566 = vrcp.pop %v3492
        %v3567 = vrcp.pop %v3495
        %v3568 = vrcp.pop %v3498
        %v3569 = vrcp.pop %v3501
        %v3570 = vrcp.pop %v3504
        %v3571 = vrcp.pop %v3507
        %v3572 = vrcp.pop %v3510
        %v3573 = vrcp.pop %v3513
        %v3574 = vrcp.pop %v3516
        %v3575 = vrcp.pop %v3519
        %v3576 = vrcp.pop %v3522
        %v3577 = vrcp.pop %v3525
        %v3578 = vrcp.pop %v3528
        %v3579 = vrcp.pop %v3531
        %v3580 = vrcp.pop %v3534
        %v3581 = vrcp.pop %v3537
        %v3582 = vrcp.pop %v3540
        %v3583 = vrcp.pop %v3543
        %v3584 = vrcp.pop %v3546
        %v3585 = vrcp.pop %v3549
        %v3586 = vrcp.pop %v3552
        %v3587 = vrcp.pop %v3555
        %v3588 = vmul.f32 %v3397, %v3556
        %v3589 = vmul.f32 %v3399, %v3557
        %v3590 = vmul.f32 %v3401, %v3558
        %v3591 = vmul.f32 %v3403, %v3559
        %v3592 = vmul.f32 %v3405, %v3560
        %v3593 = vmul.f32 %v3407, %v3561
        %v3594 = vmul.f32 %v3409, %v3562
        %v3595 = vmul.f32 %v3411, %v3563
        %v3596 = vmul.f32 %v3413, %v3564
        %v3597 = vmul.f32 %v3415, %v3565
        %v3598 = vmul.f32 %v3417, %v3566
        %v3599 = vmul.f32 %v3419, %v3567
        %v3600 = vmul.f32 %v3421, %v3568
        %v3601 = vmul.f32 %v3423, %v3569
        %v3602 = vmul.f32 %v3425, %v3570
        %v3603 = vmul.f32 %v3427, %v3571
        %v3604 = vmul.f32 %v3429, %v3572
        %v3605 = vmul.f32 %v3431, %v3573
        %v3606 = vmul.f32 %v3433, %v3574
        %v3607 = vmul.f32 %v3435, %v3575
        %v3608 = vmul.f32 %v3437, %v3576
        %v3609 = vmul.f32 %v3439, %v3577
        %v3610 = vmul.f32 %v3441, %v3578
        %v3611 = vmul.f32 %v3443, %v3579
        %v3612 = vmul.f32 %v3445, %v3580
        %v3613 = vmul.f32 %v3447, %v3581
        %v3614 = vmul.f32 %v3449, %v3582
        %v3615 = vmul.f32 %v3451, %v3583
        %v3616 = vmul.f32 %v3453, %v3584
        %v3617 = vmul.f32 %v3455, %v3585
        %v3618 = vmul.f32 %v3457, %v3586
        %v3619 = vmul.f32 %v3459, %v3587
        %3620 = vrot.lane.b32.xlu0 %v607, 96
        %v3621 = vpop.permute.xlu0 %3620
        %v3624 = vsel %vm899, %v3588, 0
        %3626 = vmatprep.subr.mxu0 0.0
        %3627 = vmatpush1.msra.mxu0 0.0
        %3628 = vmatprep.subr.mxu0 0.0
        %3629 = vmatpush1.msra.mxu0 0.0
        %3630 = vmatprep.subr.mxu0 0.0
        %3631 = vmatpush1.msra.mxu0 0.0
        %3632 = vmatprep.subr.mxu0 0.0
        %3633 = vmatpush1.msra.mxu0 0.0
        %3634 = vmatprep.subr.mxu0 0.0
        %3635 = vmatpush1.msra.mxu0 0.0
        %3636 = vmatprep.subr.mxu0 0.0
        %3637 = vmatpush1.msra.mxu0 0.0
        %3638 = vmatprep.subr.mxu0 0.0
        %3639 = vmatpush1.msra.mxu0 0.0
        %3640 = vmatprep.subr.mxu0 0.0
        %3641 = vmatpush1.msra.mxu0 0.0
        %3642 = vmatprep.subr.mxu0 0.0
        %3643 = vmatpush1.msra.mxu0 0.0
        %3644 = vmatprep.subr.mxu0 0.0
        %3645 = vmatpush1.msra.mxu0 0.0
        %3646 = vmatprep.subr.mxu0 0.0
        %3647 = vmatpush1.msra.mxu0 0.0
        %3648 = vmatprep.subr.mxu0 0.0
        %3649 = vmatpush1.msra.mxu0 0.0
        %3650 = vmatprep.subr.mxu0 0.0
        %3651 = vmatpush1.msra.mxu0 0.0
        %3652 = vmatprep.subr.mxu0 0.0
        %3653 = vmatpush1.msra.mxu0 0.0
        %3654 = vmatprep.subr.mxu0 0.0
        %3655 = vmatpush1.msra.mxu0 0.0
        %3656 = vmatprep.subr.mxu0 0.0
        %3657 = vmatpush1.msra.mxu0 %v3621
        %3658 = vmatprep.subr.mxu0 0.0
        %3659 = vmatpush2.msra.mxu0 0.0
        %3660 = vmatprep.subr.mxu0 0.0
        %3661 = vmatpush2.msra.mxu0 0.0
        %3662 = vmatprep.subr.mxu0 0.0
        %3663 = vmatpush2.msra.mxu0 0.0
        %3664 = vmatprep.subr.mxu0 0.0
        %3665 = vmatpush2.msra.mxu0 0.0
        %3666 = vmatprep.subr.mxu0 0.0
        %3667 = vmatpush2.msra.mxu0 0.0
        %3668 = vmatprep.subr.mxu0 0.0
        %3669 = vmatpush2.msra.mxu0 0.0
        %3670 = vmatprep.subr.mxu0 0.0
        %3671 = vmatpush2.msra.mxu0 0.0
        %3672 = vmatprep.subr.mxu0 0.0
        %3673 = vmatpush2.msra.mxu0 0.0
        %3674 = vmatprep.subr.mxu0 0.0
        %3675 = vmatpush2.msra.mxu0 0.0
        %3676 = vmatprep.subr.mxu0 0.0
        %3677 = vmatpush2.msra.mxu0 0.0
        %3678 = vmatprep.subr.mxu0 0.0
        %3679 = vmatpush2.msra.mxu0 0.0
        %3680 = vmatprep.subr.mxu0 0.0
        %3681 = vmatpush2.msra.mxu0 0.0
        %3682 = vmatprep.subr.mxu0 0.0
        %3683 = vmatpush2.msra.mxu0 0.0
        %3684 = vmatprep.subr.mxu0 0.0
        %3685 = vmatpush2.msra.mxu0 0.0
        %3686 = vmatprep.subr.mxu0 0.0
        %3687 = vmatpush2.msra.mxu0 0.0
        %3688 = vmatprep.subr.mxu0 0.0
        %3689 = vmatpush2.msra.mxu0 0.0
        %3690 = vmatprep.mubr.f32.mxu0 0.0
        %3691 = vmatmul.mubr.f32.gmra.mxu0 %v3624
        %v3692 = vpop.f32.mrf.mxu0
        %v3693 = vadd.f32 0.0, %v3692
        %v3694 = vpop.f32.mrf.mxu0
        %3695 = vdwg.mxu0
        %3696 = vrot.lane.b32.xlu0 %v608, 96
        %v3697 = vpop.permute.xlu0 %3696
        %v3700 = vsel %vm899, %v3589, 0
        %3702 = vmatprep.subr.mxu0 0.0
        %3703 = vmatpush1.msra.mxu0 0.0
        %3704 = vmatprep.subr.mxu0 0.0
        %3705 = vmatpush1.msra.mxu0 0.0
        %3706 = vmatprep.subr.mxu0 0.0
        %3707 = vmatpush1.msra.mxu0 0.0
        %3708 = vmatprep.subr.mxu0 0.0
        %3709 = vmatpush1.msra.mxu0 0.0
        %3710 = vmatprep.subr.mxu0 0.0
        %3711 = vmatpush1.msra.mxu0 0.0
        %3712 = vmatprep.subr.mxu0 0.0
        %3713 = vmatpush1.msra.mxu0 0.0
        %3714 = vmatprep.subr.mxu0 0.0
        %3715 = vmatpush1.msra.mxu0 0.0
        %3716 = vmatprep.subr.mxu0 0.0
        %3717 = vmatpush1.msra.mxu0 0.0
        %3718 = vmatprep.subr.mxu0 0.0
        %3719 = vmatpush1.msra.mxu0 0.0
        %3720 = vmatprep.subr.mxu0 0.0
        %3721 = vmatpush1.msra.mxu0 0.0
        %3722 = vmatprep.subr.mxu0 0.0
        %3723 = vmatpush1.msra.mxu0 0.0
        %3724 = vmatprep.subr.mxu0 0.0
        %3725 = vmatpush1.msra.mxu0 0.0
        %3726 = vmatprep.subr.mxu0 0.0
        %3727 = vmatpush1.msra.mxu0 0.0
        %3728 = vmatprep.subr.mxu0 0.0
        %3729 = vmatpush1.msra.mxu0 0.0
        %3730 = vmatprep.subr.mxu0 0.0
        %3731 = vmatpush1.msra.mxu0 0.0
        %3732 = vmatprep.subr.mxu0 0.0
        %3733 = vmatpush1.msra.mxu0 %v3697
        %3734 = vmatprep.subr.mxu0 0.0
        %3735 = vmatpush2.msra.mxu0 0.0
        %3736 = vmatprep.subr.mxu0 0.0
        %3737 = vmatpush2.msra.mxu0 0.0
        %3738 = vmatprep.subr.mxu0 0.0
        %3739 = vmatpush2.msra.mxu0 0.0
        %3740 = vmatprep.subr.mxu0 0.0
        %3741 = vmatpush2.msra.mxu0 0.0
        %3742 = vmatprep.subr.mxu0 0.0
        %3743 = vmatpush2.msra.mxu0 0.0
        %3744 = vmatprep.subr.mxu0 0.0
        %3745 = vmatpush2.msra.mxu0 0.0
        %3746 = vmatprep.subr.mxu0 0.0
        %3747 = vmatpush2.msra.mxu0 0.0
        %3748 = vmatprep.subr.mxu0 0.0
        %3749 = vmatpush2.msra.mxu0 0.0
        %3750 = vmatprep.subr.mxu0 0.0
        %3751 = vmatpush2.msra.mxu0 0.0
        %3752 = vmatprep.subr.mxu0 0.0
        %3753 = vmatpush2.msra.mxu0 0.0
        %3754 = vmatprep.subr.mxu0 0.0
        %3755 = vmatpush2.msra.mxu0 0.0
        %3756 = vmatprep.subr.mxu0 0.0
        %3757 = vmatpush2.msra.mxu0 0.0
        %3758 = vmatprep.subr.mxu0 0.0
        %3759 = vmatpush2.msra.mxu0 0.0
        %3760 = vmatprep.subr.mxu0 0.0
        %3761 = vmatpush2.msra.mxu0 0.0
        %3762 = vmatprep.subr.mxu0 0.0
        %3763 = vmatpush2.msra.mxu0 0.0
        %3764 = vmatprep.subr.mxu0 0.0
        %3765 = vmatpush2.msra.mxu0 0.0
        %3766 = vmatprep.mubr.f32.mxu0 0.0
        %3767 = vmatmul.mubr.f32.gmra.mxu0 %v3700
        %v3768 = vpop.f32.mrf.mxu0
        %v3769 = vadd.f32 0.0, %v3768
        %v3770 = vpop.f32.mrf.mxu0
        %3771 = vdwg.mxu0
        %3772 = vrot.lane.b32.xlu0 %v609, 96
        %v3773 = vpop.permute.xlu0 %3772
        %v3776 = vsel %vm899, %v3590, 0
        %3778 = vmatprep.subr.mxu0 0.0
        %3779 = vmatpush1.msra.mxu0 0.0
        %3780 = vmatprep.subr.mxu0 0.0
        %3781 = vmatpush1.msra.mxu0 0.0
        %3782 = vmatprep.subr.mxu0 0.0
        %3783 = vmatpush1.msra.mxu0 0.0
        %3784 = vmatprep.subr.mxu0 0.0
        %3785 = vmatpush1.msra.mxu0 0.0
        %3786 = vmatprep.subr.mxu0 0.0
        %3787 = vmatpush1.msra.mxu0 0.0
        %3788 = vmatprep.subr.mxu0 0.0
        %3789 = vmatpush1.msra.mxu0 0.0
        %3790 = vmatprep.subr.mxu0 0.0
        %3791 = vmatpush1.msra.mxu0 0.0
        %3792 = vmatprep.subr.mxu0 0.0
        %3793 = vmatpush1.msra.mxu0 0.0
        %3794 = vmatprep.subr.mxu0 0.0
        %3795 = vmatpush1.msra.mxu0 0.0
        %3796 = vmatprep.subr.mxu0 0.0
        %3797 = vmatpush1.msra.mxu0 0.0
        %3798 = vmatprep.subr.mxu0 0.0
        %3799 = vmatpush1.msra.mxu0 0.0
        %3800 = vmatprep.subr.mxu0 0.0
        %3801 = vmatpush1.msra.mxu0 0.0
        %3802 = vmatprep.subr.mxu0 0.0
        %3803 = vmatpush1.msra.mxu0 0.0
        %3804 = vmatprep.subr.mxu0 0.0
        %3805 = vmatpush1.msra.mxu0 0.0
        %3806 = vmatprep.subr.mxu0 0.0
        %3807 = vmatpush1.msra.mxu0 0.0
        %3808 = vmatprep.subr.mxu0 0.0
        %3809 = vmatpush1.msra.mxu0 %v3773
        %3810 = vmatprep.subr.mxu0 0.0
        %3811 = vmatpush2.msra.mxu0 0.0
        %3812 = vmatprep.subr.mxu0 0.0
        %3813 = vmatpush2.msra.mxu0 0.0
        %3814 = vmatprep.subr.mxu0 0.0
        %3815 = vmatpush2.msra.mxu0 0.0
        %3816 = vmatprep.subr.mxu0 0.0
        %3817 = vmatpush2.msra.mxu0 0.0
        %3818 = vmatprep.subr.mxu0 0.0
        %3819 = vmatpush2.msra.mxu0 0.0
        %3820 = vmatprep.subr.mxu0 0.0
        %3821 = vmatpush2.msra.mxu0 0.0
        %3822 = vmatprep.subr.mxu0 0.0
        %3823 = vmatpush2.msra.mxu0 0.0
        %3824 = vmatprep.subr.mxu0 0.0
        %3825 = vmatpush2.msra.mxu0 0.0
        %3826 = vmatprep.subr.mxu0 0.0
        %3827 = vmatpush2.msra.mxu0 0.0
        %3828 = vmatprep.subr.mxu0 0.0
        %3829 = vmatpush2.msra.mxu0 0.0
        %3830 = vmatprep.subr.mxu0 0.0
        %3831 = vmatpush2.msra.mxu0 0.0
        %3832 = vmatprep.subr.mxu0 0.0
        %3833 = vmatpush2.msra.mxu0 0.0
        %3834 = vmatprep.subr.mxu0 0.0
        %3835 = vmatpush2.msra.mxu0 0.0
        %3836 = vmatprep.subr.mxu0 0.0
        %3837 = vmatpush2.msra.mxu0 0.0
        %3838 = vmatprep.subr.mxu0 0.0
        %3839 = vmatpush2.msra.mxu0 0.0
        %3840 = vmatprep.subr.mxu0 0.0
        %3841 = vmatpush2.msra.mxu0 0.0
        %3842 = vmatprep.mubr.f32.mxu0 0.0
        %3843 = vmatmul.mubr.f32.gmra.mxu0 %v3776
        %v3844 = vpop.f32.mrf.mxu0
        %v3845 = vadd.f32 0.0, %v3844
        %v3846 = vpop.f32.mrf.mxu0
        %3847 = vdwg.mxu0
        %3848 = vrot.lane.b32.xlu0 %v610, 96
        %v3849 = vpop.permute.xlu0 %3848
        %v3852 = vsel %vm899, %v3591, 0
        %3854 = vmatprep.subr.mxu0 0.0
        %3855 = vmatpush1.msra.mxu0 0.0
        %3856 = vmatprep.subr.mxu0 0.0
        %3857 = vmatpush1.msra.mxu0 0.0
        %3858 = vmatprep.subr.mxu0 0.0
        %3859 = vmatpush1.msra.mxu0 0.0
        %3860 = vmatprep.subr.mxu0 0.0
        %3861 = vmatpush1.msra.mxu0 0.0
        %3862 = vmatprep.subr.mxu0 0.0
        %3863 = vmatpush1.msra.mxu0 0.0
        %3864 = vmatprep.subr.mxu0 0.0
        %3865 = vmatpush1.msra.mxu0 0.0
        %3866 = vmatprep.subr.mxu0 0.0
        %3867 = vmatpush1.msra.mxu0 0.0
        %3868 = vmatprep.subr.mxu0 0.0
        %3869 = vmatpush1.msra.mxu0 0.0
        %3870 = vmatprep.subr.mxu0 0.0
        %3871 = vmatpush1.msra.mxu0 0.0
        %3872 = vmatprep.subr.mxu0 0.0
        %3873 = vmatpush1.msra.mxu0 0.0
        %3874 = vmatprep.subr.mxu0 0.0
        %3875 = vmatpush1.msra.mxu0 0.0
        %3876 = vmatprep.subr.mxu0 0.0
        %3877 = vmatpush1.msra.mxu0 0.0
        %3878 = vmatprep.subr.mxu0 0.0
        %3879 = vmatpush1.msra.mxu0 0.0
        %3880 = vmatprep.subr.mxu0 0.0
        %3881 = vmatpush1.msra.mxu0 0.0
        %3882 = vmatprep.subr.mxu0 0.0
        %3883 = vmatpush1.msra.mxu0 0.0
        %3884 = vmatprep.subr.mxu0 0.0
        %3885 = vmatpush1.msra.mxu0 %v3849
        %3886 = vmatprep.subr.mxu0 0.0
        %3887 = vmatpush2.msra.mxu0 0.0
        %3888 = vmatprep.subr.mxu0 0.0
        %3889 = vmatpush2.msra.mxu0 0.0
        %3890 = vmatprep.subr.mxu0 0.0
        %3891 = vmatpush2.msra.mxu0 0.0
        %3892 = vmatprep.subr.mxu0 0.0
        %3893 = vmatpush2.msra.mxu0 0.0
        %3894 = vmatprep.subr.mxu0 0.0
        %3895 = vmatpush2.msra.mxu0 0.0
        %3896 = vmatprep.subr.mxu0 0.0
        %3897 = vmatpush2.msra.mxu0 0.0
        %3898 = vmatprep.subr.mxu0 0.0
        %3899 = vmatpush2.msra.mxu0 0.0
        %3900 = vmatprep.subr.mxu0 0.0
        %3901 = vmatpush2.msra.mxu0 0.0
        %3902 = vmatprep.subr.mxu0 0.0
        %3903 = vmatpush2.msra.mxu0 0.0
        %3904 = vmatprep.subr.mxu0 0.0
        %3905 = vmatpush2.msra.mxu0 0.0
        %3906 = vmatprep.subr.mxu0 0.0
        %3907 = vmatpush2.msra.mxu0 0.0
        %3908 = vmatprep.subr.mxu0 0.0
        %3909 = vmatpush2.msra.mxu0 0.0
        %3910 = vmatprep.subr.mxu0 0.0
        %3911 = vmatpush2.msra.mxu0 0.0
        %3912 = vmatprep.subr.mxu0 0.0
        %3913 = vmatpush2.msra.mxu0 0.0
        %3914 = vmatprep.subr.mxu0 0.0
        %3915 = vmatpush2.msra.mxu0 0.0
        %3916 = vmatprep.subr.mxu0 0.0
        %3917 = vmatpush2.msra.mxu0 0.0
        %3918 = vmatprep.mubr.f32.mxu0 0.0
        %3919 = vmatmul.mubr.f32.gmra.mxu0 %v3852
        %v3920 = vpop.f32.mrf.mxu0
        %v3921 = vadd.f32 0.0, %v3920
        %v3922 = vpop.f32.mrf.mxu0
        %3923 = vdwg.mxu0
        %3924 = vrot.lane.b32.xlu0 %v611, 96
        %v3925 = vpop.permute.xlu0 %3924
        %v3928 = vsel %vm899, %v3592, 0
        %3930 = vmatprep.subr.mxu0 0.0
        %3931 = vmatpush1.msra.mxu0 0.0
        %3932 = vmatprep.subr.mxu0 0.0
        %3933 = vmatpush1.msra.mxu0 0.0
        %3934 = vmatprep.subr.mxu0 0.0
        %3935 = vmatpush1.msra.mxu0 0.0
        %3936 = vmatprep.subr.mxu0 0.0
        %3937 = vmatpush1.msra.mxu0 0.0
        %3938 = vmatprep.subr.mxu0 0.0
        %3939 = vmatpush1.msra.mxu0 0.0
        %3940 = vmatprep.subr.mxu0 0.0
        %3941 = vmatpush1.msra.mxu0 0.0
        %3942 = vmatprep.subr.mxu0 0.0
        %3943 = vmatpush1.msra.mxu0 0.0
        %3944 = vmatprep.subr.mxu0 0.0
        %3945 = vmatpush1.msra.mxu0 0.0
        %3946 = vmatprep.subr.mxu0 0.0
        %3947 = vmatpush1.msra.mxu0 0.0
        %3948 = vmatprep.subr.mxu0 0.0
        %3949 = vmatpush1.msra.mxu0 0.0
        %3950 = vmatprep.subr.mxu0 0.0
        %3951 = vmatpush1.msra.mxu0 0.0
        %3952 = vmatprep.subr.mxu0 0.0
        %3953 = vmatpush1.msra.mxu0 0.0
        %3954 = vmatprep.subr.mxu0 0.0
        %3955 = vmatpush1.msra.mxu0 0.0
        %3956 = vmatprep.subr.mxu0 0.0
        %3957 = vmatpush1.msra.mxu0 0.0
        %3958 = vmatprep.subr.mxu0 0.0
        %3959 = vmatpush1.msra.mxu0 0.0
        %3960 = vmatprep.subr.mxu0 0.0
        %3961 = vmatpush1.msra.mxu0 %v3925
        %3962 = vmatprep.subr.mxu0 0.0
        %3963 = vmatpush2.msra.mxu0 0.0
        %3964 = vmatprep.subr.mxu0 0.0
        %3965 = vmatpush2.msra.mxu0 0.0
        %3966 = vmatprep.subr.mxu0 0.0
        %3967 = vmatpush2.msra.mxu0 0.0
        %3968 = vmatprep.subr.mxu0 0.0
        %3969 = vmatpush2.msra.mxu0 0.0
        %3970 = vmatprep.subr.mxu0 0.0
        %3971 = vmatpush2.msra.mxu0 0.0
        %3972 = vmatprep.subr.mxu0 0.0
        %3973 = vmatpush2.msra.mxu0 0.0
        %3974 = vmatprep.subr.mxu0 0.0
        %3975 = vmatpush2.msra.mxu0 0.0
        %3976 = vmatprep.subr.mxu0 0.0
        %3977 = vmatpush2.msra.mxu0 0.0
        %3978 = vmatprep.subr.mxu0 0.0
        %3979 = vmatpush2.msra.mxu0 0.0
        %3980 = vmatprep.subr.mxu0 0.0
        %3981 = vmatpush2.msra.mxu0 0.0
        %3982 = vmatprep.subr.mxu0 0.0
        %3983 = vmatpush2.msra.mxu0 0.0
        %3984 = vmatprep.subr.mxu0 0.0
        %3985 = vmatpush2.msra.mxu0 0.0
        %3986 = vmatprep.subr.mxu0 0.0
        %3987 = vmatpush2.msra.mxu0 0.0
        %3988 = vmatprep.subr.mxu0 0.0
        %3989 = vmatpush2.msra.mxu0 0.0
        %3990 = vmatprep.subr.mxu0 0.0
        %3991 = vmatpush2.msra.mxu0 0.0
        %3992 = vmatprep.subr.mxu0 0.0
        %3993 = vmatpush2.msra.mxu0 0.0
        %3994 = vmatprep.mubr.f32.mxu0 0.0
        %3995 = vmatmul.mubr.f32.gmra.mxu0 %v3928
        %v3996 = vpop.f32.mrf.mxu0
        %v3997 = vadd.f32 0.0, %v3996
        %v3998 = vpop.f32.mrf.mxu0
        %3999 = vdwg.mxu0
        %4000 = vrot.lane.b32.xlu0 %v612, 96
        %v4001 = vpop.permute.xlu0 %4000
        %v4004 = vsel %vm899, %v3593, 0
        %4006 = vmatprep.subr.mxu0 0.0
        %4007 = vmatpush1.msra.mxu0 0.0
        %4008 = vmatprep.subr.mxu0 0.0
        %4009 = vmatpush1.msra.mxu0 0.0
        %4010 = vmatprep.subr.mxu0 0.0
        %4011 = vmatpush1.msra.mxu0 0.0
        %4012 = vmatprep.subr.mxu0 0.0
        %4013 = vmatpush1.msra.mxu0 0.0
        %4014 = vmatprep.subr.mxu0 0.0
        %4015 = vmatpush1.msra.mxu0 0.0
        %4016 = vmatprep.subr.mxu0 0.0
        %4017 = vmatpush1.msra.mxu0 0.0
        %4018 = vmatprep.subr.mxu0 0.0
        %4019 = vmatpush1.msra.mxu0 0.0
        %4020 = vmatprep.subr.mxu0 0.0
        %4021 = vmatpush1.msra.mxu0 0.0
        %4022 = vmatprep.subr.mxu0 0.0
        %4023 = vmatpush1.msra.mxu0 0.0
        %4024 = vmatprep.subr.mxu0 0.0
        %4025 = vmatpush1.msra.mxu0 0.0
        %4026 = vmatprep.subr.mxu0 0.0
        %4027 = vmatpush1.msra.mxu0 0.0
        %4028 = vmatprep.subr.mxu0 0.0
        %4029 = vmatpush1.msra.mxu0 0.0
        %4030 = vmatprep.subr.mxu0 0.0
        %4031 = vmatpush1.msra.mxu0 0.0
        %4032 = vmatprep.subr.mxu0 0.0
        %4033 = vmatpush1.msra.mxu0 0.0
        %4034 = vmatprep.subr.mxu0 0.0
        %4035 = vmatpush1.msra.mxu0 0.0
        %4036 = vmatprep.subr.mxu0 0.0
        %4037 = vmatpush1.msra.mxu0 %v4001
        %4038 = vmatprep.subr.mxu0 0.0
        %4039 = vmatpush2.msra.mxu0 0.0
        %4040 = vmatprep.subr.mxu0 0.0
        %4041 = vmatpush2.msra.mxu0 0.0
        %4042 = vmatprep.subr.mxu0 0.0
        %4043 = vmatpush2.msra.mxu0 0.0
        %4044 = vmatprep.subr.mxu0 0.0
        %4045 = vmatpush2.msra.mxu0 0.0
        %4046 = vmatprep.subr.mxu0 0.0
        %4047 = vmatpush2.msra.mxu0 0.0
        %4048 = vmatprep.subr.mxu0 0.0
        %4049 = vmatpush2.msra.mxu0 0.0
        %4050 = vmatprep.subr.mxu0 0.0
        %4051 = vmatpush2.msra.mxu0 0.0
        %4052 = vmatprep.subr.mxu0 0.0
        %4053 = vmatpush2.msra.mxu0 0.0
        %4054 = vmatprep.subr.mxu0 0.0
        %4055 = vmatpush2.msra.mxu0 0.0
        %4056 = vmatprep.subr.mxu0 0.0
        %4057 = vmatpush2.msra.mxu0 0.0
        %4058 = vmatprep.subr.mxu0 0.0
        %4059 = vmatpush2.msra.mxu0 0.0
        %4060 = vmatprep.subr.mxu0 0.0
        %4061 = vmatpush2.msra.mxu0 0.0
        %4062 = vmatprep.subr.mxu0 0.0
        %4063 = vmatpush2.msra.mxu0 0.0
        %4064 = vmatprep.subr.mxu0 0.0
        %4065 = vmatpush2.msra.mxu0 0.0
        %4066 = vmatprep.subr.mxu0 0.0
        %4067 = vmatpush2.msra.mxu0 0.0
        %4068 = vmatprep.subr.mxu0 0.0
        %4069 = vmatpush2.msra.mxu0 0.0
        %4070 = vmatprep.mubr.f32.mxu0 0.0
        %4071 = vmatmul.mubr.f32.gmra.mxu0 %v4004
        %v4072 = vpop.f32.mrf.mxu0
        %v4073 = vadd.f32 0.0, %v4072
        %v4074 = vpop.f32.mrf.mxu0
        %4075 = vdwg.mxu0
        %4076 = vrot.lane.b32.xlu0 %v613, 96
        %v4077 = vpop.permute.xlu0 %4076
        %v4080 = vsel %vm899, %v3594, 0
        %4082 = vmatprep.subr.mxu0 0.0
        %4083 = vmatpush1.msra.mxu0 0.0
        %4084 = vmatprep.subr.mxu0 0.0
        %4085 = vmatpush1.msra.mxu0 0.0
        %4086 = vmatprep.subr.mxu0 0.0
        %4087 = vmatpush1.msra.mxu0 0.0
        %4088 = vmatprep.subr.mxu0 0.0
        %4089 = vmatpush1.msra.mxu0 0.0
        %4090 = vmatprep.subr.mxu0 0.0
        %4091 = vmatpush1.msra.mxu0 0.0
        %4092 = vmatprep.subr.mxu0 0.0
        %4093 = vmatpush1.msra.mxu0 0.0
        %4094 = vmatprep.subr.mxu0 0.0
        %4095 = vmatpush1.msra.mxu0 0.0
        %4096 = vmatprep.subr.mxu0 0.0
        %4097 = vmatpush1.msra.mxu0 0.0
        %4098 = vmatprep.subr.mxu0 0.0
        %4099 = vmatpush1.msra.mxu0 0.0
        %4100 = vmatprep.subr.mxu0 0.0
        %4101 = vmatpush1.msra.mxu0 0.0
        %4102 = vmatprep.subr.mxu0 0.0
        %4103 = vmatpush1.msra.mxu0 0.0
        %4104 = vmatprep.subr.mxu0 0.0
        %4105 = vmatpush1.msra.mxu0 0.0
        %4106 = vmatprep.subr.mxu0 0.0
        %4107 = vmatpush1.msra.mxu0 0.0
        %4108 = vmatprep.subr.mxu0 0.0
        %4109 = vmatpush1.msra.mxu0 0.0
        %4110 = vmatprep.subr.mxu0 0.0
        %4111 = vmatpush1.msra.mxu0 0.0
        %4112 = vmatprep.subr.mxu0 0.0
        %4113 = vmatpush1.msra.mxu0 %v4077
        %4114 = vmatprep.subr.mxu0 0.0
        %4115 = vmatpush2.msra.mxu0 0.0
        %4116 = vmatprep.subr.mxu0 0.0
        %4117 = vmatpush2.msra.mxu0 0.0
        %4118 = vmatprep.subr.mxu0 0.0
        %4119 = vmatpush2.msra.mxu0 0.0
        %4120 = vmatprep.subr.mxu0 0.0
        %4121 = vmatpush2.msra.mxu0 0.0
        %4122 = vmatprep.subr.mxu0 0.0
        %4123 = vmatpush2.msra.mxu0 0.0
        %4124 = vmatprep.subr.mxu0 0.0
        %4125 = vmatpush2.msra.mxu0 0.0
        %4126 = vmatprep.subr.mxu0 0.0
        %4127 = vmatpush2.msra.mxu0 0.0
        %4128 = vmatprep.subr.mxu0 0.0
        %4129 = vmatpush2.msra.mxu0 0.0
        %4130 = vmatprep.subr.mxu0 0.0
        %4131 = vmatpush2.msra.mxu0 0.0
        %4132 = vmatprep.subr.mxu0 0.0
        %4133 = vmatpush2.msra.mxu0 0.0
        %4134 = vmatprep.subr.mxu0 0.0
        %4135 = vmatpush2.msra.mxu0 0.0
        %4136 = vmatprep.subr.mxu0 0.0
        %4137 = vmatpush2.msra.mxu0 0.0
        %4138 = vmatprep.subr.mxu0 0.0
        %4139 = vmatpush2.msra.mxu0 0.0
        %4140 = vmatprep.subr.mxu0 0.0
        %4141 = vmatpush2.msra.mxu0 0.0
        %4142 = vmatprep.subr.mxu0 0.0
        %4143 = vmatpush2.msra.mxu0 0.0
        %4144 = vmatprep.subr.mxu0 0.0
        %4145 = vmatpush2.msra.mxu0 0.0
        %4146 = vmatprep.mubr.f32.mxu0 0.0
        %4147 = vmatmul.mubr.f32.gmra.mxu0 %v4080
        %v4148 = vpop.f32.mrf.mxu0
        %v4149 = vadd.f32 0.0, %v4148
        %v4150 = vpop.f32.mrf.mxu0
        %4151 = vdwg.mxu0
        %4152 = vrot.lane.b32.xlu0 %v614, 96
        %v4153 = vpop.permute.xlu0 %4152
        %v4156 = vsel %vm899, %v3595, 0
        %4158 = vmatprep.subr.mxu0 0.0
        %4159 = vmatpush1.msra.mxu0 0.0
        %4160 = vmatprep.subr.mxu0 0.0
        %4161 = vmatpush1.msra.mxu0 0.0
        %4162 = vmatprep.subr.mxu0 0.0
        %4163 = vmatpush1.msra.mxu0 0.0
        %4164 = vmatprep.subr.mxu0 0.0
        %4165 = vmatpush1.msra.mxu0 0.0
        %4166 = vmatprep.subr.mxu0 0.0
        %4167 = vmatpush1.msra.mxu0 0.0
        %4168 = vmatprep.subr.mxu0 0.0
        %4169 = vmatpush1.msra.mxu0 0.0
        %4170 = vmatprep.subr.mxu0 0.0
        %4171 = vmatpush1.msra.mxu0 0.0
        %4172 = vmatprep.subr.mxu0 0.0
        %4173 = vmatpush1.msra.mxu0 0.0
        %4174 = vmatprep.subr.mxu0 0.0
        %4175 = vmatpush1.msra.mxu0 0.0
        %4176 = vmatprep.subr.mxu0 0.0
        %4177 = vmatpush1.msra.mxu0 0.0
        %4178 = vmatprep.subr.mxu0 0.0
        %4179 = vmatpush1.msra.mxu0 0.0
        %4180 = vmatprep.subr.mxu0 0.0
        %4181 = vmatpush1.msra.mxu0 0.0
        %4182 = vmatprep.subr.mxu0 0.0
        %4183 = vmatpush1.msra.mxu0 0.0
        %4184 = vmatprep.subr.mxu0 0.0
        %4185 = vmatpush1.msra.mxu0 0.0
        %4186 = vmatprep.subr.mxu0 0.0
        %4187 = vmatpush1.msra.mxu0 0.0
        %4188 = vmatprep.subr.mxu0 0.0
        %4189 = vmatpush1.msra.mxu0 %v4153
        %4190 = vmatprep.subr.mxu0 0.0
        %4191 = vmatpush2.msra.mxu0 0.0
        %4192 = vmatprep.subr.mxu0 0.0
        %4193 = vmatpush2.msra.mxu0 0.0
        %4194 = vmatprep.subr.mxu0 0.0
        %4195 = vmatpush2.msra.mxu0 0.0
        %4196 = vmatprep.subr.mxu0 0.0
        %4197 = vmatpush2.msra.mxu0 0.0
        %4198 = vmatprep.subr.mxu0 0.0
        %4199 = vmatpush2.msra.mxu0 0.0
        %4200 = vmatprep.subr.mxu0 0.0
        %4201 = vmatpush2.msra.mxu0 0.0
        %4202 = vmatprep.subr.mxu0 0.0
        %4203 = vmatpush2.msra.mxu0 0.0
        %4204 = vmatprep.subr.mxu0 0.0
        %4205 = vmatpush2.msra.mxu0 0.0
        %4206 = vmatprep.subr.mxu0 0.0
        %4207 = vmatpush2.msra.mxu0 0.0
        %4208 = vmatprep.subr.mxu0 0.0
        %4209 = vmatpush2.msra.mxu0 0.0
        %4210 = vmatprep.subr.mxu0 0.0
        %4211 = vmatpush2.msra.mxu0 0.0
        %4212 = vmatprep.subr.mxu0 0.0
        %4213 = vmatpush2.msra.mxu0 0.0
        %4214 = vmatprep.subr.mxu0 0.0
        %4215 = vmatpush2.msra.mxu0 0.0
        %4216 = vmatprep.subr.mxu0 0.0
        %4217 = vmatpush2.msra.mxu0 0.0
        %4218 = vmatprep.subr.mxu0 0.0
        %4219 = vmatpush2.msra.mxu0 0.0
        %4220 = vmatprep.subr.mxu0 0.0
        %4221 = vmatpush2.msra.mxu0 0.0
        %4222 = vmatprep.mubr.f32.mxu0 0.0
        %4223 = vmatmul.mubr.f32.gmra.mxu0 %v4156
        %v4224 = vpop.f32.mrf.mxu0
        %v4225 = vadd.f32 0.0, %v4224
        %v4226 = vpop.f32.mrf.mxu0
        %4227 = vdwg.mxu0
        %4228 = vrot.lane.b32.xlu0 %v852, 96
        %v4229 = vpop.permute.xlu0 %4228
        %v4232 = vsel %vm899, %v3596, 0
        %4234 = vmatprep.subr.mxu0 0.0
        %4235 = vmatpush1.msra.mxu0 0.0
        %4236 = vmatprep.subr.mxu0 0.0
        %4237 = vmatpush1.msra.mxu0 0.0
        %4238 = vmatprep.subr.mxu0 0.0
        %4239 = vmatpush1.msra.mxu0 0.0
        %4240 = vmatprep.subr.mxu0 0.0
        %4241 = vmatpush1.msra.mxu0 0.0
        %4242 = vmatprep.subr.mxu0 0.0
        %4243 = vmatpush1.msra.mxu0 0.0
        %4244 = vmatprep.subr.mxu0 0.0
        %4245 = vmatpush1.msra.mxu0 0.0
        %4246 = vmatprep.subr.mxu0 0.0
        %4247 = vmatpush1.msra.mxu0 0.0
        %4248 = vmatprep.subr.mxu0 0.0
        %4249 = vmatpush1.msra.mxu0 0.0
        %4250 = vmatprep.subr.mxu0 0.0
        %4251 = vmatpush1.msra.mxu0 0.0
        %4252 = vmatprep.subr.mxu0 0.0
        %4253 = vmatpush1.msra.mxu0 0.0
        %4254 = vmatprep.subr.mxu0 0.0
        %4255 = vmatpush1.msra.mxu0 0.0
        %4256 = vmatprep.subr.mxu0 0.0
        %4257 = vmatpush1.msra.mxu0 0.0
        %4258 = vmatprep.subr.mxu0 0.0
        %4259 = vmatpush1.msra.mxu0 0.0
        %4260 = vmatprep.subr.mxu0 0.0
        %4261 = vmatpush1.msra.mxu0 0.0
        %4262 = vmatprep.subr.mxu0 0.0
        %4263 = vmatpush1.msra.mxu0 0.0
        %4264 = vmatprep.subr.mxu0 0.0
        %4265 = vmatpush1.msra.mxu0 %v4229
        %4266 = vmatprep.subr.mxu0 0.0
        %4267 = vmatpush2.msra.mxu0 0.0
        %4268 = vmatprep.subr.mxu0 0.0
        %4269 = vmatpush2.msra.mxu0 0.0
        %4270 = vmatprep.subr.mxu0 0.0
        %4271 = vmatpush2.msra.mxu0 0.0
        %4272 = vmatprep.subr.mxu0 0.0
        %4273 = vmatpush2.msra.mxu0 0.0
        %4274 = vmatprep.subr.mxu0 0.0
        %4275 = vmatpush2.msra.mxu0 0.0
        %4276 = vmatprep.subr.mxu0 0.0
        %4277 = vmatpush2.msra.mxu0 0.0
        %4278 = vmatprep.subr.mxu0 0.0
        %4279 = vmatpush2.msra.mxu0 0.0
        %4280 = vmatprep.subr.mxu0 0.0
        %4281 = vmatpush2.msra.mxu0 0.0
        %4282 = vmatprep.subr.mxu0 0.0
        %4283 = vmatpush2.msra.mxu0 0.0
        %4284 = vmatprep.subr.mxu0 0.0
        %4285 = vmatpush2.msra.mxu0 0.0
        %4286 = vmatprep.subr.mxu0 0.0
        %4287 = vmatpush2.msra.mxu0 0.0
        %4288 = vmatprep.subr.mxu0 0.0
        %4289 = vmatpush2.msra.mxu0 0.0
        %4290 = vmatprep.subr.mxu0 0.0
        %4291 = vmatpush2.msra.mxu0 0.0
        %4292 = vmatprep.subr.mxu0 0.0
        %4293 = vmatpush2.msra.mxu0 0.0
        %4294 = vmatprep.subr.mxu0 0.0
        %4295 = vmatpush2.msra.mxu0 0.0
        %4296 = vmatprep.subr.mxu0 0.0
        %4297 = vmatpush2.msra.mxu0 0.0
        %4298 = vmatprep.mubr.f32.mxu0 0.0
        %4299 = vmatmul.mubr.f32.gmra.mxu0 %v4232
        %v4300 = vpop.f32.mrf.mxu0
        %v4301 = vadd.f32 0.0, %v4300
        %v4302 = vpop.f32.mrf.mxu0
        %4303 = vdwg.mxu0
        %4304 = vrot.lane.b32.xlu0 %v854, 96
        %v4305 = vpop.permute.xlu0 %4304
        %v4308 = vsel %vm899, %v3597, 0
        %4310 = vmatprep.subr.mxu0 0.0
        %4311 = vmatpush1.msra.mxu0 0.0
        %4312 = vmatprep.subr.mxu0 0.0
        %4313 = vmatpush1.msra.mxu0 0.0
        %4314 = vmatprep.subr.mxu0 0.0
        %4315 = vmatpush1.msra.mxu0 0.0
        %4316 = vmatprep.subr.mxu0 0.0
        %4317 = vmatpush1.msra.mxu0 0.0
        %4318 = vmatprep.subr.mxu0 0.0
        %4319 = vmatpush1.msra.mxu0 0.0
        %4320 = vmatprep.subr.mxu0 0.0
        %4321 = vmatpush1.msra.mxu0 0.0
        %4322 = vmatprep.subr.mxu0 0.0
        %4323 = vmatpush1.msra.mxu0 0.0
        %4324 = vmatprep.subr.mxu0 0.0
        %4325 = vmatpush1.msra.mxu0 0.0
        %4326 = vmatprep.subr.mxu0 0.0
        %4327 = vmatpush1.msra.mxu0 0.0
        %4328 = vmatprep.subr.mxu0 0.0
        %4329 = vmatpush1.msra.mxu0 0.0
        %4330 = vmatprep.subr.mxu0 0.0
        %4331 = vmatpush1.msra.mxu0 0.0
        %4332 = vmatprep.subr.mxu0 0.0
        %4333 = vmatpush1.msra.mxu0 0.0
        %4334 = vmatprep.subr.mxu0 0.0
        %4335 = vmatpush1.msra.mxu0 0.0
        %4336 = vmatprep.subr.mxu0 0.0
        %4337 = vmatpush1.msra.mxu0 0.0
        %4338 = vmatprep.subr.mxu0 0.0
        %4339 = vmatpush1.msra.mxu0 0.0
        %4340 = vmatprep.subr.mxu0 0.0
        %4341 = vmatpush1.msra.mxu0 %v4305
        %4342 = vmatprep.subr.mxu0 0.0
        %4343 = vmatpush2.msra.mxu0 0.0
        %4344 = vmatprep.subr.mxu0 0.0
        %4345 = vmatpush2.msra.mxu0 0.0
        %4346 = vmatprep.subr.mxu0 0.0
        %4347 = vmatpush2.msra.mxu0 0.0
        %4348 = vmatprep.subr.mxu0 0.0
        %4349 = vmatpush2.msra.mxu0 0.0
        %4350 = vmatprep.subr.mxu0 0.0
        %4351 = vmatpush2.msra.mxu0 0.0
        %4352 = vmatprep.subr.mxu0 0.0
        %4353 = vmatpush2.msra.mxu0 0.0
        %4354 = vmatprep.subr.mxu0 0.0
        %4355 = vmatpush2.msra.mxu0 0.0
        %4356 = vmatprep.subr.mxu0 0.0
        %4357 = vmatpush2.msra.mxu0 0.0
        %4358 = vmatprep.subr.mxu0 0.0
        %4359 = vmatpush2.msra.mxu0 0.0
        %4360 = vmatprep.subr.mxu0 0.0
        %4361 = vmatpush2.msra.mxu0 0.0
        %4362 = vmatprep.subr.mxu0 0.0
        %4363 = vmatpush2.msra.mxu0 0.0
        %4364 = vmatprep.subr.mxu0 0.0
        %4365 = vmatpush2.msra.mxu0 0.0
        %4366 = vmatprep.subr.mxu0 0.0
        %4367 = vmatpush2.msra.mxu0 0.0
        %4368 = vmatprep.subr.mxu0 0.0
        %4369 = vmatpush2.msra.mxu0 0.0
        %4370 = vmatprep.subr.mxu0 0.0
        %4371 = vmatpush2.msra.mxu0 0.0
        %4372 = vmatprep.subr.mxu0 0.0
        %4373 = vmatpush2.msra.mxu0 0.0
        %4374 = vmatprep.mubr.f32.mxu0 0.0
        %4375 = vmatmul.mubr.f32.gmra.mxu0 %v4308
        %v4376 = vpop.f32.mrf.mxu0
        %v4377 = vadd.f32 0.0, %v4376
        %v4378 = vpop.f32.mrf.mxu0
        %4379 = vdwg.mxu0
        %4380 = vrot.lane.b32.xlu0 %v856, 96
        %v4381 = vpop.permute.xlu0 %4380
        %v4384 = vsel %vm899, %v3598, 0
        %4386 = vmatprep.subr.mxu0 0.0
        %4387 = vmatpush1.msra.mxu0 0.0
        %4388 = vmatprep.subr.mxu0 0.0
        %4389 = vmatpush1.msra.mxu0 0.0
        %4390 = vmatprep.subr.mxu0 0.0
        %4391 = vmatpush1.msra.mxu0 0.0
        %4392 = vmatprep.subr.mxu0 0.0
        %4393 = vmatpush1.msra.mxu0 0.0
        %4394 = vmatprep.subr.mxu0 0.0
        %4395 = vmatpush1.msra.mxu0 0.0
        %4396 = vmatprep.subr.mxu0 0.0
        %4397 = vmatpush1.msra.mxu0 0.0
        %4398 = vmatprep.subr.mxu0 0.0
        %4399 = vmatpush1.msra.mxu0 0.0
        %4400 = vmatprep.subr.mxu0 0.0
        %4401 = vmatpush1.msra.mxu0 0.0
        %4402 = vmatprep.subr.mxu0 0.0
        %4403 = vmatpush1.msra.mxu0 0.0
        %4404 = vmatprep.subr.mxu0 0.0
        %4405 = vmatpush1.msra.mxu0 0.0
        %4406 = vmatprep.subr.mxu0 0.0
        %4407 = vmatpush1.msra.mxu0 0.0
        %4408 = vmatprep.subr.mxu0 0.0
        %4409 = vmatpush1.msra.mxu0 0.0
        %4410 = vmatprep.subr.mxu0 0.0
        %4411 = vmatpush1.msra.mxu0 0.0
        %4412 = vmatprep.subr.mxu0 0.0
        %4413 = vmatpush1.msra.mxu0 0.0
        %4414 = vmatprep.subr.mxu0 0.0
        %4415 = vmatpush1.msra.mxu0 0.0
        %4416 = vmatprep.subr.mxu0 0.0
        %4417 = vmatpush1.msra.mxu0 %v4381
        %4418 = vmatprep.subr.mxu0 0.0
        %4419 = vmatpush2.msra.mxu0 0.0
        %4420 = vmatprep.subr.mxu0 0.0
        %4421 = vmatpush2.msra.mxu0 0.0
        %4422 = vmatprep.subr.mxu0 0.0
        %4423 = vmatpush2.msra.mxu0 0.0
        %4424 = vmatprep.subr.mxu0 0.0
        %4425 = vmatpush2.msra.mxu0 0.0
        %4426 = vmatprep.subr.mxu0 0.0
        %4427 = vmatpush2.msra.mxu0 0.0
        %4428 = vmatprep.subr.mxu0 0.0
        %4429 = vmatpush2.msra.mxu0 0.0
        %4430 = vmatprep.subr.mxu0 0.0
        %4431 = vmatpush2.msra.mxu0 0.0
        %4432 = vmatprep.subr.mxu0 0.0
        %4433 = vmatpush2.msra.mxu0 0.0
        %4434 = vmatprep.subr.mxu0 0.0
        %4435 = vmatpush2.msra.mxu0 0.0
        %4436 = vmatprep.subr.mxu0 0.0
        %4437 = vmatpush2.msra.mxu0 0.0
        %4438 = vmatprep.subr.mxu0 0.0
        %4439 = vmatpush2.msra.mxu0 0.0
        %4440 = vmatprep.subr.mxu0 0.0
        %4441 = vmatpush2.msra.mxu0 0.0
        %4442 = vmatprep.subr.mxu0 0.0
        %4443 = vmatpush2.msra.mxu0 0.0
        %4444 = vmatprep.subr.mxu0 0.0
        %4445 = vmatpush2.msra.mxu0 0.0
        %4446 = vmatprep.subr.mxu0 0.0
        %4447 = vmatpush2.msra.mxu0 0.0
        %4448 = vmatprep.subr.mxu0 0.0
        %4449 = vmatpush2.msra.mxu0 0.0
        %4450 = vmatprep.mubr.f32.mxu0 0.0
        %4451 = vmatmul.mubr.f32.gmra.mxu0 %v4384
        %v4452 = vpop.f32.mrf.mxu0
        %v4453 = vadd.f32 0.0, %v4452
        %v4454 = vpop.f32.mrf.mxu0
        %4455 = vdwg.mxu0
        %4456 = vrot.lane.b32.xlu0 %v858, 96
        %v4457 = vpop.permute.xlu0 %4456
        %v4460 = vsel %vm899, %v3599, 0
        %4462 = vmatprep.subr.mxu0 0.0
        %4463 = vmatpush1.msra.mxu0 0.0
        %4464 = vmatprep.subr.mxu0 0.0
        %4465 = vmatpush1.msra.mxu0 0.0
        %4466 = vmatprep.subr.mxu0 0.0
        %4467 = vmatpush1.msra.mxu0 0.0
        %4468 = vmatprep.subr.mxu0 0.0
        %4469 = vmatpush1.msra.mxu0 0.0
        %4470 = vmatprep.subr.mxu0 0.0
        %4471 = vmatpush1.msra.mxu0 0.0
        %4472 = vmatprep.subr.mxu0 0.0
        %4473 = vmatpush1.msra.mxu0 0.0
        %4474 = vmatprep.subr.mxu0 0.0
        %4475 = vmatpush1.msra.mxu0 0.0
        %4476 = vmatprep.subr.mxu0 0.0
        %4477 = vmatpush1.msra.mxu0 0.0
        %4478 = vmatprep.subr.mxu0 0.0
        %4479 = vmatpush1.msra.mxu0 0.0
        %4480 = vmatprep.subr.mxu0 0.0
        %4481 = vmatpush1.msra.mxu0 0.0
        %4482 = vmatprep.subr.mxu0 0.0
        %4483 = vmatpush1.msra.mxu0 0.0
        %4484 = vmatprep.subr.mxu0 0.0
        %4485 = vmatpush1.msra.mxu0 0.0
        %4486 = vmatprep.subr.mxu0 0.0
        %4487 = vmatpush1.msra.mxu0 0.0
        %4488 = vmatprep.subr.mxu0 0.0
        %4489 = vmatpush1.msra.mxu0 0.0
        %4490 = vmatprep.subr.mxu0 0.0
        %4491 = vmatpush1.msra.mxu0 0.0
        %4492 = vmatprep.subr.mxu0 0.0
        %4493 = vmatpush1.msra.mxu0 %v4457
        %4494 = vmatprep.subr.mxu0 0.0
        %4495 = vmatpush2.msra.mxu0 0.0
        %4496 = vmatprep.subr.mxu0 0.0
        %4497 = vmatpush2.msra.mxu0 0.0
        %4498 = vmatprep.subr.mxu0 0.0
        %4499 = vmatpush2.msra.mxu0 0.0
        %4500 = vmatprep.subr.mxu0 0.0
        %4501 = vmatpush2.msra.mxu0 0.0
        %4502 = vmatprep.subr.mxu0 0.0
        %4503 = vmatpush2.msra.mxu0 0.0
        %4504 = vmatprep.subr.mxu0 0.0
        %4505 = vmatpush2.msra.mxu0 0.0
        %4506 = vmatprep.subr.mxu0 0.0
        %4507 = vmatpush2.msra.mxu0 0.0
        %4508 = vmatprep.subr.mxu0 0.0
        %4509 = vmatpush2.msra.mxu0 0.0
        %4510 = vmatprep.subr.mxu0 0.0
        %4511 = vmatpush2.msra.mxu0 0.0
        %4512 = vmatprep.subr.mxu0 0.0
        %4513 = vmatpush2.msra.mxu0 0.0
        %4514 = vmatprep.subr.mxu0 0.0
        %4515 = vmatpush2.msra.mxu0 0.0
        %4516 = vmatprep.subr.mxu0 0.0
        %4517 = vmatpush2.msra.mxu0 0.0
        %4518 = vmatprep.subr.mxu0 0.0
        %4519 = vmatpush2.msra.mxu0 0.0
        %4520 = vmatprep.subr.mxu0 0.0
        %4521 = vmatpush2.msra.mxu0 0.0
        %4522 = vmatprep.subr.mxu0 0.0
        %4523 = vmatpush2.msra.mxu0 0.0
        %4524 = vmatprep.subr.mxu0 0.0
        %4525 = vmatpush2.msra.mxu0 0.0
        %4526 = vmatprep.mubr.f32.mxu0 0.0
        %4527 = vmatmul.mubr.f32.gmra.mxu0 %v4460
        %v4528 = vpop.f32.mrf.mxu0
        %v4529 = vadd.f32 0.0, %v4528
        %v4530 = vpop.f32.mrf.mxu0
        %4531 = vdwg.mxu0
        %4532 = vrot.lane.b32.xlu0 %v860, 96
        %v4533 = vpop.permute.xlu0 %4532
        %v4536 = vsel %vm899, %v3600, 0
        %4538 = vmatprep.subr.mxu0 0.0
        %4539 = vmatpush1.msra.mxu0 0.0
        %4540 = vmatprep.subr.mxu0 0.0
        %4541 = vmatpush1.msra.mxu0 0.0
        %4542 = vmatprep.subr.mxu0 0.0
        %4543 = vmatpush1.msra.mxu0 0.0
        %4544 = vmatprep.subr.mxu0 0.0
        %4545 = vmatpush1.msra.mxu0 0.0
        %4546 = vmatprep.subr.mxu0 0.0
        %4547 = vmatpush1.msra.mxu0 0.0
        %4548 = vmatprep.subr.mxu0 0.0
        %4549 = vmatpush1.msra.mxu0 0.0
        %4550 = vmatprep.subr.mxu0 0.0
        %4551 = vmatpush1.msra.mxu0 0.0
        %4552 = vmatprep.subr.mxu0 0.0
        %4553 = vmatpush1.msra.mxu0 0.0
        %4554 = vmatprep.subr.mxu0 0.0
        %4555 = vmatpush1.msra.mxu0 0.0
        %4556 = vmatprep.subr.mxu0 0.0
        %4557 = vmatpush1.msra.mxu0 0.0
        %4558 = vmatprep.subr.mxu0 0.0
        %4559 = vmatpush1.msra.mxu0 0.0
        %4560 = vmatprep.subr.mxu0 0.0
        %4561 = vmatpush1.msra.mxu0 0.0
        %4562 = vmatprep.subr.mxu0 0.0
        %4563 = vmatpush1.msra.mxu0 0.0
        %4564 = vmatprep.subr.mxu0 0.0
        %4565 = vmatpush1.msra.mxu0 0.0
        %4566 = vmatprep.subr.mxu0 0.0
        %4567 = vmatpush1.msra.mxu0 0.0
        %4568 = vmatprep.subr.mxu0 0.0
        %4569 = vmatpush1.msra.mxu0 %v4533
        %4570 = vmatprep.subr.mxu0 0.0
        %4571 = vmatpush2.msra.mxu0 0.0
        %4572 = vmatprep.subr.mxu0 0.0
        %4573 = vmatpush2.msra.mxu0 0.0
        %4574 = vmatprep.subr.mxu0 0.0
        %4575 = vmatpush2.msra.mxu0 0.0
        %4576 = vmatprep.subr.mxu0 0.0
        %4577 = vmatpush2.msra.mxu0 0.0
        %4578 = vmatprep.subr.mxu0 0.0
        %4579 = vmatpush2.msra.mxu0 0.0
        %4580 = vmatprep.subr.mxu0 0.0
        %4581 = vmatpush2.msra.mxu0 0.0
        %4582 = vmatprep.subr.mxu0 0.0
        %4583 = vmatpush2.msra.mxu0 0.0
        %4584 = vmatprep.subr.mxu0 0.0
        %4585 = vmatpush2.msra.mxu0 0.0
        %4586 = vmatprep.subr.mxu0 0.0
        %4587 = vmatpush2.msra.mxu0 0.0
        %4588 = vmatprep.subr.mxu0 0.0
        %4589 = vmatpush2.msra.mxu0 0.0
        %4590 = vmatprep.subr.mxu0 0.0
        %4591 = vmatpush2.msra.mxu0 0.0
        %4592 = vmatprep.subr.mxu0 0.0
        %4593 = vmatpush2.msra.mxu0 0.0
        %4594 = vmatprep.subr.mxu0 0.0
        %4595 = vmatpush2.msra.mxu0 0.0
        %4596 = vmatprep.subr.mxu0 0.0
        %4597 = vmatpush2.msra.mxu0 0.0
        %4598 = vmatprep.subr.mxu0 0.0
        %4599 = vmatpush2.msra.mxu0 0.0
        %4600 = vmatprep.subr.mxu0 0.0
        %4601 = vmatpush2.msra.mxu0 0.0
        %4602 = vmatprep.mubr.f32.mxu0 0.0
        %4603 = vmatmul.mubr.f32.gmra.mxu0 %v4536
        %v4604 = vpop.f32.mrf.mxu0
        %v4605 = vadd.f32 0.0, %v4604
        %v4606 = vpop.f32.mrf.mxu0
        %4607 = vdwg.mxu0
        %4608 = vrot.lane.b32.xlu0 %v862, 96
        %v4609 = vpop.permute.xlu0 %4608
        %v4612 = vsel %vm899, %v3601, 0
        %4614 = vmatprep.subr.mxu0 0.0
        %4615 = vmatpush1.msra.mxu0 0.0
        %4616 = vmatprep.subr.mxu0 0.0
        %4617 = vmatpush1.msra.mxu0 0.0
        %4618 = vmatprep.subr.mxu0 0.0
        %4619 = vmatpush1.msra.mxu0 0.0
        %4620 = vmatprep.subr.mxu0 0.0
        %4621 = vmatpush1.msra.mxu0 0.0
        %4622 = vmatprep.subr.mxu0 0.0
        %4623 = vmatpush1.msra.mxu0 0.0
        %4624 = vmatprep.subr.mxu0 0.0
        %4625 = vmatpush1.msra.mxu0 0.0
        %4626 = vmatprep.subr.mxu0 0.0
        %4627 = vmatpush1.msra.mxu0 0.0
        %4628 = vmatprep.subr.mxu0 0.0
        %4629 = vmatpush1.msra.mxu0 0.0
        %4630 = vmatprep.subr.mxu0 0.0
        %4631 = vmatpush1.msra.mxu0 0.0
        %4632 = vmatprep.subr.mxu0 0.0
        %4633 = vmatpush1.msra.mxu0 0.0
        %4634 = vmatprep.subr.mxu0 0.0
        %4635 = vmatpush1.msra.mxu0 0.0
        %4636 = vmatprep.subr.mxu0 0.0
        %4637 = vmatpush1.msra.mxu0 0.0
        %4638 = vmatprep.subr.mxu0 0.0
        %4639 = vmatpush1.msra.mxu0 0.0
        %4640 = vmatprep.subr.mxu0 0.0
        %4641 = vmatpush1.msra.mxu0 0.0
        %4642 = vmatprep.subr.mxu0 0.0
        %4643 = vmatpush1.msra.mxu0 0.0
        %4644 = vmatprep.subr.mxu0 0.0
        %4645 = vmatpush1.msra.mxu0 %v4609
        %4646 = vmatprep.subr.mxu0 0.0
        %4647 = vmatpush2.msra.mxu0 0.0
        %4648 = vmatprep.subr.mxu0 0.0
        %4649 = vmatpush2.msra.mxu0 0.0
        %4650 = vmatprep.subr.mxu0 0.0
        %4651 = vmatpush2.msra.mxu0 0.0
        %4652 = vmatprep.subr.mxu0 0.0
        %4653 = vmatpush2.msra.mxu0 0.0
        %4654 = vmatprep.subr.mxu0 0.0
        %4655 = vmatpush2.msra.mxu0 0.0
        %4656 = vmatprep.subr.mxu0 0.0
        %4657 = vmatpush2.msra.mxu0 0.0
        %4658 = vmatprep.subr.mxu0 0.0
        %4659 = vmatpush2.msra.mxu0 0.0
        %4660 = vmatprep.subr.mxu0 0.0
        %4661 = vmatpush2.msra.mxu0 0.0
        %4662 = vmatprep.subr.mxu0 0.0
        %4663 = vmatpush2.msra.mxu0 0.0
        %4664 = vmatprep.subr.mxu0 0.0
        %4665 = vmatpush2.msra.mxu0 0.0
        %4666 = vmatprep.subr.mxu0 0.0
        %4667 = vmatpush2.msra.mxu0 0.0
        %4668 = vmatprep.subr.mxu0 0.0
        %4669 = vmatpush2.msra.mxu0 0.0
        %4670 = vmatprep.subr.mxu0 0.0
        %4671 = vmatpush2.msra.mxu0 0.0
        %4672 = vmatprep.subr.mxu0 0.0
        %4673 = vmatpush2.msra.mxu0 0.0
        %4674 = vmatprep.subr.mxu0 0.0
        %4675 = vmatpush2.msra.mxu0 0.0
        %4676 = vmatprep.subr.mxu0 0.0
        %4677 = vmatpush2.msra.mxu0 0.0
        %4678 = vmatprep.mubr.f32.mxu0 0.0
        %4679 = vmatmul.mubr.f32.gmra.mxu0 %v4612
        %v4680 = vpop.f32.mrf.mxu0
        %v4681 = vadd.f32 0.0, %v4680
        %v4682 = vpop.f32.mrf.mxu0
        %4683 = vdwg.mxu0
        %4684 = vrot.lane.b32.xlu0 %v864, 96
        %v4685 = vpop.permute.xlu0 %4684
        %v4688 = vsel %vm899, %v3602, 0
        %4690 = vmatprep.subr.mxu0 0.0
        %4691 = vmatpush1.msra.mxu0 0.0
        %4692 = vmatprep.subr.mxu0 0.0
        %4693 = vmatpush1.msra.mxu0 0.0
        %4694 = vmatprep.subr.mxu0 0.0
        %4695 = vmatpush1.msra.mxu0 0.0
        %4696 = vmatprep.subr.mxu0 0.0
        %4697 = vmatpush1.msra.mxu0 0.0
        %4698 = vmatprep.subr.mxu0 0.0
        %4699 = vmatpush1.msra.mxu0 0.0
        %4700 = vmatprep.subr.mxu0 0.0
        %4701 = vmatpush1.msra.mxu0 0.0
        %4702 = vmatprep.subr.mxu0 0.0
        %4703 = vmatpush1.msra.mxu0 0.0
        %4704 = vmatprep.subr.mxu0 0.0
        %4705 = vmatpush1.msra.mxu0 0.0
        %4706 = vmatprep.subr.mxu0 0.0
        %4707 = vmatpush1.msra.mxu0 0.0
        %4708 = vmatprep.subr.mxu0 0.0
        %4709 = vmatpush1.msra.mxu0 0.0
        %4710 = vmatprep.subr.mxu0 0.0
        %4711 = vmatpush1.msra.mxu0 0.0
        %4712 = vmatprep.subr.mxu0 0.0
        %4713 = vmatpush1.msra.mxu0 0.0
        %4714 = vmatprep.subr.mxu0 0.0
        %4715 = vmatpush1.msra.mxu0 0.0
        %4716 = vmatprep.subr.mxu0 0.0
        %4717 = vmatpush1.msra.mxu0 0.0
        %4718 = vmatprep.subr.mxu0 0.0
        %4719 = vmatpush1.msra.mxu0 0.0
        %4720 = vmatprep.subr.mxu0 0.0
        %4721 = vmatpush1.msra.mxu0 %v4685
        %4722 = vmatprep.subr.mxu0 0.0
        %4723 = vmatpush2.msra.mxu0 0.0
        %4724 = vmatprep.subr.mxu0 0.0
        %4725 = vmatpush2.msra.mxu0 0.0
        %4726 = vmatprep.subr.mxu0 0.0
        %4727 = vmatpush2.msra.mxu0 0.0
        %4728 = vmatprep.subr.mxu0 0.0
        %4729 = vmatpush2.msra.mxu0 0.0
        %4730 = vmatprep.subr.mxu0 0.0
        %4731 = vmatpush2.msra.mxu0 0.0
        %4732 = vmatprep.subr.mxu0 0.0
        %4733 = vmatpush2.msra.mxu0 0.0
        %4734 = vmatprep.subr.mxu0 0.0
        %4735 = vmatpush2.msra.mxu0 0.0
        %4736 = vmatprep.subr.mxu0 0.0
        %4737 = vmatpush2.msra.mxu0 0.0
        %4738 = vmatprep.subr.mxu0 0.0
        %4739 = vmatpush2.msra.mxu0 0.0
        %4740 = vmatprep.subr.mxu0 0.0
        %4741 = vmatpush2.msra.mxu0 0.0
        %4742 = vmatprep.subr.mxu0 0.0
        %4743 = vmatpush2.msra.mxu0 0.0
        %4744 = vmatprep.subr.mxu0 0.0
        %4745 = vmatpush2.msra.mxu0 0.0
        %4746 = vmatprep.subr.mxu0 0.0
        %4747 = vmatpush2.msra.mxu0 0.0
        %4748 = vmatprep.subr.mxu0 0.0
        %4749 = vmatpush2.msra.mxu0 0.0
        %4750 = vmatprep.subr.mxu0 0.0
        %4751 = vmatpush2.msra.mxu0 0.0
        %4752 = vmatprep.subr.mxu0 0.0
        %4753 = vmatpush2.msra.mxu0 0.0
        %4754 = vmatprep.mubr.f32.mxu0 0.0
        %4755 = vmatmul.mubr.f32.gmra.mxu0 %v4688
        %v4756 = vpop.f32.mrf.mxu0
        %v4757 = vadd.f32 0.0, %v4756
        %v4758 = vpop.f32.mrf.mxu0
        %4759 = vdwg.mxu0
        %4760 = vrot.lane.b32.xlu0 %v866, 96
        %v4761 = vpop.permute.xlu0 %4760
        %v4764 = vsel %vm899, %v3603, 0
        %4766 = vmatprep.subr.mxu0 0.0
        %4767 = vmatpush1.msra.mxu0 0.0
        %4768 = vmatprep.subr.mxu0 0.0
        %4769 = vmatpush1.msra.mxu0 0.0
        %4770 = vmatprep.subr.mxu0 0.0
        %4771 = vmatpush1.msra.mxu0 0.0
        %4772 = vmatprep.subr.mxu0 0.0
        %4773 = vmatpush1.msra.mxu0 0.0
        %4774 = vmatprep.subr.mxu0 0.0
        %4775 = vmatpush1.msra.mxu0 0.0
        %4776 = vmatprep.subr.mxu0 0.0
        %4777 = vmatpush1.msra.mxu0 0.0
        %4778 = vmatprep.subr.mxu0 0.0
        %4779 = vmatpush1.msra.mxu0 0.0
        %4780 = vmatprep.subr.mxu0 0.0
        %4781 = vmatpush1.msra.mxu0 0.0
        %4782 = vmatprep.subr.mxu0 0.0
        %4783 = vmatpush1.msra.mxu0 0.0
        %4784 = vmatprep.subr.mxu0 0.0
        %4785 = vmatpush1.msra.mxu0 0.0
        %4786 = vmatprep.subr.mxu0 0.0
        %4787 = vmatpush1.msra.mxu0 0.0
        %4788 = vmatprep.subr.mxu0 0.0
        %4789 = vmatpush1.msra.mxu0 0.0
        %4790 = vmatprep.subr.mxu0 0.0
        %4791 = vmatpush1.msra.mxu0 0.0
        %4792 = vmatprep.subr.mxu0 0.0
        %4793 = vmatpush1.msra.mxu0 0.0
        %4794 = vmatprep.subr.mxu0 0.0
        %4795 = vmatpush1.msra.mxu0 0.0
        %4796 = vmatprep.subr.mxu0 0.0
        %4797 = vmatpush1.msra.mxu0 %v4761
        %4798 = vmatprep.subr.mxu0 0.0
        %4799 = vmatpush2.msra.mxu0 0.0
        %4800 = vmatprep.subr.mxu0 0.0
        %4801 = vmatpush2.msra.mxu0 0.0
        %4802 = vmatprep.subr.mxu0 0.0
        %4803 = vmatpush2.msra.mxu0 0.0
        %4804 = vmatprep.subr.mxu0 0.0
        %4805 = vmatpush2.msra.mxu0 0.0
        %4806 = vmatprep.subr.mxu0 0.0
        %4807 = vmatpush2.msra.mxu0 0.0
        %4808 = vmatprep.subr.mxu0 0.0
        %4809 = vmatpush2.msra.mxu0 0.0
        %4810 = vmatprep.subr.mxu0 0.0
        %4811 = vmatpush2.msra.mxu0 0.0
        %4812 = vmatprep.subr.mxu0 0.0
        %4813 = vmatpush2.msra.mxu0 0.0
        %4814 = vmatprep.subr.mxu0 0.0
        %4815 = vmatpush2.msra.mxu0 0.0
        %4816 = vmatprep.subr.mxu0 0.0
        %4817 = vmatpush2.msra.mxu0 0.0
        %4818 = vmatprep.subr.mxu0 0.0
        %4819 = vmatpush2.msra.mxu0 0.0
        %4820 = vmatprep.subr.mxu0 0.0
        %4821 = vmatpush2.msra.mxu0 0.0
        %4822 = vmatprep.subr.mxu0 0.0
        %4823 = vmatpush2.msra.mxu0 0.0
        %4824 = vmatprep.subr.mxu0 0.0
        %4825 = vmatpush2.msra.mxu0 0.0
        %4826 = vmatprep.subr.mxu0 0.0
        %4827 = vmatpush2.msra.mxu0 0.0
        %4828 = vmatprep.subr.mxu0 0.0
        %4829 = vmatpush2.msra.mxu0 0.0
        %4830 = vmatprep.mubr.f32.mxu0 0.0
        %4831 = vmatmul.mubr.f32.gmra.mxu0 %v4764
        %v4832 = vpop.f32.mrf.mxu0
        %v4833 = vadd.f32 0.0, %v4832
        %v4834 = vpop.f32.mrf.mxu0
        %4835 = vdwg.mxu0
        %4836 = vrot.lane.b32.xlu0 %v868, 96
        %v4837 = vpop.permute.xlu0 %4836
        %v4840 = vsel %vm899, %v3604, 0
        %4842 = vmatprep.subr.mxu0 0.0
        %4843 = vmatpush1.msra.mxu0 0.0
        %4844 = vmatprep.subr.mxu0 0.0
        %4845 = vmatpush1.msra.mxu0 0.0
        %4846 = vmatprep.subr.mxu0 0.0
        %4847 = vmatpush1.msra.mxu0 0.0
        %4848 = vmatprep.subr.mxu0 0.0
        %4849 = vmatpush1.msra.mxu0 0.0
        %4850 = vmatprep.subr.mxu0 0.0
        %4851 = vmatpush1.msra.mxu0 0.0
        %4852 = vmatprep.subr.mxu0 0.0
        %4853 = vmatpush1.msra.mxu0 0.0
        %4854 = vmatprep.subr.mxu0 0.0
        %4855 = vmatpush1.msra.mxu0 0.0
        %4856 = vmatprep.subr.mxu0 0.0
        %4857 = vmatpush1.msra.mxu0 0.0
        %4858 = vmatprep.subr.mxu0 0.0
        %4859 = vmatpush1.msra.mxu0 0.0
        %4860 = vmatprep.subr.mxu0 0.0
        %4861 = vmatpush1.msra.mxu0 0.0
        %4862 = vmatprep.subr.mxu0 0.0
        %4863 = vmatpush1.msra.mxu0 0.0
        %4864 = vmatprep.subr.mxu0 0.0
        %4865 = vmatpush1.msra.mxu0 0.0
        %4866 = vmatprep.subr.mxu0 0.0
        %4867 = vmatpush1.msra.mxu0 0.0
        %4868 = vmatprep.subr.mxu0 0.0
        %4869 = vmatpush1.msra.mxu0 0.0
        %4870 = vmatprep.subr.mxu0 0.0
        %4871 = vmatpush1.msra.mxu0 0.0
        %4872 = vmatprep.subr.mxu0 0.0
        %4873 = vmatpush1.msra.mxu0 %v4837
        %4874 = vmatprep.subr.mxu0 0.0
        %4875 = vmatpush2.msra.mxu0 0.0
        %4876 = vmatprep.subr.mxu0 0.0
        %4877 = vmatpush2.msra.mxu0 0.0
        %4878 = vmatprep.subr.mxu0 0.0
        %4879 = vmatpush2.msra.mxu0 0.0
        %4880 = vmatprep.subr.mxu0 0.0
        %4881 = vmatpush2.msra.mxu0 0.0
        %4882 = vmatprep.subr.mxu0 0.0
        %4883 = vmatpush2.msra.mxu0 0.0
        %4884 = vmatprep.subr.mxu0 0.0
        %4885 = vmatpush2.msra.mxu0 0.0
        %4886 = vmatprep.subr.mxu0 0.0
        %4887 = vmatpush2.msra.mxu0 0.0
        %4888 = vmatprep.subr.mxu0 0.0
        %4889 = vmatpush2.msra.mxu0 0.0
        %4890 = vmatprep.subr.mxu0 0.0
        %4891 = vmatpush2.msra.mxu0 0.0
        %4892 = vmatprep.subr.mxu0 0.0
        %4893 = vmatpush2.msra.mxu0 0.0
        %4894 = vmatprep.subr.mxu0 0.0
        %4895 = vmatpush2.msra.mxu0 0.0
        %4896 = vmatprep.subr.mxu0 0.0
        %4897 = vmatpush2.msra.mxu0 0.0
        %4898 = vmatprep.subr.mxu0 0.0
        %4899 = vmatpush2.msra.mxu0 0.0
        %4900 = vmatprep.subr.mxu0 0.0
        %4901 = vmatpush2.msra.mxu0 0.0
        %4902 = vmatprep.subr.mxu0 0.0
        %4903 = vmatpush2.msra.mxu0 0.0
        %4904 = vmatprep.subr.mxu0 0.0
        %4905 = vmatpush2.msra.mxu0 0.0
        %4906 = vmatprep.mubr.f32.mxu0 0.0
        %4907 = vmatmul.mubr.f32.gmra.mxu0 %v4840
        %v4908 = vpop.f32.mrf.mxu0
        %v4909 = vadd.f32 0.0, %v4908
        %v4910 = vpop.f32.mrf.mxu0
        %4911 = vdwg.mxu0
        %4912 = vrot.lane.b32.xlu0 %v870, 96
        %v4913 = vpop.permute.xlu0 %4912
        %v4916 = vsel %vm899, %v3605, 0
        %4918 = vmatprep.subr.mxu0 0.0
        %4919 = vmatpush1.msra.mxu0 0.0
        %4920 = vmatprep.subr.mxu0 0.0
        %4921 = vmatpush1.msra.mxu0 0.0
        %4922 = vmatprep.subr.mxu0 0.0
        %4923 = vmatpush1.msra.mxu0 0.0
        %4924 = vmatprep.subr.mxu0 0.0
        %4925 = vmatpush1.msra.mxu0 0.0
        %4926 = vmatprep.subr.mxu0 0.0
        %4927 = vmatpush1.msra.mxu0 0.0
        %4928 = vmatprep.subr.mxu0 0.0
        %4929 = vmatpush1.msra.mxu0 0.0
        %4930 = vmatprep.subr.mxu0 0.0
        %4931 = vmatpush1.msra.mxu0 0.0
        %4932 = vmatprep.subr.mxu0 0.0
        %4933 = vmatpush1.msra.mxu0 0.0
        %4934 = vmatprep.subr.mxu0 0.0
        %4935 = vmatpush1.msra.mxu0 0.0
        %4936 = vmatprep.subr.mxu0 0.0
        %4937 = vmatpush1.msra.mxu0 0.0
        %4938 = vmatprep.subr.mxu0 0.0
        %4939 = vmatpush1.msra.mxu0 0.0
        %4940 = vmatprep.subr.mxu0 0.0
        %4941 = vmatpush1.msra.mxu0 0.0
        %4942 = vmatprep.subr.mxu0 0.0
        %4943 = vmatpush1.msra.mxu0 0.0
        %4944 = vmatprep.subr.mxu0 0.0
        %4945 = vmatpush1.msra.mxu0 0.0
        %4946 = vmatprep.subr.mxu0 0.0
        %4947 = vmatpush1.msra.mxu0 0.0
        %4948 = vmatprep.subr.mxu0 0.0
        %4949 = vmatpush1.msra.mxu0 %v4913
        %4950 = vmatprep.subr.mxu0 0.0
        %4951 = vmatpush2.msra.mxu0 0.0
        %4952 = vmatprep.subr.mxu0 0.0
        %4953 = vmatpush2.msra.mxu0 0.0
        %4954 = vmatprep.subr.mxu0 0.0
        %4955 = vmatpush2.msra.mxu0 0.0
        %4956 = vmatprep.subr.mxu0 0.0
        %4957 = vmatpush2.msra.mxu0 0.0
        %4958 = vmatprep.subr.mxu0 0.0
        %4959 = vmatpush2.msra.mxu0 0.0
        %4960 = vmatprep.subr.mxu0 0.0
        %4961 = vmatpush2.msra.mxu0 0.0
        %4962 = vmatprep.subr.mxu0 0.0
        %4963 = vmatpush2.msra.mxu0 0.0
        %4964 = vmatprep.subr.mxu0 0.0
        %4965 = vmatpush2.msra.mxu0 0.0
        %4966 = vmatprep.subr.mxu0 0.0
        %4967 = vmatpush2.msra.mxu0 0.0
        %4968 = vmatprep.subr.mxu0 0.0
        %4969 = vmatpush2.msra.mxu0 0.0
        %4970 = vmatprep.subr.mxu0 0.0
        %4971 = vmatpush2.msra.mxu0 0.0
        %4972 = vmatprep.subr.mxu0 0.0
        %4973 = vmatpush2.msra.mxu0 0.0
        %4974 = vmatprep.subr.mxu0 0.0
        %4975 = vmatpush2.msra.mxu0 0.0
        %4976 = vmatprep.subr.mxu0 0.0
        %4977 = vmatpush2.msra.mxu0 0.0
        %4978 = vmatprep.subr.mxu0 0.0
        %4979 = vmatpush2.msra.mxu0 0.0
        %4980 = vmatprep.subr.mxu0 0.0
        %4981 = vmatpush2.msra.mxu0 0.0
        %4982 = vmatprep.mubr.f32.mxu0 0.0
        %4983 = vmatmul.mubr.f32.gmra.mxu0 %v4916
        %v4984 = vpop.f32.mrf.mxu0
        %v4985 = vadd.f32 0.0, %v4984
        %v4986 = vpop.f32.mrf.mxu0
        %4987 = vdwg.mxu0
        %4988 = vrot.lane.b32.xlu0 %v872, 96
        %v4989 = vpop.permute.xlu0 %4988
        %v4992 = vsel %vm899, %v3606, 0
        %4994 = vmatprep.subr.mxu0 0.0
        %4995 = vmatpush1.msra.mxu0 0.0
        %4996 = vmatprep.subr.mxu0 0.0
        %4997 = vmatpush1.msra.mxu0 0.0
        %4998 = vmatprep.subr.mxu0 0.0
        %4999 = vmatpush1.msra.mxu0 0.0
        %5000 = vmatprep.subr.mxu0 0.0
        %5001 = vmatpush1.msra.mxu0 0.0
        %5002 = vmatprep.subr.mxu0 0.0
        %5003 = vmatpush1.msra.mxu0 0.0
        %5004 = vmatprep.subr.mxu0 0.0
        %5005 = vmatpush1.msra.mxu0 0.0
        %5006 = vmatprep.subr.mxu0 0.0
        %5007 = vmatpush1.msra.mxu0 0.0
        %5008 = vmatprep.subr.mxu0 0.0
        %5009 = vmatpush1.msra.mxu0 0.0
        %5010 = vmatprep.subr.mxu0 0.0
        %5011 = vmatpush1.msra.mxu0 0.0
        %5012 = vmatprep.subr.mxu0 0.0
        %5013 = vmatpush1.msra.mxu0 0.0
        %5014 = vmatprep.subr.mxu0 0.0
        %5015 = vmatpush1.msra.mxu0 0.0
        %5016 = vmatprep.subr.mxu0 0.0
        %5017 = vmatpush1.msra.mxu0 0.0
        %5018 = vmatprep.subr.mxu0 0.0
        %5019 = vmatpush1.msra.mxu0 0.0
        %5020 = vmatprep.subr.mxu0 0.0
        %5021 = vmatpush1.msra.mxu0 0.0
        %5022 = vmatprep.subr.mxu0 0.0
        %5023 = vmatpush1.msra.mxu0 0.0
        %5024 = vmatprep.subr.mxu0 0.0
        %5025 = vmatpush1.msra.mxu0 %v4989
        %5026 = vmatprep.subr.mxu0 0.0
        %5027 = vmatpush2.msra.mxu0 0.0
        %5028 = vmatprep.subr.mxu0 0.0
        %5029 = vmatpush2.msra.mxu0 0.0
        %5030 = vmatprep.subr.mxu0 0.0
        %5031 = vmatpush2.msra.mxu0 0.0
        %5032 = vmatprep.subr.mxu0 0.0
        %5033 = vmatpush2.msra.mxu0 0.0
        %5034 = vmatprep.subr.mxu0 0.0
        %5035 = vmatpush2.msra.mxu0 0.0
        %5036 = vmatprep.subr.mxu0 0.0
        %5037 = vmatpush2.msra.mxu0 0.0
        %5038 = vmatprep.subr.mxu0 0.0
        %5039 = vmatpush2.msra.mxu0 0.0
        %5040 = vmatprep.subr.mxu0 0.0
        %5041 = vmatpush2.msra.mxu0 0.0
        %5042 = vmatprep.subr.mxu0 0.0
        %5043 = vmatpush2.msra.mxu0 0.0
        %5044 = vmatprep.subr.mxu0 0.0
        %5045 = vmatpush2.msra.mxu0 0.0
        %5046 = vmatprep.subr.mxu0 0.0
        %5047 = vmatpush2.msra.mxu0 0.0
        %5048 = vmatprep.subr.mxu0 0.0
        %5049 = vmatpush2.msra.mxu0 0.0
        %5050 = vmatprep.subr.mxu0 0.0
        %5051 = vmatpush2.msra.mxu0 0.0
        %5052 = vmatprep.subr.mxu0 0.0
        %5053 = vmatpush2.msra.mxu0 0.0
        %5054 = vmatprep.subr.mxu0 0.0
        %5055 = vmatpush2.msra.mxu0 0.0
        %5056 = vmatprep.subr.mxu0 0.0
        %5057 = vmatpush2.msra.mxu0 0.0
        %5058 = vmatprep.mubr.f32.mxu0 0.0
        %5059 = vmatmul.mubr.f32.gmra.mxu0 %v4992
        %v5060 = vpop.f32.mrf.mxu0
        %v5061 = vadd.f32 0.0, %v5060
        %v5062 = vpop.f32.mrf.mxu0
        %5063 = vdwg.mxu0
        %5064 = vrot.lane.b32.xlu0 %v874, 96
        %v5065 = vpop.permute.xlu0 %5064
        %v5068 = vsel %vm899, %v3607, 0
        %5070 = vmatprep.subr.mxu0 0.0
        %5071 = vmatpush1.msra.mxu0 0.0
        %5072 = vmatprep.subr.mxu0 0.0
        %5073 = vmatpush1.msra.mxu0 0.0
        %5074 = vmatprep.subr.mxu0 0.0
        %5075 = vmatpush1.msra.mxu0 0.0
        %5076 = vmatprep.subr.mxu0 0.0
        %5077 = vmatpush1.msra.mxu0 0.0
        %5078 = vmatprep.subr.mxu0 0.0
        %5079 = vmatpush1.msra.mxu0 0.0
        %5080 = vmatprep.subr.mxu0 0.0
        %5081 = vmatpush1.msra.mxu0 0.0
        %5082 = vmatprep.subr.mxu0 0.0
        %5083 = vmatpush1.msra.mxu0 0.0
        %5084 = vmatprep.subr.mxu0 0.0
        %5085 = vmatpush1.msra.mxu0 0.0
        %5086 = vmatprep.subr.mxu0 0.0
        %5087 = vmatpush1.msra.mxu0 0.0
        %5088 = vmatprep.subr.mxu0 0.0
        %5089 = vmatpush1.msra.mxu0 0.0
        %5090 = vmatprep.subr.mxu0 0.0
        %5091 = vmatpush1.msra.mxu0 0.0
        %5092 = vmatprep.subr.mxu0 0.0
        %5093 = vmatpush1.msra.mxu0 0.0
        %5094 = vmatprep.subr.mxu0 0.0
        %5095 = vmatpush1.msra.mxu0 0.0
        %5096 = vmatprep.subr.mxu0 0.0
        %5097 = vmatpush1.msra.mxu0 0.0
        %5098 = vmatprep.subr.mxu0 0.0
        %5099 = vmatpush1.msra.mxu0 0.0
        %5100 = vmatprep.subr.mxu0 0.0
        %5101 = vmatpush1.msra.mxu0 %v5065
        %5102 = vmatprep.subr.mxu0 0.0
        %5103 = vmatpush2.msra.mxu0 0.0
        %5104 = vmatprep.subr.mxu0 0.0
        %5105 = vmatpush2.msra.mxu0 0.0
        %5106 = vmatprep.subr.mxu0 0.0
        %5107 = vmatpush2.msra.mxu0 0.0
        %5108 = vmatprep.subr.mxu0 0.0
        %5109 = vmatpush2.msra.mxu0 0.0
        %5110 = vmatprep.subr.mxu0 0.0
        %5111 = vmatpush2.msra.mxu0 0.0
        %5112 = vmatprep.subr.mxu0 0.0
        %5113 = vmatpush2.msra.mxu0 0.0
        %5114 = vmatprep.subr.mxu0 0.0
        %5115 = vmatpush2.msra.mxu0 0.0
        %5116 = vmatprep.subr.mxu0 0.0
        %5117 = vmatpush2.msra.mxu0 0.0
        %5118 = vmatprep.subr.mxu0 0.0
        %5119 = vmatpush2.msra.mxu0 0.0
        %5120 = vmatprep.subr.mxu0 0.0
        %5121 = vmatpush2.msra.mxu0 0.0
        %5122 = vmatprep.subr.mxu0 0.0
        %5123 = vmatpush2.msra.mxu0 0.0
        %5124 = vmatprep.subr.mxu0 0.0
        %5125 = vmatpush2.msra.mxu0 0.0
        %5126 = vmatprep.subr.mxu0 0.0
        %5127 = vmatpush2.msra.mxu0 0.0
        %5128 = vmatprep.subr.mxu0 0.0
        %5129 = vmatpush2.msra.mxu0 0.0
        %5130 = vmatprep.subr.mxu0 0.0
        %5131 = vmatpush2.msra.mxu0 0.0
        %5132 = vmatprep.subr.mxu0 0.0
        %5133 = vmatpush2.msra.mxu0 0.0
        %5134 = vmatprep.mubr.f32.mxu0 0.0
        %5135 = vmatmul.mubr.f32.gmra.mxu0 %v5068
        %v5136 = vpop.f32.mrf.mxu0
        %v5137 = vadd.f32 0.0, %v5136
        %v5138 = vpop.f32.mrf.mxu0
        %5139 = vdwg.mxu0
        %5140 = vrot.lane.b32.xlu0 %v876, 96
        %v5141 = vpop.permute.xlu0 %5140
        %v5144 = vsel %vm899, %v3608, 0
        %5146 = vmatprep.subr.mxu0 0.0
        %5147 = vmatpush1.msra.mxu0 0.0
        %5148 = vmatprep.subr.mxu0 0.0
        %5149 = vmatpush1.msra.mxu0 0.0
        %5150 = vmatprep.subr.mxu0 0.0
        %5151 = vmatpush1.msra.mxu0 0.0
        %5152 = vmatprep.subr.mxu0 0.0
        %5153 = vmatpush1.msra.mxu0 0.0
        %5154 = vmatprep.subr.mxu0 0.0
        %5155 = vmatpush1.msra.mxu0 0.0
        %5156 = vmatprep.subr.mxu0 0.0
        %5157 = vmatpush1.msra.mxu0 0.0
        %5158 = vmatprep.subr.mxu0 0.0
        %5159 = vmatpush1.msra.mxu0 0.0
        %5160 = vmatprep.subr.mxu0 0.0
        %5161 = vmatpush1.msra.mxu0 0.0
        %5162 = vmatprep.subr.mxu0 0.0
        %5163 = vmatpush1.msra.mxu0 0.0
        %5164 = vmatprep.subr.mxu0 0.0
        %5165 = vmatpush1.msra.mxu0 0.0
        %5166 = vmatprep.subr.mxu0 0.0
        %5167 = vmatpush1.msra.mxu0 0.0
        %5168 = vmatprep.subr.mxu0 0.0
        %5169 = vmatpush1.msra.mxu0 0.0
        %5170 = vmatprep.subr.mxu0 0.0
        %5171 = vmatpush1.msra.mxu0 0.0
        %5172 = vmatprep.subr.mxu0 0.0
        %5173 = vmatpush1.msra.mxu0 0.0
        %5174 = vmatprep.subr.mxu0 0.0
        %5175 = vmatpush1.msra.mxu0 0.0
        %5176 = vmatprep.subr.mxu0 0.0
        %5177 = vmatpush1.msra.mxu0 %v5141
        %5178 = vmatprep.subr.mxu0 0.0
        %5179 = vmatpush2.msra.mxu0 0.0
        %5180 = vmatprep.subr.mxu0 0.0
        %5181 = vmatpush2.msra.mxu0 0.0
        %5182 = vmatprep.subr.mxu0 0.0
        %5183 = vmatpush2.msra.mxu0 0.0
        %5184 = vmatprep.subr.mxu0 0.0
        %5185 = vmatpush2.msra.mxu0 0.0
        %5186 = vmatprep.subr.mxu0 0.0
        %5187 = vmatpush2.msra.mxu0 0.0
        %5188 = vmatprep.subr.mxu0 0.0
        %5189 = vmatpush2.msra.mxu0 0.0
        %5190 = vmatprep.subr.mxu0 0.0
        %5191 = vmatpush2.msra.mxu0 0.0
        %5192 = vmatprep.subr.mxu0 0.0
        %5193 = vmatpush2.msra.mxu0 0.0
        %5194 = vmatprep.subr.mxu0 0.0
        %5195 = vmatpush2.msra.mxu0 0.0
        %5196 = vmatprep.subr.mxu0 0.0
        %5197 = vmatpush2.msra.mxu0 0.0
        %5198 = vmatprep.subr.mxu0 0.0
        %5199 = vmatpush2.msra.mxu0 0.0
        %5200 = vmatprep.subr.mxu0 0.0
        %5201 = vmatpush2.msra.mxu0 0.0
        %5202 = vmatprep.subr.mxu0 0.0
        %5203 = vmatpush2.msra.mxu0 0.0
        %5204 = vmatprep.subr.mxu0 0.0
        %5205 = vmatpush2.msra.mxu0 0.0
        %5206 = vmatprep.subr.mxu0 0.0
        %5207 = vmatpush2.msra.mxu0 0.0
        %5208 = vmatprep.subr.mxu0 0.0
        %5209 = vmatpush2.msra.mxu0 0.0
        %5210 = vmatprep.mubr.f32.mxu0 0.0
        %5211 = vmatmul.mubr.f32.gmra.mxu0 %v5144
        %v5212 = vpop.f32.mrf.mxu0
        %v5213 = vadd.f32 0.0, %v5212
        %v5214 = vpop.f32.mrf.mxu0
        %5215 = vdwg.mxu0
        %5216 = vrot.lane.b32.xlu0 %v878, 96
        %v5217 = vpop.permute.xlu0 %5216
        %v5220 = vsel %vm899, %v3609, 0
        %5222 = vmatprep.subr.mxu0 0.0
        %5223 = vmatpush1.msra.mxu0 0.0
        %5224 = vmatprep.subr.mxu0 0.0
        %5225 = vmatpush1.msra.mxu0 0.0
        %5226 = vmatprep.subr.mxu0 0.0
        %5227 = vmatpush1.msra.mxu0 0.0
        %5228 = vmatprep.subr.mxu0 0.0
        %5229 = vmatpush1.msra.mxu0 0.0
        %5230 = vmatprep.subr.mxu0 0.0
        %5231 = vmatpush1.msra.mxu0 0.0
        %5232 = vmatprep.subr.mxu0 0.0
        %5233 = vmatpush1.msra.mxu0 0.0
        %5234 = vmatprep.subr.mxu0 0.0
        %5235 = vmatpush1.msra.mxu0 0.0
        %5236 = vmatprep.subr.mxu0 0.0
        %5237 = vmatpush1.msra.mxu0 0.0
        %5238 = vmatprep.subr.mxu0 0.0
        %5239 = vmatpush1.msra.mxu0 0.0
        %5240 = vmatprep.subr.mxu0 0.0
        %5241 = vmatpush1.msra.mxu0 0.0
        %5242 = vmatprep.subr.mxu0 0.0
        %5243 = vmatpush1.msra.mxu0 0.0
        %5244 = vmatprep.subr.mxu0 0.0
        %5245 = vmatpush1.msra.mxu0 0.0
        %5246 = vmatprep.subr.mxu0 0.0
        %5247 = vmatpush1.msra.mxu0 0.0
        %5248 = vmatprep.subr.mxu0 0.0
        %5249 = vmatpush1.msra.mxu0 0.0
        %5250 = vmatprep.subr.mxu0 0.0
        %5251 = vmatpush1.msra.mxu0 0.0
        %5252 = vmatprep.subr.mxu0 0.0
        %5253 = vmatpush1.msra.mxu0 %v5217
        %5254 = vmatprep.subr.mxu0 0.0
        %5255 = vmatpush2.msra.mxu0 0.0
        %5256 = vmatprep.subr.mxu0 0.0
        %5257 = vmatpush2.msra.mxu0 0.0
        %5258 = vmatprep.subr.mxu0 0.0
        %5259 = vmatpush2.msra.mxu0 0.0
        %5260 = vmatprep.subr.mxu0 0.0
        %5261 = vmatpush2.msra.mxu0 0.0
        %5262 = vmatprep.subr.mxu0 0.0
        %5263 = vmatpush2.msra.mxu0 0.0
        %5264 = vmatprep.subr.mxu0 0.0
        %5265 = vmatpush2.msra.mxu0 0.0
        %5266 = vmatprep.subr.mxu0 0.0
        %5267 = vmatpush2.msra.mxu0 0.0
        %5268 = vmatprep.subr.mxu0 0.0
        %5269 = vmatpush2.msra.mxu0 0.0
        %5270 = vmatprep.subr.mxu0 0.0
        %5271 = vmatpush2.msra.mxu0 0.0
        %5272 = vmatprep.subr.mxu0 0.0
        %5273 = vmatpush2.msra.mxu0 0.0
        %5274 = vmatprep.subr.mxu0 0.0
        %5275 = vmatpush2.msra.mxu0 0.0
        %5276 = vmatprep.subr.mxu0 0.0
        %5277 = vmatpush2.msra.mxu0 0.0
        %5278 = vmatprep.subr.mxu0 0.0
        %5279 = vmatpush2.msra.mxu0 0.0
        %5280 = vmatprep.subr.mxu0 0.0
        %5281 = vmatpush2.msra.mxu0 0.0
        %5282 = vmatprep.subr.mxu0 0.0
        %5283 = vmatpush2.msra.mxu0 0.0
        %5284 = vmatprep.subr.mxu0 0.0
        %5285 = vmatpush2.msra.mxu0 0.0
        %5286 = vmatprep.mubr.f32.mxu0 0.0
        %5287 = vmatmul.mubr.f32.gmra.mxu0 %v5220
        %v5288 = vpop.f32.mrf.mxu0
        %v5289 = vadd.f32 0.0, %v5288
        %v5290 = vpop.f32.mrf.mxu0
        %5291 = vdwg.mxu0
        %5292 = vrot.lane.b32.xlu0 %v880, 96
        %v5293 = vpop.permute.xlu0 %5292
        %v5296 = vsel %vm899, %v3610, 0
        %5298 = vmatprep.subr.mxu0 0.0
        %5299 = vmatpush1.msra.mxu0 0.0
        %5300 = vmatprep.subr.mxu0 0.0
        %5301 = vmatpush1.msra.mxu0 0.0
        %5302 = vmatprep.subr.mxu0 0.0
        %5303 = vmatpush1.msra.mxu0 0.0
        %5304 = vmatprep.subr.mxu0 0.0
        %5305 = vmatpush1.msra.mxu0 0.0
        %5306 = vmatprep.subr.mxu0 0.0
        %5307 = vmatpush1.msra.mxu0 0.0
        %5308 = vmatprep.subr.mxu0 0.0
        %5309 = vmatpush1.msra.mxu0 0.0
        %5310 = vmatprep.subr.mxu0 0.0
        %5311 = vmatpush1.msra.mxu0 0.0
        %5312 = vmatprep.subr.mxu0 0.0
        %5313 = vmatpush1.msra.mxu0 0.0
        %5314 = vmatprep.subr.mxu0 0.0
        %5315 = vmatpush1.msra.mxu0 0.0
        %5316 = vmatprep.subr.mxu0 0.0
        %5317 = vmatpush1.msra.mxu0 0.0
        %5318 = vmatprep.subr.mxu0 0.0
        %5319 = vmatpush1.msra.mxu0 0.0
        %5320 = vmatprep.subr.mxu0 0.0
        %5321 = vmatpush1.msra.mxu0 0.0
        %5322 = vmatprep.subr.mxu0 0.0
        %5323 = vmatpush1.msra.mxu0 0.0
        %5324 = vmatprep.subr.mxu0 0.0
        %5325 = vmatpush1.msra.mxu0 0.0
        %5326 = vmatprep.subr.mxu0 0.0
        %5327 = vmatpush1.msra.mxu0 0.0
        %5328 = vmatprep.subr.mxu0 0.0
        %5329 = vmatpush1.msra.mxu0 %v5293
        %5330 = vmatprep.subr.mxu0 0.0
        %5331 = vmatpush2.msra.mxu0 0.0
        %5332 = vmatprep.subr.mxu0 0.0
        %5333 = vmatpush2.msra.mxu0 0.0
        %5334 = vmatprep.subr.mxu0 0.0
        %5335 = vmatpush2.msra.mxu0 0.0
        %5336 = vmatprep.subr.mxu0 0.0
        %5337 = vmatpush2.msra.mxu0 0.0
        %5338 = vmatprep.subr.mxu0 0.0
        %5339 = vmatpush2.msra.mxu0 0.0
        %5340 = vmatprep.subr.mxu0 0.0
        %5341 = vmatpush2.msra.mxu0 0.0
        %5342 = vmatprep.subr.mxu0 0.0
        %5343 = vmatpush2.msra.mxu0 0.0
        %5344 = vmatprep.subr.mxu0 0.0
        %5345 = vmatpush2.msra.mxu0 0.0
        %5346 = vmatprep.subr.mxu0 0.0
        %5347 = vmatpush2.msra.mxu0 0.0
        %5348 = vmatprep.subr.mxu0 0.0
        %5349 = vmatpush2.msra.mxu0 0.0
        %5350 = vmatprep.subr.mxu0 0.0
        %5351 = vmatpush2.msra.mxu0 0.0
        %5352 = vmatprep.subr.mxu0 0.0
        %5353 = vmatpush2.msra.mxu0 0.0
        %5354 = vmatprep.subr.mxu0 0.0
        %5355 = vmatpush2.msra.mxu0 0.0
        %5356 = vmatprep.subr.mxu0 0.0
        %5357 = vmatpush2.msra.mxu0 0.0
        %5358 = vmatprep.subr.mxu0 0.0
        %5359 = vmatpush2.msra.mxu0 0.0
        %5360 = vmatprep.subr.mxu0 0.0
        %5361 = vmatpush2.msra.mxu0 0.0
        %5362 = vmatprep.mubr.f32.mxu0 0.0
        %5363 = vmatmul.mubr.f32.gmra.mxu0 %v5296
        %v5364 = vpop.f32.mrf.mxu0
        %v5365 = vadd.f32 0.0, %v5364
        %v5366 = vpop.f32.mrf.mxu0
        %5367 = vdwg.mxu0
        %5368 = vrot.lane.b32.xlu0 %v882, 96
        %v5369 = vpop.permute.xlu0 %5368
        %v5372 = vsel %vm899, %v3611, 0
        %5374 = vmatprep.subr.mxu0 0.0
        %5375 = vmatpush1.msra.mxu0 0.0
        %5376 = vmatprep.subr.mxu0 0.0
        %5377 = vmatpush1.msra.mxu0 0.0
        %5378 = vmatprep.subr.mxu0 0.0
        %5379 = vmatpush1.msra.mxu0 0.0
        %5380 = vmatprep.subr.mxu0 0.0
        %5381 = vmatpush1.msra.mxu0 0.0
        %5382 = vmatprep.subr.mxu0 0.0
        %5383 = vmatpush1.msra.mxu0 0.0
        %5384 = vmatprep.subr.mxu0 0.0
        %5385 = vmatpush1.msra.mxu0 0.0
        %5386 = vmatprep.subr.mxu0 0.0
        %5387 = vmatpush1.msra.mxu0 0.0
        %5388 = vmatprep.subr.mxu0 0.0
        %5389 = vmatpush1.msra.mxu0 0.0
        %5390 = vmatprep.subr.mxu0 0.0
        %5391 = vmatpush1.msra.mxu0 0.0
        %5392 = vmatprep.subr.mxu0 0.0
        %5393 = vmatpush1.msra.mxu0 0.0
        %5394 = vmatprep.subr.mxu0 0.0
        %5395 = vmatpush1.msra.mxu0 0.0
        %5396 = vmatprep.subr.mxu0 0.0
        %5397 = vmatpush1.msra.mxu0 0.0
        %5398 = vmatprep.subr.mxu0 0.0
        %5399 = vmatpush1.msra.mxu0 0.0
        %5400 = vmatprep.subr.mxu0 0.0
        %5401 = vmatpush1.msra.mxu0 0.0
        %5402 = vmatprep.subr.mxu0 0.0
        %5403 = vmatpush1.msra.mxu0 0.0
        %5404 = vmatprep.subr.mxu0 0.0
        %5405 = vmatpush1.msra.mxu0 %v5369
        %5406 = vmatprep.subr.mxu0 0.0
        %5407 = vmatpush2.msra.mxu0 0.0
        %5408 = vmatprep.subr.mxu0 0.0
        %5409 = vmatpush2.msra.mxu0 0.0
        %5410 = vmatprep.subr.mxu0 0.0
        %5411 = vmatpush2.msra.mxu0 0.0
        %5412 = vmatprep.subr.mxu0 0.0
        %5413 = vmatpush2.msra.mxu0 0.0
        %5414 = vmatprep.subr.mxu0 0.0
        %5415 = vmatpush2.msra.mxu0 0.0
        %5416 = vmatprep.subr.mxu0 0.0
        %5417 = vmatpush2.msra.mxu0 0.0
        %5418 = vmatprep.subr.mxu0 0.0
        %5419 = vmatpush2.msra.mxu0 0.0
        %5420 = vmatprep.subr.mxu0 0.0
        %5421 = vmatpush2.msra.mxu0 0.0
        %5422 = vmatprep.subr.mxu0 0.0
        %5423 = vmatpush2.msra.mxu0 0.0
        %5424 = vmatprep.subr.mxu0 0.0
        %5425 = vmatpush2.msra.mxu0 0.0
        %5426 = vmatprep.subr.mxu0 0.0
        %5427 = vmatpush2.msra.mxu0 0.0
        %5428 = vmatprep.subr.mxu0 0.0
        %5429 = vmatpush2.msra.mxu0 0.0
        %5430 = vmatprep.subr.mxu0 0.0
        %5431 = vmatpush2.msra.mxu0 0.0
        %5432 = vmatprep.subr.mxu0 0.0
        %5433 = vmatpush2.msra.mxu0 0.0
        %5434 = vmatprep.subr.mxu0 0.0
        %5435 = vmatpush2.msra.mxu0 0.0
        %5436 = vmatprep.subr.mxu0 0.0
        %5437 = vmatpush2.msra.mxu0 0.0
        %5438 = vmatprep.mubr.f32.mxu0 0.0
        %5439 = vmatmul.mubr.f32.gmra.mxu0 %v5372
        %v5440 = vpop.f32.mrf.mxu0
        %v5441 = vadd.f32 0.0, %v5440
        %v5442 = vpop.f32.mrf.mxu0
        %5443 = vdwg.mxu0
        %5444 = vrot.lane.b32.xlu0 %v884, 96
        %v5445 = vpop.permute.xlu0 %5444
        %v5448 = vsel %vm899, %v3612, 0
        %5450 = vmatprep.subr.mxu0 0.0
        %5451 = vmatpush1.msra.mxu0 0.0
        %5452 = vmatprep.subr.mxu0 0.0
        %5453 = vmatpush1.msra.mxu0 0.0
        %5454 = vmatprep.subr.mxu0 0.0
        %5455 = vmatpush1.msra.mxu0 0.0
        %5456 = vmatprep.subr.mxu0 0.0
        %5457 = vmatpush1.msra.mxu0 0.0
        %5458 = vmatprep.subr.mxu0 0.0
        %5459 = vmatpush1.msra.mxu0 0.0
        %5460 = vmatprep.subr.mxu0 0.0
        %5461 = vmatpush1.msra.mxu0 0.0
        %5462 = vmatprep.subr.mxu0 0.0
        %5463 = vmatpush1.msra.mxu0 0.0
        %5464 = vmatprep.subr.mxu0 0.0
        %5465 = vmatpush1.msra.mxu0 0.0
        %5466 = vmatprep.subr.mxu0 0.0
        %5467 = vmatpush1.msra.mxu0 0.0
        %5468 = vmatprep.subr.mxu0 0.0
        %5469 = vmatpush1.msra.mxu0 0.0
        %5470 = vmatprep.subr.mxu0 0.0
        %5471 = vmatpush1.msra.mxu0 0.0
        %5472 = vmatprep.subr.mxu0 0.0
        %5473 = vmatpush1.msra.mxu0 0.0
        %5474 = vmatprep.subr.mxu0 0.0
        %5475 = vmatpush1.msra.mxu0 0.0
        %5476 = vmatprep.subr.mxu0 0.0
        %5477 = vmatpush1.msra.mxu0 0.0
        %5478 = vmatprep.subr.mxu0 0.0
        %5479 = vmatpush1.msra.mxu0 0.0
        %5480 = vmatprep.subr.mxu0 0.0
        %5481 = vmatpush1.msra.mxu0 %v5445
        %5482 = vmatprep.subr.mxu0 0.0
        %5483 = vmatpush2.msra.mxu0 0.0
        %5484 = vmatprep.subr.mxu0 0.0
        %5485 = vmatpush2.msra.mxu0 0.0
        %5486 = vmatprep.subr.mxu0 0.0
        %5487 = vmatpush2.msra.mxu0 0.0
        %5488 = vmatprep.subr.mxu0 0.0
        %5489 = vmatpush2.msra.mxu0 0.0
        %5490 = vmatprep.subr.mxu0 0.0
        %5491 = vmatpush2.msra.mxu0 0.0
        %5492 = vmatprep.subr.mxu0 0.0
        %5493 = vmatpush2.msra.mxu0 0.0
        %5494 = vmatprep.subr.mxu0 0.0
        %5495 = vmatpush2.msra.mxu0 0.0
        %5496 = vmatprep.subr.mxu0 0.0
        %5497 = vmatpush2.msra.mxu0 0.0
        %5498 = vmatprep.subr.mxu0 0.0
        %5499 = vmatpush2.msra.mxu0 0.0
        %5500 = vmatprep.subr.mxu0 0.0
        %5501 = vmatpush2.msra.mxu0 0.0
        %5502 = vmatprep.subr.mxu0 0.0
        %5503 = vmatpush2.msra.mxu0 0.0
        %5504 = vmatprep.subr.mxu0 0.0
        %5505 = vmatpush2.msra.mxu0 0.0
        %5506 = vmatprep.subr.mxu0 0.0
        %5507 = vmatpush2.msra.mxu0 0.0
        %5508 = vmatprep.subr.mxu0 0.0
        %5509 = vmatpush2.msra.mxu0 0.0
        %5510 = vmatprep.subr.mxu0 0.0
        %5511 = vmatpush2.msra.mxu0 0.0
        %5512 = vmatprep.subr.mxu0 0.0
        %5513 = vmatpush2.msra.mxu0 0.0
        %5514 = vmatprep.mubr.f32.mxu0 0.0
        %5515 = vmatmul.mubr.f32.gmra.mxu0 %v5448
        %v5516 = vpop.f32.mrf.mxu0
        %v5517 = vadd.f32 0.0, %v5516
        %v5518 = vpop.f32.mrf.mxu0
        %5519 = vdwg.mxu0
        %5520 = vrot.lane.b32.xlu0 %v886, 96
        %v5521 = vpop.permute.xlu0 %5520
        %v5524 = vsel %vm899, %v3613, 0
        %5526 = vmatprep.subr.mxu0 0.0
        %5527 = vmatpush1.msra.mxu0 0.0
        %5528 = vmatprep.subr.mxu0 0.0
        %5529 = vmatpush1.msra.mxu0 0.0
        %5530 = vmatprep.subr.mxu0 0.0
        %5531 = vmatpush1.msra.mxu0 0.0
        %5532 = vmatprep.subr.mxu0 0.0
        %5533 = vmatpush1.msra.mxu0 0.0
        %5534 = vmatprep.subr.mxu0 0.0
        %5535 = vmatpush1.msra.mxu0 0.0
        %5536 = vmatprep.subr.mxu0 0.0
        %5537 = vmatpush1.msra.mxu0 0.0
        %5538 = vmatprep.subr.mxu0 0.0
        %5539 = vmatpush1.msra.mxu0 0.0
        %5540 = vmatprep.subr.mxu0 0.0
        %5541 = vmatpush1.msra.mxu0 0.0
        %5542 = vmatprep.subr.mxu0 0.0
        %5543 = vmatpush1.msra.mxu0 0.0
        %5544 = vmatprep.subr.mxu0 0.0
        %5545 = vmatpush1.msra.mxu0 0.0
        %5546 = vmatprep.subr.mxu0 0.0
        %5547 = vmatpush1.msra.mxu0 0.0
        %5548 = vmatprep.subr.mxu0 0.0
        %5549 = vmatpush1.msra.mxu0 0.0
        %5550 = vmatprep.subr.mxu0 0.0
        %5551 = vmatpush1.msra.mxu0 0.0
        %5552 = vmatprep.subr.mxu0 0.0
        %5553 = vmatpush1.msra.mxu0 0.0
        %5554 = vmatprep.subr.mxu0 0.0
        %5555 = vmatpush1.msra.mxu0 0.0
        %5556 = vmatprep.subr.mxu0 0.0
        %5557 = vmatpush1.msra.mxu0 %v5521
        %5558 = vmatprep.subr.mxu0 0.0
        %5559 = vmatpush2.msra.mxu0 0.0
        %5560 = vmatprep.subr.mxu0 0.0
        %5561 = vmatpush2.msra.mxu0 0.0
        %5562 = vmatprep.subr.mxu0 0.0
        %5563 = vmatpush2.msra.mxu0 0.0
        %5564 = vmatprep.subr.mxu0 0.0
        %5565 = vmatpush2.msra.mxu0 0.0
        %5566 = vmatprep.subr.mxu0 0.0
        %5567 = vmatpush2.msra.mxu0 0.0
        %5568 = vmatprep.subr.mxu0 0.0
        %5569 = vmatpush2.msra.mxu0 0.0
        %5570 = vmatprep.subr.mxu0 0.0
        %5571 = vmatpush2.msra.mxu0 0.0
        %5572 = vmatprep.subr.mxu0 0.0
        %5573 = vmatpush2.msra.mxu0 0.0
        %5574 = vmatprep.subr.mxu0 0.0
        %5575 = vmatpush2.msra.mxu0 0.0
        %5576 = vmatprep.subr.mxu0 0.0
        %5577 = vmatpush2.msra.mxu0 0.0
        %5578 = vmatprep.subr.mxu0 0.0
        %5579 = vmatpush2.msra.mxu0 0.0
        %5580 = vmatprep.subr.mxu0 0.0
        %5581 = vmatpush2.msra.mxu0 0.0
        %5582 = vmatprep.subr.mxu0 0.0
        %5583 = vmatpush2.msra.mxu0 0.0
        %5584 = vmatprep.subr.mxu0 0.0
        %5585 = vmatpush2.msra.mxu0 0.0
        %5586 = vmatprep.subr.mxu0 0.0
        %5587 = vmatpush2.msra.mxu0 0.0
        %5588 = vmatprep.subr.mxu0 0.0
        %5589 = vmatpush2.msra.mxu0 0.0
        %5590 = vmatprep.mubr.f32.mxu0 0.0
        %5591 = vmatmul.mubr.f32.gmra.mxu0 %v5524
        %v5592 = vpop.f32.mrf.mxu0
        %v5593 = vadd.f32 0.0, %v5592
        %v5594 = vpop.f32.mrf.mxu0
        %5595 = vdwg.mxu0
        %5596 = vrot.lane.b32.xlu0 %v888, 96
        %v5597 = vpop.permute.xlu0 %5596
        %v5600 = vsel %vm899, %v3614, 0
        %5602 = vmatprep.subr.mxu0 0.0
        %5603 = vmatpush1.msra.mxu0 0.0
        %5604 = vmatprep.subr.mxu0 0.0
        %5605 = vmatpush1.msra.mxu0 0.0
        %5606 = vmatprep.subr.mxu0 0.0
        %5607 = vmatpush1.msra.mxu0 0.0
        %5608 = vmatprep.subr.mxu0 0.0
        %5609 = vmatpush1.msra.mxu0 0.0
        %5610 = vmatprep.subr.mxu0 0.0
        %5611 = vmatpush1.msra.mxu0 0.0
        %5612 = vmatprep.subr.mxu0 0.0
        %5613 = vmatpush1.msra.mxu0 0.0
        %5614 = vmatprep.subr.mxu0 0.0
        %5615 = vmatpush1.msra.mxu0 0.0
        %5616 = vmatprep.subr.mxu0 0.0
        %5617 = vmatpush1.msra.mxu0 0.0
        %5618 = vmatprep.subr.mxu0 0.0
        %5619 = vmatpush1.msra.mxu0 0.0
        %5620 = vmatprep.subr.mxu0 0.0
        %5621 = vmatpush1.msra.mxu0 0.0
        %5622 = vmatprep.subr.mxu0 0.0
        %5623 = vmatpush1.msra.mxu0 0.0
        %5624 = vmatprep.subr.mxu0 0.0
        %5625 = vmatpush1.msra.mxu0 0.0
        %5626 = vmatprep.subr.mxu0 0.0
        %5627 = vmatpush1.msra.mxu0 0.0
        %5628 = vmatprep.subr.mxu0 0.0
        %5629 = vmatpush1.msra.mxu0 0.0
        %5630 = vmatprep.subr.mxu0 0.0
        %5631 = vmatpush1.msra.mxu0 0.0
        %5632 = vmatprep.subr.mxu0 0.0
        %5633 = vmatpush1.msra.mxu0 %v5597
        %5634 = vmatprep.subr.mxu0 0.0
        %5635 = vmatpush2.msra.mxu0 0.0
        %5636 = vmatprep.subr.mxu0 0.0
        %5637 = vmatpush2.msra.mxu0 0.0
        %5638 = vmatprep.subr.mxu0 0.0
        %5639 = vmatpush2.msra.mxu0 0.0
        %5640 = vmatprep.subr.mxu0 0.0
        %5641 = vmatpush2.msra.mxu0 0.0
        %5642 = vmatprep.subr.mxu0 0.0
        %5643 = vmatpush2.msra.mxu0 0.0
        %5644 = vmatprep.subr.mxu0 0.0
        %5645 = vmatpush2.msra.mxu0 0.0
        %5646 = vmatprep.subr.mxu0 0.0
        %5647 = vmatpush2.msra.mxu0 0.0
        %5648 = vmatprep.subr.mxu0 0.0
        %5649 = vmatpush2.msra.mxu0 0.0
        %5650 = vmatprep.subr.mxu0 0.0
        %5651 = vmatpush2.msra.mxu0 0.0
        %5652 = vmatprep.subr.mxu0 0.0
        %5653 = vmatpush2.msra.mxu0 0.0
        %5654 = vmatprep.subr.mxu0 0.0
        %5655 = vmatpush2.msra.mxu0 0.0
        %5656 = vmatprep.subr.mxu0 0.0
        %5657 = vmatpush2.msra.mxu0 0.0
        %5658 = vmatprep.subr.mxu0 0.0
        %5659 = vmatpush2.msra.mxu0 0.0
        %5660 = vmatprep.subr.mxu0 0.0
        %5661 = vmatpush2.msra.mxu0 0.0
        %5662 = vmatprep.subr.mxu0 0.0
        %5663 = vmatpush2.msra.mxu0 0.0
        %5664 = vmatprep.subr.mxu0 0.0
        %5665 = vmatpush2.msra.mxu0 0.0
        %5666 = vmatprep.mubr.f32.mxu0 0.0
        %5667 = vmatmul.mubr.f32.gmra.mxu0 %v5600
        %v5668 = vpop.f32.mrf.mxu0
        %v5669 = vadd.f32 0.0, %v5668
        %v5670 = vpop.f32.mrf.mxu0
        %5671 = vdwg.mxu0
        %5672 = vrot.lane.b32.xlu0 %v890, 96
        %v5673 = vpop.permute.xlu0 %5672
        %v5676 = vsel %vm899, %v3615, 0
        %5678 = vmatprep.subr.mxu0 0.0
        %5679 = vmatpush1.msra.mxu0 0.0
        %5680 = vmatprep.subr.mxu0 0.0
        %5681 = vmatpush1.msra.mxu0 0.0
        %5682 = vmatprep.subr.mxu0 0.0
        %5683 = vmatpush1.msra.mxu0 0.0
        %5684 = vmatprep.subr.mxu0 0.0
        %5685 = vmatpush1.msra.mxu0 0.0
        %5686 = vmatprep.subr.mxu0 0.0
        %5687 = vmatpush1.msra.mxu0 0.0
        %5688 = vmatprep.subr.mxu0 0.0
        %5689 = vmatpush1.msra.mxu0 0.0
        %5690 = vmatprep.subr.mxu0 0.0
        %5691 = vmatpush1.msra.mxu0 0.0
        %5692 = vmatprep.subr.mxu0 0.0
        %5693 = vmatpush1.msra.mxu0 0.0
        %5694 = vmatprep.subr.mxu0 0.0
        %5695 = vmatpush1.msra.mxu0 0.0
        %5696 = vmatprep.subr.mxu0 0.0
        %5697 = vmatpush1.msra.mxu0 0.0
        %5698 = vmatprep.subr.mxu0 0.0
        %5699 = vmatpush1.msra.mxu0 0.0
        %5700 = vmatprep.subr.mxu0 0.0
        %5701 = vmatpush1.msra.mxu0 0.0
        %5702 = vmatprep.subr.mxu0 0.0
        %5703 = vmatpush1.msra.mxu0 0.0
        %5704 = vmatprep.subr.mxu0 0.0
        %5705 = vmatpush1.msra.mxu0 0.0
        %5706 = vmatprep.subr.mxu0 0.0
        %5707 = vmatpush1.msra.mxu0 0.0
        %5708 = vmatprep.subr.mxu0 0.0
        %5709 = vmatpush1.msra.mxu0 %v5673
        %5710 = vmatprep.subr.mxu0 0.0
        %5711 = vmatpush2.msra.mxu0 0.0
        %5712 = vmatprep.subr.mxu0 0.0
        %5713 = vmatpush2.msra.mxu0 0.0
        %5714 = vmatprep.subr.mxu0 0.0
        %5715 = vmatpush2.msra.mxu0 0.0
        %5716 = vmatprep.subr.mxu0 0.0
        %5717 = vmatpush2.msra.mxu0 0.0
        %5718 = vmatprep.subr.mxu0 0.0
        %5719 = vmatpush2.msra.mxu0 0.0
        %5720 = vmatprep.subr.mxu0 0.0
        %5721 = vmatpush2.msra.mxu0 0.0
        %5722 = vmatprep.subr.mxu0 0.0
        %5723 = vmatpush2.msra.mxu0 0.0
        %5724 = vmatprep.subr.mxu0 0.0
        %5725 = vmatpush2.msra.mxu0 0.0
        %5726 = vmatprep.subr.mxu0 0.0
        %5727 = vmatpush2.msra.mxu0 0.0
        %5728 = vmatprep.subr.mxu0 0.0
        %5729 = vmatpush2.msra.mxu0 0.0
        %5730 = vmatprep.subr.mxu0 0.0
        %5731 = vmatpush2.msra.mxu0 0.0
        %5732 = vmatprep.subr.mxu0 0.0
        %5733 = vmatpush2.msra.mxu0 0.0
        %5734 = vmatprep.subr.mxu0 0.0
        %5735 = vmatpush2.msra.mxu0 0.0
        %5736 = vmatprep.subr.mxu0 0.0
        %5737 = vmatpush2.msra.mxu0 0.0
        %5738 = vmatprep.subr.mxu0 0.0
        %5739 = vmatpush2.msra.mxu0 0.0
        %5740 = vmatprep.subr.mxu0 0.0
        %5741 = vmatpush2.msra.mxu0 0.0
        %5742 = vmatprep.mubr.f32.mxu0 0.0
        %5743 = vmatmul.mubr.f32.gmra.mxu0 %v5676
        %v5744 = vpop.f32.mrf.mxu0
        %v5745 = vadd.f32 0.0, %v5744
        %v5746 = vpop.f32.mrf.mxu0
        %5747 = vdwg.mxu0
        %5748 = vrot.lane.b32.xlu0 %v892, 96
        %v5749 = vpop.permute.xlu0 %5748
        %v5752 = vsel %vm899, %v3616, 0
        %5754 = vmatprep.subr.mxu0 0.0
        %5755 = vmatpush1.msra.mxu0 0.0
        %5756 = vmatprep.subr.mxu0 0.0
        %5757 = vmatpush1.msra.mxu0 0.0
        %5758 = vmatprep.subr.mxu0 0.0
        %5759 = vmatpush1.msra.mxu0 0.0
        %5760 = vmatprep.subr.mxu0 0.0
        %5761 = vmatpush1.msra.mxu0 0.0
        %5762 = vmatprep.subr.mxu0 0.0
        %5763 = vmatpush1.msra.mxu0 0.0
        %5764 = vmatprep.subr.mxu0 0.0
        %5765 = vmatpush1.msra.mxu0 0.0
        %5766 = vmatprep.subr.mxu0 0.0
        %5767 = vmatpush1.msra.mxu0 0.0
        %5768 = vmatprep.subr.mxu0 0.0
        %5769 = vmatpush1.msra.mxu0 0.0
        %5770 = vmatprep.subr.mxu0 0.0
        %5771 = vmatpush1.msra.mxu0 0.0
        %5772 = vmatprep.subr.mxu0 0.0
        %5773 = vmatpush1.msra.mxu0 0.0
        %5774 = vmatprep.subr.mxu0 0.0
        %5775 = vmatpush1.msra.mxu0 0.0
        %5776 = vmatprep.subr.mxu0 0.0
        %5777 = vmatpush1.msra.mxu0 0.0
        %5778 = vmatprep.subr.mxu0 0.0
        %5779 = vmatpush1.msra.mxu0 0.0
        %5780 = vmatprep.subr.mxu0 0.0
        %5781 = vmatpush1.msra.mxu0 0.0
        %5782 = vmatprep.subr.mxu0 0.0
        %5783 = vmatpush1.msra.mxu0 0.0
        %5784 = vmatprep.subr.mxu0 0.0
        %5785 = vmatpush1.msra.mxu0 %v5749
        %5786 = vmatprep.subr.mxu0 0.0
        %5787 = vmatpush2.msra.mxu0 0.0
        %5788 = vmatprep.subr.mxu0 0.0
        %5789 = vmatpush2.msra.mxu0 0.0
        %5790 = vmatprep.subr.mxu0 0.0
        %5791 = vmatpush2.msra.mxu0 0.0
        %5792 = vmatprep.subr.mxu0 0.0
        %5793 = vmatpush2.msra.mxu0 0.0
        %5794 = vmatprep.subr.mxu0 0.0
        %5795 = vmatpush2.msra.mxu0 0.0
        %5796 = vmatprep.subr.mxu0 0.0
        %5797 = vmatpush2.msra.mxu0 0.0
        %5798 = vmatprep.subr.mxu0 0.0
        %5799 = vmatpush2.msra.mxu0 0.0
        %5800 = vmatprep.subr.mxu0 0.0
        %5801 = vmatpush2.msra.mxu0 0.0
        %5802 = vmatprep.subr.mxu0 0.0
        %5803 = vmatpush2.msra.mxu0 0.0
        %5804 = vmatprep.subr.mxu0 0.0
        %5805 = vmatpush2.msra.mxu0 0.0
        %5806 = vmatprep.subr.mxu0 0.0
        %5807 = vmatpush2.msra.mxu0 0.0
        %5808 = vmatprep.subr.mxu0 0.0
        %5809 = vmatpush2.msra.mxu0 0.0
        %5810 = vmatprep.subr.mxu0 0.0
        %5811 = vmatpush2.msra.mxu0 0.0
        %5812 = vmatprep.subr.mxu0 0.0
        %5813 = vmatpush2.msra.mxu0 0.0
        %5814 = vmatprep.subr.mxu0 0.0
        %5815 = vmatpush2.msra.mxu0 0.0
        %5816 = vmatprep.subr.mxu0 0.0
        %5817 = vmatpush2.msra.mxu0 0.0
        %5818 = vmatprep.mubr.f32.mxu0 0.0
        %5819 = vmatmul.mubr.f32.gmra.mxu0 %v5752
        %v5820 = vpop.f32.mrf.mxu0
        %v5821 = vadd.f32 0.0, %v5820
        %v5822 = vpop.f32.mrf.mxu0
        %5823 = vdwg.mxu0
        %5824 = vrot.lane.b32.xlu0 %v894, 96
        %v5825 = vpop.permute.xlu0 %5824
        %v5828 = vsel %vm899, %v3617, 0
        %5830 = vmatprep.subr.mxu0 0.0
        %5831 = vmatpush1.msra.mxu0 0.0
        %5832 = vmatprep.subr.mxu0 0.0
        %5833 = vmatpush1.msra.mxu0 0.0
        %5834 = vmatprep.subr.mxu0 0.0
        %5835 = vmatpush1.msra.mxu0 0.0
        %5836 = vmatprep.subr.mxu0 0.0
        %5837 = vmatpush1.msra.mxu0 0.0
        %5838 = vmatprep.subr.mxu0 0.0
        %5839 = vmatpush1.msra.mxu0 0.0
        %5840 = vmatprep.subr.mxu0 0.0
        %5841 = vmatpush1.msra.mxu0 0.0
        %5842 = vmatprep.subr.mxu0 0.0
        %5843 = vmatpush1.msra.mxu0 0.0
        %5844 = vmatprep.subr.mxu0 0.0
        %5845 = vmatpush1.msra.mxu0 0.0
        %5846 = vmatprep.subr.mxu0 0.0
        %5847 = vmatpush1.msra.mxu0 0.0
        %5848 = vmatprep.subr.mxu0 0.0
        %5849 = vmatpush1.msra.mxu0 0.0
        %5850 = vmatprep.subr.mxu0 0.0
        %5851 = vmatpush1.msra.mxu0 0.0
        %5852 = vmatprep.subr.mxu0 0.0
        %5853 = vmatpush1.msra.mxu0 0.0
        %5854 = vmatprep.subr.mxu0 0.0
        %5855 = vmatpush1.msra.mxu0 0.0
        %5856 = vmatprep.subr.mxu0 0.0
        %5857 = vmatpush1.msra.mxu0 0.0
        %5858 = vmatprep.subr.mxu0 0.0
        %5859 = vmatpush1.msra.mxu0 0.0
        %5860 = vmatprep.subr.mxu0 0.0
        %5861 = vmatpush1.msra.mxu0 %v5825
        %5862 = vmatprep.subr.mxu0 0.0
        %5863 = vmatpush2.msra.mxu0 0.0
        %5864 = vmatprep.subr.mxu0 0.0
        %5865 = vmatpush2.msra.mxu0 0.0
        %5866 = vmatprep.subr.mxu0 0.0
        %5867 = vmatpush2.msra.mxu0 0.0
        %5868 = vmatprep.subr.mxu0 0.0
        %5869 = vmatpush2.msra.mxu0 0.0
        %5870 = vmatprep.subr.mxu0 0.0
        %5871 = vmatpush2.msra.mxu0 0.0
        %5872 = vmatprep.subr.mxu0 0.0
        %5873 = vmatpush2.msra.mxu0 0.0
        %5874 = vmatprep.subr.mxu0 0.0
        %5875 = vmatpush2.msra.mxu0 0.0
        %5876 = vmatprep.subr.mxu0 0.0
        %5877 = vmatpush2.msra.mxu0 0.0
        %5878 = vmatprep.subr.mxu0 0.0
        %5879 = vmatpush2.msra.mxu0 0.0
        %5880 = vmatprep.subr.mxu0 0.0
        %5881 = vmatpush2.msra.mxu0 0.0
        %5882 = vmatprep.subr.mxu0 0.0
        %5883 = vmatpush2.msra.mxu0 0.0
        %5884 = vmatprep.subr.mxu0 0.0
        %5885 = vmatpush2.msra.mxu0 0.0
        %5886 = vmatprep.subr.mxu0 0.0
        %5887 = vmatpush2.msra.mxu0 0.0
        %5888 = vmatprep.subr.mxu0 0.0
        %5889 = vmatpush2.msra.mxu0 0.0
        %5890 = vmatprep.subr.mxu0 0.0
        %5891 = vmatpush2.msra.mxu0 0.0
        %5892 = vmatprep.subr.mxu0 0.0
        %5893 = vmatpush2.msra.mxu0 0.0
        %5894 = vmatprep.mubr.f32.mxu0 0.0
        %5895 = vmatmul.mubr.f32.gmra.mxu0 %v5828
        %v5896 = vpop.f32.mrf.mxu0
        %v5897 = vadd.f32 0.0, %v5896
        %v5898 = vpop.f32.mrf.mxu0
        %5899 = vdwg.mxu0
        %5900 = vrot.lane.b32.xlu0 %v896, 96
        %v5901 = vpop.permute.xlu0 %5900
        %v5904 = vsel %vm899, %v3618, 0
        %5906 = vmatprep.subr.mxu0 0.0
        %5907 = vmatpush1.msra.mxu0 0.0
        %5908 = vmatprep.subr.mxu0 0.0
        %5909 = vmatpush1.msra.mxu0 0.0
        %5910 = vmatprep.subr.mxu0 0.0
        %5911 = vmatpush1.msra.mxu0 0.0
        %5912 = vmatprep.subr.mxu0 0.0
        %5913 = vmatpush1.msra.mxu0 0.0
        %5914 = vmatprep.subr.mxu0 0.0
        %5915 = vmatpush1.msra.mxu0 0.0
        %5916 = vmatprep.subr.mxu0 0.0
        %5917 = vmatpush1.msra.mxu0 0.0
        %5918 = vmatprep.subr.mxu0 0.0
        %5919 = vmatpush1.msra.mxu0 0.0
        %5920 = vmatprep.subr.mxu0 0.0
        %5921 = vmatpush1.msra.mxu0 0.0
        %5922 = vmatprep.subr.mxu0 0.0
        %5923 = vmatpush1.msra.mxu0 0.0
        %5924 = vmatprep.subr.mxu0 0.0
        %5925 = vmatpush1.msra.mxu0 0.0
        %5926 = vmatprep.subr.mxu0 0.0
        %5927 = vmatpush1.msra.mxu0 0.0
        %5928 = vmatprep.subr.mxu0 0.0
        %5929 = vmatpush1.msra.mxu0 0.0
        %5930 = vmatprep.subr.mxu0 0.0
        %5931 = vmatpush1.msra.mxu0 0.0
        %5932 = vmatprep.subr.mxu0 0.0
        %5933 = vmatpush1.msra.mxu0 0.0
        %5934 = vmatprep.subr.mxu0 0.0
        %5935 = vmatpush1.msra.mxu0 0.0
        %5936 = vmatprep.subr.mxu0 0.0
        %5937 = vmatpush1.msra.mxu0 %v5901
        %5938 = vmatprep.subr.mxu0 0.0
        %5939 = vmatpush2.msra.mxu0 0.0
        %5940 = vmatprep.subr.mxu0 0.0
        %5941 = vmatpush2.msra.mxu0 0.0
        %5942 = vmatprep.subr.mxu0 0.0
        %5943 = vmatpush2.msra.mxu0 0.0
        %5944 = vmatprep.subr.mxu0 0.0
        %5945 = vmatpush2.msra.mxu0 0.0
        %5946 = vmatprep.subr.mxu0 0.0
        %5947 = vmatpush2.msra.mxu0 0.0
        %5948 = vmatprep.subr.mxu0 0.0
        %5949 = vmatpush2.msra.mxu0 0.0
        %5950 = vmatprep.subr.mxu0 0.0
        %5951 = vmatpush2.msra.mxu0 0.0
        %5952 = vmatprep.subr.mxu0 0.0
        %5953 = vmatpush2.msra.mxu0 0.0
        %5954 = vmatprep.subr.mxu0 0.0
        %5955 = vmatpush2.msra.mxu0 0.0
        %5956 = vmatprep.subr.mxu0 0.0
        %5957 = vmatpush2.msra.mxu0 0.0
        %5958 = vmatprep.subr.mxu0 0.0
        %5959 = vmatpush2.msra.mxu0 0.0
        %5960 = vmatprep.subr.mxu0 0.0
        %5961 = vmatpush2.msra.mxu0 0.0
        %5962 = vmatprep.subr.mxu0 0.0
        %5963 = vmatpush2.msra.mxu0 0.0
        %5964 = vmatprep.subr.mxu0 0.0
        %5965 = vmatpush2.msra.mxu0 0.0
        %5966 = vmatprep.subr.mxu0 0.0
        %5967 = vmatpush2.msra.mxu0 0.0
        %5968 = vmatprep.subr.mxu0 0.0
        %5969 = vmatpush2.msra.mxu0 0.0
        %5970 = vmatprep.mubr.f32.mxu0 0.0
        %5971 = vmatmul.mubr.f32.gmra.mxu0 %v5904
        %v5972 = vpop.f32.mrf.mxu0
        %v5973 = vadd.f32 0.0, %v5972
        %v5974 = vpop.f32.mrf.mxu0
        %5975 = vdwg.mxu0
        %5976 = vrot.lane.b32.xlu0 %v898, 96
        %v5977 = vpop.permute.xlu0 %5976
        %v5980 = vsel %vm899, %v3619, 0
        %5982 = vmatprep.subr.mxu0 0.0
        %5983 = vmatpush1.msra.mxu0 0.0
        %5984 = vmatprep.subr.mxu0 0.0
        %5985 = vmatpush1.msra.mxu0 0.0
        %5986 = vmatprep.subr.mxu0 0.0
        %5987 = vmatpush1.msra.mxu0 0.0
        %5988 = vmatprep.subr.mxu0 0.0
        %5989 = vmatpush1.msra.mxu0 0.0
        %5990 = vmatprep.subr.mxu0 0.0
        %5991 = vmatpush1.msra.mxu0 0.0
        %5992 = vmatprep.subr.mxu0 0.0
        %5993 = vmatpush1.msra.mxu0 0.0
        %5994 = vmatprep.subr.mxu0 0.0
        %5995 = vmatpush1.msra.mxu0 0.0
        %5996 = vmatprep.subr.mxu0 0.0
        %5997 = vmatpush1.msra.mxu0 0.0
        %5998 = vmatprep.subr.mxu0 0.0
        %5999 = vmatpush1.msra.mxu0 0.0
        %6000 = vmatprep.subr.mxu0 0.0
        %6001 = vmatpush1.msra.mxu0 0.0
        %6002 = vmatprep.subr.mxu0 0.0
        %6003 = vmatpush1.msra.mxu0 0.0
        %6004 = vmatprep.subr.mxu0 0.0
        %6005 = vmatpush1.msra.mxu0 0.0
        %6006 = vmatprep.subr.mxu0 0.0
        %6007 = vmatpush1.msra.mxu0 0.0
        %6008 = vmatprep.subr.mxu0 0.0
        %6009 = vmatpush1.msra.mxu0 0.0
        %6010 = vmatprep.subr.mxu0 0.0
        %6011 = vmatpush1.msra.mxu0 0.0
        %6012 = vmatprep.subr.mxu0 0.0
        %6013 = vmatpush1.msra.mxu0 %v5977
        %6014 = vmatprep.subr.mxu0 0.0
        %6015 = vmatpush2.msra.mxu0 0.0
        %6016 = vmatprep.subr.mxu0 0.0
        %6017 = vmatpush2.msra.mxu0 0.0
        %6018 = vmatprep.subr.mxu0 0.0
        %6019 = vmatpush2.msra.mxu0 0.0
        %6020 = vmatprep.subr.mxu0 0.0
        %6021 = vmatpush2.msra.mxu0 0.0
        %6022 = vmatprep.subr.mxu0 0.0
        %6023 = vmatpush2.msra.mxu0 0.0
        %6024 = vmatprep.subr.mxu0 0.0
        %6025 = vmatpush2.msra.mxu0 0.0
        %6026 = vmatprep.subr.mxu0 0.0
        %6027 = vmatpush2.msra.mxu0 0.0
        %6028 = vmatprep.subr.mxu0 0.0
        %6029 = vmatpush2.msra.mxu0 0.0
        %6030 = vmatprep.subr.mxu0 0.0
        %6031 = vmatpush2.msra.mxu0 0.0
        %6032 = vmatprep.subr.mxu0 0.0
        %6033 = vmatpush2.msra.mxu0 0.0
        %6034 = vmatprep.subr.mxu0 0.0
        %6035 = vmatpush2.msra.mxu0 0.0
        %6036 = vmatprep.subr.mxu0 0.0
        %6037 = vmatpush2.msra.mxu0 0.0
        %6038 = vmatprep.subr.mxu0 0.0
        %6039 = vmatpush2.msra.mxu0 0.0
        %6040 = vmatprep.subr.mxu0 0.0
        %6041 = vmatpush2.msra.mxu0 0.0
        %6042 = vmatprep.subr.mxu0 0.0
        %6043 = vmatpush2.msra.mxu0 0.0
        %6044 = vmatprep.subr.mxu0 0.0
        %6045 = vmatpush2.msra.mxu0 0.0
        %6046 = vmatprep.mubr.f32.mxu0 0.0
        %6047 = vmatmul.mubr.f32.gmra.mxu0 %v5980
        %v6048 = vpop.f32.mrf.mxu0
        %v6049 = vadd.f32 0.0, %v6048
        %v6050 = vpop.f32.mrf.mxu0
        %6051 = vdwg.mxu0
        %6060 = vrot.lane.b32.xlu0 %v4301, 8
        %v6061 = vpop.permute.xlu0 %6060
        %6062 = vrot.lane.b32.xlu0 %v4377, 8
        %v6063 = vpop.permute.xlu0 %6062
        %6064 = vrot.lane.b32.xlu0 %v4453, 8
        %v6065 = vpop.permute.xlu0 %6064
        %6066 = vrot.lane.b32.xlu0 %v4529, 8
        %v6067 = vpop.permute.xlu0 %6066
        %6068 = vrot.lane.b32.xlu0 %v4605, 8
        %v6069 = vpop.permute.xlu0 %6068
        %6070 = vrot.lane.b32.xlu0 %v4681, 8
        %v6071 = vpop.permute.xlu0 %6070
        %6072 = vrot.lane.b32.xlu0 %v4757, 8
        %v6073 = vpop.permute.xlu0 %6072
        %6074 = vrot.lane.b32.xlu0 %v4833, 8
        %v6075 = vpop.permute.xlu0 %6074
        %6092 = vrot.lane.b32.xlu0 %v4909, 16
        %v6093 = vpop.permute.xlu0 %6092
        %6094 = vrot.lane.b32.xlu0 %v4985, 16
        %v6095 = vpop.permute.xlu0 %6094
        %6096 = vrot.lane.b32.xlu0 %v5061, 16
        %v6097 = vpop.permute.xlu0 %6096
        %6098 = vrot.lane.b32.xlu0 %v5137, 16
        %v6099 = vpop.permute.xlu0 %6098
        %6100 = vrot.lane.b32.xlu0 %v5213, 16
        %v6101 = vpop.permute.xlu0 %6100
        %6102 = vrot.lane.b32.xlu0 %v5289, 16
        %v6103 = vpop.permute.xlu0 %6102
        %6104 = vrot.lane.b32.xlu0 %v5365, 16
        %v6105 = vpop.permute.xlu0 %6104
        %6106 = vrot.lane.b32.xlu0 %v5441, 16
        %v6107 = vpop.permute.xlu0 %6106
        %6124 = vrot.lane.b32.xlu0 %v5517, 24
        %v6125 = vpop.permute.xlu0 %6124
        %6126 = vrot.lane.b32.xlu0 %v5593, 24
        %v6127 = vpop.permute.xlu0 %6126
        %6128 = vrot.lane.b32.xlu0 %v5669, 24
        %v6129 = vpop.permute.xlu0 %6128
        %6130 = vrot.lane.b32.xlu0 %v5745, 24
        %v6131 = vpop.permute.xlu0 %6130
        %6132 = vrot.lane.b32.xlu0 %v5821, 24
        %v6133 = vpop.permute.xlu0 %6132
        %6134 = vrot.lane.b32.xlu0 %v5897, 24
        %v6135 = vpop.permute.xlu0 %6134
        %6136 = vrot.lane.b32.xlu0 %v5973, 24
        %v6137 = vpop.permute.xlu0 %6136
        %6138 = vrot.lane.b32.xlu0 %v6049, 24
        %v6139 = vpop.permute.xlu0 %6138
        %v6148 = vsel %vm899, %v3693, %v6061
        %v6149 = vsel %vm899, %v3769, %v6063
        %v6150 = vsel %vm899, %v3845, %v6065
        %v6151 = vsel %vm899, %v3921, %v6067
        %v6152 = vsel %vm899, %v3997, %v6069
        %v6153 = vsel %vm899, %v4073, %v6071
        %v6154 = vsel %vm899, %v4149, %v6073
        %v6155 = vsel %vm899, %v4225, %v6075
        %v6156 = vsel %vm344, %v6148, %v6093
        %v6157 = vsel %vm344, %v6149, %v6095
        %v6158 = vsel %vm344, %v6150, %v6097
        %v6159 = vsel %vm344, %v6151, %v6099
        %v6160 = vsel %vm344, %v6152, %v6101
        %v6161 = vsel %vm344, %v6153, %v6103
        %v6162 = vsel %vm344, %v6154, %v6105
        %v6163 = vsel %vm344, %v6155, %v6107
        %vm6164 = vcmask 195584
        %v6165 = vsel %vm6164, %v6156, %v6125
        %v6166 = vsel %vm6164, %v6157, %v6127
        %v6167 = vsel %vm6164, %v6158, %v6129
        %v6168 = vsel %vm6164, %v6159, %v6131
        %v6169 = vsel %vm6164, %v6160, %v6133
        %v6170 = vsel %vm6164, %v6161, %v6135
        %v6171 = vsel %vm6164, %v6162, %v6137
        %v6172 = vsel %vm6164, %v6163, %v6139
        %v6173 = vld [vmem:[%s3 + $0x3] sm:$0x1]
        %v6174 = vld [vmem:[%s5] sm:$0xff]
        %v6175 = vld [vmem:[%s5 + $0x8] sm:$0xff]
        %v6176 = vld [vmem:[%s5 + $0x10] sm:$0xff]
        %v6177 = vld [vmem:[%s5 + $0x18] sm:$0xff]
        %v6178 = vlaneseq
        %v6179 = vshrl.u32 %v6178, 7
        %v6180 = vsub.s32 0, %v6179
        %v6181 = vrot.slane %v6173, %v6180
        %6183 = vrot.lane.b32.xlu0 %v6181, 96
        %v6184 = vpop.permute.xlu0 %6183
        %vm6186 = vcmask 261120
        %v6188 = vsel %vm6186, %v6165, 0
        %v6191 = vsel %vm6186, %v6166, 0
        %v6194 = vsel %vm6186, %v6167, 0
        %v6197 = vsel %vm6186, %v6168, 0
        %v6200 = vsel %vm6186, %v6169, 0
        %v6203 = vsel %vm6186, %v6170, 0
        %v6206 = vsel %vm6186, %v6171, 0
        %v6209 = vsel %vm6186, %v6172, 0
        %6211 = vmatprep.subr.mxu0 0.0
        %6212 = vmatpush1.msra.mxu0 0.0
        %6213 = vmatprep.subr.mxu0 0.0
        %6214 = vmatpush1.msra.mxu0 0.0
        %6215 = vmatprep.subr.mxu0 0.0
        %6216 = vmatpush1.msra.mxu0 0.0
        %6217 = vmatprep.subr.mxu0 0.0
        %6218 = vmatpush1.msra.mxu0 0.0
        %6219 = vmatprep.subr.mxu0 0.0
        %6220 = vmatpush1.msra.mxu0 0.0
        %6221 = vmatprep.subr.mxu0 0.0
        %6222 = vmatpush1.msra.mxu0 0.0
        %6223 = vmatprep.subr.mxu0 0.0
        %6224 = vmatpush1.msra.mxu0 0.0
        %6225 = vmatprep.subr.mxu0 0.0
        %6226 = vmatpush1.msra.mxu0 0.0
        %6227 = vmatprep.subr.mxu0 0.0
        %6228 = vmatpush1.msra.mxu0 0.0
        %6229 = vmatprep.subr.mxu0 0.0
        %6230 = vmatpush1.msra.mxu0 0.0
        %6231 = vmatprep.subr.mxu0 0.0
        %6232 = vmatpush1.msra.mxu0 0.0
        %6233 = vmatprep.subr.mxu0 0.0
        %6234 = vmatpush1.msra.mxu0 0.0
        %6235 = vmatprep.subr.mxu0 0.0
        %6236 = vmatpush1.msra.mxu0 %v6177
        %6237 = vmatprep.subr.mxu0 0.0
        %6238 = vmatpush1.msra.mxu0 %v6176
        %6239 = vmatprep.subr.mxu0 0.0
        %6240 = vmatpush1.msra.mxu0 %v6175
        %6241 = vmatprep.subr.mxu0 0.0
        %6242 = vmatpush1.msra.mxu0 %v6174
        %6243 = vmatprep.subr.mxu0 0.0
        %6244 = vmatpush2.msra.mxu0 0.0
        %6245 = vmatprep.subr.mxu0 0.0
        %6246 = vmatpush2.msra.mxu0 0.0
        %6247 = vmatprep.subr.mxu0 0.0
        %6248 = vmatpush2.msra.mxu0 0.0
        %6249 = vmatprep.subr.mxu0 0.0
        %6250 = vmatpush2.msra.mxu0 0.0
        %6251 = vmatprep.subr.mxu0 0.0
        %6252 = vmatpush2.msra.mxu0 0.0
        %6253 = vmatprep.subr.mxu0 0.0
        %6254 = vmatpush2.msra.mxu0 0.0
        %6255 = vmatprep.subr.mxu0 0.0
        %6256 = vmatpush2.msra.mxu0 0.0
        %6257 = vmatprep.subr.mxu0 0.0
        %6258 = vmatpush2.msra.mxu0 0.0
        %6259 = vmatprep.subr.mxu0 0.0
        %6260 = vmatpush2.msra.mxu0 0.0
        %6261 = vmatprep.subr.mxu0 0.0
        %6262 = vmatpush2.msra.mxu0 0.0
        %6263 = vmatprep.subr.mxu0 0.0
        %6264 = vmatpush2.msra.mxu0 0.0
        %6265 = vmatprep.subr.mxu0 0.0
        %6266 = vmatpush2.msra.mxu0 0.0
        %6267 = vmatprep.subr.mxu0 0.0
        %6268 = vmatpush2.msra.mxu0 0.0
        %6269 = vmatprep.subr.mxu0 0.0
        %6270 = vmatpush2.msra.mxu0 0.0
        %6271 = vmatprep.subr.mxu0 0.0
        %6272 = vmatpush2.msra.mxu0 0.0
        %6273 = vmatprep.subr.mxu0 0.0
        %6274 = vmatpush2.msra.mxu0 0.0
        %6275 = vmatprep.mubr.f32.mxu0 0.0
        %6276 = vmatmul.mubr.f32.gmra.mxu0 %v6188
        %v6277 = vpop.f32.mrf.mxu0
        %v6278 = vadd.f32 %v6184, %v6277
        %v6279 = vpop.f32.mrf.mxu0
        %6280 = vmatprep.mubr.f32.mxu0 0.0
        %6281 = vmatmul.mubr.f32.gmra.mxu0 %v6191
        %v6282 = vpop.f32.mrf.mxu0
        %v6283 = vadd.f32 %v6184, %v6282
        %v6284 = vpop.f32.mrf.mxu0
        %6285 = vmatprep.mubr.f32.mxu0 0.0
        %6286 = vmatmul.mubr.f32.gmra.mxu0 %v6194
        %v6287 = vpop.f32.mrf.mxu0
        %v6288 = vadd.f32 %v6184, %v6287
        %v6289 = vpop.f32.mrf.mxu0
        %6290 = vmatprep.mubr.f32.mxu0 0.0
        %6291 = vmatmul.mubr.f32.gmra.mxu0 %v6197
        %v6292 = vpop.f32.mrf.mxu0
        %v6293 = vadd.f32 %v6184, %v6292
        %v6294 = vpop.f32.mrf.mxu0
        %6295 = vmatprep.mubr.f32.mxu0 0.0
        %6296 = vmatmul.mubr.f32.gmra.mxu0 %v6200
        %v6297 = vpop.f32.mrf.mxu0
        %v6298 = vadd.f32 %v6184, %v6297
        %v6299 = vpop.f32.mrf.mxu0
        %6300 = vmatprep.mubr.f32.mxu0 0.0
        %6301 = vmatmul.mubr.f32.gmra.mxu0 %v6203
        %v6302 = vpop.f32.mrf.mxu0
        %v6303 = vadd.f32 %v6184, %v6302
        %v6304 = vpop.f32.mrf.mxu0
        %6305 = vmatprep.mubr.f32.mxu0 0.0
        %6306 = vmatmul.mubr.f32.gmra.mxu0 %v6206
        %v6307 = vpop.f32.mrf.mxu0
        %v6308 = vadd.f32 %v6184, %v6307
        %v6309 = vpop.f32.mrf.mxu0
        %6310 = vmatprep.mubr.f32.mxu0 0.0
        %6311 = vmatmul.mubr.f32.gmra.mxu0 %v6209
        %v6312 = vpop.f32.mrf.mxu0
        %v6313 = vadd.f32 %v6184, %v6312
        %v6314 = vpop.f32.mrf.mxu0
        %6315 = vdwg.mxu0
        %v6324 = vrot.slane %v6283, 7
        %vm6325 = vcmask 1041409
        %v6326 = vsel %vm6325, %v6324, %v6278
        %v6327 = vrot.slane %v6288, 6
        %vm6328 = vcmask 1042434
        %v6329 = vsel %vm6328, %v6327, %v6326
        %v6330 = vrot.slane %v6293, 5
        %vm6331 = vcmask 1043459
        %v6332 = vsel %vm6331, %v6330, %v6329
        %v6333 = vrot.slane %v6298, 4
        %vm6334 = vcmask 1044484
        %v6335 = vsel %vm6334, %v6333, %v6332
        %v6336 = vrot.slane %v6303, 3
        %vm6337 = vcmask 1045509
        %v6338 = vsel %vm6337, %v6336, %v6335
        %v6339 = vrot.slane %v6308, 2
        %vm6340 = vcmask 1046534
        %v6341 = vsel %vm6340, %v6339, %v6338
        %v6342 = vrot.slane %v6313, 1
        %vm6343 = vcmask 1047559
        %v6344 = vsel %vm6343, %v6342, %v6341
        %v6346 = vrot.slane %v6278, 1
        %v6347 = vsel %vm6325, %v6283, %v6346
        %v6348 = vrot.slane %v6288, 7
        %v6349 = vsel %vm6328, %v6348, %v6347
        %v6350 = vrot.slane %v6293, 6
        %v6351 = vsel %vm6331, %v6350, %v6349
        %v6352 = vrot.slane %v6298, 5
        %v6353 = vsel %vm6334, %v6352, %v6351
        %v6354 = vrot.slane %v6303, 4
        %v6355 = vsel %vm6337, %v6354, %v6353
        %v6356 = vrot.slane %v6308, 3
        %v6357 = vsel %vm6340, %v6356, %v6355
        %v6358 = vrot.slane %v6313, 2
        %v6359 = vsel %vm6343, %v6358, %v6357
        %6360 = vrot.lane.b32.xlu0 %v6359, 16
        %v6361 = vpop.permute.xlu0 %6360
        %v6363 = vrot.slane %v6278, 2
        %v6364 = vrot.slane %v6283, 1
        %v6365 = vsel %vm6325, %v6364, %v6363
        %v6366 = vsel %vm6328, %v6288, %v6365
        %v6367 = vrot.slane %v6293, 7
        %v6368 = vsel %vm6331, %v6367, %v6366
        %v6369 = vrot.slane %v6298, 6
        %v6370 = vsel %vm6334, %v6369, %v6368
        %v6371 = vrot.slane %v6303, 5
        %v6372 = vsel %vm6337, %v6371, %v6370
        %v6373 = vrot.slane %v6308, 4
        %v6374 = vsel %vm6340, %v6373, %v6372
        %v6375 = vrot.slane %v6313, 3
        %v6376 = vsel %vm6343, %v6375, %v6374
        %6377 = vrot.lane.b32.xlu0 %v6376, 32
        %v6378 = vpop.permute.xlu0 %6377
        %v6380 = vrot.slane %v6278, 3
        %v6381 = vrot.slane %v6283, 2
        %v6382 = vsel %vm6325, %v6381, %v6380
        %v6383 = vrot.slane %v6288, 1
        %v6384 = vsel %vm6328, %v6383, %v6382
        %v6385 = vsel %vm6331, %v6293, %v6384
        %v6386 = vrot.slane %v6298, 7
        %v6387 = vsel %vm6334, %v6386, %v6385
        %v6388 = vrot.slane %v6303, 6
        %v6389 = vsel %vm6337, %v6388, %v6387
        %v6390 = vrot.slane %v6308, 5
        %v6391 = vsel %vm6340, %v6390, %v6389
        %v6392 = vrot.slane %v6313, 4
        %v6393 = vsel %vm6343, %v6392, %v6391
        %6394 = vrot.lane.b32.xlu0 %v6393, 48
        %v6395 = vpop.permute.xlu0 %6394
        %v6397 = vrot.slane %v6278, 4
        %v6398 = vrot.slane %v6283, 3
        %v6399 = vsel %vm6325, %v6398, %v6397
        %v6400 = vrot.slane %v6288, 2
        %v6401 = vsel %vm6328, %v6400, %v6399
        %v6402 = vrot.slane %v6293, 1
        %v6403 = vsel %vm6331, %v6402, %v6401
        %v6404 = vsel %vm6334, %v6298, %v6403
        %v6405 = vrot.slane %v6303, 7
        %v6406 = vsel %vm6337, %v6405, %v6404
        %v6407 = vrot.slane %v6308, 6
        %v6408 = vsel %vm6340, %v6407, %v6406
        %v6409 = vrot.slane %v6313, 5
        %v6410 = vsel %vm6343, %v6409, %v6408
        %6411 = vrot.lane.b32.xlu0 %v6410, 64
        %v6412 = vpop.permute.xlu0 %6411
        %v6414 = vrot.slane %v6278, 5
        %v6415 = vrot.slane %v6283, 4
        %v6416 = vsel %vm6325, %v6415, %v6414
        %v6417 = vrot.slane %v6288, 3
        %v6418 = vsel %vm6328, %v6417, %v6416
        %v6419 = vrot.slane %v6293, 2
        %v6420 = vsel %vm6331, %v6419, %v6418
        %v6421 = vrot.slane %v6298, 1
        %v6422 = vsel %vm6334, %v6421, %v6420
        %v6423 = vsel %vm6337, %v6303, %v6422
        %v6424 = vrot.slane %v6308, 7
        %v6425 = vsel %vm6340, %v6424, %v6423
        %v6426 = vrot.slane %v6313, 6
        %v6427 = vsel %vm6343, %v6426, %v6425
        %6428 = vrot.lane.b32.xlu0 %v6427, 80
        %v6429 = vpop.permute.xlu0 %6428
        %v6431 = vrot.slane %v6278, 6
        %v6432 = vrot.slane %v6283, 5
        %v6433 = vsel %vm6325, %v6432, %v6431
        %v6434 = vrot.slane %v6288, 4
        %v6435 = vsel %vm6328, %v6434, %v6433
        %v6436 = vrot.slane %v6293, 3
        %v6437 = vsel %vm6331, %v6436, %v6435
        %v6438 = vrot.slane %v6298, 2
        %v6439 = vsel %vm6334, %v6438, %v6437
        %v6440 = vrot.slane %v6303, 1
        %v6441 = vsel %vm6337, %v6440, %v6439
        %v6442 = vsel %vm6340, %v6308, %v6441
        %v6443 = vrot.slane %v6313, 7
        %v6444 = vsel %vm6343, %v6443, %v6442
        %6445 = vrot.lane.b32.xlu0 %v6444, 96
        %v6446 = vpop.permute.xlu0 %6445
        %v6448 = vrot.slane %v6278, 7
        %v6449 = vrot.slane %v6283, 6
        %v6450 = vsel %vm6325, %v6449, %v6448
        %v6451 = vrot.slane %v6288, 5
        %v6452 = vsel %vm6328, %v6451, %v6450
        %v6453 = vrot.slane %v6293, 4
        %v6454 = vsel %vm6331, %v6453, %v6452
        %v6455 = vrot.slane %v6298, 3
        %v6456 = vsel %vm6334, %v6455, %v6454
        %v6457 = vrot.slane %v6303, 2
        %v6458 = vsel %vm6337, %v6457, %v6456
        %v6459 = vrot.slane %v6308, 1
        %v6460 = vsel %vm6340, %v6459, %v6458
        %v6461 = vsel %vm6343, %v6313, %v6460
        %6462 = vrot.lane.b32.xlu0 %v6461, 112
        %v6463 = vpop.permute.xlu0 %6462
        %v6465 = vsel %vm344, %v6344, %v6361
        %v6466 = vsel %vm6186, %v6465, %v6378
        %vm6467 = vcmask 392192
        %v6468 = vsel %vm6467, %v6466, %v6395
        %vm6469 = vcmask 523264
        %v6470 = vsel %vm6469, %v6468, %v6412
        %vm6471 = vcmask 654336
        %v6472 = vsel %vm6471, %v6470, %v6429
        %vm6473 = vcmask 785408
        %v6474 = vsel %vm6473, %v6472, %v6446
        %vm6475 = vcmask 916480
        %v6476 = vsel %vm6475, %v6474, %v6463
        %6477 = vst [vmem:[%s301] sm:$0xff] %v6476
        %s6478 = sand.u32 %s172, 1
        %s6479 = scalar_lea.sflag [#allocation4], %s6478
        %s6480 = sand.u32 %s172, 1
        %s6481 = smul.addr %s6480, 8
        %s6482 = scalar_lea.vmem [#allocation5], %s6481
        // Predicated region
        $region49: #{tpu_custom_call.1} parent=43 // pred_check
          %p6483 = pneg %p182
        $region50: #{tpu_custom_call.1} parent=43 // pred_check_branch
          %6485 = sbr.rel (%p6483) target = $region52
        $region51: #{tpu_custom_call.1} parent=43 // pred_region
          %s6487 = ssub.s32 128, 128
          %6488 = vsyncadd %s6479, %s6487
          %s6489 = smul.addr %s23, 128
          %s6490 = scalar_lea.hbm %s6, %s6489
          %s6492 = sshll.u32 %s6482, 4
          %s6493 = int_to_ptr.vmem [resolvable:$true] %s6492
          %6495 = dma.vmem_to_hbm [thread:$0]  %s6493, 128, %s6490, %s6479
        $region52: #{tpu_custom_call.1} parent=43 // pred_fallthru
          _
      $region44: #{tpu_custom_call.1} parent=5 // pred_fallthru
        _
      %p6496 = scmp.le.s32.totalorder 2, %s18
      // Predicated region
      $region53: #{tpu_custom_call.1} parent=5 // pred_check
        %p6497 = pneg %p6496
      $region54: #{tpu_custom_call.1} parent=5 // pred_check_branch
        %6499 = sbr.rel (%p6497) target = $region56
      $region55: #{tpu_custom_call.1} parent=5 // pred_region
        %s6500 = ssub.s32 %s18, 2
        // Predicated region
        $region57: #{tpu_custom_call.1} parent=55 // pred_check
          %p6501 = pneg %p188
        $region58: #{tpu_custom_call.1} parent=55 // pred_check_branch
          %6503 = sbr.rel (%p6501) target = $region60
        $region59: #{tpu_custom_call.1} parent=55 // pred_region
          %s6504 = sand.u32 %s173, 1
          %s6505 = scalar_lea.sflag [#allocation4], %s6504
          %s6506 = sand.u32 %s173, 1
          %s6507 = smul.addr %s6506, 8
          %s6508 = scalar_lea.vmem [#allocation5], %s6507
          %6509 = dma.done %s6505, 128
        $region60: #{tpu_custom_call.1} parent=55 // pred_fallthru
          _
      $region56: #{tpu_custom_call.1} parent=5 // pred_fallthru
        _
    $region6: #{tpu_custom_call.1} parent=1 // loop_footer
      %s22 = sadd.s32 1, %s18
    $region7: #{tpu_custom_call.1} parent=1 // loop_footer_branch
      %17 = sbr.rel target = $region3
    $region8: #{tpu_custom_call.1} parent=1 // loop_exit
      _
    %6510 = vsyncpa [#allocation3], 1
    %s6511 = scalar_lea.sflag [#allocation3], 1
    %6512 = vsyncpa %s6511, 1
    %6513 = vsyncpa [#allocation4], 1
    %s6514 = scalar_lea.sflag [#allocation4], 1
    %6515 = vsyncpa %s6514, 1

</llo_original>
